<compile_context>
chip_gen: v6e
topology: v6e:2x2x1
jax: 0.10.0
libtpu: 0.0.40
codegen_flags: <defaults>
</compile_context>

<pallas_src>
import functools

import jax
import jax.numpy as jnp
from jax.experimental import pallas as pl
from jax.experimental.pallas import tpu as pltpu

WINDOW = 8
EPS = 1e-5
INV_SQRT2 = 0.7071067811865476

# Flip to jnp.bfloat16 on v6e/v7x for ~2x MXU throughput (accumulation stays f32).
MATMUL_DTYPE = jnp.float32


# ----------------------------- fused Pallas kernel ---------------------------

def fused_block_kernel(x_ref, g_ref, b_ref,
                       wqkv_ref, wo_ref, bo_ref,
                       w1_ref, b1_ref, w2_ref, b2_ref,
                       o_ref, *, heads, num_windows):
    N, C = x_ref.shape
    NW = num_windows
    T = WINDOW * WINDOW
    d = C // heads

    gamma = g_ref[...].astype(jnp.float32)            # (1, C)
    beta = b_ref[...].astype(jnp.float32)             # (1, C)

    def mm(a, w):
        return jnp.dot(a.astype(MATMUL_DTYPE), w.astype(MATMUL_DTYPE),
                       preferred_element_type=jnp.float32)

    def groupnorm(t):
        # GroupNorm(num_groups=1): single-pass stats over all tokens & channels.
        mean = jnp.mean(t)
        var = jnp.mean(t * t) - mean * mean
        return (t - mean) * jax.lax.rsqrt(var + EPS) * gamma + beta

    xw = x_ref[...].astype(jnp.float32)                # (N, C) window-major tokens

    # ---- attention branch: x + to_out(attn(GN1(x))) ----
    n1 = groupnorm(xw)
    qkv = mm(n1, wqkv_ref[...])                        # (N, 3C); scale already in Q cols

    def head_stack(col0):
        # (N, 3C) -> (heads*NW, T, d): per-head lane slice + free leading reshape,
        # stacked along the cheap leading axis so attention runs batched over
        # every (head, window) pair in one einsum.
        return jnp.concatenate(
            [qkv[:, col0 + h * d: col0 + (h + 1) * d].reshape(NW, T, d)
             for h in range(heads)], axis=0)

    q_all = head_stack(0)
    k_all = head_stack(C)
    v_all = head_stack(2 * C)

    s = jnp.einsum("bid,bjd->bij", q_all.astype(MATMUL_DTYPE),
                   k_all.astype(MATMUL_DTYPE),
                   preferred_element_type=jnp.float32)         # (heads*NW, T, T)
    s = s - jnp.max(s, axis=-1, keepdims=True)
    p = jnp.exp(s)
    denom = jnp.sum(p, axis=-1, keepdims=True)
    inv = pl.reciprocal(denom, approx=True)
    inv = inv * (2.0 - denom * inv)                    # one Newton step -> f32-accurate
    p = p * inv
    o_hw = jnp.einsum("bij,bjd->bid", p.astype(MATMUL_DTYPE),
                      v_all.astype(MATMUL_DTYPE),
                      preferred_element_type=jnp.float32)      # (heads*NW, T, d)

    # Output projection: accumulate per-head row-blocks of W_out.  This equals
    # concat(head outputs) @ (C, C) exactly, without a minor-dim concat.
    acc = bo_ref[...].astype(jnp.float32)              # (1, C); broadcasts over tokens
    for h in range(heads):                             # heads is small & static
        acc = acc + mm(o_hw[h * NW:(h + 1) * NW].reshape(N, d), wo_ref[h])
    x1 = xw + acc                                      # residual (window-major order)

    # ---- FFN branch: x1 + W2(gelu(W1(GN2(x1)))) ----
    n2 = groupnorm(x1)
    hid = mm(n2, w1_ref[...]) + b1_ref[...]
    hid = 0.5 * hid * (1.0 + jax.lax.erf(hid * INV_SQRT2))     # exact GELU
    y = x1 + mm(hid, w2_ref[...]) + b2_ref[...]

    o_ref[...] = y.astype(o_ref.dtype)


# ----------------------------- wrapper ---------------------------------------

def transformer_block(x_nchw, p, heads):
    B, C, H, W = x_nchw.shape
    nh, nw = H // WINDOW, W // WINDOW
    NW = nh * nw
    N = H * W
    d = C // heads
    scale = d ** (-0.5)

    # Raster NCHW -> window-major tokens (B, N, C).  This and its inverse below
    # are the only layout shuffles in the forward pass; each is a single fused
    # XLA copy in HBM instead of in-kernel VMEM relayouts.
    xw = x_nchw.reshape(B, C, nh, WINDOW, nw, WINDOW)
    xw = xw.transpose(0, 2, 4, 3, 5, 1).reshape(B, N, C)

    # Fused QKV weight (C, 3C) with the attention scale folded into Q columns.
    col_scale = jnp.concatenate([jnp.full((C,), scale, jnp.float32),
                                 jnp.ones((2 * C,), jnp.float32)])
    wqkv = p["wqkv"].T * col_scale[None, :]
    # Per-head row blocks of the output projection: y += o_h @ wo[h].
    wo = p["wout"].T.reshape(heads, d, C)

    kernel = functools.partial(fused_block_kernel, heads=heads, num_windows=NW)
    tok_spec = pl.BlockSpec((pl.Squeezed(), N, C), lambda b: (b, 0, 0))
    const2 = lambda b: (0, 0)
    const3 = lambda b: (0, 0, 0)

    out = pl.pallas_call(
        kernel,
        out_shape=jax.ShapeDtypeStruct((B, N, C), x_nchw.dtype),
        grid=(B,),
        in_specs=[
            tok_spec,                                   # x, window-major tokens
            pl.BlockSpec((1, C), const2),               # GN gamma
            pl.BlockSpec((1, C), const2),               # GN beta
            pl.BlockSpec((C, 3 * C), const2),           # fused Wqkv (scale folded)
            pl.BlockSpec((heads, d, C), const3),        # Wout per-head row blocks
            pl.BlockSpec((1, C), const2),               # bout
            pl.BlockSpec((C, 2 * C), const2),           # W1
            pl.BlockSpec((1, 2 * C), const2),           # b1
            pl.BlockSpec((2 * C, C), const2),           # W2
            pl.BlockSpec((1, C), const2),               # b2
        ],
        out_specs=tok_spec,
        compiler_params=pltpu.CompilerParams(
            dimension_semantics=("parallel",),
            vmem_limit_bytes=32 * 1024 * 1024),
    )(xw,
      p["gn_w"].reshape(1, C), p["gn_b"].reshape(1, C),
      wqkv, wo, p["bout"].reshape(1, C),
      p["w1"].T, p["b1"].reshape(1, 2 * C), p["w2"].T, p["b2"].reshape(1, C))

    # Window-major tokens -> raster NCHW.
    out = out.reshape(B, nh, nw, WINDOW, WINDOW, C)
    return out.transpose(0, 5, 1, 3, 2, 4).reshape(B, C, H, W)


# ----------------------------- pure-JAX reference ----------------------------

def ref_forward(x, p, heads):
    C = x.shape[1]
    scale = (C // heads) ** (-0.5)

    def gn(t):
        mean = t.mean(axis=(1, 2, 3), keepdims=True)
        var = ((t - mean) ** 2).mean(axis=(1, 2, 3), keepdims=True)
        tn = (t - mean) / jnp.sqrt(var + EPS)
        return tn * p["gn_w"][None, :, None, None] + p["gn_b"][None, :, None, None]

    def conv1x1(t, w, b=None):
        y = jnp.einsum("oc,bchw->bohw", w, t)
        return y if b is None else y + b[None, :, None, None]

    def attn(t):
        B, Cc, H, W = t.shape
        nh, nw = H // WINDOW, W // WINDOW
        xw = t.reshape(B, Cc, nh, WINDOW, nw, WINDOW).transpose(0, 2, 4, 1, 3, 5)
        xw = xw.reshape(B * nh * nw, Cc, WINDOW, WINDOW)
        qkv = conv1x1(xw, p["wqkv"])
        q, k, v = jnp.split(qkv, 3, axis=1)

        def split_heads(u):
            b_, c_, _, _ = u.shape
            return u.reshape(b_, heads, c_ // heads, WINDOW * WINDOW).transpose(0, 1, 3, 2)

        q, k, v = map(split_heads, (q, k, v))
        q = q * scale
        a = jax.nn.softmax(jnp.einsum("bhid,bhjd->bhij", q, k), axis=-1)
        o = jnp.einsum("bhij,bhjd->bhid", a, v)
        o = o.transpose(0, 1, 3, 2).reshape(-1, Cc, WINDOW, WINDOW)
        o = o.reshape(B, nh, nw, Cc, WINDOW, WINDOW).transpose(0, 3, 1, 4, 2, 5)
        o = o.reshape(B, Cc, H, W)
        return conv1x1(o, p["wout"], p["bout"])

    def ffn_ref(t):
        h = conv1x1(t, p["w1"], p["b1"])
        h = 0.5 * h * (1.0 + jax.lax.erf(h * INV_SQRT2))
        return conv1x1(h, p["w2"], p["b2"])

    x = x + attn(gn(x))
    x = x + ffn_ref(gn(x))
    return x


# ----------------------------- main -------------------------------------------

if __name__ == "__main__":
    B, C, H, W = 2, 16, 16, 16
    HEADS = 4

    key = jax.random.PRNGKey(0)
    keys = jax.random.split(key, 10)
    x = jax.random.normal(keys[0], (B, C, H, W), dtype=jnp.float32)

    params = {
        "gn_w": jax.random.normal(keys[1], (C,), jnp.float32) * 0.1 + 1.0,
        "gn_b": jax.random.normal(keys[2], (C,), jnp.float32) * 0.1,
        "wqkv": jax.random.normal(keys[3], (3 * C, C), jnp.float32) * 0.1,
        "wout": jax.random.normal(keys[4], (C, C), jnp.float32) * 0.1,
        "bout": jax.random.normal(keys[5], (C,), jnp.float32) * 0.1,
        "w1": jax.random.normal(keys[6], (2 * C, C), jnp.float32) * 0.1,
        "b1": jax.random.normal(keys[7], (2 * C,), jnp.float32) * 0.1,
        "w2": jax.random.normal(keys[8], (C, 2 * C), jnp.float32) * 0.1,
        "b2": jax.random.normal(keys[9], (C,), jnp.float32) * 0.1,
    }

    fwd = jax.jit(functools.partial(transformer_block, heads=HEADS))
    out = jax.block_until_ready(fwd(x, params))
    ref = jax.block_until_ready(ref_forward(x, params, HEADS))

    assert out.shape == (B, C, H, W)
    err = float(jnp.max(jnp.abs(out - ref)))
    assert jnp.allclose(out, ref, atol=1e-4, rtol=1e-4), err
    print("KERNEL_OK")
</pallas_src>

<mosaic_0001>
module attributes {stable_mosaic.version = 11 : i64} {
  func.func @fused_block_kernel(%arg0: i32, %arg1: memref<1x256x16xf32, #tpu.memory_space<vmem>>, %arg2: memref<1x16xf32, #tpu.memory_space<vmem>>, %arg3: memref<1x16xf32, #tpu.memory_space<vmem>>, %arg4: memref<16x48xf32, #tpu.memory_space<vmem>>, %arg5: memref<4x4x16xf32, #tpu.memory_space<vmem>>, %arg6: memref<1x16xf32, #tpu.memory_space<vmem>>, %arg7: memref<16x32xf32, #tpu.memory_space<vmem>>, %arg8: memref<1x32xf32, #tpu.memory_space<vmem>>, %arg9: memref<32x16xf32, #tpu.memory_space<vmem>>, %arg10: memref<1x16xf32, #tpu.memory_space<vmem>>, %arg11: memref<1x256x16xf32, #tpu.memory_space<vmem>>) attributes {dimension_semantics = [#tpu.dimension_semantics<parallel>], iteration_bounds = array<i64: 2>, scalar_prefetch = 0 : i64, scratch_operands = 0 : i64, tpu.core_type = #tpu.core_type<tc>, window_params = [{transform_indices = @transform_0, window_bounds = array<i64: 1, 256, 16>}, {pipeline_mode = #tpu.pipeline_mode<synchronous>, transform_indices = @transform_1, window_bounds = array<i64: 1, 16>}, {pipeline_mode = #tpu.pipeline_mode<synchronous>, transform_indices = @transform_2, window_bounds = array<i64: 1, 16>}, {pipeline_mode = #tpu.pipeline_mode<synchronous>, transform_indices = @transform_3, window_bounds = array<i64: 16, 48>}, {pipeline_mode = #tpu.pipeline_mode<synchronous>, transform_indices = @transform_4, window_bounds = array<i64: 4, 4, 16>}, {pipeline_mode = #tpu.pipeline_mode<synchronous>, transform_indices = @transform_5, window_bounds = array<i64: 1, 16>}, {pipeline_mode = #tpu.pipeline_mode<synchronous>, transform_indices = @transform_6, window_bounds = array<i64: 16, 32>}, {pipeline_mode = #tpu.pipeline_mode<synchronous>, transform_indices = @transform_7, window_bounds = array<i64: 1, 32>}, {pipeline_mode = #tpu.pipeline_mode<synchronous>, transform_indices = @transform_8, window_bounds = array<i64: 32, 16>}, {pipeline_mode = #tpu.pipeline_mode<synchronous>, transform_indices = @transform_9, window_bounds = array<i64: 1, 16>}, {transform_indices = @transform_10, window_bounds = array<i64: 1, 256, 16>}]} {
    %c0 = arith.constant 0 : index
    %c0_0 = arith.constant 0 : index
    %0 = vector.load %arg2[%c0, %c0_0] : memref<1x16xf32, #tpu.memory_space<vmem>>, vector<1x16xf32>
    %c0_1 = arith.constant 0 : index
    %c0_2 = arith.constant 0 : index
    %1 = vector.load %arg3[%c0_1, %c0_2] : memref<1x16xf32, #tpu.memory_space<vmem>>, vector<1x16xf32>
    %c0_3 = arith.constant 0 : index
    %c0_4 = arith.constant 0 : index
    %c0_5 = arith.constant 0 : index
    %2 = vector.load %arg1[%c0_3, %c0_4, %c0_5] : memref<1x256x16xf32, #tpu.memory_space<vmem>>, vector<1x256x16xf32>
    %3 = vector.shape_cast %2 : vector<1x256x16xf32> to vector<256x16xf32>
    %4 = vector.shape_cast %3 : vector<256x16xf32> to vector<1x256x16xf32>
    %cst = arith.constant dense<0.000000e+00> : vector<1xf32>
    %5 = vector.multi_reduction <add>, %4, %cst [1, 2] : vector<1x256x16xf32> to vector<1xf32>
    %6 = vector.shape_cast %5 : vector<1xf32> to vector<1x1x1xf32>
    %7 = vector.extract %6[0, 0, 0] : f32 from vector<1x1x1xf32>
    %cst_6 = arith.constant 4.096000e+03 : f32
    %8 = arith.divf %7, %cst_6 : f32
    %9 = arith.mulf %3, %3 : vector<256x16xf32>
    %10 = vector.shape_cast %9 : vector<256x16xf32> to vector<1x256x16xf32>
    %cst_7 = arith.constant dense<0.000000e+00> : vector<1xf32>
    %11 = vector.multi_reduction <add>, %10, %cst_7 [1, 2] : vector<1x256x16xf32> to vector<1xf32>
    %12 = vector.shape_cast %11 : vector<1xf32> to vector<1x1x1xf32>
    %13 = vector.extract %12[0, 0, 0] : f32 from vector<1x1x1xf32>
    %cst_8 = arith.constant 4.096000e+03 : f32
    %14 = arith.divf %13, %cst_8 : f32
    %15 = arith.mulf %8, %8 : f32
    %16 = arith.subf %14, %15 : f32
    %17 = vector.broadcast %8 : f32 to vector<256x16xf32>
    %18 = arith.subf %3, %17 : vector<256x16xf32>
    %cst_9 = arith.constant 9.99999974E-6 : f32
    %19 = arith.addf %16, %cst_9 : f32
    %20 = math.rsqrt %19 : f32
    %21 = vector.broadcast %20 : f32 to vector<256x16xf32>
    %22 = arith.mulf %18, %21 : vector<256x16xf32>
    %23 = vector.broadcast %0 : vector<1x16xf32> to vector<256x16xf32>
    %24 = arith.mulf %22, %23 : vector<256x16xf32>
    %25 = vector.broadcast %1 : vector<1x16xf32> to vector<256x16xf32>
    %26 = arith.addf %24, %25 : vector<256x16xf32>
    %c0_10 = arith.constant 0 : index
    %c0_11 = arith.constant 0 : index
    %27 = vector.load %arg4[%c0_10, %c0_11] : memref<16x48xf32, #tpu.memory_space<vmem>>, vector<16x48xf32>
    %cst_12 = arith.constant dense<0.000000e+00> : vector<256x48xf32>
    %28 = tpu.matmul %26, %27, %cst_12 {dimension_numbers = #tpu.dot_dimension_numbers<[1], [0], [0], [1], [0, 0, 1, 1], [], []>} : vector<256x16xf32>, vector<16x48xf32>, vector<256x48xf32> -> vector<256x48xf32>
    %29 = vector.extract_strided_slice %28 {offsets = [0, 0], sizes = [256, 4], strides = [1, 1]} : vector<256x48xf32> to vector<256x4xf32>
    %30 = vector.shape_cast %29 : vector<256x4xf32> to vector<4x64x4xf32>
    %31 = vector.extract_strided_slice %28 {offsets = [0, 4], sizes = [256, 4], strides = [1, 1]} : vector<256x48xf32> to vector<256x4xf32>
    %32 = vector.shape_cast %31 : vector<256x4xf32> to vector<4x64x4xf32>
    %33 = vector.extract_strided_slice %28 {offsets = [0, 8], sizes = [256, 4], strides = [1, 1]} : vector<256x48xf32> to vector<256x4xf32>
    %34 = vector.shape_cast %33 : vector<256x4xf32> to vector<4x64x4xf32>
    %35 = vector.extract_strided_slice %28 {offsets = [0, 12], sizes = [256, 4], strides = [1, 1]} : vector<256x48xf32> to vector<256x4xf32>
    %36 = vector.shape_cast %35 : vector<256x4xf32> to vector<4x64x4xf32>
    %37 = tpu.concatenate %30, %32, %34, %36 in 0 : vector<4x64x4xf32>, vector<4x64x4xf32>, vector<4x64x4xf32>, vector<4x64x4xf32> -> vector<16x64x4xf32>
    %38 = vector.extract_strided_slice %28 {offsets = [0, 16], sizes = [256, 4], strides = [1, 1]} : vector<256x48xf32> to vector<256x4xf32>
    %39 = vector.shape_cast %38 : vector<256x4xf32> to vector<4x64x4xf32>
    %40 = vector.extract_strided_slice %28 {offsets = [0, 20], sizes = [256, 4], strides = [1, 1]} : vector<256x48xf32> to vector<256x4xf32>
    %41 = vector.shape_cast %40 : vector<256x4xf32> to vector<4x64x4xf32>
    %42 = vector.extract_strided_slice %28 {offsets = [0, 24], sizes = [256, 4], strides = [1, 1]} : vector<256x48xf32> to vector<256x4xf32>
    %43 = vector.shape_cast %42 : vector<256x4xf32> to vector<4x64x4xf32>
    %44 = vector.extract_strided_slice %28 {offsets = [0, 28], sizes = [256, 4], strides = [1, 1]} : vector<256x48xf32> to vector<256x4xf32>
    %45 = vector.shape_cast %44 : vector<256x4xf32> to vector<4x64x4xf32>
    %46 = tpu.concatenate %39, %41, %43, %45 in 0 : vector<4x64x4xf32>, vector<4x64x4xf32>, vector<4x64x4xf32>, vector<4x64x4xf32> -> vector<16x64x4xf32>
    %47 = vector.extract_strided_slice %28 {offsets = [0, 32], sizes = [256, 4], strides = [1, 1]} : vector<256x48xf32> to vector<256x4xf32>
    %48 = vector.shape_cast %47 : vector<256x4xf32> to vector<4x64x4xf32>
    %49 = vector.extract_strided_slice %28 {offsets = [0, 36], sizes = [256, 4], strides = [1, 1]} : vector<256x48xf32> to vector<256x4xf32>
    %50 = vector.shape_cast %49 : vector<256x4xf32> to vector<4x64x4xf32>
    %51 = vector.extract_strided_slice %28 {offsets = [0, 40], sizes = [256, 4], strides = [1, 1]} : vector<256x48xf32> to vector<256x4xf32>
    %52 = vector.shape_cast %51 : vector<256x4xf32> to vector<4x64x4xf32>
    %53 = vector.extract_strided_slice %28 {offsets = [0, 44], sizes = [256, 4], strides = [1, 1]} : vector<256x48xf32> to vector<256x4xf32>
    %54 = vector.shape_cast %53 : vector<256x4xf32> to vector<4x64x4xf32>
    %55 = tpu.concatenate %48, %50, %52, %54 in 0 : vector<4x64x4xf32>, vector<4x64x4xf32>, vector<4x64x4xf32>, vector<4x64x4xf32> -> vector<16x64x4xf32>
    "tpu.trace_start"() <{level = 10 : i32, message = "bid,bjd->bij"}> : () -> ()
    %cst_13 = arith.constant dense<0.000000e+00> : vector<16x64x64xf32>
    %56 = tpu.matmul %37, %46, %cst_13 {dimension_numbers = #tpu.dot_dimension_numbers<[2], [2], [1], [1], [0, 0, 0, 1, 1, 1], [0], [0]>} : vector<16x64x4xf32>, vector<16x64x4xf32>, vector<16x64x64xf32> -> vector<16x64x64xf32>
    "tpu.trace_stop"() : () -> ()
    %cst_14 = arith.constant dense<0xFF800000> : vector<16x64xf32>
    %57 = vector.multi_reduction <maximumf>, %56, %cst_14 [2] : vector<16x64x64xf32> to vector<16x64xf32>
    %58 = vector.shape_cast %57 : vector<16x64xf32> to vector<16x64x1xf32>
    %59 = vector.broadcast %58 : vector<16x64x1xf32> to vector<16x64x64xf32>
    %60 = arith.subf %56, %59 : vector<16x64x64xf32>
    %61 = math.exp %60 : vector<16x64x64xf32>
    %cst_15 = arith.constant dense<0.000000e+00> : vector<16x64xf32>
    %62 = vector.multi_reduction <add>, %61, %cst_15 [2] : vector<16x64x64xf32> to vector<16x64xf32>
    %63 = vector.shape_cast %62 : vector<16x64xf32> to vector<16x64x1xf32>
    %64 = tpu.reciprocal %63 {approx = true} : vector<16x64x1xf32> -> vector<16x64x1xf32>
    %65 = arith.mulf %63, %64 : vector<16x64x1xf32>
    %cst_16 = arith.constant 2.000000e+00 : f32
    %66 = vector.broadcast %cst_16 : f32 to vector<16x64x1xf32>
    %67 = arith.subf %66, %65 : vector<16x64x1xf32>
    %68 = arith.mulf %64, %67 : vector<16x64x1xf32>
    %69 = vector.broadcast %68 : vector<16x64x1xf32> to vector<16x64x64xf32>
    %70 = arith.mulf %61, %69 : vector<16x64x64xf32>
    "tpu.trace_start"() <{level = 10 : i32, message = "bij,bjd->bid"}> : () -> ()
    %cst_17 = arith.constant dense<0.000000e+00> : vector<16x64x4xf32>
    %71 = tpu.matmul %70, %55, %cst_17 {dimension_numbers = #tpu.dot_dimension_numbers<[2], [1], [1], [2], [0, 0, 0, 1, 1, 2], [0], [0]>} : vector<16x64x64xf32>, vector<16x64x4xf32>, vector<16x64x4xf32> -> vector<16x64x4xf32>
    "tpu.trace_stop"() : () -> ()
    %c0_18 = arith.constant 0 : index
    %c0_19 = arith.constant 0 : index
    %72 = vector.load %arg6[%c0_18, %c0_19] : memref<1x16xf32, #tpu.memory_space<vmem>>, vector<1x16xf32>
    %73 = vector.extract_strided_slice %71 {offsets = [0, 0, 0], sizes = [4, 64, 4], strides = [1, 1, 1]} : vector<16x64x4xf32> to vector<4x64x4xf32>
    %74 = vector.shape_cast %73 : vector<4x64x4xf32> to vector<256x4xf32>
    %c0_20 = arith.constant 0 : index
    %c0_21 = arith.constant 0 : index
    %c0_22 = arith.constant 0 : index
    %75 = vector.load %arg5[%c0_20, %c0_21, %c0_22] : memref<4x4x16xf32, #tpu.memory_space<vmem>>, vector<1x4x16xf32>
    %76 = vector.shape_cast %75 : vector<1x4x16xf32> to vector<4x16xf32>
    %cst_23 = arith.constant dense<0.000000e+00> : vector<256x16xf32>
    %77 = tpu.matmul %74, %76, %cst_23 {dimension_numbers = #tpu.dot_dimension_numbers<[1], [0], [0], [1], [0, 0, 1, 1], [], []>} : vector<256x4xf32>, vector<4x16xf32>, vector<256x16xf32> -> vector<256x16xf32>
    %78 = vector.broadcast %72 : vector<1x16xf32> to vector<256x16xf32>
    %79 = arith.addf %78, %77 : vector<256x16xf32>
    %80 = vector.extract_strided_slice %71 {offsets = [4, 0, 0], sizes = [4, 64, 4], strides = [1, 1, 1]} : vector<16x64x4xf32> to vector<4x64x4xf32>
    %81 = vector.shape_cast %80 : vector<4x64x4xf32> to vector<256x4xf32>
    %c1 = arith.constant 1 : index
    %c0_24 = arith.constant 0 : index
    %c0_25 = arith.constant 0 : index
    %82 = vector.load %arg5[%c1, %c0_24, %c0_25] : memref<4x4x16xf32, #tpu.memory_space<vmem>>, vector<1x4x16xf32>
    %83 = vector.shape_cast %82 : vector<1x4x16xf32> to vector<4x16xf32>
    %cst_26 = arith.constant dense<0.000000e+00> : vector<256x16xf32>
    %84 = tpu.matmul %81, %83, %cst_26 {dimension_numbers = #tpu.dot_dimension_numbers<[1], [0], [0], [1], [0, 0, 1, 1], [], []>} : vector<256x4xf32>, vector<4x16xf32>, vector<256x16xf32> -> vector<256x16xf32>
    %85 = arith.addf %79, %84 : vector<256x16xf32>
    %86 = vector.extract_strided_slice %71 {offsets = [8, 0, 0], sizes = [4, 64, 4], strides = [1, 1, 1]} : vector<16x64x4xf32> to vector<4x64x4xf32>
    %87 = vector.shape_cast %86 : vector<4x64x4xf32> to vector<256x4xf32>
    %c2 = arith.constant 2 : index
    %c0_27 = arith.constant 0 : index
    %c0_28 = arith.constant 0 : index
    %88 = vector.load %arg5[%c2, %c0_27, %c0_28] : memref<4x4x16xf32, #tpu.memory_space<vmem>>, vector<1x4x16xf32>
    %89 = vector.shape_cast %88 : vector<1x4x16xf32> to vector<4x16xf32>
    %cst_29 = arith.constant dense<0.000000e+00> : vector<256x16xf32>
    %90 = tpu.matmul %87, %89, %cst_29 {dimension_numbers = #tpu.dot_dimension_numbers<[1], [0], [0], [1], [0, 0, 1, 1], [], []>} : vector<256x4xf32>, vector<4x16xf32>, vector<256x16xf32> -> vector<256x16xf32>
    %91 = arith.addf %85, %90 : vector<256x16xf32>
    %92 = vector.extract_strided_slice %71 {offsets = [12, 0, 0], sizes = [4, 64, 4], strides = [1, 1, 1]} : vector<16x64x4xf32> to vector<4x64x4xf32>
    %93 = vector.shape_cast %92 : vector<4x64x4xf32> to vector<256x4xf32>
    %c3 = arith.constant 3 : index
    %c0_30 = arith.constant 0 : index
    %c0_31 = arith.constant 0 : index
    %94 = vector.load %arg5[%c3, %c0_30, %c0_31] : memref<4x4x16xf32, #tpu.memory_space<vmem>>, vector<1x4x16xf32>
    %95 = vector.shape_cast %94 : vector<1x4x16xf32> to vector<4x16xf32>
    %cst_32 = arith.constant dense<0.000000e+00> : vector<256x16xf32>
    %96 = tpu.matmul %93, %95, %cst_32 {dimension_numbers = #tpu.dot_dimension_numbers<[1], [0], [0], [1], [0, 0, 1, 1], [], []>} : vector<256x4xf32>, vector<4x16xf32>, vector<256x16xf32> -> vector<256x16xf32>
    %97 = arith.addf %91, %96 : vector<256x16xf32>
    %98 = arith.addf %3, %97 : vector<256x16xf32>
    %99 = vector.shape_cast %98 : vector<256x16xf32> to vector<1x256x16xf32>
    %cst_33 = arith.constant dense<0.000000e+00> : vector<1xf32>
    %100 = vector.multi_reduction <add>, %99, %cst_33 [1, 2] : vector<1x256x16xf32> to vector<1xf32>
    %101 = vector.shape_cast %100 : vector<1xf32> to vector<1x1x1xf32>
    %102 = vector.extract %101[0, 0, 0] : f32 from vector<1x1x1xf32>
    %cst_34 = arith.constant 4.096000e+03 : f32
    %103 = arith.divf %102, %cst_34 : f32
    %104 = arith.mulf %98, %98 : vector<256x16xf32>
    %105 = vector.shape_cast %104 : vector<256x16xf32> to vector<1x256x16xf32>
    %cst_35 = arith.constant dense<0.000000e+00> : vector<1xf32>
    %106 = vector.multi_reduction <add>, %105, %cst_35 [1, 2] : vector<1x256x16xf32> to vector<1xf32>
    %107 = vector.shape_cast %106 : vector<1xf32> to vector<1x1x1xf32>
    %108 = vector.extract %107[0, 0, 0] : f32 from vector<1x1x1xf32>
    %cst_36 = arith.constant 4.096000e+03 : f32
    %109 = arith.divf %108, %cst_36 : f32
    %110 = arith.mulf %103, %103 : f32
    %111 = arith.subf %109, %110 : f32
    %112 = vector.broadcast %103 : f32 to vector<256x16xf32>
    %113 = arith.subf %98, %112 : vector<256x16xf32>
    %cst_37 = arith.constant 9.99999974E-6 : f32
    %114 = arith.addf %111, %cst_37 : f32
    %115 = math.rsqrt %114 : f32
    %116 = vector.broadcast %115 : f32 to vector<256x16xf32>
    %117 = arith.mulf %113, %116 : vector<256x16xf32>
    %118 = vector.broadcast %0 : vector<1x16xf32> to vector<256x16xf32>
    %119 = arith.mulf %117, %118 : vector<256x16xf32>
    %120 = vector.broadcast %1 : vector<1x16xf32> to vector<256x16xf32>
    %121 = arith.addf %119, %120 : vector<256x16xf32>
    %c0_38 = arith.constant 0 : index
    %c0_39 = arith.constant 0 : index
    %122 = vector.load %arg7[%c0_38, %c0_39] : memref<16x32xf32, #tpu.memory_space<vmem>>, vector<16x32xf32>
    %cst_40 = arith.constant dense<0.000000e+00> : vector<256x32xf32>
    %123 = tpu.matmul %121, %122, %cst_40 {dimension_numbers = #tpu.dot_dimension_numbers<[1], [0], [0], [1], [0, 0, 1, 1], [], []>} : vector<256x16xf32>, vector<16x32xf32>, vector<256x32xf32> -> vector<256x32xf32>
    %c0_41 = arith.constant 0 : index
    %c0_42 = arith.constant 0 : index
    %124 = vector.load %arg8[%c0_41, %c0_42] : memref<1x32xf32, #tpu.memory_space<vmem>>, vector<1x32xf32>
    %125 = vector.broadcast %124 : vector<1x32xf32> to vector<256x32xf32>
    %126 = arith.addf %123, %125 : vector<256x32xf32>
    %cst_43 = arith.constant 5.000000e-01 : f32
    %127 = vector.broadcast %cst_43 : f32 to vector<256x32xf32>
    %128 = arith.mulf %127, %126 : vector<256x32xf32>
    %cst_44 = arith.constant 0.707106769 : f32
    %129 = vector.broadcast %cst_44 : f32 to vector<256x32xf32>
    %130 = arith.mulf %126, %129 : vector<256x32xf32>
    %131 = math.erf %130 : vector<256x32xf32>
    %cst_45 = arith.constant 1.000000e+00 : f32
    %132 = vector.broadcast %cst_45 : f32 to vector<256x32xf32>
    %133 = arith.addf %132, %131 : vector<256x32xf32>
    %134 = arith.mulf %128, %133 : vector<256x32xf32>
    %c0_46 = arith.constant 0 : index
    %c0_47 = arith.constant 0 : index
    %135 = vector.load %arg9[%c0_46, %c0_47] : memref<32x16xf32, #tpu.memory_space<vmem>>, vector<32x16xf32>
    %cst_48 = arith.constant dense<0.000000e+00> : vector<256x16xf32>
    %136 = tpu.matmul %134, %135, %cst_48 {dimension_numbers = #tpu.dot_dimension_numbers<[1], [0], [0], [1], [0, 0, 1, 1], [], []>} : vector<256x32xf32>, vector<32x16xf32>, vector<256x16xf32> -> vector<256x16xf32>
    %137 = arith.addf %98, %136 : vector<256x16xf32>
    %c0_49 = arith.constant 0 : index
    %c0_50 = arith.constant 0 : index
    %138 = vector.load %arg10[%c0_49, %c0_50] : memref<1x16xf32, #tpu.memory_space<vmem>>, vector<1x16xf32>
    %139 = vector.broadcast %138 : vector<1x16xf32> to vector<256x16xf32>
    %140 = arith.addf %137, %139 : vector<256x16xf32>
    %c0_51 = arith.constant 0 : index
    %c0_52 = arith.constant 0 : index
    %c0_53 = arith.constant 0 : index
    %141 = vector.load %arg11[%c0_51, %c0_52, %c0_53] : memref<1x256x16xf32, #tpu.memory_space<vmem>>, vector<1x256x16xf32>
    %142 = vector.shape_cast %141 : vector<1x256x16xf32> to vector<256x16xf32>
    %143 = vector.shape_cast %140 : vector<256x16xf32> to vector<1x256x16xf32>
    tpu.vector_store %arg11[%c0_51, %c0_52, %c0_53], %143 {strides = array<i32>} : memref<1x256x16xf32, #tpu.memory_space<vmem>>, vector<1x256x16xf32>,
    return
  }
  func.func @transform_0(%arg0: i32) -> (i32, i32, i32) {
    %c0_i32 = arith.constant 0 : i32
    %c0_i32_0 = arith.constant 0 : i32
    %c0_i32_1 = arith.constant 0 : i32
    return %arg0, %c0_i32, %c0_i32_0 : i32, i32, i32
  }
  func.func @transform_1(%arg0: i32) -> (i32, i32) {
    %c0_i32 = arith.constant 0 : i32
    %c0_i32_0 = arith.constant 0 : i32
    %c0_i32_1 = arith.constant 0 : i32
    return %c0_i32, %c0_i32_0 : i32, i32
  }
  func.func @transform_2(%arg0: i32) -> (i32, i32) {
    %c0_i32 = arith.constant 0 : i32
    %c0_i32_0 = arith.constant 0 : i32
    %c0_i32_1 = arith.constant 0 : i32
    return %c0_i32, %c0_i32_0 : i32, i32
  }
  func.func @transform_3(%arg0: i32) -> (i32, i32) {
    %c0_i32 = arith.constant 0 : i32
    %c0_i32_0 = arith.constant 0 : i32
    %c0_i32_1 = arith.constant 0 : i32
    return %c0_i32, %c0_i32_0 : i32, i32
  }
  func.func @transform_4(%arg0: i32) -> (i32, i32, i32) {
    %c0_i32 = arith.constant 0 : i32
    %c0_i32_0 = arith.constant 0 : i32
    %c0_i32_1 = arith.constant 0 : i32
    %c0_i32_2 = arith.constant 0 : i32
    return %c0_i32, %c0_i32_0, %c0_i32_1 : i32, i32, i32
  }
  func.func @transform_5(%arg0: i32) -> (i32, i32) {
    %c0_i32 = arith.constant 0 : i32
    %c0_i32_0 = arith.constant 0 : i32
    %c0_i32_1 = arith.constant 0 : i32
    return %c0_i32, %c0_i32_0 : i32, i32
  }
  func.func @transform_6(%arg0: i32) -> (i32, i32) {
    %c0_i32 = arith.constant 0 : i32
    %c0_i32_0 = arith.constant 0 : i32
    %c0_i32_1 = arith.constant 0 : i32
    return %c0_i32, %c0_i32_0 : i32, i32
  }
  func.func @transform_7(%arg0: i32) -> (i32, i32) {
    %c0_i32 = arith.constant 0 : i32
    %c0_i32_0 = arith.constant 0 : i32
    %c0_i32_1 = arith.constant 0 : i32
    return %c0_i32, %c0_i32_0 : i32, i32
  }
  func.func @transform_8(%arg0: i32) -> (i32, i32) {
    %c0_i32 = arith.constant 0 : i32
    %c0_i32_0 = arith.constant 0 : i32
    %c0_i32_1 = arith.constant 0 : i32
    return %c0_i32, %c0_i32_0 : i32, i32
  }
  func.func @transform_9(%arg0: i32) -> (i32, i32) {
    %c0_i32 = arith.constant 0 : i32
    %c0_i32_0 = arith.constant 0 : i32
    %c0_i32_1 = arith.constant 0 : i32
    return %c0_i32, %c0_i32_0 : i32, i32
  }
  func.func @transform_10(%arg0: i32) -> (i32, i32, i32) {
    %c0_i32 = arith.constant 0 : i32
    %c0_i32_0 = arith.constant 0 : i32
    %c0_i32_1 = arith.constant 0 : i32
    return %arg0, %c0_i32, %c0_i32_0 : i32, i32, i32
  }
}

</mosaic_0001>

<llo_original>
// kernel: transformer_block.1
$region0: #{transformer_block.1}
  #allocation0 [shape = 'u32[]', space=smem, size = 0x4, offset = 0x4, fixed_abs, tag = 'smem constant byte address 0x4 - core index']
  #allocation1 [shape = 'u32[144,128]{1,0:T(1,128)}', space=vmem, size = 0x12000, scoped, tag = 'internal scratch']
  %s0 = inlined_call_operand.vmem [shape: f32[2,256,16], index: 0, kind: input, shape index: {}]
  %s1 = inlined_call_operand.vmem [shape: f32[1,16], index: 1, kind: input, shape index: {}]
  %s2 = inlined_call_operand.vmem [shape: f32[1,16], index: 2, kind: input, shape index: {}]
  %s3 = inlined_call_operand.vmem [shape: f32[16,48], index: 3, kind: input, shape index: {}]
  %s4 = inlined_call_operand.vmem [shape: f32[4,4,16], index: 4, kind: input, shape index: {}]
  %s5 = inlined_call_operand.vmem [shape: f32[1,16], index: 5, kind: input, shape index: {}]
  %s6 = inlined_call_operand.vmem [shape: f32[16,32], index: 6, kind: input, shape index: {}]
  %s7 = inlined_call_operand.vmem [shape: f32[1,32], index: 7, kind: input, shape index: {}]
  %s8 = inlined_call_operand.vmem [shape: f32[32,16], index: 8, kind: input, shape index: {}]
  %s9 = inlined_call_operand.vmem [shape: f32[1,16], index: 9, kind: input, shape index: {}]
  %s10 = inlined_call_operand.vmem [shape: f32[2,256,16], index: 10, kind: output, shape index: {}]
  %s11 = sld [smem:[#allocation0]]
  $region73: #{transformer_block.1} parent=0
    _
  %s13 = ssub.s32 1, %s11
  %s14 = scalar_select 0, %s13, %s11
  loop: start=0, step=1, limit=4
  $region2: #{transformer_block.1} parent=0 // loop_pre_header
    _
  $region3: #{transformer_block.1} parent=0 // loop_header
    %s16 = sphi 0, %s20
    %p17 = scmp.ge.s32.totalorder %s16, 4
    %s26 = sphi 0, %s28
    %s29 = sphi 0, %s26
    %s30 = sphi 0, %s29
    %s46 = sphi 0, %s30
    %s50 = sphi 0, %s50
    %s52 = sphi 0, %s50
    %s53 = sphi 0, %s52
    %s67 = sphi 0, %s53
    %s71 = sphi 0, %s71
    %s73 = sphi 0, %s71
    %s74 = sphi 0, %s73
    %s88 = sphi 0, %s74
    %s92 = sphi 0, %s92
    %s94 = sphi 0, %s92
    %s95 = sphi 0, %s94
    %s109 = sphi 0, %s95
    %s113 = sphi 0, %s113
    %s115 = sphi 0, %s113
    %s116 = sphi 0, %s115
    %s130 = sphi 0, %s116
    %s134 = sphi 0, %s134
    %s136 = sphi 0, %s134
    %s137 = sphi 0, %s136
    %s151 = sphi 0, %s137
    %s155 = sphi 0, %s155
    %s157 = sphi 0, %s155
    %s158 = sphi 0, %s157
    %s172 = sphi 0, %s158
    %s176 = sphi 0, %s176
    %s178 = sphi 0, %s176
    %s179 = sphi 0, %s178
    %s193 = sphi 0, %s179
    %s197 = sphi 0, %s197
    %s199 = sphi 0, %s197
    %s200 = sphi 0, %s199
    %s214 = sphi 0, %s200
    %s218 = sphi 0, %s218
    %s220 = sphi 0, %s218
    %s221 = sphi 0, %s220
    %s235 = sphi 0, %s221
    %s241 = sphi 0, %s243
    %s244 = sphi 0, %s241
    %s245 = sphi 0, %s244
    %s261 = sphi 0, %s245
  $region4: #{transformer_block.1} parent=0 // loop_header_branch
    %19 = sbr.rel (%p17) target = $region8
  $region5: #{transformer_block.1} parent=0 // loop_body
    %s21 = ssub.s32 %s16, 1
    %s22 = ssub.s32 %s16, 2
    %s23 = sadd.s32 %s16, 1
    %s24 = ssub.s32 %s16, %s23
    %p25 = scmp.eq.s32.totalorder %s24, 0
    %s27 = sadd.s32 %s26, 1
    %s28 = scalar_select %p25, %s26, %s27
    %p31 = pneg %p25
    %p32 = scmp.eq.s32.totalorder %s16, 1
    %p33 = por %p31, %p32
    %p34 = scmp.ne.s32.totalorder %s26, %s29
    %p35 = scmp.eq.s32.totalorder %s16, 0
    %p36 = por %p34, %p35
    %p37 = scmp.ne.s32.totalorder %s26, %s29
    %p38 = scmp.eq.s32.totalorder %s21, 1
    %p39 = por %p37, %p38
    %p40 = scmp.ne.s32.totalorder %s29, %s30
    %p41 = scmp.eq.s32.totalorder %s21, 0
    %p42 = por %p40, %p41
    %p43 = scmp.ne.s32.totalorder %s29, %s30
    %p44 = scmp.eq.s32.totalorder %s22, 1
    %p45 = por %p43, %p44
    %p47 = scmp.ne.s32.totalorder %s30, %s46
    %p48 = scmp.eq.s32.totalorder %s22, 0
    %p49 = por %p47, %p48
    %s51 = sadd.s32 %s50, 1
    %p54 = scmp.eq.s32.totalorder %s16, 1
    %p55 = scmp.ne.s32.totalorder %s50, %s52
    %p56 = scmp.eq.s32.totalorder %s16, 0
    %p57 = por %p55, %p56
    %p58 = scmp.ne.s32.totalorder %s50, %s52
    %p59 = scmp.eq.s32.totalorder %s21, 1
    %p60 = por %p58, %p59
    %p61 = scmp.ne.s32.totalorder %s52, %s53
    %p62 = scmp.eq.s32.totalorder %s21, 0
    %p63 = por %p61, %p62
    %p64 = scmp.ne.s32.totalorder %s52, %s53
    %p65 = scmp.eq.s32.totalorder %s22, 1
    %p66 = por %p64, %p65
    %p68 = scmp.ne.s32.totalorder %s53, %s67
    %p69 = scmp.eq.s32.totalorder %s22, 0
    %p70 = por %p68, %p69
    %s72 = sadd.s32 %s71, 1
    %p75 = scmp.eq.s32.totalorder %s16, 1
    %p76 = scmp.ne.s32.totalorder %s71, %s73
    %p77 = scmp.eq.s32.totalorder %s16, 0
    %p78 = por %p76, %p77
    %p79 = scmp.ne.s32.totalorder %s71, %s73
    %p80 = scmp.eq.s32.totalorder %s21, 1
    %p81 = por %p79, %p80
    %p82 = scmp.ne.s32.totalorder %s73, %s74
    %p83 = scmp.eq.s32.totalorder %s21, 0
    %p84 = por %p82, %p83
    %p85 = scmp.ne.s32.totalorder %s73, %s74
    %p86 = scmp.eq.s32.totalorder %s22, 1
    %p87 = por %p85, %p86
    %p89 = scmp.ne.s32.totalorder %s74, %s88
    %p90 = scmp.eq.s32.totalorder %s22, 0
    %p91 = por %p89, %p90
    %s93 = sadd.s32 %s92, 1
    %p96 = scmp.eq.s32.totalorder %s16, 1
    %p97 = scmp.ne.s32.totalorder %s92, %s94
    %p98 = scmp.eq.s32.totalorder %s16, 0
    %p99 = por %p97, %p98
    %p100 = scmp.ne.s32.totalorder %s92, %s94
    %p101 = scmp.eq.s32.totalorder %s21, 1
    %p102 = por %p100, %p101
    %p103 = scmp.ne.s32.totalorder %s94, %s95
    %p104 = scmp.eq.s32.totalorder %s21, 0
    %p105 = por %p103, %p104
    %p106 = scmp.ne.s32.totalorder %s94, %s95
    %p107 = scmp.eq.s32.totalorder %s22, 1
    %p108 = por %p106, %p107
    %p110 = scmp.ne.s32.totalorder %s95, %s109
    %p111 = scmp.eq.s32.totalorder %s22, 0
    %p112 = por %p110, %p111
    %s114 = sadd.s32 %s113, 1
    %p117 = scmp.eq.s32.totalorder %s16, 1
    %p118 = scmp.ne.s32.totalorder %s113, %s115
    %p119 = scmp.eq.s32.totalorder %s16, 0
    %p120 = por %p118, %p119
    %p121 = scmp.ne.s32.totalorder %s113, %s115
    %p122 = scmp.eq.s32.totalorder %s21, 1
    %p123 = por %p121, %p122
    %p124 = scmp.ne.s32.totalorder %s115, %s116
    %p125 = scmp.eq.s32.totalorder %s21, 0
    %p126 = por %p124, %p125
    %p127 = scmp.ne.s32.totalorder %s115, %s116
    %p128 = scmp.eq.s32.totalorder %s22, 1
    %p129 = por %p127, %p128
    %p131 = scmp.ne.s32.totalorder %s116, %s130
    %p132 = scmp.eq.s32.totalorder %s22, 0
    %p133 = por %p131, %p132
    %s135 = sadd.s32 %s134, 1
    %p138 = scmp.eq.s32.totalorder %s16, 1
    %p139 = scmp.ne.s32.totalorder %s134, %s136
    %p140 = scmp.eq.s32.totalorder %s16, 0
    %p141 = por %p139, %p140
    %p142 = scmp.ne.s32.totalorder %s134, %s136
    %p143 = scmp.eq.s32.totalorder %s21, 1
    %p144 = por %p142, %p143
    %p145 = scmp.ne.s32.totalorder %s136, %s137
    %p146 = scmp.eq.s32.totalorder %s21, 0
    %p147 = por %p145, %p146
    %p148 = scmp.ne.s32.totalorder %s136, %s137
    %p149 = scmp.eq.s32.totalorder %s22, 1
    %p150 = por %p148, %p149
    %p152 = scmp.ne.s32.totalorder %s137, %s151
    %p153 = scmp.eq.s32.totalorder %s22, 0
    %p154 = por %p152, %p153
    %s156 = sadd.s32 %s155, 1
    %p159 = scmp.eq.s32.totalorder %s16, 1
    %p160 = scmp.ne.s32.totalorder %s155, %s157
    %p161 = scmp.eq.s32.totalorder %s16, 0
    %p162 = por %p160, %p161
    %p163 = scmp.ne.s32.totalorder %s155, %s157
    %p164 = scmp.eq.s32.totalorder %s21, 1
    %p165 = por %p163, %p164
    %p166 = scmp.ne.s32.totalorder %s157, %s158
    %p167 = scmp.eq.s32.totalorder %s21, 0
    %p168 = por %p166, %p167
    %p169 = scmp.ne.s32.totalorder %s157, %s158
    %p170 = scmp.eq.s32.totalorder %s22, 1
    %p171 = por %p169, %p170
    %p173 = scmp.ne.s32.totalorder %s158, %s172
    %p174 = scmp.eq.s32.totalorder %s22, 0
    %p175 = por %p173, %p174
    %s177 = sadd.s32 %s176, 1
    %p180 = scmp.eq.s32.totalorder %s16, 1
    %p181 = scmp.ne.s32.totalorder %s176, %s178
    %p182 = scmp.eq.s32.totalorder %s16, 0
    %p183 = por %p181, %p182
    %p184 = scmp.ne.s32.totalorder %s176, %s178
    %p185 = scmp.eq.s32.totalorder %s21, 1
    %p186 = por %p184, %p185
    %p187 = scmp.ne.s32.totalorder %s178, %s179
    %p188 = scmp.eq.s32.totalorder %s21, 0
    %p189 = por %p187, %p188
    %p190 = scmp.ne.s32.totalorder %s178, %s179
    %p191 = scmp.eq.s32.totalorder %s22, 1
    %p192 = por %p190, %p191
    %p194 = scmp.ne.s32.totalorder %s179, %s193
    %p195 = scmp.eq.s32.totalorder %s22, 0
    %p196 = por %p194, %p195
    %s198 = sadd.s32 %s197, 1
    %p201 = scmp.eq.s32.totalorder %s16, 1
    %p202 = scmp.ne.s32.totalorder %s197, %s199
    %p203 = scmp.eq.s32.totalorder %s16, 0
    %p204 = por %p202, %p203
    %p205 = scmp.ne.s32.totalorder %s197, %s199
    %p206 = scmp.eq.s32.totalorder %s21, 1
    %p207 = por %p205, %p206
    %p208 = scmp.ne.s32.totalorder %s199, %s200
    %p209 = scmp.eq.s32.totalorder %s21, 0
    %p210 = por %p208, %p209
    %p211 = scmp.ne.s32.totalorder %s199, %s200
    %p212 = scmp.eq.s32.totalorder %s22, 1
    %p213 = por %p211, %p212
    %p215 = scmp.ne.s32.totalorder %s200, %s214
    %p216 = scmp.eq.s32.totalorder %s22, 0
    %p217 = por %p215, %p216
    %s219 = sadd.s32 %s218, 1
    %p222 = scmp.eq.s32.totalorder %s16, 1
    %p223 = scmp.ne.s32.totalorder %s218, %s220
    %p224 = scmp.eq.s32.totalorder %s16, 0
    %p225 = por %p223, %p224
    %p226 = scmp.ne.s32.totalorder %s218, %s220
    %p227 = scmp.eq.s32.totalorder %s21, 1
    %p228 = por %p226, %p227
    %p229 = scmp.ne.s32.totalorder %s220, %s221
    %p230 = scmp.eq.s32.totalorder %s21, 0
    %p231 = por %p229, %p230
    %p232 = scmp.ne.s32.totalorder %s220, %s221
    %p233 = scmp.eq.s32.totalorder %s22, 1
    %p234 = por %p232, %p233
    %p236 = scmp.ne.s32.totalorder %s221, %s235
    %p237 = scmp.eq.s32.totalorder %s22, 0
    %p238 = por %p236, %p237
    %s239 = ssub.s32 %s16, %s23
    %p240 = scmp.eq.s32.totalorder %s239, 0
    %s242 = sadd.s32 %s241, 1
    %s243 = scalar_select %p240, %s241, %s242
    %p246 = pneg %p240
    %p247 = scmp.eq.s32.totalorder %s16, 1
    %p248 = por %p246, %p247
    %p249 = scmp.ne.s32.totalorder %s241, %s244
    %p250 = scmp.eq.s32.totalorder %s16, 0
    %p251 = por %p249, %p250
    %p252 = scmp.ne.s32.totalorder %s241, %s244
    %p253 = scmp.eq.s32.totalorder %s21, 1
    %p254 = por %p252, %p253
    %p255 = scmp.ne.s32.totalorder %s244, %s245
    %p256 = scmp.eq.s32.totalorder %s21, 0
    %p257 = por %p255, %p256
    %p258 = scmp.ne.s32.totalorder %s244, %s245
    %p259 = scmp.eq.s32.totalorder %s22, 1
    %p260 = por %p258, %p259
    %p262 = scmp.ne.s32.totalorder %s245, %s261
    %p263 = scmp.eq.s32.totalorder %s22, 0
    %p264 = por %p262, %p263
    %p265 = scmp.le.s32.totalorder 1, %s16
    %p266 = scmp.lt.s32.totalorder %s16, 3
    %p267 = pnand %p265, %p266
    %p268 = pneg %p267
    // Predicated region
    $region9: #{transformer_block.1} parent=5 // pred_check
      _
    $region10: #{transformer_block.1} parent=5 // pred_check_branch
      %270 = sbr.rel (%p267) target = $region12
    $region11: #{transformer_block.1} parent=5 // pred_region
      %s271 = ssub.s32 %s16, 1
      // Predicated region
      $region13: #{transformer_block.1} parent=11 // pred_check
        %p272 = pneg %p63
      $region14: #{transformer_block.1} parent=11 // pred_check_branch
        %274 = sbr.rel (%p272) target = $region16
      $region15: #{transformer_block.1} parent=11 // pred_region
        _
      $region16: #{transformer_block.1} parent=11 // pred_fallthru
        _
      // Predicated region
      $region17: #{transformer_block.1} parent=11 // pred_check
        %p275 = pneg %p84
      $region18: #{transformer_block.1} parent=11 // pred_check_branch
        %277 = sbr.rel (%p275) target = $region20
      $region19: #{transformer_block.1} parent=11 // pred_region
        _
      $region20: #{transformer_block.1} parent=11 // pred_fallthru
        _
      // Predicated region
      $region21: #{transformer_block.1} parent=11 // pred_check
        %p278 = pneg %p105
      $region22: #{transformer_block.1} parent=11 // pred_check_branch
        %280 = sbr.rel (%p278) target = $region24
      $region23: #{transformer_block.1} parent=11 // pred_region
        _
      $region24: #{transformer_block.1} parent=11 // pred_fallthru
        _
      // Predicated region
      $region25: #{transformer_block.1} parent=11 // pred_check
        %p281 = pneg %p126
      $region26: #{transformer_block.1} parent=11 // pred_check_branch
        %283 = sbr.rel (%p281) target = $region28
      $region27: #{transformer_block.1} parent=11 // pred_region
        _
      $region28: #{transformer_block.1} parent=11 // pred_fallthru
        _
      // Predicated region
      $region29: #{transformer_block.1} parent=11 // pred_check
        %p284 = pneg %p147
      $region30: #{transformer_block.1} parent=11 // pred_check_branch
        %286 = sbr.rel (%p284) target = $region32
      $region31: #{transformer_block.1} parent=11 // pred_region
        _
      $region32: #{transformer_block.1} parent=11 // pred_fallthru
        _
      // Predicated region
      $region33: #{transformer_block.1} parent=11 // pred_check
        %p287 = pneg %p168
      $region34: #{transformer_block.1} parent=11 // pred_check_branch
        %289 = sbr.rel (%p287) target = $region36
      $region35: #{transformer_block.1} parent=11 // pred_region
        _
      $region36: #{transformer_block.1} parent=11 // pred_fallthru
        _
      // Predicated region
      $region37: #{transformer_block.1} parent=11 // pred_check
        %p290 = pneg %p189
      $region38: #{transformer_block.1} parent=11 // pred_check_branch
        %292 = sbr.rel (%p290) target = $region40
      $region39: #{transformer_block.1} parent=11 // pred_region
        _
      $region40: #{transformer_block.1} parent=11 // pred_fallthru
        _
      // Predicated region
      $region41: #{transformer_block.1} parent=11 // pred_check
        %p293 = pneg %p210
      $region42: #{transformer_block.1} parent=11 // pred_check_branch
        %295 = sbr.rel (%p293) target = $region44
      $region43: #{transformer_block.1} parent=11 // pred_region
        _
      $region44: #{transformer_block.1} parent=11 // pred_fallthru
        _
      // Predicated region
      $region45: #{transformer_block.1} parent=11 // pred_check
        %p296 = pneg %p231
      $region46: #{transformer_block.1} parent=11 // pred_check_branch
        %298 = sbr.rel (%p296) target = $region48
      $region47: #{transformer_block.1} parent=11 // pred_region
        _
      $region48: #{transformer_block.1} parent=11 // pred_fallthru
        _
    $region12: #{transformer_block.1} parent=5 // pred_fallthru
      _
    %p299 = scmp.lt.s32.totalorder %s16, 2
    // Predicated region
    $region49: #{transformer_block.1} parent=5 // pred_check
      %p300 = pneg %p299
    $region50: #{transformer_block.1} parent=5 // pred_check_branch
      %302 = sbr.rel (%p300) target = $region52
    $region51: #{transformer_block.1} parent=5 // pred_region
      // Predicated region
      $region53: #{transformer_block.1} parent=51 // pred_check
        %p303 = pneg %p36
      $region54: #{transformer_block.1} parent=51 // pred_check_branch
        %305 = sbr.rel (%p303) target = $region56
      $region55: #{transformer_block.1} parent=51 // pred_region
        %p306 = scmp.lt.s32.totalorder %s16, 1
        %s307 = scalar_select %p306, %s16, 1
        %s308 = smul.addr %s307, 32
        %s309 = smul.addr %s308, 8
        %s310 = scalar_lea.vmem %s0, %s309
      $region56: #{transformer_block.1} parent=51 // pred_fallthru
        _
    $region52: #{transformer_block.1} parent=5 // pred_fallthru
      _
    %p311 = scmp.le.s32.totalorder 1, %s16
    %p312 = scmp.lt.s32.totalorder %s16, 3
    %p313 = pnand %p311, %p312
    %p314 = pneg %p313
    // Predicated region
    $region57: #{transformer_block.1} parent=5 // pred_check
      _
    $region58: #{transformer_block.1} parent=5 // pred_check_branch
      %316 = sbr.rel (%p313) target = $region60
    $region59: #{transformer_block.1} parent=5 // pred_region
      %s317 = ssub.s32 %s16, 1
      %p318 = scmp.lt.s32.totalorder %s21, 1
      %s319 = scalar_select %p318, %s21, 1
      %s320 = smul.addr %s319, 32
      %s321 = smul.addr %s320, 8
      %s322 = scalar_lea.vmem %s0, %s321
      %p323 = pneg %p42
      %p324 = pneg %p39
      %p325 = pneg %p63
      %p326 = pneg %p60
      %p327 = pneg %p84
      %p328 = pneg %p81
      %p329 = pneg %p105
      %p330 = pneg %p102
      %p331 = pneg %p126
      %p332 = pneg %p123
      %p333 = pneg %p147
      %p334 = pneg %p144
      %p335 = pneg %p168
      %p336 = pneg %p165
      %p337 = pneg %p189
      %p338 = pneg %p186
      %p339 = pneg %p210
      %p340 = pneg %p207
      %p341 = pneg %p231
      %p342 = pneg %p228
      %p343 = pneg %p257
      %p344 = pneg %p254
      %p345 = scmp.lt.s32.totalorder %s21, 1
      %s346 = scalar_select %p345, %s21, 1
      %s347 = smul.addr %s346, 32
      %s348 = smul.addr %s347, 8
      %s349 = scalar_lea.vmem %s10, %s348
      %p350 = scmp.lt.s32.totalorder %s21, 1
      %s351 = scalar_select %p350, %s21, 1
      %s352 = smul.addr %s351, 32
      %s353 = smul.addr %s352, 8
      %s354 = scalar_lea.vmem %s0, %s353
      %p355 = scmp.lt.s32.totalorder %s21, 1
      %s356 = scalar_select %p355, %s21, 1
      %s357 = smul.addr %s356, 32
      %s358 = smul.addr %s357, 8
      %s359 = scalar_lea.vmem %s10, %s358
      %v360 = vld [vmem:[%s1] sm:$0x1]
      %v361 = vld [vmem:[%s2] sm:$0x1]
      %v362 = vld [vmem:[%s354] sm:$0xff]
      %v363 = vld [vmem:[%s354 + $0x8] sm:$0xff]
      %v364 = vld [vmem:[%s354 + $0x10] sm:$0xff]
      %v365 = vld [vmem:[%s354 + $0x18] sm:$0xff]
      %v366 = vld [vmem:[%s354 + $0x20] sm:$0xff]
      %v367 = vld [vmem:[%s354 + $0x28] sm:$0xff]
      %v368 = vld [vmem:[%s354 + $0x30] sm:$0xff]
      %v369 = vld [vmem:[%s354 + $0x38] sm:$0xff]
      %v370 = vld [vmem:[%s354 + $0x40] sm:$0xff]
      %v371 = vld [vmem:[%s354 + $0x48] sm:$0xff]
      %v372 = vld [vmem:[%s354 + $0x50] sm:$0xff]
      %v373 = vld [vmem:[%s354 + $0x58] sm:$0xff]
      %v374 = vld [vmem:[%s354 + $0x60] sm:$0xff]
      %v375 = vld [vmem:[%s354 + $0x68] sm:$0xff]
      %v376 = vld [vmem:[%s354 + $0x70] sm:$0xff]
      %v377 = vld [vmem:[%s354 + $0x78] sm:$0xff]
      %v378 = vld [vmem:[%s354 + $0x80] sm:$0xff]
      %v379 = vld [vmem:[%s354 + $0x88] sm:$0xff]
      %v380 = vld [vmem:[%s354 + $0x90] sm:$0xff]
      %v381 = vld [vmem:[%s354 + $0x98] sm:$0xff]
      %v382 = vld [vmem:[%s354 + $0xa0] sm:$0xff]
      %v383 = vld [vmem:[%s354 + $0xa8] sm:$0xff]
      %v384 = vld [vmem:[%s354 + $0xb0] sm:$0xff]
      %v385 = vld [vmem:[%s354 + $0xb8] sm:$0xff]
      %v386 = vld [vmem:[%s354 + $0xc0] sm:$0xff]
      %v387 = vld [vmem:[%s354 + $0xc8] sm:$0xff]
      %v388 = vld [vmem:[%s354 + $0xd0] sm:$0xff]
      %v389 = vld [vmem:[%s354 + $0xd8] sm:$0xff]
      %v390 = vld [vmem:[%s354 + $0xe0] sm:$0xff]
      %v391 = vld [vmem:[%s354 + $0xe8] sm:$0xff]
      %v392 = vld [vmem:[%s354 + $0xf0] sm:$0xff]
      %v393 = vld [vmem:[%s354 + $0xf8] sm:$0xff]
      %vm394 = vcmask 130048
      %v395 = vsel %vm394, %v362, 0.0
      %v396 = vsel %vm394, %v363, 0.0
      %v397 = vadd.f32 %v395, %v396
      %v398 = vsel %vm394, %v364, 0.0
      %v399 = vadd.f32 %v397, %v398
      %v400 = vsel %vm394, %v365, 0.0
      %v401 = vadd.f32 %v399, %v400
      %v402 = vsel %vm394, %v366, 0.0
      %v403 = vadd.f32 %v401, %v402
      %v404 = vsel %vm394, %v367, 0.0
      %v405 = vadd.f32 %v403, %v404
      %v406 = vsel %vm394, %v368, 0.0
      %v407 = vadd.f32 %v405, %v406
      %v408 = vsel %vm394, %v369, 0.0
      %v409 = vadd.f32 %v407, %v408
      %v410 = vsel %vm394, %v370, 0.0
      %v411 = vadd.f32 %v409, %v410
      %v412 = vsel %vm394, %v371, 0.0
      %v413 = vadd.f32 %v411, %v412
      %v414 = vsel %vm394, %v372, 0.0
      %v415 = vadd.f32 %v413, %v414
      %v416 = vsel %vm394, %v373, 0.0
      %v417 = vadd.f32 %v415, %v416
      %v418 = vsel %vm394, %v374, 0.0
      %v419 = vadd.f32 %v417, %v418
      %v420 = vsel %vm394, %v375, 0.0
      %v421 = vadd.f32 %v419, %v420
      %v422 = vsel %vm394, %v376, 0.0
      %v423 = vadd.f32 %v421, %v422
      %v424 = vsel %vm394, %v377, 0.0
      %v425 = vadd.f32 %v423, %v424
      %v426 = vsel %vm394, %v378, 0.0
      %v427 = vadd.f32 %v425, %v426
      %v428 = vsel %vm394, %v379, 0.0
      %v429 = vadd.f32 %v427, %v428
      %v430 = vsel %vm394, %v380, 0.0
      %v431 = vadd.f32 %v429, %v430
      %v432 = vsel %vm394, %v381, 0.0
      %v433 = vadd.f32 %v431, %v432
      %v434 = vsel %vm394, %v382, 0.0
      %v435 = vadd.f32 %v433, %v434
      %v436 = vsel %vm394, %v383, 0.0
      %v437 = vadd.f32 %v435, %v436
      %v438 = vsel %vm394, %v384, 0.0
      %v439 = vadd.f32 %v437, %v438
      %v440 = vsel %vm394, %v385, 0.0
      %v441 = vadd.f32 %v439, %v440
      %v442 = vsel %vm394, %v386, 0.0
      %v443 = vadd.f32 %v441, %v442
      %v444 = vsel %vm394, %v387, 0.0
      %v445 = vadd.f32 %v443, %v444
      %v446 = vsel %vm394, %v388, 0.0
      %v447 = vadd.f32 %v445, %v446
      %v448 = vsel %vm394, %v389, 0.0
      %v449 = vadd.f32 %v447, %v448
      %v450 = vsel %vm394, %v390, 0.0
      %v451 = vadd.f32 %v449, %v450
      %v452 = vsel %vm394, %v391, 0.0
      %v453 = vadd.f32 %v451, %v452
      %v454 = vsel %vm394, %v392, 0.0
      %v455 = vadd.f32 %v453, %v454
      %v456 = vsel %vm394, %v393, 0.0
      %v457 = vadd.f32 %v455, %v456
      %458 = vadd.xlane.f32.xlu0 %v457
      %v459 = vpop.xlane.xlu0 %458
      %v460 = vrot.slane %v459, 4
      %v461 = vadd.f32 %v459, %v460
      %v462 = vrot.slane %v461, 2
      %v463 = vadd.f32 %v461, %v462
      %v464 = vrot.slane %v463, 1
      %v465 = vadd.f32 %v463, %v464
      %s466 = vtos %v465
      %v467 = vrcp.pop 4096.0
      %s468 = vtos %v467
      %s469 = smul.f32 %s466, %s468
      %v470 = vmul.f32 %v362, %v362
      %v471 = vmul.f32 %v363, %v363
      %v472 = vmul.f32 %v364, %v364
      %v473 = vmul.f32 %v365, %v365
      %v474 = vmul.f32 %v366, %v366
      %v475 = vmul.f32 %v367, %v367
      %v476 = vmul.f32 %v368, %v368
      %v477 = vmul.f32 %v369, %v369
      %v478 = vmul.f32 %v370, %v370
      %v479 = vmul.f32 %v371, %v371
      %v480 = vmul.f32 %v372, %v372
      %v481 = vmul.f32 %v373, %v373
      %v482 = vmul.f32 %v374, %v374
      %v483 = vmul.f32 %v375, %v375
      %v484 = vmul.f32 %v376, %v376
      %v485 = vmul.f32 %v377, %v377
      %v486 = vmul.f32 %v378, %v378
      %v487 = vmul.f32 %v379, %v379
      %v488 = vmul.f32 %v380, %v380
      %v489 = vmul.f32 %v381, %v381
      %v490 = vmul.f32 %v382, %v382
      %v491 = vmul.f32 %v383, %v383
      %v492 = vmul.f32 %v384, %v384
      %v493 = vmul.f32 %v385, %v385
      %v494 = vmul.f32 %v386, %v386
      %v495 = vmul.f32 %v387, %v387
      %v496 = vmul.f32 %v388, %v388
      %v497 = vmul.f32 %v389, %v389
      %v498 = vmul.f32 %v390, %v390
      %v499 = vmul.f32 %v391, %v391
      %v500 = vmul.f32 %v392, %v392
      %v501 = vmul.f32 %v393, %v393
      %v502 = vsel %vm394, %v470, 0.0
      %v503 = vsel %vm394, %v471, 0.0
      %v504 = vadd.f32 %v502, %v503
      %v505 = vsel %vm394, %v472, 0.0
      %v506 = vadd.f32 %v504, %v505
      %v507 = vsel %vm394, %v473, 0.0
      %v508 = vadd.f32 %v506, %v507
      %v509 = vsel %vm394, %v474, 0.0
      %v510 = vadd.f32 %v508, %v509
      %v511 = vsel %vm394, %v475, 0.0
      %v512 = vadd.f32 %v510, %v511
      %v513 = vsel %vm394, %v476, 0.0
      %v514 = vadd.f32 %v512, %v513
      %v515 = vsel %vm394, %v477, 0.0
      %v516 = vadd.f32 %v514, %v515
      %v517 = vsel %vm394, %v478, 0.0
      %v518 = vadd.f32 %v516, %v517
      %v519 = vsel %vm394, %v479, 0.0
      %v520 = vadd.f32 %v518, %v519
      %v521 = vsel %vm394, %v480, 0.0
      %v522 = vadd.f32 %v520, %v521
      %v523 = vsel %vm394, %v481, 0.0
      %v524 = vadd.f32 %v522, %v523
      %v525 = vsel %vm394, %v482, 0.0
      %v526 = vadd.f32 %v524, %v525
      %v527 = vsel %vm394, %v483, 0.0
      %v528 = vadd.f32 %v526, %v527
      %v529 = vsel %vm394, %v484, 0.0
      %v530 = vadd.f32 %v528, %v529
      %v531 = vsel %vm394, %v485, 0.0
      %v532 = vadd.f32 %v530, %v531
      %v533 = vsel %vm394, %v486, 0.0
      %v534 = vadd.f32 %v532, %v533
      %v535 = vsel %vm394, %v487, 0.0
      %v536 = vadd.f32 %v534, %v535
      %v537 = vsel %vm394, %v488, 0.0
      %v538 = vadd.f32 %v536, %v537
      %v539 = vsel %vm394, %v489, 0.0
      %v540 = vadd.f32 %v538, %v539
      %v541 = vsel %vm394, %v490, 0.0
      %v542 = vadd.f32 %v540, %v541
      %v543 = vsel %vm394, %v491, 0.0
      %v544 = vadd.f32 %v542, %v543
      %v545 = vsel %vm394, %v492, 0.0
      %v546 = vadd.f32 %v544, %v545
      %v547 = vsel %vm394, %v493, 0.0
      %v548 = vadd.f32 %v546, %v547
      %v549 = vsel %vm394, %v494, 0.0
      %v550 = vadd.f32 %v548, %v549
      %v551 = vsel %vm394, %v495, 0.0
      %v552 = vadd.f32 %v550, %v551
      %v553 = vsel %vm394, %v496, 0.0
      %v554 = vadd.f32 %v552, %v553
      %v555 = vsel %vm394, %v497, 0.0
      %v556 = vadd.f32 %v554, %v555
      %v557 = vsel %vm394, %v498, 0.0
      %v558 = vadd.f32 %v556, %v557
      %v559 = vsel %vm394, %v499, 0.0
      %v560 = vadd.f32 %v558, %v559
      %v561 = vsel %vm394, %v500, 0.0
      %v562 = vadd.f32 %v560, %v561
      %v563 = vsel %vm394, %v501, 0.0
      %v564 = vadd.f32 %v562, %v563
      %565 = vadd.xlane.f32.xlu0 %v564
      %v566 = vpop.xlane.xlu0 %565
      %v567 = vrot.slane %v566, 4
      %v568 = vadd.f32 %v566, %v567
      %v569 = vrot.slane %v568, 2
      %v570 = vadd.f32 %v568, %v569
      %v571 = vrot.slane %v570, 1
      %v572 = vadd.f32 %v570, %v571
      %s573 = vtos %v572
      %v574 = vrcp.pop 4096.0
      %s575 = vtos %v574
      %s576 = smul.f32 %s573, %s575
      %s577 = smul.f32 %s469, %s469
      %s578 = ssub.f32 %s576, %s577
      %v579 = vstv %s469
      %v580 = vsub.f32 %v362, %v579
      %v581 = vsub.f32 %v363, %v579
      %v582 = vsub.f32 %v364, %v579
      %v583 = vsub.f32 %v365, %v579
      %v584 = vsub.f32 %v366, %v579
      %v585 = vsub.f32 %v367, %v579
      %v586 = vsub.f32 %v368, %v579
      %v587 = vsub.f32 %v369, %v579
      %v588 = vsub.f32 %v370, %v579
      %v589 = vsub.f32 %v371, %v579
      %v590 = vsub.f32 %v372, %v579
      %v591 = vsub.f32 %v373, %v579
      %v592 = vsub.f32 %v374, %v579
      %v593 = vsub.f32 %v375, %v579
      %v594 = vsub.f32 %v376, %v579
      %v595 = vsub.f32 %v377, %v579
      %v596 = vsub.f32 %v378, %v579
      %v597 = vsub.f32 %v379, %v579
      %v598 = vsub.f32 %v380, %v579
      %v599 = vsub.f32 %v381, %v579
      %v600 = vsub.f32 %v382, %v579
      %v601 = vsub.f32 %v383, %v579
      %v602 = vsub.f32 %v384, %v579
      %v603 = vsub.f32 %v385, %v579
      %v604 = vsub.f32 %v386, %v579
      %v605 = vsub.f32 %v387, %v579
      %v606 = vsub.f32 %v388, %v579
      %v607 = vsub.f32 %v389, %v579
      %v608 = vsub.f32 %v390, %v579
      %v609 = vsub.f32 %v391, %v579
      %v610 = vsub.f32 %v392, %v579
      %v611 = vsub.f32 %v393, %v579
      %s612 = sadd.f32 %s578, 1e-05
      %v613 = vstv %s612
      %v614 = vrsqrt.pop %v613
      %s615 = vtos %v614
      %v616 = vstv %s615
      %v617 = vmul.f32 %v580, %v616
      %v618 = vmul.f32 %v581, %v616
      %v619 = vmul.f32 %v582, %v616
      %v620 = vmul.f32 %v583, %v616
      %v621 = vmul.f32 %v584, %v616
      %v622 = vmul.f32 %v585, %v616
      %v623 = vmul.f32 %v586, %v616
      %v624 = vmul.f32 %v587, %v616
      %v625 = vmul.f32 %v588, %v616
      %v626 = vmul.f32 %v589, %v616
      %v627 = vmul.f32 %v590, %v616
      %v628 = vmul.f32 %v591, %v616
      %v629 = vmul.f32 %v592, %v616
      %v630 = vmul.f32 %v593, %v616
      %v631 = vmul.f32 %v594, %v616
      %v632 = vmul.f32 %v595, %v616
      %v633 = vmul.f32 %v596, %v616
      %v634 = vmul.f32 %v597, %v616
      %v635 = vmul.f32 %v598, %v616
      %v636 = vmul.f32 %v599, %v616
      %v637 = vmul.f32 %v600, %v616
      %v638 = vmul.f32 %v601, %v616
      %v639 = vmul.f32 %v602, %v616
      %v640 = vmul.f32 %v603, %v616
      %v641 = vmul.f32 %v604, %v616
      %v642 = vmul.f32 %v605, %v616
      %v643 = vmul.f32 %v606, %v616
      %v644 = vmul.f32 %v607, %v616
      %v645 = vmul.f32 %v608, %v616
      %v646 = vmul.f32 %v609, %v616
      %v647 = vmul.f32 %v610, %v616
      %v648 = vmul.f32 %v611, %v616
      %v650 = vlaneseq
      %v651 = vshrl.u32 %v650, 7
      %v652 = vsub.s32 0, %v651
      %v653 = vrot.slane %v360, %v652
      %v655 = vmul.f32 %v617, %v653
      %v656 = vmul.f32 %v618, %v653
      %v657 = vmul.f32 %v619, %v653
      %v658 = vmul.f32 %v620, %v653
      %v659 = vmul.f32 %v621, %v653
      %v660 = vmul.f32 %v622, %v653
      %v661 = vmul.f32 %v623, %v653
      %v662 = vmul.f32 %v624, %v653
      %v663 = vmul.f32 %v625, %v653
      %v664 = vmul.f32 %v626, %v653
      %v665 = vmul.f32 %v627, %v653
      %v666 = vmul.f32 %v628, %v653
      %v667 = vmul.f32 %v629, %v653
      %v668 = vmul.f32 %v630, %v653
      %v669 = vmul.f32 %v631, %v653
      %v670 = vmul.f32 %v632, %v653
      %v671 = vmul.f32 %v633, %v653
      %v672 = vmul.f32 %v634, %v653
      %v673 = vmul.f32 %v635, %v653
      %v674 = vmul.f32 %v636, %v653
      %v675 = vmul.f32 %v637, %v653
      %v676 = vmul.f32 %v638, %v653
      %v677 = vmul.f32 %v639, %v653
      %v678 = vmul.f32 %v640, %v653
      %v679 = vmul.f32 %v641, %v653
      %v680 = vmul.f32 %v642, %v653
      %v681 = vmul.f32 %v643, %v653
      %v682 = vmul.f32 %v644, %v653
      %v683 = vmul.f32 %v645, %v653
      %v684 = vmul.f32 %v646, %v653
      %v685 = vmul.f32 %v647, %v653
      %v686 = vmul.f32 %v648, %v653
      %v688 = vlaneseq
      %v689 = vshrl.u32 %v688, 7
      %v690 = vsub.s32 0, %v689
      %v691 = vrot.slane %v361, %v690
      %v693 = vadd.f32 %v655, %v691
      %v694 = vadd.f32 %v656, %v691
      %v695 = vadd.f32 %v657, %v691
      %v696 = vadd.f32 %v658, %v691
      %v697 = vadd.f32 %v659, %v691
      %v698 = vadd.f32 %v660, %v691
      %v699 = vadd.f32 %v661, %v691
      %v700 = vadd.f32 %v662, %v691
      %v701 = vadd.f32 %v663, %v691
      %v702 = vadd.f32 %v664, %v691
      %v703 = vadd.f32 %v665, %v691
      %v704 = vadd.f32 %v666, %v691
      %v705 = vadd.f32 %v667, %v691
      %v706 = vadd.f32 %v668, %v691
      %v707 = vadd.f32 %v669, %v691
      %v708 = vadd.f32 %v670, %v691
      %v709 = vadd.f32 %v671, %v691
      %v710 = vadd.f32 %v672, %v691
      %v711 = vadd.f32 %v673, %v691
      %v712 = vadd.f32 %v674, %v691
      %v713 = vadd.f32 %v675, %v691
      %v714 = vadd.f32 %v676, %v691
      %v715 = vadd.f32 %v677, %v691
      %v716 = vadd.f32 %v678, %v691
      %v717 = vadd.f32 %v679, %v691
      %v718 = vadd.f32 %v680, %v691
      %v719 = vadd.f32 %v681, %v691
      %v720 = vadd.f32 %v682, %v691
      %v721 = vadd.f32 %v683, %v691
      %v722 = vadd.f32 %v684, %v691
      %v723 = vadd.f32 %v685, %v691
      %v724 = vadd.f32 %v686, %v691
      %v725 = vld [vmem:[%s3] sm:$0xff]
      %v726 = vld [vmem:[%s3 + $0x8] sm:$0xff]
      %v728 = vsel %vm394, %v693, 0
      %v731 = vsel %vm394, %v694, 0
      %v734 = vsel %vm394, %v695, 0
      %v737 = vsel %vm394, %v696, 0
      %v740 = vsel %vm394, %v697, 0
      %v743 = vsel %vm394, %v698, 0
      %v746 = vsel %vm394, %v699, 0
      %v749 = vsel %vm394, %v700, 0
      %v752 = vsel %vm394, %v701, 0
      %v755 = vsel %vm394, %v702, 0
      %v758 = vsel %vm394, %v703, 0
      %v761 = vsel %vm394, %v704, 0
      %v764 = vsel %vm394, %v705, 0
      %v767 = vsel %vm394, %v706, 0
      %v770 = vsel %vm394, %v707, 0
      %v773 = vsel %vm394, %v708, 0
      %v776 = vsel %vm394, %v709, 0
      %v779 = vsel %vm394, %v710, 0
      %v782 = vsel %vm394, %v711, 0
      %v785 = vsel %vm394, %v712, 0
      %v788 = vsel %vm394, %v713, 0
      %v791 = vsel %vm394, %v714, 0
      %v794 = vsel %vm394, %v715, 0
      %v797 = vsel %vm394, %v716, 0
      %v800 = vsel %vm394, %v717, 0
      %v803 = vsel %vm394, %v718, 0
      %v806 = vsel %vm394, %v719, 0
      %v809 = vsel %vm394, %v720, 0
      %v812 = vsel %vm394, %v721, 0
      %v815 = vsel %vm394, %v722, 0
      %v818 = vsel %vm394, %v723, 0
      %v821 = vsel %vm394, %v724, 0
      %823 = vmatprep.subr.mxu0 0.0
      %824 = vmatpush1.msra.mxu0 0.0
      %825 = vmatprep.subr.mxu0 0.0
      %826 = vmatpush1.msra.mxu0 0.0
      %827 = vmatprep.subr.mxu0 0.0
      %828 = vmatpush1.msra.mxu0 0.0
      %829 = vmatprep.subr.mxu0 0.0
      %830 = vmatpush1.msra.mxu0 0.0
      %831 = vmatprep.subr.mxu0 0.0
      %832 = vmatpush1.msra.mxu0 0.0
      %833 = vmatprep.subr.mxu0 0.0
      %834 = vmatpush1.msra.mxu0 0.0
      %835 = vmatprep.subr.mxu0 0.0
      %836 = vmatpush1.msra.mxu0 0.0
      %837 = vmatprep.subr.mxu0 0.0
      %838 = vmatpush1.msra.mxu0 0.0
      %839 = vmatprep.subr.mxu0 0.0
      %840 = vmatpush1.msra.mxu0 0.0
      %841 = vmatprep.subr.mxu0 0.0
      %842 = vmatpush1.msra.mxu0 0.0
      %843 = vmatprep.subr.mxu0 0.0
      %844 = vmatpush1.msra.mxu0 0.0
      %845 = vmatprep.subr.mxu0 0.0
      %846 = vmatpush1.msra.mxu0 0.0
      %847 = vmatprep.subr.mxu0 0.0
      %848 = vmatpush1.msra.mxu0 0.0
      %849 = vmatprep.subr.mxu0 0.0
      %850 = vmatpush1.msra.mxu0 0.0
      %851 = vmatprep.subr.mxu0 0.0
      %852 = vmatpush1.msra.mxu0 %v726
      %853 = vmatprep.subr.mxu0 0.0
      %854 = vmatpush1.msra.mxu0 %v725
      %855 = vmatprep.subr.mxu0 0.0
      %856 = vmatpush2.msra.mxu0 0.0
      %857 = vmatprep.subr.mxu0 0.0
      %858 = vmatpush2.msra.mxu0 0.0
      %859 = vmatprep.subr.mxu0 0.0
      %860 = vmatpush2.msra.mxu0 0.0
      %861 = vmatprep.subr.mxu0 0.0
      %862 = vmatpush2.msra.mxu0 0.0
      %863 = vmatprep.subr.mxu0 0.0
      %864 = vmatpush2.msra.mxu0 0.0
      %865 = vmatprep.subr.mxu0 0.0
      %866 = vmatpush2.msra.mxu0 0.0
      %867 = vmatprep.subr.mxu0 0.0
      %868 = vmatpush2.msra.mxu0 0.0
      %869 = vmatprep.subr.mxu0 0.0
      %870 = vmatpush2.msra.mxu0 0.0
      %871 = vmatprep.subr.mxu0 0.0
      %872 = vmatpush2.msra.mxu0 0.0
      %873 = vmatprep.subr.mxu0 0.0
      %874 = vmatpush2.msra.mxu0 0.0
      %875 = vmatprep.subr.mxu0 0.0
      %876 = vmatpush2.msra.mxu0 0.0
      %877 = vmatprep.subr.mxu0 0.0
      %878 = vmatpush2.msra.mxu0 0.0
      %879 = vmatprep.subr.mxu0 0.0
      %880 = vmatpush2.msra.mxu0 0.0
      %881 = vmatprep.subr.mxu0 0.0
      %882 = vmatpush2.msra.mxu0 0.0
      %883 = vmatprep.subr.mxu0 0.0
      %884 = vmatpush2.msra.mxu0 0.0
      %885 = vmatprep.subr.mxu0 0.0
      %886 = vmatpush2.msra.mxu0 0.0
      %887 = vmatprep.mubr.f32.mxu0 0.0
      %888 = vmatmul.mubr.f32.gmra.mxu0 %v728
      %v889 = vpop.f32.mrf.mxu0
      %v890 = vadd.f32 0.0, %v889
      %v891 = vpop.f32.mrf.mxu0
      %892 = vmatprep.mubr.f32.mxu0 0.0
      %893 = vmatmul.mubr.f32.gmra.mxu0 %v731
      %v894 = vpop.f32.mrf.mxu0
      %v895 = vadd.f32 0.0, %v894
      %v896 = vpop.f32.mrf.mxu0
      %897 = vmatprep.mubr.f32.mxu0 0.0
      %898 = vmatmul.mubr.f32.gmra.mxu0 %v734
      %v899 = vpop.f32.mrf.mxu0
      %v900 = vadd.f32 0.0, %v899
      %v901 = vpop.f32.mrf.mxu0
      %902 = vmatprep.mubr.f32.mxu0 0.0
      %903 = vmatmul.mubr.f32.gmra.mxu0 %v737
      %v904 = vpop.f32.mrf.mxu0
      %v905 = vadd.f32 0.0, %v904
      %v906 = vpop.f32.mrf.mxu0
      %907 = vmatprep.mubr.f32.mxu0 0.0
      %908 = vmatmul.mubr.f32.gmra.mxu0 %v740
      %v909 = vpop.f32.mrf.mxu0
      %v910 = vadd.f32 0.0, %v909
      %v911 = vpop.f32.mrf.mxu0
      %912 = vmatprep.mubr.f32.mxu0 0.0
      %913 = vmatmul.mubr.f32.gmra.mxu0 %v743
      %v914 = vpop.f32.mrf.mxu0
      %v915 = vadd.f32 0.0, %v914
      %v916 = vpop.f32.mrf.mxu0
      %917 = vmatprep.mubr.f32.mxu0 0.0
      %918 = vmatmul.mubr.f32.gmra.mxu0 %v746
      %v919 = vpop.f32.mrf.mxu0
      %v920 = vadd.f32 0.0, %v919
      %v921 = vpop.f32.mrf.mxu0
      %922 = vmatprep.mubr.f32.mxu0 0.0
      %923 = vmatmul.mubr.f32.gmra.mxu0 %v749
      %v924 = vpop.f32.mrf.mxu0
      %v925 = vadd.f32 0.0, %v924
      %v926 = vpop.f32.mrf.mxu0
      %927 = vmatprep.mubr.f32.mxu0 0.0
      %928 = vmatmul.mubr.f32.gmra.mxu0 %v752
      %v929 = vpop.f32.mrf.mxu0
      %v930 = vadd.f32 0.0, %v929
      %v931 = vpop.f32.mrf.mxu0
      %932 = vmatprep.mubr.f32.mxu0 0.0
      %933 = vmatmul.mubr.f32.gmra.mxu0 %v755
      %v934 = vpop.f32.mrf.mxu0
      %v935 = vadd.f32 0.0, %v934
      %v936 = vpop.f32.mrf.mxu0
      %937 = vmatprep.mubr.f32.mxu0 0.0
      %938 = vmatmul.mubr.f32.gmra.mxu0 %v758
      %v939 = vpop.f32.mrf.mxu0
      %v940 = vadd.f32 0.0, %v939
      %v941 = vpop.f32.mrf.mxu0
      %942 = vmatprep.mubr.f32.mxu0 0.0
      %943 = vmatmul.mubr.f32.gmra.mxu0 %v761
      %v944 = vpop.f32.mrf.mxu0
      %v945 = vadd.f32 0.0, %v944
      %v946 = vpop.f32.mrf.mxu0
      %947 = vmatprep.mubr.f32.mxu0 0.0
      %948 = vmatmul.mubr.f32.gmra.mxu0 %v764
      %v949 = vpop.f32.mrf.mxu0
      %v950 = vadd.f32 0.0, %v949
      %v951 = vpop.f32.mrf.mxu0
      %952 = vmatprep.mubr.f32.mxu0 0.0
      %953 = vmatmul.mubr.f32.gmra.mxu0 %v767
      %v954 = vpop.f32.mrf.mxu0
      %v955 = vadd.f32 0.0, %v954
      %v956 = vpop.f32.mrf.mxu0
      %957 = vmatprep.mubr.f32.mxu0 0.0
      %958 = vmatmul.mubr.f32.gmra.mxu0 %v770
      %v959 = vpop.f32.mrf.mxu0
      %v960 = vadd.f32 0.0, %v959
      %v961 = vpop.f32.mrf.mxu0
      %962 = vmatprep.mubr.f32.mxu0 0.0
      %963 = vmatmul.mubr.f32.gmra.mxu0 %v773
      %v964 = vpop.f32.mrf.mxu0
      %v965 = vadd.f32 0.0, %v964
      %v966 = vpop.f32.mrf.mxu0
      %967 = vmatprep.mubr.f32.mxu0 0.0
      %968 = vmatmul.mubr.f32.gmra.mxu0 %v776
      %v969 = vpop.f32.mrf.mxu0
      %v970 = vadd.f32 0.0, %v969
      %v971 = vpop.f32.mrf.mxu0
      %972 = vmatprep.mubr.f32.mxu0 0.0
      %973 = vmatmul.mubr.f32.gmra.mxu0 %v779
      %v974 = vpop.f32.mrf.mxu0
      %v975 = vadd.f32 0.0, %v974
      %v976 = vpop.f32.mrf.mxu0
      %977 = vmatprep.mubr.f32.mxu0 0.0
      %978 = vmatmul.mubr.f32.gmra.mxu0 %v782
      %v979 = vpop.f32.mrf.mxu0
      %v980 = vadd.f32 0.0, %v979
      %v981 = vpop.f32.mrf.mxu0
      %982 = vmatprep.mubr.f32.mxu0 0.0
      %983 = vmatmul.mubr.f32.gmra.mxu0 %v785
      %v984 = vpop.f32.mrf.mxu0
      %v985 = vadd.f32 0.0, %v984
      %v986 = vpop.f32.mrf.mxu0
      %987 = vmatprep.mubr.f32.mxu0 0.0
      %988 = vmatmul.mubr.f32.gmra.mxu0 %v788
      %v989 = vpop.f32.mrf.mxu0
      %v990 = vadd.f32 0.0, %v989
      %v991 = vpop.f32.mrf.mxu0
      %992 = vmatprep.mubr.f32.mxu0 0.0
      %993 = vmatmul.mubr.f32.gmra.mxu0 %v791
      %v994 = vpop.f32.mrf.mxu0
      %v995 = vadd.f32 0.0, %v994
      %v996 = vpop.f32.mrf.mxu0
      %997 = vmatprep.mubr.f32.mxu0 0.0
      %998 = vmatmul.mubr.f32.gmra.mxu0 %v794
      %v999 = vpop.f32.mrf.mxu0
      %v1000 = vadd.f32 0.0, %v999
      %v1001 = vpop.f32.mrf.mxu0
      %1002 = vmatprep.mubr.f32.mxu0 0.0
      %1003 = vmatmul.mubr.f32.gmra.mxu0 %v797
      %v1004 = vpop.f32.mrf.mxu0
      %v1005 = vadd.f32 0.0, %v1004
      %v1006 = vpop.f32.mrf.mxu0
      %1007 = vmatprep.mubr.f32.mxu0 0.0
      %1008 = vmatmul.mubr.f32.gmra.mxu0 %v800
      %v1009 = vpop.f32.mrf.mxu0
      %v1010 = vadd.f32 0.0, %v1009
      %v1011 = vpop.f32.mrf.mxu0
      %1012 = vmatprep.mubr.f32.mxu0 0.0
      %1013 = vmatmul.mubr.f32.gmra.mxu0 %v803
      %v1014 = vpop.f32.mrf.mxu0
      %v1015 = vadd.f32 0.0, %v1014
      %v1016 = vpop.f32.mrf.mxu0
      %1017 = vmatprep.mubr.f32.mxu0 0.0
      %1018 = vmatmul.mubr.f32.gmra.mxu0 %v806
      %v1019 = vpop.f32.mrf.mxu0
      %v1020 = vadd.f32 0.0, %v1019
      %v1021 = vpop.f32.mrf.mxu0
      %1022 = vmatprep.mubr.f32.mxu0 0.0
      %1023 = vmatmul.mubr.f32.gmra.mxu0 %v809
      %v1024 = vpop.f32.mrf.mxu0
      %v1025 = vadd.f32 0.0, %v1024
      %v1026 = vpop.f32.mrf.mxu0
      %1027 = vmatprep.mubr.f32.mxu0 0.0
      %1028 = vmatmul.mubr.f32.gmra.mxu0 %v812
      %v1029 = vpop.f32.mrf.mxu0
      %v1030 = vadd.f32 0.0, %v1029
      %v1031 = vpop.f32.mrf.mxu0
      %1032 = vmatprep.mubr.f32.mxu0 0.0
      %1033 = vmatmul.mubr.f32.gmra.mxu0 %v815
      %v1034 = vpop.f32.mrf.mxu0
      %v1035 = vadd.f32 0.0, %v1034
      %v1036 = vpop.f32.mrf.mxu0
      %1037 = vmatprep.mubr.f32.mxu0 0.0
      %1038 = vmatmul.mubr.f32.gmra.mxu0 %v818
      %v1039 = vpop.f32.mrf.mxu0
      %v1040 = vadd.f32 0.0, %v1039
      %v1041 = vpop.f32.mrf.mxu0
      %1042 = vmatprep.mubr.f32.mxu0 0.0
      %1043 = vmatmul.mubr.f32.gmra.mxu0 %v821
      %v1044 = vpop.f32.mrf.mxu0
      %v1045 = vadd.f32 0.0, %v1044
      %v1046 = vpop.f32.mrf.mxu0
      %1047 = vdwg.mxu0
      %1080 = vrot.lane.b32.xlu0 %v890, 124
      %v1081 = vpop.permute.xlu0 %1080
      %1082 = vrot.lane.b32.xlu0 %v895, 124
      %v1083 = vpop.permute.xlu0 %1082
      %1084 = vrot.lane.b32.xlu0 %v900, 124
      %v1085 = vpop.permute.xlu0 %1084
      %1086 = vrot.lane.b32.xlu0 %v905, 124
      %v1087 = vpop.permute.xlu0 %1086
      %1088 = vrot.lane.b32.xlu0 %v910, 124
      %v1089 = vpop.permute.xlu0 %1088
      %1090 = vrot.lane.b32.xlu0 %v915, 124
      %v1091 = vpop.permute.xlu0 %1090
      %1092 = vrot.lane.b32.xlu0 %v920, 124
      %v1093 = vpop.permute.xlu0 %1092
      %1094 = vrot.lane.b32.xlu0 %v925, 124
      %v1095 = vpop.permute.xlu0 %1094
      %1096 = vrot.lane.b32.xlu0 %v930, 124
      %v1097 = vpop.permute.xlu0 %1096
      %1098 = vrot.lane.b32.xlu0 %v935, 124
      %v1099 = vpop.permute.xlu0 %1098
      %1100 = vrot.lane.b32.xlu0 %v940, 124
      %v1101 = vpop.permute.xlu0 %1100
      %1102 = vrot.lane.b32.xlu0 %v945, 124
      %v1103 = vpop.permute.xlu0 %1102
      %1104 = vrot.lane.b32.xlu0 %v950, 124
      %v1105 = vpop.permute.xlu0 %1104
      %1106 = vrot.lane.b32.xlu0 %v955, 124
      %v1107 = vpop.permute.xlu0 %1106
      %1108 = vrot.lane.b32.xlu0 %v960, 124
      %v1109 = vpop.permute.xlu0 %1108
      %1110 = vrot.lane.b32.xlu0 %v965, 124
      %v1111 = vpop.permute.xlu0 %1110
      %1112 = vrot.lane.b32.xlu0 %v970, 124
      %v1113 = vpop.permute.xlu0 %1112
      %1114 = vrot.lane.b32.xlu0 %v975, 124
      %v1115 = vpop.permute.xlu0 %1114
      %1116 = vrot.lane.b32.xlu0 %v980, 124
      %v1117 = vpop.permute.xlu0 %1116
      %1118 = vrot.lane.b32.xlu0 %v985, 124
      %v1119 = vpop.permute.xlu0 %1118
      %1120 = vrot.lane.b32.xlu0 %v990, 124
      %v1121 = vpop.permute.xlu0 %1120
      %1122 = vrot.lane.b32.xlu0 %v995, 124
      %v1123 = vpop.permute.xlu0 %1122
      %1124 = vrot.lane.b32.xlu0 %v1000, 124
      %v1125 = vpop.permute.xlu0 %1124
      %1126 = vrot.lane.b32.xlu0 %v1005, 124
      %v1127 = vpop.permute.xlu0 %1126
      %1128 = vrot.lane.b32.xlu0 %v1010, 124
      %v1129 = vpop.permute.xlu0 %1128
      %1130 = vrot.lane.b32.xlu0 %v1015, 124
      %v1131 = vpop.permute.xlu0 %1130
      %1132 = vrot.lane.b32.xlu0 %v1020, 124
      %v1133 = vpop.permute.xlu0 %1132
      %1134 = vrot.lane.b32.xlu0 %v1025, 124
      %v1135 = vpop.permute.xlu0 %1134
      %1136 = vrot.lane.b32.xlu0 %v1030, 124
      %v1137 = vpop.permute.xlu0 %1136
      %1138 = vrot.lane.b32.xlu0 %v1035, 124
      %v1139 = vpop.permute.xlu0 %1138
      %1140 = vrot.lane.b32.xlu0 %v1040, 124
      %v1141 = vpop.permute.xlu0 %1140
      %1142 = vrot.lane.b32.xlu0 %v1045, 124
      %v1143 = vpop.permute.xlu0 %1142
      %1144 = vrot.lane.b32.xlu0 %v890, 120
      %v1145 = vpop.permute.xlu0 %1144
      %1146 = vrot.lane.b32.xlu0 %v895, 120
      %v1147 = vpop.permute.xlu0 %1146
      %1148 = vrot.lane.b32.xlu0 %v900, 120
      %v1149 = vpop.permute.xlu0 %1148
      %1150 = vrot.lane.b32.xlu0 %v905, 120
      %v1151 = vpop.permute.xlu0 %1150
      %1152 = vrot.lane.b32.xlu0 %v910, 120
      %v1153 = vpop.permute.xlu0 %1152
      %1154 = vrot.lane.b32.xlu0 %v915, 120
      %v1155 = vpop.permute.xlu0 %1154
      %1156 = vrot.lane.b32.xlu0 %v920, 120
      %v1157 = vpop.permute.xlu0 %1156
      %1158 = vrot.lane.b32.xlu0 %v925, 120
      %v1159 = vpop.permute.xlu0 %1158
      %1160 = vrot.lane.b32.xlu0 %v930, 120
      %v1161 = vpop.permute.xlu0 %1160
      %1162 = vrot.lane.b32.xlu0 %v935, 120
      %v1163 = vpop.permute.xlu0 %1162
      %1164 = vrot.lane.b32.xlu0 %v940, 120
      %v1165 = vpop.permute.xlu0 %1164
      %1166 = vrot.lane.b32.xlu0 %v945, 120
      %v1167 = vpop.permute.xlu0 %1166
      %1168 = vrot.lane.b32.xlu0 %v950, 120
      %v1169 = vpop.permute.xlu0 %1168
      %1170 = vrot.lane.b32.xlu0 %v955, 120
      %v1171 = vpop.permute.xlu0 %1170
      %1172 = vrot.lane.b32.xlu0 %v960, 120
      %v1173 = vpop.permute.xlu0 %1172
      %1174 = vrot.lane.b32.xlu0 %v965, 120
      %v1175 = vpop.permute.xlu0 %1174
      %1176 = vrot.lane.b32.xlu0 %v970, 120
      %v1177 = vpop.permute.xlu0 %1176
      %1178 = vrot.lane.b32.xlu0 %v975, 120
      %v1179 = vpop.permute.xlu0 %1178
      %1180 = vrot.lane.b32.xlu0 %v980, 120
      %v1181 = vpop.permute.xlu0 %1180
      %1182 = vrot.lane.b32.xlu0 %v985, 120
      %v1183 = vpop.permute.xlu0 %1182
      %1184 = vrot.lane.b32.xlu0 %v990, 120
      %v1185 = vpop.permute.xlu0 %1184
      %1186 = vrot.lane.b32.xlu0 %v995, 120
      %v1187 = vpop.permute.xlu0 %1186
      %1188 = vrot.lane.b32.xlu0 %v1000, 120
      %v1189 = vpop.permute.xlu0 %1188
      %1190 = vrot.lane.b32.xlu0 %v1005, 120
      %v1191 = vpop.permute.xlu0 %1190
      %1192 = vrot.lane.b32.xlu0 %v1010, 120
      %v1193 = vpop.permute.xlu0 %1192
      %1194 = vrot.lane.b32.xlu0 %v1015, 120
      %v1195 = vpop.permute.xlu0 %1194
      %1196 = vrot.lane.b32.xlu0 %v1020, 120
      %v1197 = vpop.permute.xlu0 %1196
      %1198 = vrot.lane.b32.xlu0 %v1025, 120
      %v1199 = vpop.permute.xlu0 %1198
      %1200 = vrot.lane.b32.xlu0 %v1030, 120
      %v1201 = vpop.permute.xlu0 %1200
      %1202 = vrot.lane.b32.xlu0 %v1035, 120
      %v1203 = vpop.permute.xlu0 %1202
      %1204 = vrot.lane.b32.xlu0 %v1040, 120
      %v1205 = vpop.permute.xlu0 %1204
      %1206 = vrot.lane.b32.xlu0 %v1045, 120
      %v1207 = vpop.permute.xlu0 %1206
      %1208 = vrot.lane.b32.xlu0 %v890, 116
      %v1209 = vpop.permute.xlu0 %1208
      %1210 = vrot.lane.b32.xlu0 %v895, 116
      %v1211 = vpop.permute.xlu0 %1210
      %1212 = vrot.lane.b32.xlu0 %v900, 116
      %v1213 = vpop.permute.xlu0 %1212
      %1214 = vrot.lane.b32.xlu0 %v905, 116
      %v1215 = vpop.permute.xlu0 %1214
      %1216 = vrot.lane.b32.xlu0 %v910, 116
      %v1217 = vpop.permute.xlu0 %1216
      %1218 = vrot.lane.b32.xlu0 %v915, 116
      %v1219 = vpop.permute.xlu0 %1218
      %1220 = vrot.lane.b32.xlu0 %v920, 116
      %v1221 = vpop.permute.xlu0 %1220
      %1222 = vrot.lane.b32.xlu0 %v925, 116
      %v1223 = vpop.permute.xlu0 %1222
      %1224 = vrot.lane.b32.xlu0 %v930, 116
      %v1225 = vpop.permute.xlu0 %1224
      %1226 = vrot.lane.b32.xlu0 %v935, 116
      %v1227 = vpop.permute.xlu0 %1226
      %1228 = vrot.lane.b32.xlu0 %v940, 116
      %v1229 = vpop.permute.xlu0 %1228
      %1230 = vrot.lane.b32.xlu0 %v945, 116
      %v1231 = vpop.permute.xlu0 %1230
      %1232 = vrot.lane.b32.xlu0 %v950, 116
      %v1233 = vpop.permute.xlu0 %1232
      %1234 = vrot.lane.b32.xlu0 %v955, 116
      %v1235 = vpop.permute.xlu0 %1234
      %1236 = vrot.lane.b32.xlu0 %v960, 116
      %v1237 = vpop.permute.xlu0 %1236
      %1238 = vrot.lane.b32.xlu0 %v965, 116
      %v1239 = vpop.permute.xlu0 %1238
      %1240 = vrot.lane.b32.xlu0 %v970, 116
      %v1241 = vpop.permute.xlu0 %1240
      %1242 = vrot.lane.b32.xlu0 %v975, 116
      %v1243 = vpop.permute.xlu0 %1242
      %1244 = vrot.lane.b32.xlu0 %v980, 116
      %v1245 = vpop.permute.xlu0 %1244
      %1246 = vrot.lane.b32.xlu0 %v985, 116
      %v1247 = vpop.permute.xlu0 %1246
      %1248 = vrot.lane.b32.xlu0 %v990, 116
      %v1249 = vpop.permute.xlu0 %1248
      %1250 = vrot.lane.b32.xlu0 %v995, 116
      %v1251 = vpop.permute.xlu0 %1250
      %1252 = vrot.lane.b32.xlu0 %v1000, 116
      %v1253 = vpop.permute.xlu0 %1252
      %1254 = vrot.lane.b32.xlu0 %v1005, 116
      %v1255 = vpop.permute.xlu0 %1254
      %1256 = vrot.lane.b32.xlu0 %v1010, 116
      %v1257 = vpop.permute.xlu0 %1256
      %1258 = vrot.lane.b32.xlu0 %v1015, 116
      %v1259 = vpop.permute.xlu0 %1258
      %1260 = vrot.lane.b32.xlu0 %v1020, 116
      %v1261 = vpop.permute.xlu0 %1260
      %1262 = vrot.lane.b32.xlu0 %v1025, 116
      %v1263 = vpop.permute.xlu0 %1262
      %1264 = vrot.lane.b32.xlu0 %v1030, 116
      %v1265 = vpop.permute.xlu0 %1264
      %1266 = vrot.lane.b32.xlu0 %v1035, 116
      %v1267 = vpop.permute.xlu0 %1266
      %1268 = vrot.lane.b32.xlu0 %v1040, 116
      %v1269 = vpop.permute.xlu0 %1268
      %1270 = vrot.lane.b32.xlu0 %v1045, 116
      %v1271 = vpop.permute.xlu0 %1270
      %1272 = vrot.lane.b32.xlu0 %v890, 112
      %v1273 = vpop.permute.xlu0 %1272
      %1274 = vrot.lane.b32.xlu0 %v895, 112
      %v1275 = vpop.permute.xlu0 %1274
      %1276 = vrot.lane.b32.xlu0 %v900, 112
      %v1277 = vpop.permute.xlu0 %1276
      %1278 = vrot.lane.b32.xlu0 %v905, 112
      %v1279 = vpop.permute.xlu0 %1278
      %1280 = vrot.lane.b32.xlu0 %v910, 112
      %v1281 = vpop.permute.xlu0 %1280
      %1282 = vrot.lane.b32.xlu0 %v915, 112
      %v1283 = vpop.permute.xlu0 %1282
      %1284 = vrot.lane.b32.xlu0 %v920, 112
      %v1285 = vpop.permute.xlu0 %1284
      %1286 = vrot.lane.b32.xlu0 %v925, 112
      %v1287 = vpop.permute.xlu0 %1286
      %vm1288 = vcmask 31744
      %v1289 = vsel %vm1288, %v890, 0
      %v1291 = vsel %vm1288, %v895, 0
      %v1293 = vsel %vm1288, %v900, 0
      %v1295 = vsel %vm1288, %v905, 0
      %v1297 = vsel %vm1288, %v910, 0
      %v1299 = vsel %vm1288, %v915, 0
      %v1301 = vsel %vm1288, %v920, 0
      %v1303 = vsel %vm1288, %v925, 0
      %v1305 = vsel %vm1288, %v1273, 0
      %v1307 = vsel %vm1288, %v1275, 0
      %v1309 = vsel %vm1288, %v1277, 0
      %v1311 = vsel %vm1288, %v1279, 0
      %v1313 = vsel %vm1288, %v1281, 0
      %v1315 = vsel %vm1288, %v1283, 0
      %v1317 = vsel %vm1288, %v1285, 0
      %v1319 = vsel %vm1288, %v1287, 0
      %1321 = vmatprep.subr.mxu0 0.0
      %1322 = vmatpush1.xpose.msra.mxu0 0.0
      %1323 = vmatprep.subr.mxu0 0.0
      %1324 = vmatpush1.xpose.msra.mxu0 0.0
      %1325 = vmatprep.subr.mxu0 0.0
      %1326 = vmatpush1.xpose.msra.mxu0 0.0
      %1327 = vmatprep.subr.mxu0 0.0
      %1328 = vmatpush1.xpose.msra.mxu0 0.0
      %1329 = vmatprep.subr.mxu0 0.0
      %1330 = vmatpush1.xpose.msra.mxu0 0.0
      %1331 = vmatprep.subr.mxu0 0.0
      %1332 = vmatpush1.xpose.msra.mxu0 0.0
      %1333 = vmatprep.subr.mxu0 0.0
      %1334 = vmatpush1.xpose.msra.mxu0 0.0
      %1335 = vmatprep.subr.mxu0 0.0
      %1336 = vmatpush1.xpose.msra.mxu0 0.0
      %1337 = vmatprep.subr.mxu0 0.0
      %1338 = vmatpush1.xpose.msra.mxu0 %v1319
      %1339 = vmatprep.subr.mxu0 0.0
      %1340 = vmatpush1.xpose.msra.mxu0 %v1317
      %1341 = vmatprep.subr.mxu0 0.0
      %1342 = vmatpush1.xpose.msra.mxu0 %v1315
      %1343 = vmatprep.subr.mxu0 0.0
      %1344 = vmatpush1.xpose.msra.mxu0 %v1313
      %1345 = vmatprep.subr.mxu0 0.0
      %1346 = vmatpush1.xpose.msra.mxu0 %v1311
      %1347 = vmatprep.subr.mxu0 0.0
      %1348 = vmatpush1.xpose.msra.mxu0 %v1309
      %1349 = vmatprep.subr.mxu0 0.0
      %1350 = vmatpush1.xpose.msra.mxu0 %v1307
      %1351 = vmatprep.subr.mxu0 0.0
      %1352 = vmatpush1.xpose.msra.mxu0 %v1305
      %1353 = vmatprep.subr.mxu0 0.0
      %1354 = vmatpush2.xpose.msra.mxu0 0.0
      %1355 = vmatprep.subr.mxu0 0.0
      %1356 = vmatpush2.xpose.msra.mxu0 0.0
      %1357 = vmatprep.subr.mxu0 0.0
      %1358 = vmatpush2.xpose.msra.mxu0 0.0
      %1359 = vmatprep.subr.mxu0 0.0
      %1360 = vmatpush2.xpose.msra.mxu0 0.0
      %1361 = vmatprep.subr.mxu0 0.0
      %1362 = vmatpush2.xpose.msra.mxu0 0.0
      %1363 = vmatprep.subr.mxu0 0.0
      %1364 = vmatpush2.xpose.msra.mxu0 0.0
      %1365 = vmatprep.subr.mxu0 0.0
      %1366 = vmatpush2.xpose.msra.mxu0 0.0
      %1367 = vmatprep.subr.mxu0 0.0
      %1368 = vmatpush2.xpose.msra.mxu0 0.0
      %1369 = vmatprep.subr.mxu0 0.0
      %1370 = vmatpush2.xpose.msra.mxu0 0.0
      %1371 = vmatprep.subr.mxu0 0.0
      %1372 = vmatpush2.xpose.msra.mxu0 0.0
      %1373 = vmatprep.subr.mxu0 0.0
      %1374 = vmatpush2.xpose.msra.mxu0 0.0
      %1375 = vmatprep.subr.mxu0 0.0
      %1376 = vmatpush2.xpose.msra.mxu0 0.0
      %1377 = vmatprep.subr.mxu0 0.0
      %1378 = vmatpush2.xpose.msra.mxu0 0.0
      %1379 = vmatprep.subr.mxu0 0.0
      %1380 = vmatpush2.xpose.msra.mxu0 0.0
      %1381 = vmatprep.subr.mxu0 0.0
      %1382 = vmatpush2.xpose.msra.mxu0 0.0
      %1383 = vmatprep.subr.mxu0 0.0
      %1384 = vmatpush2.xpose.msra.mxu0 0.0
      %1385 = vmatprep.mubr.f32.mxu0 0.0
      %1386 = vmatmul.mubr.f32.gmra.mxu0 %v1289
      %v1387 = vpop.f32.mrf.mxu0
      %v1388 = vadd.f32 0.0, %v1387
      %v1389 = vpop.f32.mrf.mxu0
      %1390 = vmatprep.mubr.f32.mxu0 0.0
      %1391 = vmatmul.mubr.f32.gmra.mxu0 %v1291
      %v1392 = vpop.f32.mrf.mxu0
      %v1393 = vadd.f32 0.0, %v1392
      %v1394 = vpop.f32.mrf.mxu0
      %1395 = vmatprep.mubr.f32.mxu0 0.0
      %1396 = vmatmul.mubr.f32.gmra.mxu0 %v1293
      %v1397 = vpop.f32.mrf.mxu0
      %v1398 = vadd.f32 0.0, %v1397
      %v1399 = vpop.f32.mrf.mxu0
      %1400 = vmatprep.mubr.f32.mxu0 0.0
      %1401 = vmatmul.mubr.f32.gmra.mxu0 %v1295
      %v1402 = vpop.f32.mrf.mxu0
      %v1403 = vadd.f32 0.0, %v1402
      %v1404 = vpop.f32.mrf.mxu0
      %1405 = vmatprep.mubr.f32.mxu0 0.0
      %1406 = vmatmul.mubr.f32.gmra.mxu0 %v1297
      %v1407 = vpop.f32.mrf.mxu0
      %v1408 = vadd.f32 0.0, %v1407
      %v1409 = vpop.f32.mrf.mxu0
      %1410 = vmatprep.mubr.f32.mxu0 0.0
      %1411 = vmatmul.mubr.f32.gmra.mxu0 %v1299
      %v1412 = vpop.f32.mrf.mxu0
      %v1413 = vadd.f32 0.0, %v1412
      %v1414 = vpop.f32.mrf.mxu0
      %1415 = vmatprep.mubr.f32.mxu0 0.0
      %1416 = vmatmul.mubr.f32.gmra.mxu0 %v1301
      %v1417 = vpop.f32.mrf.mxu0
      %v1418 = vadd.f32 0.0, %v1417
      %v1419 = vpop.f32.mrf.mxu0
      %1420 = vmatprep.mubr.f32.mxu0 0.0
      %1421 = vmatmul.mubr.f32.gmra.mxu0 %v1303
      %v1422 = vpop.f32.mrf.mxu0
      %v1423 = vadd.f32 0.0, %v1422
      %v1424 = vpop.f32.mrf.mxu0
      %1425 = vdwg.mxu0
      %1426 = vrot.lane.b32.xlu0 %v930, 112
      %v1427 = vpop.permute.xlu0 %1426
      %1428 = vrot.lane.b32.xlu0 %v935, 112
      %v1429 = vpop.permute.xlu0 %1428
      %1430 = vrot.lane.b32.xlu0 %v940, 112
      %v1431 = vpop.permute.xlu0 %1430
      %1432 = vrot.lane.b32.xlu0 %v945, 112
      %v1433 = vpop.permute.xlu0 %1432
      %1434 = vrot.lane.b32.xlu0 %v950, 112
      %v1435 = vpop.permute.xlu0 %1434
      %1436 = vrot.lane.b32.xlu0 %v955, 112
      %v1437 = vpop.permute.xlu0 %1436
      %1438 = vrot.lane.b32.xlu0 %v960, 112
      %v1439 = vpop.permute.xlu0 %1438
      %1440 = vrot.lane.b32.xlu0 %v965, 112
      %v1441 = vpop.permute.xlu0 %1440
      %v1442 = vsel %vm1288, %v930, 0
      %v1444 = vsel %vm1288, %v935, 0
      %v1446 = vsel %vm1288, %v940, 0
      %v1448 = vsel %vm1288, %v945, 0
      %v1450 = vsel %vm1288, %v950, 0
      %v1452 = vsel %vm1288, %v955, 0
      %v1454 = vsel %vm1288, %v960, 0
      %v1456 = vsel %vm1288, %v965, 0
      %v1458 = vsel %vm1288, %v1427, 0
      %v1460 = vsel %vm1288, %v1429, 0
      %v1462 = vsel %vm1288, %v1431, 0
      %v1464 = vsel %vm1288, %v1433, 0
      %v1466 = vsel %vm1288, %v1435, 0
      %v1468 = vsel %vm1288, %v1437, 0
      %v1470 = vsel %vm1288, %v1439, 0
      %v1472 = vsel %vm1288, %v1441, 0
      %1474 = vmatprep.subr.mxu0 0.0
      %1475 = vmatpush1.xpose.msra.mxu0 0.0
      %1476 = vmatprep.subr.mxu0 0.0
      %1477 = vmatpush1.xpose.msra.mxu0 0.0
      %1478 = vmatprep.subr.mxu0 0.0
      %1479 = vmatpush1.xpose.msra.mxu0 0.0
      %1480 = vmatprep.subr.mxu0 0.0
      %1481 = vmatpush1.xpose.msra.mxu0 0.0
      %1482 = vmatprep.subr.mxu0 0.0
      %1483 = vmatpush1.xpose.msra.mxu0 0.0
      %1484 = vmatprep.subr.mxu0 0.0
      %1485 = vmatpush1.xpose.msra.mxu0 0.0
      %1486 = vmatprep.subr.mxu0 0.0
      %1487 = vmatpush1.xpose.msra.mxu0 0.0
      %1488 = vmatprep.subr.mxu0 0.0
      %1489 = vmatpush1.xpose.msra.mxu0 0.0
      %1490 = vmatprep.subr.mxu0 0.0
      %1491 = vmatpush1.xpose.msra.mxu0 %v1472
      %1492 = vmatprep.subr.mxu0 0.0
      %1493 = vmatpush1.xpose.msra.mxu0 %v1470
      %1494 = vmatprep.subr.mxu0 0.0
      %1495 = vmatpush1.xpose.msra.mxu0 %v1468
      %1496 = vmatprep.subr.mxu0 0.0
      %1497 = vmatpush1.xpose.msra.mxu0 %v1466
      %1498 = vmatprep.subr.mxu0 0.0
      %1499 = vmatpush1.xpose.msra.mxu0 %v1464
      %1500 = vmatprep.subr.mxu0 0.0
      %1501 = vmatpush1.xpose.msra.mxu0 %v1462
      %1502 = vmatprep.subr.mxu0 0.0
      %1503 = vmatpush1.xpose.msra.mxu0 %v1460
      %1504 = vmatprep.subr.mxu0 0.0
      %1505 = vmatpush1.xpose.msra.mxu0 %v1458
      %1506 = vmatprep.subr.mxu0 0.0
      %1507 = vmatpush2.xpose.msra.mxu0 0.0
      %1508 = vmatprep.subr.mxu0 0.0
      %1509 = vmatpush2.xpose.msra.mxu0 0.0
      %1510 = vmatprep.subr.mxu0 0.0
      %1511 = vmatpush2.xpose.msra.mxu0 0.0
      %1512 = vmatprep.subr.mxu0 0.0
      %1513 = vmatpush2.xpose.msra.mxu0 0.0
      %1514 = vmatprep.subr.mxu0 0.0
      %1515 = vmatpush2.xpose.msra.mxu0 0.0
      %1516 = vmatprep.subr.mxu0 0.0
      %1517 = vmatpush2.xpose.msra.mxu0 0.0
      %1518 = vmatprep.subr.mxu0 0.0
      %1519 = vmatpush2.xpose.msra.mxu0 0.0
      %1520 = vmatprep.subr.mxu0 0.0
      %1521 = vmatpush2.xpose.msra.mxu0 0.0
      %1522 = vmatprep.subr.mxu0 0.0
      %1523 = vmatpush2.xpose.msra.mxu0 0.0
      %1524 = vmatprep.subr.mxu0 0.0
      %1525 = vmatpush2.xpose.msra.mxu0 0.0
      %1526 = vmatprep.subr.mxu0 0.0
      %1527 = vmatpush2.xpose.msra.mxu0 0.0
      %1528 = vmatprep.subr.mxu0 0.0
      %1529 = vmatpush2.xpose.msra.mxu0 0.0
      %1530 = vmatprep.subr.mxu0 0.0
      %1531 = vmatpush2.xpose.msra.mxu0 0.0
      %1532 = vmatprep.subr.mxu0 0.0
      %1533 = vmatpush2.xpose.msra.mxu0 0.0
      %1534 = vmatprep.subr.mxu0 0.0
      %1535 = vmatpush2.xpose.msra.mxu0 0.0
      %1536 = vmatprep.subr.mxu0 0.0
      %1537 = vmatpush2.xpose.msra.mxu0 0.0
      %1538 = vmatprep.mubr.f32.mxu0 0.0
      %1539 = vmatmul.mubr.f32.gmra.mxu0 %v1442
      %v1540 = vpop.f32.mrf.mxu0
      %v1541 = vadd.f32 0.0, %v1540
      %v1542 = vpop.f32.mrf.mxu0
      %1543 = vmatprep.mubr.f32.mxu0 0.0
      %1544 = vmatmul.mubr.f32.gmra.mxu0 %v1444
      %v1545 = vpop.f32.mrf.mxu0
      %v1546 = vadd.f32 0.0, %v1545
      %v1547 = vpop.f32.mrf.mxu0
      %1548 = vmatprep.mubr.f32.mxu0 0.0
      %1549 = vmatmul.mubr.f32.gmra.mxu0 %v1446
      %v1550 = vpop.f32.mrf.mxu0
      %v1551 = vadd.f32 0.0, %v1550
      %v1552 = vpop.f32.mrf.mxu0
      %1553 = vmatprep.mubr.f32.mxu0 0.0
      %1554 = vmatmul.mubr.f32.gmra.mxu0 %v1448
      %v1555 = vpop.f32.mrf.mxu0
      %v1556 = vadd.f32 0.0, %v1555
      %v1557 = vpop.f32.mrf.mxu0
      %1558 = vmatprep.mubr.f32.mxu0 0.0
      %1559 = vmatmul.mubr.f32.gmra.mxu0 %v1450
      %v1560 = vpop.f32.mrf.mxu0
      %v1561 = vadd.f32 0.0, %v1560
      %v1562 = vpop.f32.mrf.mxu0
      %1563 = vmatprep.mubr.f32.mxu0 0.0
      %1564 = vmatmul.mubr.f32.gmra.mxu0 %v1452
      %v1565 = vpop.f32.mrf.mxu0
      %v1566 = vadd.f32 0.0, %v1565
      %v1567 = vpop.f32.mrf.mxu0
      %1568 = vmatprep.mubr.f32.mxu0 0.0
      %1569 = vmatmul.mubr.f32.gmra.mxu0 %v1454
      %v1570 = vpop.f32.mrf.mxu0
      %v1571 = vadd.f32 0.0, %v1570
      %v1572 = vpop.f32.mrf.mxu0
      %1573 = vmatprep.mubr.f32.mxu0 0.0
      %1574 = vmatmul.mubr.f32.gmra.mxu0 %v1456
      %v1575 = vpop.f32.mrf.mxu0
      %v1576 = vadd.f32 0.0, %v1575
      %v1577 = vpop.f32.mrf.mxu0
      %1578 = vdwg.mxu0
      %1579 = vrot.lane.b32.xlu0 %v970, 112
      %v1580 = vpop.permute.xlu0 %1579
      %1581 = vrot.lane.b32.xlu0 %v975, 112
      %v1582 = vpop.permute.xlu0 %1581
      %1583 = vrot.lane.b32.xlu0 %v980, 112
      %v1584 = vpop.permute.xlu0 %1583
      %1585 = vrot.lane.b32.xlu0 %v985, 112
      %v1586 = vpop.permute.xlu0 %1585
      %1587 = vrot.lane.b32.xlu0 %v990, 112
      %v1588 = vpop.permute.xlu0 %1587
      %1589 = vrot.lane.b32.xlu0 %v995, 112
      %v1590 = vpop.permute.xlu0 %1589
      %1591 = vrot.lane.b32.xlu0 %v1000, 112
      %v1592 = vpop.permute.xlu0 %1591
      %1593 = vrot.lane.b32.xlu0 %v1005, 112
      %v1594 = vpop.permute.xlu0 %1593
      %v1595 = vsel %vm1288, %v970, 0
      %v1597 = vsel %vm1288, %v975, 0
      %v1599 = vsel %vm1288, %v980, 0
      %v1601 = vsel %vm1288, %v985, 0
      %v1603 = vsel %vm1288, %v990, 0
      %v1605 = vsel %vm1288, %v995, 0
      %v1607 = vsel %vm1288, %v1000, 0
      %v1609 = vsel %vm1288, %v1005, 0
      %v1611 = vsel %vm1288, %v1580, 0
      %v1613 = vsel %vm1288, %v1582, 0
      %v1615 = vsel %vm1288, %v1584, 0
      %v1617 = vsel %vm1288, %v1586, 0
      %v1619 = vsel %vm1288, %v1588, 0
      %v1621 = vsel %vm1288, %v1590, 0
      %v1623 = vsel %vm1288, %v1592, 0
      %v1625 = vsel %vm1288, %v1594, 0
      %1627 = vmatprep.subr.mxu0 0.0
      %1628 = vmatpush1.xpose.msra.mxu0 0.0
      %1629 = vmatprep.subr.mxu0 0.0
      %1630 = vmatpush1.xpose.msra.mxu0 0.0
      %1631 = vmatprep.subr.mxu0 0.0
      %1632 = vmatpush1.xpose.msra.mxu0 0.0
      %1633 = vmatprep.subr.mxu0 0.0
      %1634 = vmatpush1.xpose.msra.mxu0 0.0
      %1635 = vmatprep.subr.mxu0 0.0
      %1636 = vmatpush1.xpose.msra.mxu0 0.0
      %1637 = vmatprep.subr.mxu0 0.0
      %1638 = vmatpush1.xpose.msra.mxu0 0.0
      %1639 = vmatprep.subr.mxu0 0.0
      %1640 = vmatpush1.xpose.msra.mxu0 0.0
      %1641 = vmatprep.subr.mxu0 0.0
      %1642 = vmatpush1.xpose.msra.mxu0 0.0
      %1643 = vmatprep.subr.mxu0 0.0
      %1644 = vmatpush1.xpose.msra.mxu0 %v1625
      %1645 = vmatprep.subr.mxu0 0.0
      %1646 = vmatpush1.xpose.msra.mxu0 %v1623
      %1647 = vmatprep.subr.mxu0 0.0
      %1648 = vmatpush1.xpose.msra.mxu0 %v1621
      %1649 = vmatprep.subr.mxu0 0.0
      %1650 = vmatpush1.xpose.msra.mxu0 %v1619
      %1651 = vmatprep.subr.mxu0 0.0
      %1652 = vmatpush1.xpose.msra.mxu0 %v1617
      %1653 = vmatprep.subr.mxu0 0.0
      %1654 = vmatpush1.xpose.msra.mxu0 %v1615
      %1655 = vmatprep.subr.mxu0 0.0
      %1656 = vmatpush1.xpose.msra.mxu0 %v1613
      %1657 = vmatprep.subr.mxu0 0.0
      %1658 = vmatpush1.xpose.msra.mxu0 %v1611
      %1659 = vmatprep.subr.mxu0 0.0
      %1660 = vmatpush2.xpose.msra.mxu0 0.0
      %1661 = vmatprep.subr.mxu0 0.0
      %1662 = vmatpush2.xpose.msra.mxu0 0.0
      %1663 = vmatprep.subr.mxu0 0.0
      %1664 = vmatpush2.xpose.msra.mxu0 0.0
      %1665 = vmatprep.subr.mxu0 0.0
      %1666 = vmatpush2.xpose.msra.mxu0 0.0
      %1667 = vmatprep.subr.mxu0 0.0
      %1668 = vmatpush2.xpose.msra.mxu0 0.0
      %1669 = vmatprep.subr.mxu0 0.0
      %1670 = vmatpush2.xpose.msra.mxu0 0.0
      %1671 = vmatprep.subr.mxu0 0.0
      %1672 = vmatpush2.xpose.msra.mxu0 0.0
      %1673 = vmatprep.subr.mxu0 0.0
      %1674 = vmatpush2.xpose.msra.mxu0 0.0
      %1675 = vmatprep.subr.mxu0 0.0
      %1676 = vmatpush2.xpose.msra.mxu0 0.0
      %1677 = vmatprep.subr.mxu0 0.0
      %1678 = vmatpush2.xpose.msra.mxu0 0.0
      %1679 = vmatprep.subr.mxu0 0.0
      %1680 = vmatpush2.xpose.msra.mxu0 0.0
      %1681 = vmatprep.subr.mxu0 0.0
      %1682 = vmatpush2.xpose.msra.mxu0 0.0
      %1683 = vmatprep.subr.mxu0 0.0
      %1684 = vmatpush2.xpose.msra.mxu0 0.0
      %1685 = vmatprep.subr.mxu0 0.0
      %1686 = vmatpush2.xpose.msra.mxu0 0.0
      %1687 = vmatprep.subr.mxu0 0.0
      %1688 = vmatpush2.xpose.msra.mxu0 0.0
      %1689 = vmatprep.subr.mxu0 0.0
      %1690 = vmatpush2.xpose.msra.mxu0 0.0
      %1691 = vmatprep.mubr.f32.mxu0 0.0
      %1692 = vmatmul.mubr.f32.gmra.mxu0 %v1595
      %v1693 = vpop.f32.mrf.mxu0
      %v1694 = vadd.f32 0.0, %v1693
      %v1695 = vpop.f32.mrf.mxu0
      %1696 = vmatprep.mubr.f32.mxu0 0.0
      %1697 = vmatmul.mubr.f32.gmra.mxu0 %v1597
      %v1698 = vpop.f32.mrf.mxu0
      %v1699 = vadd.f32 0.0, %v1698
      %v1700 = vpop.f32.mrf.mxu0
      %1701 = vmatprep.mubr.f32.mxu0 0.0
      %1702 = vmatmul.mubr.f32.gmra.mxu0 %v1599
      %v1703 = vpop.f32.mrf.mxu0
      %v1704 = vadd.f32 0.0, %v1703
      %v1705 = vpop.f32.mrf.mxu0
      %1706 = vmatprep.mubr.f32.mxu0 0.0
      %1707 = vmatmul.mubr.f32.gmra.mxu0 %v1601
      %v1708 = vpop.f32.mrf.mxu0
      %v1709 = vadd.f32 0.0, %v1708
      %v1710 = vpop.f32.mrf.mxu0
      %1711 = vmatprep.mubr.f32.mxu0 0.0
      %1712 = vmatmul.mubr.f32.gmra.mxu0 %v1603
      %v1713 = vpop.f32.mrf.mxu0
      %v1714 = vadd.f32 0.0, %v1713
      %v1715 = vpop.f32.mrf.mxu0
      %1716 = vmatprep.mubr.f32.mxu0 0.0
      %1717 = vmatmul.mubr.f32.gmra.mxu0 %v1605
      %v1718 = vpop.f32.mrf.mxu0
      %v1719 = vadd.f32 0.0, %v1718
      %v1720 = vpop.f32.mrf.mxu0
      %1721 = vmatprep.mubr.f32.mxu0 0.0
      %1722 = vmatmul.mubr.f32.gmra.mxu0 %v1607
      %v1723 = vpop.f32.mrf.mxu0
      %v1724 = vadd.f32 0.0, %v1723
      %v1725 = vpop.f32.mrf.mxu0
      %1726 = vmatprep.mubr.f32.mxu0 0.0
      %1727 = vmatmul.mubr.f32.gmra.mxu0 %v1609
      %v1728 = vpop.f32.mrf.mxu0
      %v1729 = vadd.f32 0.0, %v1728
      %v1730 = vpop.f32.mrf.mxu0
      %1731 = vdwg.mxu0
      %1732 = vrot.lane.b32.xlu0 %v1010, 112
      %v1733 = vpop.permute.xlu0 %1732
      %1734 = vrot.lane.b32.xlu0 %v1015, 112
      %v1735 = vpop.permute.xlu0 %1734
      %1736 = vrot.lane.b32.xlu0 %v1020, 112
      %v1737 = vpop.permute.xlu0 %1736
      %1738 = vrot.lane.b32.xlu0 %v1025, 112
      %v1739 = vpop.permute.xlu0 %1738
      %1740 = vrot.lane.b32.xlu0 %v1030, 112
      %v1741 = vpop.permute.xlu0 %1740
      %1742 = vrot.lane.b32.xlu0 %v1035, 112
      %v1743 = vpop.permute.xlu0 %1742
      %1744 = vrot.lane.b32.xlu0 %v1040, 112
      %v1745 = vpop.permute.xlu0 %1744
      %1746 = vrot.lane.b32.xlu0 %v1045, 112
      %v1747 = vpop.permute.xlu0 %1746
      %v1748 = vsel %vm1288, %v1010, 0
      %v1750 = vsel %vm1288, %v1015, 0
      %v1752 = vsel %vm1288, %v1020, 0
      %v1754 = vsel %vm1288, %v1025, 0
      %v1756 = vsel %vm1288, %v1030, 0
      %v1758 = vsel %vm1288, %v1035, 0
      %v1760 = vsel %vm1288, %v1040, 0
      %v1762 = vsel %vm1288, %v1045, 0
      %v1764 = vsel %vm1288, %v1733, 0
      %v1766 = vsel %vm1288, %v1735, 0
      %v1768 = vsel %vm1288, %v1737, 0
      %v1770 = vsel %vm1288, %v1739, 0
      %v1772 = vsel %vm1288, %v1741, 0
      %v1774 = vsel %vm1288, %v1743, 0
      %v1776 = vsel %vm1288, %v1745, 0
      %v1778 = vsel %vm1288, %v1747, 0
      %1780 = vmatprep.subr.mxu0 0.0
      %1781 = vmatpush1.xpose.msra.mxu0 0.0
      %1782 = vmatprep.subr.mxu0 0.0
      %1783 = vmatpush1.xpose.msra.mxu0 0.0
      %1784 = vmatprep.subr.mxu0 0.0
      %1785 = vmatpush1.xpose.msra.mxu0 0.0
      %1786 = vmatprep.subr.mxu0 0.0
      %1787 = vmatpush1.xpose.msra.mxu0 0.0
      %1788 = vmatprep.subr.mxu0 0.0
      %1789 = vmatpush1.xpose.msra.mxu0 0.0
      %1790 = vmatprep.subr.mxu0 0.0
      %1791 = vmatpush1.xpose.msra.mxu0 0.0
      %1792 = vmatprep.subr.mxu0 0.0
      %1793 = vmatpush1.xpose.msra.mxu0 0.0
      %1794 = vmatprep.subr.mxu0 0.0
      %1795 = vmatpush1.xpose.msra.mxu0 0.0
      %1796 = vmatprep.subr.mxu0 0.0
      %1797 = vmatpush1.xpose.msra.mxu0 %v1778
      %1798 = vmatprep.subr.mxu0 0.0
      %1799 = vmatpush1.xpose.msra.mxu0 %v1776
      %1800 = vmatprep.subr.mxu0 0.0
      %1801 = vmatpush1.xpose.msra.mxu0 %v1774
      %1802 = vmatprep.subr.mxu0 0.0
      %1803 = vmatpush1.xpose.msra.mxu0 %v1772
      %1804 = vmatprep.subr.mxu0 0.0
      %1805 = vmatpush1.xpose.msra.mxu0 %v1770
      %1806 = vmatprep.subr.mxu0 0.0
      %1807 = vmatpush1.xpose.msra.mxu0 %v1768
      %1808 = vmatprep.subr.mxu0 0.0
      %1809 = vmatpush1.xpose.msra.mxu0 %v1766
      %1810 = vmatprep.subr.mxu0 0.0
      %1811 = vmatpush1.xpose.msra.mxu0 %v1764
      %1812 = vmatprep.subr.mxu0 0.0
      %1813 = vmatpush2.xpose.msra.mxu0 0.0
      %1814 = vmatprep.subr.mxu0 0.0
      %1815 = vmatpush2.xpose.msra.mxu0 0.0
      %1816 = vmatprep.subr.mxu0 0.0
      %1817 = vmatpush2.xpose.msra.mxu0 0.0
      %1818 = vmatprep.subr.mxu0 0.0
      %1819 = vmatpush2.xpose.msra.mxu0 0.0
      %1820 = vmatprep.subr.mxu0 0.0
      %1821 = vmatpush2.xpose.msra.mxu0 0.0
      %1822 = vmatprep.subr.mxu0 0.0
      %1823 = vmatpush2.xpose.msra.mxu0 0.0
      %1824 = vmatprep.subr.mxu0 0.0
      %1825 = vmatpush2.xpose.msra.mxu0 0.0
      %1826 = vmatprep.subr.mxu0 0.0
      %1827 = vmatpush2.xpose.msra.mxu0 0.0
      %1828 = vmatprep.subr.mxu0 0.0
      %1829 = vmatpush2.xpose.msra.mxu0 0.0
      %1830 = vmatprep.subr.mxu0 0.0
      %1831 = vmatpush2.xpose.msra.mxu0 0.0
      %1832 = vmatprep.subr.mxu0 0.0
      %1833 = vmatpush2.xpose.msra.mxu0 0.0
      %1834 = vmatprep.subr.mxu0 0.0
      %1835 = vmatpush2.xpose.msra.mxu0 0.0
      %1836 = vmatprep.subr.mxu0 0.0
      %1837 = vmatpush2.xpose.msra.mxu0 0.0
      %1838 = vmatprep.subr.mxu0 0.0
      %1839 = vmatpush2.xpose.msra.mxu0 0.0
      %1840 = vmatprep.subr.mxu0 0.0
      %1841 = vmatpush2.xpose.msra.mxu0 0.0
      %1842 = vmatprep.subr.mxu0 0.0
      %1843 = vmatpush2.xpose.msra.mxu0 0.0
      %1844 = vmatprep.mubr.f32.mxu0 0.0
      %1845 = vmatmul.mubr.f32.gmra.mxu0 %v1748
      %v1846 = vpop.f32.mrf.mxu0
      %v1847 = vadd.f32 0.0, %v1846
      %v1848 = vpop.f32.mrf.mxu0
      %1849 = vmatprep.mubr.f32.mxu0 0.0
      %1850 = vmatmul.mubr.f32.gmra.mxu0 %v1750
      %v1851 = vpop.f32.mrf.mxu0
      %v1852 = vadd.f32 0.0, %v1851
      %v1853 = vpop.f32.mrf.mxu0
      %1854 = vmatprep.mubr.f32.mxu0 0.0
      %1855 = vmatmul.mubr.f32.gmra.mxu0 %v1752
      %v1856 = vpop.f32.mrf.mxu0
      %v1857 = vadd.f32 0.0, %v1856
      %v1858 = vpop.f32.mrf.mxu0
      %1859 = vmatprep.mubr.f32.mxu0 0.0
      %1860 = vmatmul.mubr.f32.gmra.mxu0 %v1754
      %v1861 = vpop.f32.mrf.mxu0
      %v1862 = vadd.f32 0.0, %v1861
      %v1863 = vpop.f32.mrf.mxu0
      %1864 = vmatprep.mubr.f32.mxu0 0.0
      %1865 = vmatmul.mubr.f32.gmra.mxu0 %v1756
      %v1866 = vpop.f32.mrf.mxu0
      %v1867 = vadd.f32 0.0, %v1866
      %v1868 = vpop.f32.mrf.mxu0
      %1869 = vmatprep.mubr.f32.mxu0 0.0
      %1870 = vmatmul.mubr.f32.gmra.mxu0 %v1758
      %v1871 = vpop.f32.mrf.mxu0
      %v1872 = vadd.f32 0.0, %v1871
      %v1873 = vpop.f32.mrf.mxu0
      %1874 = vmatprep.mubr.f32.mxu0 0.0
      %1875 = vmatmul.mubr.f32.gmra.mxu0 %v1760
      %v1876 = vpop.f32.mrf.mxu0
      %v1877 = vadd.f32 0.0, %v1876
      %v1878 = vpop.f32.mrf.mxu0
      %1879 = vmatprep.mubr.f32.mxu0 0.0
      %1880 = vmatmul.mubr.f32.gmra.mxu0 %v1762
      %v1881 = vpop.f32.mrf.mxu0
      %v1882 = vadd.f32 0.0, %v1881
      %v1883 = vpop.f32.mrf.mxu0
      %1884 = vdwg.mxu0
      %1885 = vrot.lane.b32.xlu0 %v1081, 112
      %v1886 = vpop.permute.xlu0 %1885
      %1887 = vrot.lane.b32.xlu0 %v1083, 112
      %v1888 = vpop.permute.xlu0 %1887
      %1889 = vrot.lane.b32.xlu0 %v1085, 112
      %v1890 = vpop.permute.xlu0 %1889
      %1891 = vrot.lane.b32.xlu0 %v1087, 112
      %v1892 = vpop.permute.xlu0 %1891
      %1893 = vrot.lane.b32.xlu0 %v1089, 112
      %v1894 = vpop.permute.xlu0 %1893
      %1895 = vrot.lane.b32.xlu0 %v1091, 112
      %v1896 = vpop.permute.xlu0 %1895
      %1897 = vrot.lane.b32.xlu0 %v1093, 112
      %v1898 = vpop.permute.xlu0 %1897
      %1899 = vrot.lane.b32.xlu0 %v1095, 112
      %v1900 = vpop.permute.xlu0 %1899
      %v1901 = vsel %vm1288, %v1081, 0
      %v1903 = vsel %vm1288, %v1083, 0
      %v1905 = vsel %vm1288, %v1085, 0
      %v1907 = vsel %vm1288, %v1087, 0
      %v1909 = vsel %vm1288, %v1089, 0
      %v1911 = vsel %vm1288, %v1091, 0
      %v1913 = vsel %vm1288, %v1093, 0
      %v1915 = vsel %vm1288, %v1095, 0
      %v1917 = vsel %vm1288, %v1886, 0
      %v1919 = vsel %vm1288, %v1888, 0
      %v1921 = vsel %vm1288, %v1890, 0
      %v1923 = vsel %vm1288, %v1892, 0
      %v1925 = vsel %vm1288, %v1894, 0
      %v1927 = vsel %vm1288, %v1896, 0
      %v1929 = vsel %vm1288, %v1898, 0
      %v1931 = vsel %vm1288, %v1900, 0
      %1933 = vmatprep.subr.mxu0 0.0
      %1934 = vmatpush1.xpose.msra.mxu0 0.0
      %1935 = vmatprep.subr.mxu0 0.0
      %1936 = vmatpush1.xpose.msra.mxu0 0.0
      %1937 = vmatprep.subr.mxu0 0.0
      %1938 = vmatpush1.xpose.msra.mxu0 0.0
      %1939 = vmatprep.subr.mxu0 0.0
      %1940 = vmatpush1.xpose.msra.mxu0 0.0
      %1941 = vmatprep.subr.mxu0 0.0
      %1942 = vmatpush1.xpose.msra.mxu0 0.0
      %1943 = vmatprep.subr.mxu0 0.0
      %1944 = vmatpush1.xpose.msra.mxu0 0.0
      %1945 = vmatprep.subr.mxu0 0.0
      %1946 = vmatpush1.xpose.msra.mxu0 0.0
      %1947 = vmatprep.subr.mxu0 0.0
      %1948 = vmatpush1.xpose.msra.mxu0 0.0
      %1949 = vmatprep.subr.mxu0 0.0
      %1950 = vmatpush1.xpose.msra.mxu0 %v1931
      %1951 = vmatprep.subr.mxu0 0.0
      %1952 = vmatpush1.xpose.msra.mxu0 %v1929
      %1953 = vmatprep.subr.mxu0 0.0
      %1954 = vmatpush1.xpose.msra.mxu0 %v1927
      %1955 = vmatprep.subr.mxu0 0.0
      %1956 = vmatpush1.xpose.msra.mxu0 %v1925
      %1957 = vmatprep.subr.mxu0 0.0
      %1958 = vmatpush1.xpose.msra.mxu0 %v1923
      %1959 = vmatprep.subr.mxu0 0.0
      %1960 = vmatpush1.xpose.msra.mxu0 %v1921
      %1961 = vmatprep.subr.mxu0 0.0
      %1962 = vmatpush1.xpose.msra.mxu0 %v1919
      %1963 = vmatprep.subr.mxu0 0.0
      %1964 = vmatpush1.xpose.msra.mxu0 %v1917
      %1965 = vmatprep.subr.mxu0 0.0
      %1966 = vmatpush2.xpose.msra.mxu0 0.0
      %1967 = vmatprep.subr.mxu0 0.0
      %1968 = vmatpush2.xpose.msra.mxu0 0.0
      %1969 = vmatprep.subr.mxu0 0.0
      %1970 = vmatpush2.xpose.msra.mxu0 0.0
      %1971 = vmatprep.subr.mxu0 0.0
      %1972 = vmatpush2.xpose.msra.mxu0 0.0
      %1973 = vmatprep.subr.mxu0 0.0
      %1974 = vmatpush2.xpose.msra.mxu0 0.0
      %1975 = vmatprep.subr.mxu0 0.0
      %1976 = vmatpush2.xpose.msra.mxu0 0.0
      %1977 = vmatprep.subr.mxu0 0.0
      %1978 = vmatpush2.xpose.msra.mxu0 0.0
      %1979 = vmatprep.subr.mxu0 0.0
      %1980 = vmatpush2.xpose.msra.mxu0 0.0
      %1981 = vmatprep.subr.mxu0 0.0
      %1982 = vmatpush2.xpose.msra.mxu0 0.0
      %1983 = vmatprep.subr.mxu0 0.0
      %1984 = vmatpush2.xpose.msra.mxu0 0.0
      %1985 = vmatprep.subr.mxu0 0.0
      %1986 = vmatpush2.xpose.msra.mxu0 0.0
      %1987 = vmatprep.subr.mxu0 0.0
      %1988 = vmatpush2.xpose.msra.mxu0 0.0
      %1989 = vmatprep.subr.mxu0 0.0
      %1990 = vmatpush2.xpose.msra.mxu0 0.0
      %1991 = vmatprep.subr.mxu0 0.0
      %1992 = vmatpush2.xpose.msra.mxu0 0.0
      %1993 = vmatprep.subr.mxu0 0.0
      %1994 = vmatpush2.xpose.msra.mxu0 0.0
      %1995 = vmatprep.subr.mxu0 0.0
      %1996 = vmatpush2.xpose.msra.mxu0 0.0
      %1997 = vmatprep.mubr.f32.mxu0 0.0
      %1998 = vmatmul.mubr.f32.gmra.mxu0 %v1901
      %v1999 = vpop.f32.mrf.mxu0
      %v2000 = vadd.f32 0.0, %v1999
      %v2001 = vpop.f32.mrf.mxu0
      %2002 = vmatprep.mubr.f32.mxu0 0.0
      %2003 = vmatmul.mubr.f32.gmra.mxu0 %v1903
      %v2004 = vpop.f32.mrf.mxu0
      %v2005 = vadd.f32 0.0, %v2004
      %v2006 = vpop.f32.mrf.mxu0
      %2007 = vmatprep.mubr.f32.mxu0 0.0
      %2008 = vmatmul.mubr.f32.gmra.mxu0 %v1905
      %v2009 = vpop.f32.mrf.mxu0
      %v2010 = vadd.f32 0.0, %v2009
      %v2011 = vpop.f32.mrf.mxu0
      %2012 = vmatprep.mubr.f32.mxu0 0.0
      %2013 = vmatmul.mubr.f32.gmra.mxu0 %v1907
      %v2014 = vpop.f32.mrf.mxu0
      %v2015 = vadd.f32 0.0, %v2014
      %v2016 = vpop.f32.mrf.mxu0
      %2017 = vmatprep.mubr.f32.mxu0 0.0
      %2018 = vmatmul.mubr.f32.gmra.mxu0 %v1909
      %v2019 = vpop.f32.mrf.mxu0
      %v2020 = vadd.f32 0.0, %v2019
      %v2021 = vpop.f32.mrf.mxu0
      %2022 = vmatprep.mubr.f32.mxu0 0.0
      %2023 = vmatmul.mubr.f32.gmra.mxu0 %v1911
      %v2024 = vpop.f32.mrf.mxu0
      %v2025 = vadd.f32 0.0, %v2024
      %v2026 = vpop.f32.mrf.mxu0
      %2027 = vmatprep.mubr.f32.mxu0 0.0
      %2028 = vmatmul.mubr.f32.gmra.mxu0 %v1913
      %v2029 = vpop.f32.mrf.mxu0
      %v2030 = vadd.f32 0.0, %v2029
      %v2031 = vpop.f32.mrf.mxu0
      %2032 = vmatprep.mubr.f32.mxu0 0.0
      %2033 = vmatmul.mubr.f32.gmra.mxu0 %v1915
      %v2034 = vpop.f32.mrf.mxu0
      %v2035 = vadd.f32 0.0, %v2034
      %v2036 = vpop.f32.mrf.mxu0
      %2037 = vdwg.mxu0
      %2038 = vrot.lane.b32.xlu0 %v1097, 112
      %v2039 = vpop.permute.xlu0 %2038
      %2040 = vrot.lane.b32.xlu0 %v1099, 112
      %v2041 = vpop.permute.xlu0 %2040
      %2042 = vrot.lane.b32.xlu0 %v1101, 112
      %v2043 = vpop.permute.xlu0 %2042
      %2044 = vrot.lane.b32.xlu0 %v1103, 112
      %v2045 = vpop.permute.xlu0 %2044
      %2046 = vrot.lane.b32.xlu0 %v1105, 112
      %v2047 = vpop.permute.xlu0 %2046
      %2048 = vrot.lane.b32.xlu0 %v1107, 112
      %v2049 = vpop.permute.xlu0 %2048
      %2050 = vrot.lane.b32.xlu0 %v1109, 112
      %v2051 = vpop.permute.xlu0 %2050
      %2052 = vrot.lane.b32.xlu0 %v1111, 112
      %v2053 = vpop.permute.xlu0 %2052
      %v2054 = vsel %vm1288, %v1097, 0
      %v2056 = vsel %vm1288, %v1099, 0
      %v2058 = vsel %vm1288, %v1101, 0
      %v2060 = vsel %vm1288, %v1103, 0
      %v2062 = vsel %vm1288, %v1105, 0
      %v2064 = vsel %vm1288, %v1107, 0
      %v2066 = vsel %vm1288, %v1109, 0
      %v2068 = vsel %vm1288, %v1111, 0
      %v2070 = vsel %vm1288, %v2039, 0
      %v2072 = vsel %vm1288, %v2041, 0
      %v2074 = vsel %vm1288, %v2043, 0
      %v2076 = vsel %vm1288, %v2045, 0
      %v2078 = vsel %vm1288, %v2047, 0
      %v2080 = vsel %vm1288, %v2049, 0
      %v2082 = vsel %vm1288, %v2051, 0
      %v2084 = vsel %vm1288, %v2053, 0
      %2086 = vmatprep.subr.mxu0 0.0
      %2087 = vmatpush1.xpose.msra.mxu0 0.0
      %2088 = vmatprep.subr.mxu0 0.0
      %2089 = vmatpush1.xpose.msra.mxu0 0.0
      %2090 = vmatprep.subr.mxu0 0.0
      %2091 = vmatpush1.xpose.msra.mxu0 0.0
      %2092 = vmatprep.subr.mxu0 0.0
      %2093 = vmatpush1.xpose.msra.mxu0 0.0
      %2094 = vmatprep.subr.mxu0 0.0
      %2095 = vmatpush1.xpose.msra.mxu0 0.0
      %2096 = vmatprep.subr.mxu0 0.0
      %2097 = vmatpush1.xpose.msra.mxu0 0.0
      %2098 = vmatprep.subr.mxu0 0.0
      %2099 = vmatpush1.xpose.msra.mxu0 0.0
      %2100 = vmatprep.subr.mxu0 0.0
      %2101 = vmatpush1.xpose.msra.mxu0 0.0
      %2102 = vmatprep.subr.mxu0 0.0
      %2103 = vmatpush1.xpose.msra.mxu0 %v2084
      %2104 = vmatprep.subr.mxu0 0.0
      %2105 = vmatpush1.xpose.msra.mxu0 %v2082
      %2106 = vmatprep.subr.mxu0 0.0
      %2107 = vmatpush1.xpose.msra.mxu0 %v2080
      %2108 = vmatprep.subr.mxu0 0.0
      %2109 = vmatpush1.xpose.msra.mxu0 %v2078
      %2110 = vmatprep.subr.mxu0 0.0
      %2111 = vmatpush1.xpose.msra.mxu0 %v2076
      %2112 = vmatprep.subr.mxu0 0.0
      %2113 = vmatpush1.xpose.msra.mxu0 %v2074
      %2114 = vmatprep.subr.mxu0 0.0
      %2115 = vmatpush1.xpose.msra.mxu0 %v2072
      %2116 = vmatprep.subr.mxu0 0.0
      %2117 = vmatpush1.xpose.msra.mxu0 %v2070
      %2118 = vmatprep.subr.mxu0 0.0
      %2119 = vmatpush2.xpose.msra.mxu0 0.0
      %2120 = vmatprep.subr.mxu0 0.0
      %2121 = vmatpush2.xpose.msra.mxu0 0.0
      %2122 = vmatprep.subr.mxu0 0.0
      %2123 = vmatpush2.xpose.msra.mxu0 0.0
      %2124 = vmatprep.subr.mxu0 0.0
      %2125 = vmatpush2.xpose.msra.mxu0 0.0
      %2126 = vmatprep.subr.mxu0 0.0
      %2127 = vmatpush2.xpose.msra.mxu0 0.0
      %2128 = vmatprep.subr.mxu0 0.0
      %2129 = vmatpush2.xpose.msra.mxu0 0.0
      %2130 = vmatprep.subr.mxu0 0.0
      %2131 = vmatpush2.xpose.msra.mxu0 0.0
      %2132 = vmatprep.subr.mxu0 0.0
      %2133 = vmatpush2.xpose.msra.mxu0 0.0
      %2134 = vmatprep.subr.mxu0 0.0
      %2135 = vmatpush2.xpose.msra.mxu0 0.0
      %2136 = vmatprep.subr.mxu0 0.0
      %2137 = vmatpush2.xpose.msra.mxu0 0.0
      %2138 = vmatprep.subr.mxu0 0.0
      %2139 = vmatpush2.xpose.msra.mxu0 0.0
      %2140 = vmatprep.subr.mxu0 0.0
      %2141 = vmatpush2.xpose.msra.mxu0 0.0
      %2142 = vmatprep.subr.mxu0 0.0
      %2143 = vmatpush2.xpose.msra.mxu0 0.0
      %2144 = vmatprep.subr.mxu0 0.0
      %2145 = vmatpush2.xpose.msra.mxu0 0.0
      %2146 = vmatprep.subr.mxu0 0.0
      %2147 = vmatpush2.xpose.msra.mxu0 0.0
      %2148 = vmatprep.subr.mxu0 0.0
      %2149 = vmatpush2.xpose.msra.mxu0 0.0
      %2150 = vmatprep.mubr.f32.mxu0 0.0
      %2151 = vmatmul.mubr.f32.gmra.mxu0 %v2054
      %v2152 = vpop.f32.mrf.mxu0
      %v2153 = vadd.f32 0.0, %v2152
      %v2154 = vpop.f32.mrf.mxu0
      %2155 = vmatprep.mubr.f32.mxu0 0.0
      %2156 = vmatmul.mubr.f32.gmra.mxu0 %v2056
      %v2157 = vpop.f32.mrf.mxu0
      %v2158 = vadd.f32 0.0, %v2157
      %v2159 = vpop.f32.mrf.mxu0
      %2160 = vmatprep.mubr.f32.mxu0 0.0
      %2161 = vmatmul.mubr.f32.gmra.mxu0 %v2058
      %v2162 = vpop.f32.mrf.mxu0
      %v2163 = vadd.f32 0.0, %v2162
      %v2164 = vpop.f32.mrf.mxu0
      %2165 = vmatprep.mubr.f32.mxu0 0.0
      %2166 = vmatmul.mubr.f32.gmra.mxu0 %v2060
      %v2167 = vpop.f32.mrf.mxu0
      %v2168 = vadd.f32 0.0, %v2167
      %v2169 = vpop.f32.mrf.mxu0
      %2170 = vmatprep.mubr.f32.mxu0 0.0
      %2171 = vmatmul.mubr.f32.gmra.mxu0 %v2062
      %v2172 = vpop.f32.mrf.mxu0
      %v2173 = vadd.f32 0.0, %v2172
      %v2174 = vpop.f32.mrf.mxu0
      %2175 = vmatprep.mubr.f32.mxu0 0.0
      %2176 = vmatmul.mubr.f32.gmra.mxu0 %v2064
      %v2177 = vpop.f32.mrf.mxu0
      %v2178 = vadd.f32 0.0, %v2177
      %v2179 = vpop.f32.mrf.mxu0
      %2180 = vmatprep.mubr.f32.mxu0 0.0
      %2181 = vmatmul.mubr.f32.gmra.mxu0 %v2066
      %v2182 = vpop.f32.mrf.mxu0
      %v2183 = vadd.f32 0.0, %v2182
      %v2184 = vpop.f32.mrf.mxu0
      %2185 = vmatprep.mubr.f32.mxu0 0.0
      %2186 = vmatmul.mubr.f32.gmra.mxu0 %v2068
      %v2187 = vpop.f32.mrf.mxu0
      %v2188 = vadd.f32 0.0, %v2187
      %v2189 = vpop.f32.mrf.mxu0
      %2190 = vdwg.mxu0
      %2191 = vrot.lane.b32.xlu0 %v1113, 112
      %v2192 = vpop.permute.xlu0 %2191
      %2193 = vrot.lane.b32.xlu0 %v1115, 112
      %v2194 = vpop.permute.xlu0 %2193
      %2195 = vrot.lane.b32.xlu0 %v1117, 112
      %v2196 = vpop.permute.xlu0 %2195
      %2197 = vrot.lane.b32.xlu0 %v1119, 112
      %v2198 = vpop.permute.xlu0 %2197
      %2199 = vrot.lane.b32.xlu0 %v1121, 112
      %v2200 = vpop.permute.xlu0 %2199
      %2201 = vrot.lane.b32.xlu0 %v1123, 112
      %v2202 = vpop.permute.xlu0 %2201
      %2203 = vrot.lane.b32.xlu0 %v1125, 112
      %v2204 = vpop.permute.xlu0 %2203
      %2205 = vrot.lane.b32.xlu0 %v1127, 112
      %v2206 = vpop.permute.xlu0 %2205
      %v2207 = vsel %vm1288, %v1113, 0
      %v2209 = vsel %vm1288, %v1115, 0
      %v2211 = vsel %vm1288, %v1117, 0
      %v2213 = vsel %vm1288, %v1119, 0
      %v2215 = vsel %vm1288, %v1121, 0
      %v2217 = vsel %vm1288, %v1123, 0
      %v2219 = vsel %vm1288, %v1125, 0
      %v2221 = vsel %vm1288, %v1127, 0
      %v2223 = vsel %vm1288, %v2192, 0
      %v2225 = vsel %vm1288, %v2194, 0
      %v2227 = vsel %vm1288, %v2196, 0
      %v2229 = vsel %vm1288, %v2198, 0
      %v2231 = vsel %vm1288, %v2200, 0
      %v2233 = vsel %vm1288, %v2202, 0
      %v2235 = vsel %vm1288, %v2204, 0
      %v2237 = vsel %vm1288, %v2206, 0
      %2239 = vmatprep.subr.mxu0 0.0
      %2240 = vmatpush1.xpose.msra.mxu0 0.0
      %2241 = vmatprep.subr.mxu0 0.0
      %2242 = vmatpush1.xpose.msra.mxu0 0.0
      %2243 = vmatprep.subr.mxu0 0.0
      %2244 = vmatpush1.xpose.msra.mxu0 0.0
      %2245 = vmatprep.subr.mxu0 0.0
      %2246 = vmatpush1.xpose.msra.mxu0 0.0
      %2247 = vmatprep.subr.mxu0 0.0
      %2248 = vmatpush1.xpose.msra.mxu0 0.0
      %2249 = vmatprep.subr.mxu0 0.0
      %2250 = vmatpush1.xpose.msra.mxu0 0.0
      %2251 = vmatprep.subr.mxu0 0.0
      %2252 = vmatpush1.xpose.msra.mxu0 0.0
      %2253 = vmatprep.subr.mxu0 0.0
      %2254 = vmatpush1.xpose.msra.mxu0 0.0
      %2255 = vmatprep.subr.mxu0 0.0
      %2256 = vmatpush1.xpose.msra.mxu0 %v2237
      %2257 = vmatprep.subr.mxu0 0.0
      %2258 = vmatpush1.xpose.msra.mxu0 %v2235
      %2259 = vmatprep.subr.mxu0 0.0
      %2260 = vmatpush1.xpose.msra.mxu0 %v2233
      %2261 = vmatprep.subr.mxu0 0.0
      %2262 = vmatpush1.xpose.msra.mxu0 %v2231
      %2263 = vmatprep.subr.mxu0 0.0
      %2264 = vmatpush1.xpose.msra.mxu0 %v2229
      %2265 = vmatprep.subr.mxu0 0.0
      %2266 = vmatpush1.xpose.msra.mxu0 %v2227
      %2267 = vmatprep.subr.mxu0 0.0
      %2268 = vmatpush1.xpose.msra.mxu0 %v2225
      %2269 = vmatprep.subr.mxu0 0.0
      %2270 = vmatpush1.xpose.msra.mxu0 %v2223
      %2271 = vmatprep.subr.mxu0 0.0
      %2272 = vmatpush2.xpose.msra.mxu0 0.0
      %2273 = vmatprep.subr.mxu0 0.0
      %2274 = vmatpush2.xpose.msra.mxu0 0.0
      %2275 = vmatprep.subr.mxu0 0.0
      %2276 = vmatpush2.xpose.msra.mxu0 0.0
      %2277 = vmatprep.subr.mxu0 0.0
      %2278 = vmatpush2.xpose.msra.mxu0 0.0
      %2279 = vmatprep.subr.mxu0 0.0
      %2280 = vmatpush2.xpose.msra.mxu0 0.0
      %2281 = vmatprep.subr.mxu0 0.0
      %2282 = vmatpush2.xpose.msra.mxu0 0.0
      %2283 = vmatprep.subr.mxu0 0.0
      %2284 = vmatpush2.xpose.msra.mxu0 0.0
      %2285 = vmatprep.subr.mxu0 0.0
      %2286 = vmatpush2.xpose.msra.mxu0 0.0
      %2287 = vmatprep.subr.mxu0 0.0
      %2288 = vmatpush2.xpose.msra.mxu0 0.0
      %2289 = vmatprep.subr.mxu0 0.0
      %2290 = vmatpush2.xpose.msra.mxu0 0.0
      %2291 = vmatprep.subr.mxu0 0.0
      %2292 = vmatpush2.xpose.msra.mxu0 0.0
      %2293 = vmatprep.subr.mxu0 0.0
      %2294 = vmatpush2.xpose.msra.mxu0 0.0
      %2295 = vmatprep.subr.mxu0 0.0
      %2296 = vmatpush2.xpose.msra.mxu0 0.0
      %2297 = vmatprep.subr.mxu0 0.0
      %2298 = vmatpush2.xpose.msra.mxu0 0.0
      %2299 = vmatprep.subr.mxu0 0.0
      %2300 = vmatpush2.xpose.msra.mxu0 0.0
      %2301 = vmatprep.subr.mxu0 0.0
      %2302 = vmatpush2.xpose.msra.mxu0 0.0
      %2303 = vmatprep.mubr.f32.mxu0 0.0
      %2304 = vmatmul.mubr.f32.gmra.mxu0 %v2207
      %v2305 = vpop.f32.mrf.mxu0
      %v2306 = vadd.f32 0.0, %v2305
      %v2307 = vpop.f32.mrf.mxu0
      %2308 = vmatprep.mubr.f32.mxu0 0.0
      %2309 = vmatmul.mubr.f32.gmra.mxu0 %v2209
      %v2310 = vpop.f32.mrf.mxu0
      %v2311 = vadd.f32 0.0, %v2310
      %v2312 = vpop.f32.mrf.mxu0
      %2313 = vmatprep.mubr.f32.mxu0 0.0
      %2314 = vmatmul.mubr.f32.gmra.mxu0 %v2211
      %v2315 = vpop.f32.mrf.mxu0
      %v2316 = vadd.f32 0.0, %v2315
      %v2317 = vpop.f32.mrf.mxu0
      %2318 = vmatprep.mubr.f32.mxu0 0.0
      %2319 = vmatmul.mubr.f32.gmra.mxu0 %v2213
      %v2320 = vpop.f32.mrf.mxu0
      %v2321 = vadd.f32 0.0, %v2320
      %v2322 = vpop.f32.mrf.mxu0
      %2323 = vmatprep.mubr.f32.mxu0 0.0
      %2324 = vmatmul.mubr.f32.gmra.mxu0 %v2215
      %v2325 = vpop.f32.mrf.mxu0
      %v2326 = vadd.f32 0.0, %v2325
      %v2327 = vpop.f32.mrf.mxu0
      %2328 = vmatprep.mubr.f32.mxu0 0.0
      %2329 = vmatmul.mubr.f32.gmra.mxu0 %v2217
      %v2330 = vpop.f32.mrf.mxu0
      %v2331 = vadd.f32 0.0, %v2330
      %v2332 = vpop.f32.mrf.mxu0
      %2333 = vmatprep.mubr.f32.mxu0 0.0
      %2334 = vmatmul.mubr.f32.gmra.mxu0 %v2219
      %v2335 = vpop.f32.mrf.mxu0
      %v2336 = vadd.f32 0.0, %v2335
      %v2337 = vpop.f32.mrf.mxu0
      %2338 = vmatprep.mubr.f32.mxu0 0.0
      %2339 = vmatmul.mubr.f32.gmra.mxu0 %v2221
      %v2340 = vpop.f32.mrf.mxu0
      %v2341 = vadd.f32 0.0, %v2340
      %v2342 = vpop.f32.mrf.mxu0
      %2343 = vdwg.mxu0
      %2344 = vrot.lane.b32.xlu0 %v1129, 112
      %v2345 = vpop.permute.xlu0 %2344
      %2346 = vrot.lane.b32.xlu0 %v1131, 112
      %v2347 = vpop.permute.xlu0 %2346
      %2348 = vrot.lane.b32.xlu0 %v1133, 112
      %v2349 = vpop.permute.xlu0 %2348
      %2350 = vrot.lane.b32.xlu0 %v1135, 112
      %v2351 = vpop.permute.xlu0 %2350
      %2352 = vrot.lane.b32.xlu0 %v1137, 112
      %v2353 = vpop.permute.xlu0 %2352
      %2354 = vrot.lane.b32.xlu0 %v1139, 112
      %v2355 = vpop.permute.xlu0 %2354
      %2356 = vrot.lane.b32.xlu0 %v1141, 112
      %v2357 = vpop.permute.xlu0 %2356
      %2358 = vrot.lane.b32.xlu0 %v1143, 112
      %v2359 = vpop.permute.xlu0 %2358
      %v2360 = vsel %vm1288, %v1129, 0
      %v2362 = vsel %vm1288, %v1131, 0
      %v2364 = vsel %vm1288, %v1133, 0
      %v2366 = vsel %vm1288, %v1135, 0
      %v2368 = vsel %vm1288, %v1137, 0
      %v2370 = vsel %vm1288, %v1139, 0
      %v2372 = vsel %vm1288, %v1141, 0
      %v2374 = vsel %vm1288, %v1143, 0
      %v2376 = vsel %vm1288, %v2345, 0
      %v2378 = vsel %vm1288, %v2347, 0
      %v2380 = vsel %vm1288, %v2349, 0
      %v2382 = vsel %vm1288, %v2351, 0
      %v2384 = vsel %vm1288, %v2353, 0
      %v2386 = vsel %vm1288, %v2355, 0
      %v2388 = vsel %vm1288, %v2357, 0
      %v2390 = vsel %vm1288, %v2359, 0
      %2392 = vmatprep.subr.mxu0 0.0
      %2393 = vmatpush1.xpose.msra.mxu0 0.0
      %2394 = vmatprep.subr.mxu0 0.0
      %2395 = vmatpush1.xpose.msra.mxu0 0.0
      %2396 = vmatprep.subr.mxu0 0.0
      %2397 = vmatpush1.xpose.msra.mxu0 0.0
      %2398 = vmatprep.subr.mxu0 0.0
      %2399 = vmatpush1.xpose.msra.mxu0 0.0
      %2400 = vmatprep.subr.mxu0 0.0
      %2401 = vmatpush1.xpose.msra.mxu0 0.0
      %2402 = vmatprep.subr.mxu0 0.0
      %2403 = vmatpush1.xpose.msra.mxu0 0.0
      %2404 = vmatprep.subr.mxu0 0.0
      %2405 = vmatpush1.xpose.msra.mxu0 0.0
      %2406 = vmatprep.subr.mxu0 0.0
      %2407 = vmatpush1.xpose.msra.mxu0 0.0
      %2408 = vmatprep.subr.mxu0 0.0
      %2409 = vmatpush1.xpose.msra.mxu0 %v2390
      %2410 = vmatprep.subr.mxu0 0.0
      %2411 = vmatpush1.xpose.msra.mxu0 %v2388
      %2412 = vmatprep.subr.mxu0 0.0
      %2413 = vmatpush1.xpose.msra.mxu0 %v2386
      %2414 = vmatprep.subr.mxu0 0.0
      %2415 = vmatpush1.xpose.msra.mxu0 %v2384
      %2416 = vmatprep.subr.mxu0 0.0
      %2417 = vmatpush1.xpose.msra.mxu0 %v2382
      %2418 = vmatprep.subr.mxu0 0.0
      %2419 = vmatpush1.xpose.msra.mxu0 %v2380
      %2420 = vmatprep.subr.mxu0 0.0
      %2421 = vmatpush1.xpose.msra.mxu0 %v2378
      %2422 = vmatprep.subr.mxu0 0.0
      %2423 = vmatpush1.xpose.msra.mxu0 %v2376
      %2424 = vmatprep.subr.mxu0 0.0
      %2425 = vmatpush2.xpose.msra.mxu0 0.0
      %2426 = vmatprep.subr.mxu0 0.0
      %2427 = vmatpush2.xpose.msra.mxu0 0.0
      %2428 = vmatprep.subr.mxu0 0.0
      %2429 = vmatpush2.xpose.msra.mxu0 0.0
      %2430 = vmatprep.subr.mxu0 0.0
      %2431 = vmatpush2.xpose.msra.mxu0 0.0
      %2432 = vmatprep.subr.mxu0 0.0
      %2433 = vmatpush2.xpose.msra.mxu0 0.0
      %2434 = vmatprep.subr.mxu0 0.0
      %2435 = vmatpush2.xpose.msra.mxu0 0.0
      %2436 = vmatprep.subr.mxu0 0.0
      %2437 = vmatpush2.xpose.msra.mxu0 0.0
      %2438 = vmatprep.subr.mxu0 0.0
      %2439 = vmatpush2.xpose.msra.mxu0 0.0
      %2440 = vmatprep.subr.mxu0 0.0
      %2441 = vmatpush2.xpose.msra.mxu0 0.0
      %2442 = vmatprep.subr.mxu0 0.0
      %2443 = vmatpush2.xpose.msra.mxu0 0.0
      %2444 = vmatprep.subr.mxu0 0.0
      %2445 = vmatpush2.xpose.msra.mxu0 0.0
      %2446 = vmatprep.subr.mxu0 0.0
      %2447 = vmatpush2.xpose.msra.mxu0 0.0
      %2448 = vmatprep.subr.mxu0 0.0
      %2449 = vmatpush2.xpose.msra.mxu0 0.0
      %2450 = vmatprep.subr.mxu0 0.0
      %2451 = vmatpush2.xpose.msra.mxu0 0.0
      %2452 = vmatprep.subr.mxu0 0.0
      %2453 = vmatpush2.xpose.msra.mxu0 0.0
      %2454 = vmatprep.subr.mxu0 0.0
      %2455 = vmatpush2.xpose.msra.mxu0 0.0
      %2456 = vmatprep.mubr.f32.mxu0 0.0
      %2457 = vmatmul.mubr.f32.gmra.mxu0 %v2360
      %v2458 = vpop.f32.mrf.mxu0
      %v2459 = vadd.f32 0.0, %v2458
      %v2460 = vpop.f32.mrf.mxu0
      %2461 = vmatprep.mubr.f32.mxu0 0.0
      %2462 = vmatmul.mubr.f32.gmra.mxu0 %v2362
      %v2463 = vpop.f32.mrf.mxu0
      %v2464 = vadd.f32 0.0, %v2463
      %v2465 = vpop.f32.mrf.mxu0
      %2466 = vmatprep.mubr.f32.mxu0 0.0
      %2467 = vmatmul.mubr.f32.gmra.mxu0 %v2364
      %v2468 = vpop.f32.mrf.mxu0
      %v2469 = vadd.f32 0.0, %v2468
      %v2470 = vpop.f32.mrf.mxu0
      %2471 = vmatprep.mubr.f32.mxu0 0.0
      %2472 = vmatmul.mubr.f32.gmra.mxu0 %v2366
      %v2473 = vpop.f32.mrf.mxu0
      %v2474 = vadd.f32 0.0, %v2473
      %v2475 = vpop.f32.mrf.mxu0
      %2476 = vmatprep.mubr.f32.mxu0 0.0
      %2477 = vmatmul.mubr.f32.gmra.mxu0 %v2368
      %v2478 = vpop.f32.mrf.mxu0
      %v2479 = vadd.f32 0.0, %v2478
      %v2480 = vpop.f32.mrf.mxu0
      %2481 = vmatprep.mubr.f32.mxu0 0.0
      %2482 = vmatmul.mubr.f32.gmra.mxu0 %v2370
      %v2483 = vpop.f32.mrf.mxu0
      %v2484 = vadd.f32 0.0, %v2483
      %v2485 = vpop.f32.mrf.mxu0
      %2486 = vmatprep.mubr.f32.mxu0 0.0
      %2487 = vmatmul.mubr.f32.gmra.mxu0 %v2372
      %v2488 = vpop.f32.mrf.mxu0
      %v2489 = vadd.f32 0.0, %v2488
      %v2490 = vpop.f32.mrf.mxu0
      %2491 = vmatprep.mubr.f32.mxu0 0.0
      %2492 = vmatmul.mubr.f32.gmra.mxu0 %v2374
      %v2493 = vpop.f32.mrf.mxu0
      %v2494 = vadd.f32 0.0, %v2493
      %v2495 = vpop.f32.mrf.mxu0
      %2496 = vdwg.mxu0
      %2497 = vrot.lane.b32.xlu0 %v1145, 112
      %v2498 = vpop.permute.xlu0 %2497
      %2499 = vrot.lane.b32.xlu0 %v1147, 112
      %v2500 = vpop.permute.xlu0 %2499
      %2501 = vrot.lane.b32.xlu0 %v1149, 112
      %v2502 = vpop.permute.xlu0 %2501
      %2503 = vrot.lane.b32.xlu0 %v1151, 112
      %v2504 = vpop.permute.xlu0 %2503
      %2505 = vrot.lane.b32.xlu0 %v1153, 112
      %v2506 = vpop.permute.xlu0 %2505
      %2507 = vrot.lane.b32.xlu0 %v1155, 112
      %v2508 = vpop.permute.xlu0 %2507
      %2509 = vrot.lane.b32.xlu0 %v1157, 112
      %v2510 = vpop.permute.xlu0 %2509
      %2511 = vrot.lane.b32.xlu0 %v1159, 112
      %v2512 = vpop.permute.xlu0 %2511
      %v2513 = vsel %vm1288, %v1145, 0
      %v2515 = vsel %vm1288, %v1147, 0
      %v2517 = vsel %vm1288, %v1149, 0
      %v2519 = vsel %vm1288, %v1151, 0
      %v2521 = vsel %vm1288, %v1153, 0
      %v2523 = vsel %vm1288, %v1155, 0
      %v2525 = vsel %vm1288, %v1157, 0
      %v2527 = vsel %vm1288, %v1159, 0
      %v2529 = vsel %vm1288, %v2498, 0
      %v2531 = vsel %vm1288, %v2500, 0
      %v2533 = vsel %vm1288, %v2502, 0
      %v2535 = vsel %vm1288, %v2504, 0
      %v2537 = vsel %vm1288, %v2506, 0
      %v2539 = vsel %vm1288, %v2508, 0
      %v2541 = vsel %vm1288, %v2510, 0
      %v2543 = vsel %vm1288, %v2512, 0
      %2545 = vmatprep.subr.mxu0 0.0
      %2546 = vmatpush1.xpose.msra.mxu0 0.0
      %2547 = vmatprep.subr.mxu0 0.0
      %2548 = vmatpush1.xpose.msra.mxu0 0.0
      %2549 = vmatprep.subr.mxu0 0.0
      %2550 = vmatpush1.xpose.msra.mxu0 0.0
      %2551 = vmatprep.subr.mxu0 0.0
      %2552 = vmatpush1.xpose.msra.mxu0 0.0
      %2553 = vmatprep.subr.mxu0 0.0
      %2554 = vmatpush1.xpose.msra.mxu0 0.0
      %2555 = vmatprep.subr.mxu0 0.0
      %2556 = vmatpush1.xpose.msra.mxu0 0.0
      %2557 = vmatprep.subr.mxu0 0.0
      %2558 = vmatpush1.xpose.msra.mxu0 0.0
      %2559 = vmatprep.subr.mxu0 0.0
      %2560 = vmatpush1.xpose.msra.mxu0 0.0
      %2561 = vmatprep.subr.mxu0 0.0
      %2562 = vmatpush1.xpose.msra.mxu0 %v2543
      %2563 = vmatprep.subr.mxu0 0.0
      %2564 = vmatpush1.xpose.msra.mxu0 %v2541
      %2565 = vmatprep.subr.mxu0 0.0
      %2566 = vmatpush1.xpose.msra.mxu0 %v2539
      %2567 = vmatprep.subr.mxu0 0.0
      %2568 = vmatpush1.xpose.msra.mxu0 %v2537
      %2569 = vmatprep.subr.mxu0 0.0
      %2570 = vmatpush1.xpose.msra.mxu0 %v2535
      %2571 = vmatprep.subr.mxu0 0.0
      %2572 = vmatpush1.xpose.msra.mxu0 %v2533
      %2573 = vmatprep.subr.mxu0 0.0
      %2574 = vmatpush1.xpose.msra.mxu0 %v2531
      %2575 = vmatprep.subr.mxu0 0.0
      %2576 = vmatpush1.xpose.msra.mxu0 %v2529
      %2577 = vmatprep.subr.mxu0 0.0
      %2578 = vmatpush2.xpose.msra.mxu0 0.0
      %2579 = vmatprep.subr.mxu0 0.0
      %2580 = vmatpush2.xpose.msra.mxu0 0.0
      %2581 = vmatprep.subr.mxu0 0.0
      %2582 = vmatpush2.xpose.msra.mxu0 0.0
      %2583 = vmatprep.subr.mxu0 0.0
      %2584 = vmatpush2.xpose.msra.mxu0 0.0
      %2585 = vmatprep.subr.mxu0 0.0
      %2586 = vmatpush2.xpose.msra.mxu0 0.0
      %2587 = vmatprep.subr.mxu0 0.0
      %2588 = vmatpush2.xpose.msra.mxu0 0.0
      %2589 = vmatprep.subr.mxu0 0.0
      %2590 = vmatpush2.xpose.msra.mxu0 0.0
      %2591 = vmatprep.subr.mxu0 0.0
      %2592 = vmatpush2.xpose.msra.mxu0 0.0
      %2593 = vmatprep.subr.mxu0 0.0
      %2594 = vmatpush2.xpose.msra.mxu0 0.0
      %2595 = vmatprep.subr.mxu0 0.0
      %2596 = vmatpush2.xpose.msra.mxu0 0.0
      %2597 = vmatprep.subr.mxu0 0.0
      %2598 = vmatpush2.xpose.msra.mxu0 0.0
      %2599 = vmatprep.subr.mxu0 0.0
      %2600 = vmatpush2.xpose.msra.mxu0 0.0
      %2601 = vmatprep.subr.mxu0 0.0
      %2602 = vmatpush2.xpose.msra.mxu0 0.0
      %2603 = vmatprep.subr.mxu0 0.0
      %2604 = vmatpush2.xpose.msra.mxu0 0.0
      %2605 = vmatprep.subr.mxu0 0.0
      %2606 = vmatpush2.xpose.msra.mxu0 0.0
      %2607 = vmatprep.subr.mxu0 0.0
      %2608 = vmatpush2.xpose.msra.mxu0 0.0
      %2609 = vmatprep.mubr.f32.mxu0 0.0
      %2610 = vmatmul.mubr.f32.gmra.mxu0 %v2513
      %v2611 = vpop.f32.mrf.mxu0
      %v2612 = vadd.f32 0.0, %v2611
      %v2613 = vpop.f32.mrf.mxu0
      %2614 = vmatprep.mubr.f32.mxu0 0.0
      %2615 = vmatmul.mubr.f32.gmra.mxu0 %v2515
      %v2616 = vpop.f32.mrf.mxu0
      %v2617 = vadd.f32 0.0, %v2616
      %v2618 = vpop.f32.mrf.mxu0
      %2619 = vmatprep.mubr.f32.mxu0 0.0
      %2620 = vmatmul.mubr.f32.gmra.mxu0 %v2517
      %v2621 = vpop.f32.mrf.mxu0
      %v2622 = vadd.f32 0.0, %v2621
      %v2623 = vpop.f32.mrf.mxu0
      %2624 = vmatprep.mubr.f32.mxu0 0.0
      %2625 = vmatmul.mubr.f32.gmra.mxu0 %v2519
      %v2626 = vpop.f32.mrf.mxu0
      %v2627 = vadd.f32 0.0, %v2626
      %v2628 = vpop.f32.mrf.mxu0
      %2629 = vmatprep.mubr.f32.mxu0 0.0
      %2630 = vmatmul.mubr.f32.gmra.mxu0 %v2521
      %v2631 = vpop.f32.mrf.mxu0
      %v2632 = vadd.f32 0.0, %v2631
      %v2633 = vpop.f32.mrf.mxu0
      %2634 = vmatprep.mubr.f32.mxu0 0.0
      %2635 = vmatmul.mubr.f32.gmra.mxu0 %v2523
      %v2636 = vpop.f32.mrf.mxu0
      %v2637 = vadd.f32 0.0, %v2636
      %v2638 = vpop.f32.mrf.mxu0
      %2639 = vmatprep.mubr.f32.mxu0 0.0
      %2640 = vmatmul.mubr.f32.gmra.mxu0 %v2525
      %v2641 = vpop.f32.mrf.mxu0
      %v2642 = vadd.f32 0.0, %v2641
      %v2643 = vpop.f32.mrf.mxu0
      %2644 = vmatprep.mubr.f32.mxu0 0.0
      %2645 = vmatmul.mubr.f32.gmra.mxu0 %v2527
      %v2646 = vpop.f32.mrf.mxu0
      %v2647 = vadd.f32 0.0, %v2646
      %v2648 = vpop.f32.mrf.mxu0
      %2649 = vdwg.mxu0
      %2650 = vrot.lane.b32.xlu0 %v1161, 112
      %v2651 = vpop.permute.xlu0 %2650
      %2652 = vrot.lane.b32.xlu0 %v1163, 112
      %v2653 = vpop.permute.xlu0 %2652
      %2654 = vrot.lane.b32.xlu0 %v1165, 112
      %v2655 = vpop.permute.xlu0 %2654
      %2656 = vrot.lane.b32.xlu0 %v1167, 112
      %v2657 = vpop.permute.xlu0 %2656
      %2658 = vrot.lane.b32.xlu0 %v1169, 112
      %v2659 = vpop.permute.xlu0 %2658
      %2660 = vrot.lane.b32.xlu0 %v1171, 112
      %v2661 = vpop.permute.xlu0 %2660
      %2662 = vrot.lane.b32.xlu0 %v1173, 112
      %v2663 = vpop.permute.xlu0 %2662
      %2664 = vrot.lane.b32.xlu0 %v1175, 112
      %v2665 = vpop.permute.xlu0 %2664
      %v2666 = vsel %vm1288, %v1161, 0
      %v2668 = vsel %vm1288, %v1163, 0
      %v2670 = vsel %vm1288, %v1165, 0
      %v2672 = vsel %vm1288, %v1167, 0
      %v2674 = vsel %vm1288, %v1169, 0
      %v2676 = vsel %vm1288, %v1171, 0
      %v2678 = vsel %vm1288, %v1173, 0
      %v2680 = vsel %vm1288, %v1175, 0
      %v2682 = vsel %vm1288, %v2651, 0
      %v2684 = vsel %vm1288, %v2653, 0
      %v2686 = vsel %vm1288, %v2655, 0
      %v2688 = vsel %vm1288, %v2657, 0
      %v2690 = vsel %vm1288, %v2659, 0
      %v2692 = vsel %vm1288, %v2661, 0
      %v2694 = vsel %vm1288, %v2663, 0
      %v2696 = vsel %vm1288, %v2665, 0
      %2698 = vmatprep.subr.mxu0 0.0
      %2699 = vmatpush1.xpose.msra.mxu0 0.0
      %2700 = vmatprep.subr.mxu0 0.0
      %2701 = vmatpush1.xpose.msra.mxu0 0.0
      %2702 = vmatprep.subr.mxu0 0.0
      %2703 = vmatpush1.xpose.msra.mxu0 0.0
      %2704 = vmatprep.subr.mxu0 0.0
      %2705 = vmatpush1.xpose.msra.mxu0 0.0
      %2706 = vmatprep.subr.mxu0 0.0
      %2707 = vmatpush1.xpose.msra.mxu0 0.0
      %2708 = vmatprep.subr.mxu0 0.0
      %2709 = vmatpush1.xpose.msra.mxu0 0.0
      %2710 = vmatprep.subr.mxu0 0.0
      %2711 = vmatpush1.xpose.msra.mxu0 0.0
      %2712 = vmatprep.subr.mxu0 0.0
      %2713 = vmatpush1.xpose.msra.mxu0 0.0
      %2714 = vmatprep.subr.mxu0 0.0
      %2715 = vmatpush1.xpose.msra.mxu0 %v2696
      %2716 = vmatprep.subr.mxu0 0.0
      %2717 = vmatpush1.xpose.msra.mxu0 %v2694
      %2718 = vmatprep.subr.mxu0 0.0
      %2719 = vmatpush1.xpose.msra.mxu0 %v2692
      %2720 = vmatprep.subr.mxu0 0.0
      %2721 = vmatpush1.xpose.msra.mxu0 %v2690
      %2722 = vmatprep.subr.mxu0 0.0
      %2723 = vmatpush1.xpose.msra.mxu0 %v2688
      %2724 = vmatprep.subr.mxu0 0.0
      %2725 = vmatpush1.xpose.msra.mxu0 %v2686
      %2726 = vmatprep.subr.mxu0 0.0
      %2727 = vmatpush1.xpose.msra.mxu0 %v2684
      %2728 = vmatprep.subr.mxu0 0.0
      %2729 = vmatpush1.xpose.msra.mxu0 %v2682
      %2730 = vmatprep.subr.mxu0 0.0
      %2731 = vmatpush2.xpose.msra.mxu0 0.0
      %2732 = vmatprep.subr.mxu0 0.0
      %2733 = vmatpush2.xpose.msra.mxu0 0.0
      %2734 = vmatprep.subr.mxu0 0.0
      %2735 = vmatpush2.xpose.msra.mxu0 0.0
      %2736 = vmatprep.subr.mxu0 0.0
      %2737 = vmatpush2.xpose.msra.mxu0 0.0
      %2738 = vmatprep.subr.mxu0 0.0
      %2739 = vmatpush2.xpose.msra.mxu0 0.0
      %2740 = vmatprep.subr.mxu0 0.0
      %2741 = vmatpush2.xpose.msra.mxu0 0.0
      %2742 = vmatprep.subr.mxu0 0.0
      %2743 = vmatpush2.xpose.msra.mxu0 0.0
      %2744 = vmatprep.subr.mxu0 0.0
      %2745 = vmatpush2.xpose.msra.mxu0 0.0
      %2746 = vmatprep.subr.mxu0 0.0
      %2747 = vmatpush2.xpose.msra.mxu0 0.0
      %2748 = vmatprep.subr.mxu0 0.0
      %2749 = vmatpush2.xpose.msra.mxu0 0.0
      %2750 = vmatprep.subr.mxu0 0.0
      %2751 = vmatpush2.xpose.msra.mxu0 0.0
      %2752 = vmatprep.subr.mxu0 0.0
      %2753 = vmatpush2.xpose.msra.mxu0 0.0
      %2754 = vmatprep.subr.mxu0 0.0
      %2755 = vmatpush2.xpose.msra.mxu0 0.0
      %2756 = vmatprep.subr.mxu0 0.0
      %2757 = vmatpush2.xpose.msra.mxu0 0.0
      %2758 = vmatprep.subr.mxu0 0.0
      %2759 = vmatpush2.xpose.msra.mxu0 0.0
      %2760 = vmatprep.subr.mxu0 0.0
      %2761 = vmatpush2.xpose.msra.mxu0 0.0
      %2762 = vmatprep.mubr.f32.mxu0 0.0
      %2763 = vmatmul.mubr.f32.gmra.mxu0 %v2666
      %v2764 = vpop.f32.mrf.mxu0
      %v2765 = vadd.f32 0.0, %v2764
      %v2766 = vpop.f32.mrf.mxu0
      %2767 = vmatprep.mubr.f32.mxu0 0.0
      %2768 = vmatmul.mubr.f32.gmra.mxu0 %v2668
      %v2769 = vpop.f32.mrf.mxu0
      %v2770 = vadd.f32 0.0, %v2769
      %v2771 = vpop.f32.mrf.mxu0
      %2772 = vmatprep.mubr.f32.mxu0 0.0
      %2773 = vmatmul.mubr.f32.gmra.mxu0 %v2670
      %v2774 = vpop.f32.mrf.mxu0
      %v2775 = vadd.f32 0.0, %v2774
      %v2776 = vpop.f32.mrf.mxu0
      %2777 = vmatprep.mubr.f32.mxu0 0.0
      %2778 = vmatmul.mubr.f32.gmra.mxu0 %v2672
      %v2779 = vpop.f32.mrf.mxu0
      %v2780 = vadd.f32 0.0, %v2779
      %v2781 = vpop.f32.mrf.mxu0
      %2782 = vmatprep.mubr.f32.mxu0 0.0
      %2783 = vmatmul.mubr.f32.gmra.mxu0 %v2674
      %v2784 = vpop.f32.mrf.mxu0
      %v2785 = vadd.f32 0.0, %v2784
      %v2786 = vpop.f32.mrf.mxu0
      %2787 = vmatprep.mubr.f32.mxu0 0.0
      %2788 = vmatmul.mubr.f32.gmra.mxu0 %v2676
      %v2789 = vpop.f32.mrf.mxu0
      %v2790 = vadd.f32 0.0, %v2789
      %v2791 = vpop.f32.mrf.mxu0
      %2792 = vmatprep.mubr.f32.mxu0 0.0
      %2793 = vmatmul.mubr.f32.gmra.mxu0 %v2678
      %v2794 = vpop.f32.mrf.mxu0
      %v2795 = vadd.f32 0.0, %v2794
      %v2796 = vpop.f32.mrf.mxu0
      %2797 = vmatprep.mubr.f32.mxu0 0.0
      %2798 = vmatmul.mubr.f32.gmra.mxu0 %v2680
      %v2799 = vpop.f32.mrf.mxu0
      %v2800 = vadd.f32 0.0, %v2799
      %v2801 = vpop.f32.mrf.mxu0
      %2802 = vdwg.mxu0
      %2803 = vrot.lane.b32.xlu0 %v1177, 112
      %v2804 = vpop.permute.xlu0 %2803
      %2805 = vrot.lane.b32.xlu0 %v1179, 112
      %v2806 = vpop.permute.xlu0 %2805
      %2807 = vrot.lane.b32.xlu0 %v1181, 112
      %v2808 = vpop.permute.xlu0 %2807
      %2809 = vrot.lane.b32.xlu0 %v1183, 112
      %v2810 = vpop.permute.xlu0 %2809
      %2811 = vrot.lane.b32.xlu0 %v1185, 112
      %v2812 = vpop.permute.xlu0 %2811
      %2813 = vrot.lane.b32.xlu0 %v1187, 112
      %v2814 = vpop.permute.xlu0 %2813
      %2815 = vrot.lane.b32.xlu0 %v1189, 112
      %v2816 = vpop.permute.xlu0 %2815
      %2817 = vrot.lane.b32.xlu0 %v1191, 112
      %v2818 = vpop.permute.xlu0 %2817
      %v2819 = vsel %vm1288, %v1177, 0
      %v2821 = vsel %vm1288, %v1179, 0
      %v2823 = vsel %vm1288, %v1181, 0
      %v2825 = vsel %vm1288, %v1183, 0
      %v2827 = vsel %vm1288, %v1185, 0
      %v2829 = vsel %vm1288, %v1187, 0
      %v2831 = vsel %vm1288, %v1189, 0
      %v2833 = vsel %vm1288, %v1191, 0
      %v2835 = vsel %vm1288, %v2804, 0
      %v2837 = vsel %vm1288, %v2806, 0
      %v2839 = vsel %vm1288, %v2808, 0
      %v2841 = vsel %vm1288, %v2810, 0
      %v2843 = vsel %vm1288, %v2812, 0
      %v2845 = vsel %vm1288, %v2814, 0
      %v2847 = vsel %vm1288, %v2816, 0
      %v2849 = vsel %vm1288, %v2818, 0
      %2851 = vmatprep.subr.mxu0 0.0
      %2852 = vmatpush1.xpose.msra.mxu0 0.0
      %2853 = vmatprep.subr.mxu0 0.0
      %2854 = vmatpush1.xpose.msra.mxu0 0.0
      %2855 = vmatprep.subr.mxu0 0.0
      %2856 = vmatpush1.xpose.msra.mxu0 0.0
      %2857 = vmatprep.subr.mxu0 0.0
      %2858 = vmatpush1.xpose.msra.mxu0 0.0
      %2859 = vmatprep.subr.mxu0 0.0
      %2860 = vmatpush1.xpose.msra.mxu0 0.0
      %2861 = vmatprep.subr.mxu0 0.0
      %2862 = vmatpush1.xpose.msra.mxu0 0.0
      %2863 = vmatprep.subr.mxu0 0.0
      %2864 = vmatpush1.xpose.msra.mxu0 0.0
      %2865 = vmatprep.subr.mxu0 0.0
      %2866 = vmatpush1.xpose.msra.mxu0 0.0
      %2867 = vmatprep.subr.mxu0 0.0
      %2868 = vmatpush1.xpose.msra.mxu0 %v2849
      %2869 = vmatprep.subr.mxu0 0.0
      %2870 = vmatpush1.xpose.msra.mxu0 %v2847
      %2871 = vmatprep.subr.mxu0 0.0
      %2872 = vmatpush1.xpose.msra.mxu0 %v2845
      %2873 = vmatprep.subr.mxu0 0.0
      %2874 = vmatpush1.xpose.msra.mxu0 %v2843
      %2875 = vmatprep.subr.mxu0 0.0
      %2876 = vmatpush1.xpose.msra.mxu0 %v2841
      %2877 = vmatprep.subr.mxu0 0.0
      %2878 = vmatpush1.xpose.msra.mxu0 %v2839
      %2879 = vmatprep.subr.mxu0 0.0
      %2880 = vmatpush1.xpose.msra.mxu0 %v2837
      %2881 = vmatprep.subr.mxu0 0.0
      %2882 = vmatpush1.xpose.msra.mxu0 %v2835
      %2883 = vmatprep.subr.mxu0 0.0
      %2884 = vmatpush2.xpose.msra.mxu0 0.0
      %2885 = vmatprep.subr.mxu0 0.0
      %2886 = vmatpush2.xpose.msra.mxu0 0.0
      %2887 = vmatprep.subr.mxu0 0.0
      %2888 = vmatpush2.xpose.msra.mxu0 0.0
      %2889 = vmatprep.subr.mxu0 0.0
      %2890 = vmatpush2.xpose.msra.mxu0 0.0
      %2891 = vmatprep.subr.mxu0 0.0
      %2892 = vmatpush2.xpose.msra.mxu0 0.0
      %2893 = vmatprep.subr.mxu0 0.0
      %2894 = vmatpush2.xpose.msra.mxu0 0.0
      %2895 = vmatprep.subr.mxu0 0.0
      %2896 = vmatpush2.xpose.msra.mxu0 0.0
      %2897 = vmatprep.subr.mxu0 0.0
      %2898 = vmatpush2.xpose.msra.mxu0 0.0
      %2899 = vmatprep.subr.mxu0 0.0
      %2900 = vmatpush2.xpose.msra.mxu0 0.0
      %2901 = vmatprep.subr.mxu0 0.0
      %2902 = vmatpush2.xpose.msra.mxu0 0.0
      %2903 = vmatprep.subr.mxu0 0.0
      %2904 = vmatpush2.xpose.msra.mxu0 0.0
      %2905 = vmatprep.subr.mxu0 0.0
      %2906 = vmatpush2.xpose.msra.mxu0 0.0
      %2907 = vmatprep.subr.mxu0 0.0
      %2908 = vmatpush2.xpose.msra.mxu0 0.0
      %2909 = vmatprep.subr.mxu0 0.0
      %2910 = vmatpush2.xpose.msra.mxu0 0.0
      %2911 = vmatprep.subr.mxu0 0.0
      %2912 = vmatpush2.xpose.msra.mxu0 0.0
      %2913 = vmatprep.subr.mxu0 0.0
      %2914 = vmatpush2.xpose.msra.mxu0 0.0
      %2915 = vmatprep.mubr.f32.mxu0 0.0
      %2916 = vmatmul.mubr.f32.gmra.mxu0 %v2819
      %v2917 = vpop.f32.mrf.mxu0
      %v2918 = vadd.f32 0.0, %v2917
      %v2919 = vpop.f32.mrf.mxu0
      %2920 = vmatprep.mubr.f32.mxu0 0.0
      %2921 = vmatmul.mubr.f32.gmra.mxu0 %v2821
      %v2922 = vpop.f32.mrf.mxu0
      %v2923 = vadd.f32 0.0, %v2922
      %v2924 = vpop.f32.mrf.mxu0
      %2925 = vmatprep.mubr.f32.mxu0 0.0
      %2926 = vmatmul.mubr.f32.gmra.mxu0 %v2823
      %v2927 = vpop.f32.mrf.mxu0
      %v2928 = vadd.f32 0.0, %v2927
      %v2929 = vpop.f32.mrf.mxu0
      %2930 = vmatprep.mubr.f32.mxu0 0.0
      %2931 = vmatmul.mubr.f32.gmra.mxu0 %v2825
      %v2932 = vpop.f32.mrf.mxu0
      %v2933 = vadd.f32 0.0, %v2932
      %v2934 = vpop.f32.mrf.mxu0
      %2935 = vmatprep.mubr.f32.mxu0 0.0
      %2936 = vmatmul.mubr.f32.gmra.mxu0 %v2827
      %v2937 = vpop.f32.mrf.mxu0
      %v2938 = vadd.f32 0.0, %v2937
      %v2939 = vpop.f32.mrf.mxu0
      %2940 = vmatprep.mubr.f32.mxu0 0.0
      %2941 = vmatmul.mubr.f32.gmra.mxu0 %v2829
      %v2942 = vpop.f32.mrf.mxu0
      %v2943 = vadd.f32 0.0, %v2942
      %v2944 = vpop.f32.mrf.mxu0
      %2945 = vmatprep.mubr.f32.mxu0 0.0
      %2946 = vmatmul.mubr.f32.gmra.mxu0 %v2831
      %v2947 = vpop.f32.mrf.mxu0
      %v2948 = vadd.f32 0.0, %v2947
      %v2949 = vpop.f32.mrf.mxu0
      %2950 = vmatprep.mubr.f32.mxu0 0.0
      %2951 = vmatmul.mubr.f32.gmra.mxu0 %v2833
      %v2952 = vpop.f32.mrf.mxu0
      %v2953 = vadd.f32 0.0, %v2952
      %v2954 = vpop.f32.mrf.mxu0
      %2955 = vdwg.mxu0
      %2956 = vrot.lane.b32.xlu0 %v1193, 112
      %v2957 = vpop.permute.xlu0 %2956
      %2958 = vrot.lane.b32.xlu0 %v1195, 112
      %v2959 = vpop.permute.xlu0 %2958
      %2960 = vrot.lane.b32.xlu0 %v1197, 112
      %v2961 = vpop.permute.xlu0 %2960
      %2962 = vrot.lane.b32.xlu0 %v1199, 112
      %v2963 = vpop.permute.xlu0 %2962
      %2964 = vrot.lane.b32.xlu0 %v1201, 112
      %v2965 = vpop.permute.xlu0 %2964
      %2966 = vrot.lane.b32.xlu0 %v1203, 112
      %v2967 = vpop.permute.xlu0 %2966
      %2968 = vrot.lane.b32.xlu0 %v1205, 112
      %v2969 = vpop.permute.xlu0 %2968
      %2970 = vrot.lane.b32.xlu0 %v1207, 112
      %v2971 = vpop.permute.xlu0 %2970
      %v2972 = vsel %vm1288, %v1193, 0
      %v2974 = vsel %vm1288, %v1195, 0
      %v2976 = vsel %vm1288, %v1197, 0
      %v2978 = vsel %vm1288, %v1199, 0
      %v2980 = vsel %vm1288, %v1201, 0
      %v2982 = vsel %vm1288, %v1203, 0
      %v2984 = vsel %vm1288, %v1205, 0
      %v2986 = vsel %vm1288, %v1207, 0
      %v2988 = vsel %vm1288, %v2957, 0
      %v2990 = vsel %vm1288, %v2959, 0
      %v2992 = vsel %vm1288, %v2961, 0
      %v2994 = vsel %vm1288, %v2963, 0
      %v2996 = vsel %vm1288, %v2965, 0
      %v2998 = vsel %vm1288, %v2967, 0
      %v3000 = vsel %vm1288, %v2969, 0
      %v3002 = vsel %vm1288, %v2971, 0
      %3004 = vmatprep.subr.mxu0 0.0
      %3005 = vmatpush1.xpose.msra.mxu0 0.0
      %3006 = vmatprep.subr.mxu0 0.0
      %3007 = vmatpush1.xpose.msra.mxu0 0.0
      %3008 = vmatprep.subr.mxu0 0.0
      %3009 = vmatpush1.xpose.msra.mxu0 0.0
      %3010 = vmatprep.subr.mxu0 0.0
      %3011 = vmatpush1.xpose.msra.mxu0 0.0
      %3012 = vmatprep.subr.mxu0 0.0
      %3013 = vmatpush1.xpose.msra.mxu0 0.0
      %3014 = vmatprep.subr.mxu0 0.0
      %3015 = vmatpush1.xpose.msra.mxu0 0.0
      %3016 = vmatprep.subr.mxu0 0.0
      %3017 = vmatpush1.xpose.msra.mxu0 0.0
      %3018 = vmatprep.subr.mxu0 0.0
      %3019 = vmatpush1.xpose.msra.mxu0 0.0
      %3020 = vmatprep.subr.mxu0 0.0
      %3021 = vmatpush1.xpose.msra.mxu0 %v3002
      %3022 = vmatprep.subr.mxu0 0.0
      %3023 = vmatpush1.xpose.msra.mxu0 %v3000
      %3024 = vmatprep.subr.mxu0 0.0
      %3025 = vmatpush1.xpose.msra.mxu0 %v2998
      %3026 = vmatprep.subr.mxu0 0.0
      %3027 = vmatpush1.xpose.msra.mxu0 %v2996
      %3028 = vmatprep.subr.mxu0 0.0
      %3029 = vmatpush1.xpose.msra.mxu0 %v2994
      %3030 = vmatprep.subr.mxu0 0.0
      %3031 = vmatpush1.xpose.msra.mxu0 %v2992
      %3032 = vmatprep.subr.mxu0 0.0
      %3033 = vmatpush1.xpose.msra.mxu0 %v2990
      %3034 = vmatprep.subr.mxu0 0.0
      %3035 = vmatpush1.xpose.msra.mxu0 %v2988
      %3036 = vmatprep.subr.mxu0 0.0
      %3037 = vmatpush2.xpose.msra.mxu0 0.0
      %3038 = vmatprep.subr.mxu0 0.0
      %3039 = vmatpush2.xpose.msra.mxu0 0.0
      %3040 = vmatprep.subr.mxu0 0.0
      %3041 = vmatpush2.xpose.msra.mxu0 0.0
      %3042 = vmatprep.subr.mxu0 0.0
      %3043 = vmatpush2.xpose.msra.mxu0 0.0
      %3044 = vmatprep.subr.mxu0 0.0
      %3045 = vmatpush2.xpose.msra.mxu0 0.0
      %3046 = vmatprep.subr.mxu0 0.0
      %3047 = vmatpush2.xpose.msra.mxu0 0.0
      %3048 = vmatprep.subr.mxu0 0.0
      %3049 = vmatpush2.xpose.msra.mxu0 0.0
      %3050 = vmatprep.subr.mxu0 0.0
      %3051 = vmatpush2.xpose.msra.mxu0 0.0
      %3052 = vmatprep.subr.mxu0 0.0
      %3053 = vmatpush2.xpose.msra.mxu0 0.0
      %3054 = vmatprep.subr.mxu0 0.0
      %3055 = vmatpush2.xpose.msra.mxu0 0.0
      %3056 = vmatprep.subr.mxu0 0.0
      %3057 = vmatpush2.xpose.msra.mxu0 0.0
      %3058 = vmatprep.subr.mxu0 0.0
      %3059 = vmatpush2.xpose.msra.mxu0 0.0
      %3060 = vmatprep.subr.mxu0 0.0
      %3061 = vmatpush2.xpose.msra.mxu0 0.0
      %3062 = vmatprep.subr.mxu0 0.0
      %3063 = vmatpush2.xpose.msra.mxu0 0.0
      %3064 = vmatprep.subr.mxu0 0.0
      %3065 = vmatpush2.xpose.msra.mxu0 0.0
      %3066 = vmatprep.subr.mxu0 0.0
      %3067 = vmatpush2.xpose.msra.mxu0 0.0
      %3068 = vmatprep.mubr.f32.mxu0 0.0
      %3069 = vmatmul.mubr.f32.gmra.mxu0 %v2972
      %v3070 = vpop.f32.mrf.mxu0
      %v3071 = vadd.f32 0.0, %v3070
      %v3072 = vpop.f32.mrf.mxu0
      %3073 = vmatprep.mubr.f32.mxu0 0.0
      %3074 = vmatmul.mubr.f32.gmra.mxu0 %v2974
      %v3075 = vpop.f32.mrf.mxu0
      %v3076 = vadd.f32 0.0, %v3075
      %v3077 = vpop.f32.mrf.mxu0
      %3078 = vmatprep.mubr.f32.mxu0 0.0
      %3079 = vmatmul.mubr.f32.gmra.mxu0 %v2976
      %v3080 = vpop.f32.mrf.mxu0
      %v3081 = vadd.f32 0.0, %v3080
      %v3082 = vpop.f32.mrf.mxu0
      %3083 = vmatprep.mubr.f32.mxu0 0.0
      %3084 = vmatmul.mubr.f32.gmra.mxu0 %v2978
      %v3085 = vpop.f32.mrf.mxu0
      %v3086 = vadd.f32 0.0, %v3085
      %v3087 = vpop.f32.mrf.mxu0
      %3088 = vmatprep.mubr.f32.mxu0 0.0
      %3089 = vmatmul.mubr.f32.gmra.mxu0 %v2980
      %v3090 = vpop.f32.mrf.mxu0
      %v3091 = vadd.f32 0.0, %v3090
      %v3092 = vpop.f32.mrf.mxu0
      %3093 = vmatprep.mubr.f32.mxu0 0.0
      %3094 = vmatmul.mubr.f32.gmra.mxu0 %v2982
      %v3095 = vpop.f32.mrf.mxu0
      %v3096 = vadd.f32 0.0, %v3095
      %v3097 = vpop.f32.mrf.mxu0
      %3098 = vmatprep.mubr.f32.mxu0 0.0
      %3099 = vmatmul.mubr.f32.gmra.mxu0 %v2984
      %v3100 = vpop.f32.mrf.mxu0
      %v3101 = vadd.f32 0.0, %v3100
      %v3102 = vpop.f32.mrf.mxu0
      %3103 = vmatprep.mubr.f32.mxu0 0.0
      %3104 = vmatmul.mubr.f32.gmra.mxu0 %v2986
      %v3105 = vpop.f32.mrf.mxu0
      %v3106 = vadd.f32 0.0, %v3105
      %v3107 = vpop.f32.mrf.mxu0
      %3108 = vdwg.mxu0
      %3109 = vrot.lane.b32.xlu0 %v1209, 112
      %v3110 = vpop.permute.xlu0 %3109
      %3111 = vrot.lane.b32.xlu0 %v1211, 112
      %v3112 = vpop.permute.xlu0 %3111
      %3113 = vrot.lane.b32.xlu0 %v1213, 112
      %v3114 = vpop.permute.xlu0 %3113
      %3115 = vrot.lane.b32.xlu0 %v1215, 112
      %v3116 = vpop.permute.xlu0 %3115
      %3117 = vrot.lane.b32.xlu0 %v1217, 112
      %v3118 = vpop.permute.xlu0 %3117
      %3119 = vrot.lane.b32.xlu0 %v1219, 112
      %v3120 = vpop.permute.xlu0 %3119
      %3121 = vrot.lane.b32.xlu0 %v1221, 112
      %v3122 = vpop.permute.xlu0 %3121
      %3123 = vrot.lane.b32.xlu0 %v1223, 112
      %v3124 = vpop.permute.xlu0 %3123
      %v3125 = vsel %vm1288, %v1209, 0
      %v3127 = vsel %vm1288, %v1211, 0
      %v3129 = vsel %vm1288, %v1213, 0
      %v3131 = vsel %vm1288, %v1215, 0
      %v3133 = vsel %vm1288, %v1217, 0
      %v3135 = vsel %vm1288, %v1219, 0
      %v3137 = vsel %vm1288, %v1221, 0
      %v3139 = vsel %vm1288, %v1223, 0
      %v3141 = vsel %vm1288, %v3110, 0
      %v3143 = vsel %vm1288, %v3112, 0
      %v3145 = vsel %vm1288, %v3114, 0
      %v3147 = vsel %vm1288, %v3116, 0
      %v3149 = vsel %vm1288, %v3118, 0
      %v3151 = vsel %vm1288, %v3120, 0
      %v3153 = vsel %vm1288, %v3122, 0
      %v3155 = vsel %vm1288, %v3124, 0
      %3157 = vmatprep.subr.mxu0 0.0
      %3158 = vmatpush1.xpose.msra.mxu0 0.0
      %3159 = vmatprep.subr.mxu0 0.0
      %3160 = vmatpush1.xpose.msra.mxu0 0.0
      %3161 = vmatprep.subr.mxu0 0.0
      %3162 = vmatpush1.xpose.msra.mxu0 0.0
      %3163 = vmatprep.subr.mxu0 0.0
      %3164 = vmatpush1.xpose.msra.mxu0 0.0
      %3165 = vmatprep.subr.mxu0 0.0
      %3166 = vmatpush1.xpose.msra.mxu0 0.0
      %3167 = vmatprep.subr.mxu0 0.0
      %3168 = vmatpush1.xpose.msra.mxu0 0.0
      %3169 = vmatprep.subr.mxu0 0.0
      %3170 = vmatpush1.xpose.msra.mxu0 0.0
      %3171 = vmatprep.subr.mxu0 0.0
      %3172 = vmatpush1.xpose.msra.mxu0 0.0
      %3173 = vmatprep.subr.mxu0 0.0
      %3174 = vmatpush1.xpose.msra.mxu0 %v3155
      %3175 = vmatprep.subr.mxu0 0.0
      %3176 = vmatpush1.xpose.msra.mxu0 %v3153
      %3177 = vmatprep.subr.mxu0 0.0
      %3178 = vmatpush1.xpose.msra.mxu0 %v3151
      %3179 = vmatprep.subr.mxu0 0.0
      %3180 = vmatpush1.xpose.msra.mxu0 %v3149
      %3181 = vmatprep.subr.mxu0 0.0
      %3182 = vmatpush1.xpose.msra.mxu0 %v3147
      %3183 = vmatprep.subr.mxu0 0.0
      %3184 = vmatpush1.xpose.msra.mxu0 %v3145
      %3185 = vmatprep.subr.mxu0 0.0
      %3186 = vmatpush1.xpose.msra.mxu0 %v3143
      %3187 = vmatprep.subr.mxu0 0.0
      %3188 = vmatpush1.xpose.msra.mxu0 %v3141
      %3189 = vmatprep.subr.mxu0 0.0
      %3190 = vmatpush2.xpose.msra.mxu0 0.0
      %3191 = vmatprep.subr.mxu0 0.0
      %3192 = vmatpush2.xpose.msra.mxu0 0.0
      %3193 = vmatprep.subr.mxu0 0.0
      %3194 = vmatpush2.xpose.msra.mxu0 0.0
      %3195 = vmatprep.subr.mxu0 0.0
      %3196 = vmatpush2.xpose.msra.mxu0 0.0
      %3197 = vmatprep.subr.mxu0 0.0
      %3198 = vmatpush2.xpose.msra.mxu0 0.0
      %3199 = vmatprep.subr.mxu0 0.0
      %3200 = vmatpush2.xpose.msra.mxu0 0.0
      %3201 = vmatprep.subr.mxu0 0.0
      %3202 = vmatpush2.xpose.msra.mxu0 0.0
      %3203 = vmatprep.subr.mxu0 0.0
      %3204 = vmatpush2.xpose.msra.mxu0 0.0
      %3205 = vmatprep.subr.mxu0 0.0
      %3206 = vmatpush2.xpose.msra.mxu0 0.0
      %3207 = vmatprep.subr.mxu0 0.0
      %3208 = vmatpush2.xpose.msra.mxu0 0.0
      %3209 = vmatprep.subr.mxu0 0.0
      %3210 = vmatpush2.xpose.msra.mxu0 0.0
      %3211 = vmatprep.subr.mxu0 0.0
      %3212 = vmatpush2.xpose.msra.mxu0 0.0
      %3213 = vmatprep.subr.mxu0 0.0
      %3214 = vmatpush2.xpose.msra.mxu0 0.0
      %3215 = vmatprep.subr.mxu0 0.0
      %3216 = vmatpush2.xpose.msra.mxu0 0.0
      %3217 = vmatprep.subr.mxu0 0.0
      %3218 = vmatpush2.xpose.msra.mxu0 0.0
      %3219 = vmatprep.subr.mxu0 0.0
      %3220 = vmatpush2.xpose.msra.mxu0 0.0
      %3221 = vmatprep.mubr.f32.mxu0 0.0
      %3222 = vmatmul.mubr.f32.gmra.mxu0 %v3125
      %v3223 = vpop.f32.mrf.mxu0
      %v3224 = vadd.f32 0.0, %v3223
      %v3225 = vpop.f32.mrf.mxu0
      %3226 = vmatprep.mubr.f32.mxu0 0.0
      %3227 = vmatmul.mubr.f32.gmra.mxu0 %v3127
      %v3228 = vpop.f32.mrf.mxu0
      %v3229 = vadd.f32 0.0, %v3228
      %v3230 = vpop.f32.mrf.mxu0
      %3231 = vmatprep.mubr.f32.mxu0 0.0
      %3232 = vmatmul.mubr.f32.gmra.mxu0 %v3129
      %v3233 = vpop.f32.mrf.mxu0
      %v3234 = vadd.f32 0.0, %v3233
      %v3235 = vpop.f32.mrf.mxu0
      %3236 = vmatprep.mubr.f32.mxu0 0.0
      %3237 = vmatmul.mubr.f32.gmra.mxu0 %v3131
      %v3238 = vpop.f32.mrf.mxu0
      %v3239 = vadd.f32 0.0, %v3238
      %v3240 = vpop.f32.mrf.mxu0
      %3241 = vmatprep.mubr.f32.mxu0 0.0
      %3242 = vmatmul.mubr.f32.gmra.mxu0 %v3133
      %v3243 = vpop.f32.mrf.mxu0
      %v3244 = vadd.f32 0.0, %v3243
      %v3245 = vpop.f32.mrf.mxu0
      %3246 = vmatprep.mubr.f32.mxu0 0.0
      %3247 = vmatmul.mubr.f32.gmra.mxu0 %v3135
      %v3248 = vpop.f32.mrf.mxu0
      %v3249 = vadd.f32 0.0, %v3248
      %v3250 = vpop.f32.mrf.mxu0
      %3251 = vmatprep.mubr.f32.mxu0 0.0
      %3252 = vmatmul.mubr.f32.gmra.mxu0 %v3137
      %v3253 = vpop.f32.mrf.mxu0
      %v3254 = vadd.f32 0.0, %v3253
      %v3255 = vpop.f32.mrf.mxu0
      %3256 = vmatprep.mubr.f32.mxu0 0.0
      %3257 = vmatmul.mubr.f32.gmra.mxu0 %v3139
      %v3258 = vpop.f32.mrf.mxu0
      %v3259 = vadd.f32 0.0, %v3258
      %v3260 = vpop.f32.mrf.mxu0
      %3261 = vdwg.mxu0
      %3262 = vrot.lane.b32.xlu0 %v1225, 112
      %v3263 = vpop.permute.xlu0 %3262
      %3264 = vrot.lane.b32.xlu0 %v1227, 112
      %v3265 = vpop.permute.xlu0 %3264
      %3266 = vrot.lane.b32.xlu0 %v1229, 112
      %v3267 = vpop.permute.xlu0 %3266
      %3268 = vrot.lane.b32.xlu0 %v1231, 112
      %v3269 = vpop.permute.xlu0 %3268
      %3270 = vrot.lane.b32.xlu0 %v1233, 112
      %v3271 = vpop.permute.xlu0 %3270
      %3272 = vrot.lane.b32.xlu0 %v1235, 112
      %v3273 = vpop.permute.xlu0 %3272
      %3274 = vrot.lane.b32.xlu0 %v1237, 112
      %v3275 = vpop.permute.xlu0 %3274
      %3276 = vrot.lane.b32.xlu0 %v1239, 112
      %v3277 = vpop.permute.xlu0 %3276
      %v3278 = vsel %vm1288, %v1225, 0
      %v3280 = vsel %vm1288, %v1227, 0
      %v3282 = vsel %vm1288, %v1229, 0
      %v3284 = vsel %vm1288, %v1231, 0
      %v3286 = vsel %vm1288, %v1233, 0
      %v3288 = vsel %vm1288, %v1235, 0
      %v3290 = vsel %vm1288, %v1237, 0
      %v3292 = vsel %vm1288, %v1239, 0
      %v3294 = vsel %vm1288, %v3263, 0
      %v3296 = vsel %vm1288, %v3265, 0
      %v3298 = vsel %vm1288, %v3267, 0
      %v3300 = vsel %vm1288, %v3269, 0
      %v3302 = vsel %vm1288, %v3271, 0
      %v3304 = vsel %vm1288, %v3273, 0
      %v3306 = vsel %vm1288, %v3275, 0
      %v3308 = vsel %vm1288, %v3277, 0
      %3310 = vmatprep.subr.mxu0 0.0
      %3311 = vmatpush1.xpose.msra.mxu0 0.0
      %3312 = vmatprep.subr.mxu0 0.0
      %3313 = vmatpush1.xpose.msra.mxu0 0.0
      %3314 = vmatprep.subr.mxu0 0.0
      %3315 = vmatpush1.xpose.msra.mxu0 0.0
      %3316 = vmatprep.subr.mxu0 0.0
      %3317 = vmatpush1.xpose.msra.mxu0 0.0
      %3318 = vmatprep.subr.mxu0 0.0
      %3319 = vmatpush1.xpose.msra.mxu0 0.0
      %3320 = vmatprep.subr.mxu0 0.0
      %3321 = vmatpush1.xpose.msra.mxu0 0.0
      %3322 = vmatprep.subr.mxu0 0.0
      %3323 = vmatpush1.xpose.msra.mxu0 0.0
      %3324 = vmatprep.subr.mxu0 0.0
      %3325 = vmatpush1.xpose.msra.mxu0 0.0
      %3326 = vmatprep.subr.mxu0 0.0
      %3327 = vmatpush1.xpose.msra.mxu0 %v3308
      %3328 = vmatprep.subr.mxu0 0.0
      %3329 = vmatpush1.xpose.msra.mxu0 %v3306
      %3330 = vmatprep.subr.mxu0 0.0
      %3331 = vmatpush1.xpose.msra.mxu0 %v3304
      %3332 = vmatprep.subr.mxu0 0.0
      %3333 = vmatpush1.xpose.msra.mxu0 %v3302
      %3334 = vmatprep.subr.mxu0 0.0
      %3335 = vmatpush1.xpose.msra.mxu0 %v3300
      %3336 = vmatprep.subr.mxu0 0.0
      %3337 = vmatpush1.xpose.msra.mxu0 %v3298
      %3338 = vmatprep.subr.mxu0 0.0
      %3339 = vmatpush1.xpose.msra.mxu0 %v3296
      %3340 = vmatprep.subr.mxu0 0.0
      %3341 = vmatpush1.xpose.msra.mxu0 %v3294
      %3342 = vmatprep.subr.mxu0 0.0
      %3343 = vmatpush2.xpose.msra.mxu0 0.0
      %3344 = vmatprep.subr.mxu0 0.0
      %3345 = vmatpush2.xpose.msra.mxu0 0.0
      %3346 = vmatprep.subr.mxu0 0.0
      %3347 = vmatpush2.xpose.msra.mxu0 0.0
      %3348 = vmatprep.subr.mxu0 0.0
      %3349 = vmatpush2.xpose.msra.mxu0 0.0
      %3350 = vmatprep.subr.mxu0 0.0
      %3351 = vmatpush2.xpose.msra.mxu0 0.0
      %3352 = vmatprep.subr.mxu0 0.0
      %3353 = vmatpush2.xpose.msra.mxu0 0.0
      %3354 = vmatprep.subr.mxu0 0.0
      %3355 = vmatpush2.xpose.msra.mxu0 0.0
      %3356 = vmatprep.subr.mxu0 0.0
      %3357 = vmatpush2.xpose.msra.mxu0 0.0
      %3358 = vmatprep.subr.mxu0 0.0
      %3359 = vmatpush2.xpose.msra.mxu0 0.0
      %3360 = vmatprep.subr.mxu0 0.0
      %3361 = vmatpush2.xpose.msra.mxu0 0.0
      %3362 = vmatprep.subr.mxu0 0.0
      %3363 = vmatpush2.xpose.msra.mxu0 0.0
      %3364 = vmatprep.subr.mxu0 0.0
      %3365 = vmatpush2.xpose.msra.mxu0 0.0
      %3366 = vmatprep.subr.mxu0 0.0
      %3367 = vmatpush2.xpose.msra.mxu0 0.0
      %3368 = vmatprep.subr.mxu0 0.0
      %3369 = vmatpush2.xpose.msra.mxu0 0.0
      %3370 = vmatprep.subr.mxu0 0.0
      %3371 = vmatpush2.xpose.msra.mxu0 0.0
      %3372 = vmatprep.subr.mxu0 0.0
      %3373 = vmatpush2.xpose.msra.mxu0 0.0
      %3374 = vmatprep.mubr.f32.mxu0 0.0
      %3375 = vmatmul.mubr.f32.gmra.mxu0 %v3278
      %v3376 = vpop.f32.mrf.mxu0
      %v3377 = vadd.f32 0.0, %v3376
      %v3378 = vpop.f32.mrf.mxu0
      %3379 = vmatprep.mubr.f32.mxu0 0.0
      %3380 = vmatmul.mubr.f32.gmra.mxu0 %v3280
      %v3381 = vpop.f32.mrf.mxu0
      %v3382 = vadd.f32 0.0, %v3381
      %v3383 = vpop.f32.mrf.mxu0
      %3384 = vmatprep.mubr.f32.mxu0 0.0
      %3385 = vmatmul.mubr.f32.gmra.mxu0 %v3282
      %v3386 = vpop.f32.mrf.mxu0
      %v3387 = vadd.f32 0.0, %v3386
      %v3388 = vpop.f32.mrf.mxu0
      %3389 = vmatprep.mubr.f32.mxu0 0.0
      %3390 = vmatmul.mubr.f32.gmra.mxu0 %v3284
      %v3391 = vpop.f32.mrf.mxu0
      %v3392 = vadd.f32 0.0, %v3391
      %v3393 = vpop.f32.mrf.mxu0
      %3394 = vmatprep.mubr.f32.mxu0 0.0
      %3395 = vmatmul.mubr.f32.gmra.mxu0 %v3286
      %v3396 = vpop.f32.mrf.mxu0
      %v3397 = vadd.f32 0.0, %v3396
      %v3398 = vpop.f32.mrf.mxu0
      %3399 = vmatprep.mubr.f32.mxu0 0.0
      %3400 = vmatmul.mubr.f32.gmra.mxu0 %v3288
      %v3401 = vpop.f32.mrf.mxu0
      %v3402 = vadd.f32 0.0, %v3401
      %v3403 = vpop.f32.mrf.mxu0
      %3404 = vmatprep.mubr.f32.mxu0 0.0
      %3405 = vmatmul.mubr.f32.gmra.mxu0 %v3290
      %v3406 = vpop.f32.mrf.mxu0
      %v3407 = vadd.f32 0.0, %v3406
      %v3408 = vpop.f32.mrf.mxu0
      %3409 = vmatprep.mubr.f32.mxu0 0.0
      %3410 = vmatmul.mubr.f32.gmra.mxu0 %v3292
      %v3411 = vpop.f32.mrf.mxu0
      %v3412 = vadd.f32 0.0, %v3411
      %v3413 = vpop.f32.mrf.mxu0
      %3414 = vdwg.mxu0
      %3415 = vrot.lane.b32.xlu0 %v1241, 112
      %v3416 = vpop.permute.xlu0 %3415
      %3417 = vrot.lane.b32.xlu0 %v1243, 112
      %v3418 = vpop.permute.xlu0 %3417
      %3419 = vrot.lane.b32.xlu0 %v1245, 112
      %v3420 = vpop.permute.xlu0 %3419
      %3421 = vrot.lane.b32.xlu0 %v1247, 112
      %v3422 = vpop.permute.xlu0 %3421
      %3423 = vrot.lane.b32.xlu0 %v1249, 112
      %v3424 = vpop.permute.xlu0 %3423
      %3425 = vrot.lane.b32.xlu0 %v1251, 112
      %v3426 = vpop.permute.xlu0 %3425
      %3427 = vrot.lane.b32.xlu0 %v1253, 112
      %v3428 = vpop.permute.xlu0 %3427
      %3429 = vrot.lane.b32.xlu0 %v1255, 112
      %v3430 = vpop.permute.xlu0 %3429
      %v3431 = vsel %vm1288, %v1241, 0
      %v3433 = vsel %vm1288, %v1243, 0
      %v3435 = vsel %vm1288, %v1245, 0
      %v3437 = vsel %vm1288, %v1247, 0
      %v3439 = vsel %vm1288, %v1249, 0
      %v3441 = vsel %vm1288, %v1251, 0
      %v3443 = vsel %vm1288, %v1253, 0
      %v3445 = vsel %vm1288, %v1255, 0
      %v3447 = vsel %vm1288, %v3416, 0
      %v3449 = vsel %vm1288, %v3418, 0
      %v3451 = vsel %vm1288, %v3420, 0
      %v3453 = vsel %vm1288, %v3422, 0
      %v3455 = vsel %vm1288, %v3424, 0
      %v3457 = vsel %vm1288, %v3426, 0
      %v3459 = vsel %vm1288, %v3428, 0
      %v3461 = vsel %vm1288, %v3430, 0
      %3463 = vmatprep.subr.mxu0 0.0
      %3464 = vmatpush1.xpose.msra.mxu0 0.0
      %3465 = vmatprep.subr.mxu0 0.0
      %3466 = vmatpush1.xpose.msra.mxu0 0.0
      %3467 = vmatprep.subr.mxu0 0.0
      %3468 = vmatpush1.xpose.msra.mxu0 0.0
      %3469 = vmatprep.subr.mxu0 0.0
      %3470 = vmatpush1.xpose.msra.mxu0 0.0
      %3471 = vmatprep.subr.mxu0 0.0
      %3472 = vmatpush1.xpose.msra.mxu0 0.0
      %3473 = vmatprep.subr.mxu0 0.0
      %3474 = vmatpush1.xpose.msra.mxu0 0.0
      %3475 = vmatprep.subr.mxu0 0.0
      %3476 = vmatpush1.xpose.msra.mxu0 0.0
      %3477 = vmatprep.subr.mxu0 0.0
      %3478 = vmatpush1.xpose.msra.mxu0 0.0
      %3479 = vmatprep.subr.mxu0 0.0
      %3480 = vmatpush1.xpose.msra.mxu0 %v3461
      %3481 = vmatprep.subr.mxu0 0.0
      %3482 = vmatpush1.xpose.msra.mxu0 %v3459
      %3483 = vmatprep.subr.mxu0 0.0
      %3484 = vmatpush1.xpose.msra.mxu0 %v3457
      %3485 = vmatprep.subr.mxu0 0.0
      %3486 = vmatpush1.xpose.msra.mxu0 %v3455
      %3487 = vmatprep.subr.mxu0 0.0
      %3488 = vmatpush1.xpose.msra.mxu0 %v3453
      %3489 = vmatprep.subr.mxu0 0.0
      %3490 = vmatpush1.xpose.msra.mxu0 %v3451
      %3491 = vmatprep.subr.mxu0 0.0
      %3492 = vmatpush1.xpose.msra.mxu0 %v3449
      %3493 = vmatprep.subr.mxu0 0.0
      %3494 = vmatpush1.xpose.msra.mxu0 %v3447
      %3495 = vmatprep.subr.mxu0 0.0
      %3496 = vmatpush2.xpose.msra.mxu0 0.0
      %3497 = vmatprep.subr.mxu0 0.0
      %3498 = vmatpush2.xpose.msra.mxu0 0.0
      %3499 = vmatprep.subr.mxu0 0.0
      %3500 = vmatpush2.xpose.msra.mxu0 0.0
      %3501 = vmatprep.subr.mxu0 0.0
      %3502 = vmatpush2.xpose.msra.mxu0 0.0
      %3503 = vmatprep.subr.mxu0 0.0
      %3504 = vmatpush2.xpose.msra.mxu0 0.0
      %3505 = vmatprep.subr.mxu0 0.0
      %3506 = vmatpush2.xpose.msra.mxu0 0.0
      %3507 = vmatprep.subr.mxu0 0.0
      %3508 = vmatpush2.xpose.msra.mxu0 0.0
      %3509 = vmatprep.subr.mxu0 0.0
      %3510 = vmatpush2.xpose.msra.mxu0 0.0
      %3511 = vmatprep.subr.mxu0 0.0
      %3512 = vmatpush2.xpose.msra.mxu0 0.0
      %3513 = vmatprep.subr.mxu0 0.0
      %3514 = vmatpush2.xpose.msra.mxu0 0.0
      %3515 = vmatprep.subr.mxu0 0.0
      %3516 = vmatpush2.xpose.msra.mxu0 0.0
      %3517 = vmatprep.subr.mxu0 0.0
      %3518 = vmatpush2.xpose.msra.mxu0 0.0
      %3519 = vmatprep.subr.mxu0 0.0
      %3520 = vmatpush2.xpose.msra.mxu0 0.0
      %3521 = vmatprep.subr.mxu0 0.0
      %3522 = vmatpush2.xpose.msra.mxu0 0.0
      %3523 = vmatprep.subr.mxu0 0.0
      %3524 = vmatpush2.xpose.msra.mxu0 0.0
      %3525 = vmatprep.subr.mxu0 0.0
      %3526 = vmatpush2.xpose.msra.mxu0 0.0
      %3527 = vmatprep.mubr.f32.mxu0 0.0
      %3528 = vmatmul.mubr.f32.gmra.mxu0 %v3431
      %v3529 = vpop.f32.mrf.mxu0
      %v3530 = vadd.f32 0.0, %v3529
      %v3531 = vpop.f32.mrf.mxu0
      %3532 = vmatprep.mubr.f32.mxu0 0.0
      %3533 = vmatmul.mubr.f32.gmra.mxu0 %v3433
      %v3534 = vpop.f32.mrf.mxu0
      %v3535 = vadd.f32 0.0, %v3534
      %v3536 = vpop.f32.mrf.mxu0
      %3537 = vmatprep.mubr.f32.mxu0 0.0
      %3538 = vmatmul.mubr.f32.gmra.mxu0 %v3435
      %v3539 = vpop.f32.mrf.mxu0
      %v3540 = vadd.f32 0.0, %v3539
      %v3541 = vpop.f32.mrf.mxu0
      %3542 = vmatprep.mubr.f32.mxu0 0.0
      %3543 = vmatmul.mubr.f32.gmra.mxu0 %v3437
      %v3544 = vpop.f32.mrf.mxu0
      %v3545 = vadd.f32 0.0, %v3544
      %v3546 = vpop.f32.mrf.mxu0
      %3547 = vmatprep.mubr.f32.mxu0 0.0
      %3548 = vmatmul.mubr.f32.gmra.mxu0 %v3439
      %v3549 = vpop.f32.mrf.mxu0
      %v3550 = vadd.f32 0.0, %v3549
      %v3551 = vpop.f32.mrf.mxu0
      %3552 = vmatprep.mubr.f32.mxu0 0.0
      %3553 = vmatmul.mubr.f32.gmra.mxu0 %v3441
      %v3554 = vpop.f32.mrf.mxu0
      %v3555 = vadd.f32 0.0, %v3554
      %v3556 = vpop.f32.mrf.mxu0
      %3557 = vmatprep.mubr.f32.mxu0 0.0
      %3558 = vmatmul.mubr.f32.gmra.mxu0 %v3443
      %v3559 = vpop.f32.mrf.mxu0
      %v3560 = vadd.f32 0.0, %v3559
      %v3561 = vpop.f32.mrf.mxu0
      %3562 = vmatprep.mubr.f32.mxu0 0.0
      %3563 = vmatmul.mubr.f32.gmra.mxu0 %v3445
      %v3564 = vpop.f32.mrf.mxu0
      %v3565 = vadd.f32 0.0, %v3564
      %v3566 = vpop.f32.mrf.mxu0
      %3567 = vdwg.mxu0
      %3568 = vrot.lane.b32.xlu0 %v1257, 112
      %v3569 = vpop.permute.xlu0 %3568
      %3570 = vrot.lane.b32.xlu0 %v1259, 112
      %v3571 = vpop.permute.xlu0 %3570
      %3572 = vrot.lane.b32.xlu0 %v1261, 112
      %v3573 = vpop.permute.xlu0 %3572
      %3574 = vrot.lane.b32.xlu0 %v1263, 112
      %v3575 = vpop.permute.xlu0 %3574
      %3576 = vrot.lane.b32.xlu0 %v1265, 112
      %v3577 = vpop.permute.xlu0 %3576
      %3578 = vrot.lane.b32.xlu0 %v1267, 112
      %v3579 = vpop.permute.xlu0 %3578
      %3580 = vrot.lane.b32.xlu0 %v1269, 112
      %v3581 = vpop.permute.xlu0 %3580
      %3582 = vrot.lane.b32.xlu0 %v1271, 112
      %v3583 = vpop.permute.xlu0 %3582
      %v3584 = vsel %vm1288, %v1257, 0
      %v3586 = vsel %vm1288, %v1259, 0
      %v3588 = vsel %vm1288, %v1261, 0
      %v3590 = vsel %vm1288, %v1263, 0
      %v3592 = vsel %vm1288, %v1265, 0
      %v3594 = vsel %vm1288, %v1267, 0
      %v3596 = vsel %vm1288, %v1269, 0
      %v3598 = vsel %vm1288, %v1271, 0
      %v3600 = vsel %vm1288, %v3569, 0
      %v3602 = vsel %vm1288, %v3571, 0
      %v3604 = vsel %vm1288, %v3573, 0
      %v3606 = vsel %vm1288, %v3575, 0
      %v3608 = vsel %vm1288, %v3577, 0
      %v3610 = vsel %vm1288, %v3579, 0
      %v3612 = vsel %vm1288, %v3581, 0
      %v3614 = vsel %vm1288, %v3583, 0
      %3616 = vmatprep.subr.mxu0 0.0
      %3617 = vmatpush1.xpose.msra.mxu0 0.0
      %3618 = vmatprep.subr.mxu0 0.0
      %3619 = vmatpush1.xpose.msra.mxu0 0.0
      %3620 = vmatprep.subr.mxu0 0.0
      %3621 = vmatpush1.xpose.msra.mxu0 0.0
      %3622 = vmatprep.subr.mxu0 0.0
      %3623 = vmatpush1.xpose.msra.mxu0 0.0
      %3624 = vmatprep.subr.mxu0 0.0
      %3625 = vmatpush1.xpose.msra.mxu0 0.0
      %3626 = vmatprep.subr.mxu0 0.0
      %3627 = vmatpush1.xpose.msra.mxu0 0.0
      %3628 = vmatprep.subr.mxu0 0.0
      %3629 = vmatpush1.xpose.msra.mxu0 0.0
      %3630 = vmatprep.subr.mxu0 0.0
      %3631 = vmatpush1.xpose.msra.mxu0 0.0
      %3632 = vmatprep.subr.mxu0 0.0
      %3633 = vmatpush1.xpose.msra.mxu0 %v3614
      %3634 = vmatprep.subr.mxu0 0.0
      %3635 = vmatpush1.xpose.msra.mxu0 %v3612
      %3636 = vmatprep.subr.mxu0 0.0
      %3637 = vmatpush1.xpose.msra.mxu0 %v3610
      %3638 = vmatprep.subr.mxu0 0.0
      %3639 = vmatpush1.xpose.msra.mxu0 %v3608
      %3640 = vmatprep.subr.mxu0 0.0
      %3641 = vmatpush1.xpose.msra.mxu0 %v3606
      %3642 = vmatprep.subr.mxu0 0.0
      %3643 = vmatpush1.xpose.msra.mxu0 %v3604
      %3644 = vmatprep.subr.mxu0 0.0
      %3645 = vmatpush1.xpose.msra.mxu0 %v3602
      %3646 = vmatprep.subr.mxu0 0.0
      %3647 = vmatpush1.xpose.msra.mxu0 %v3600
      %3648 = vmatprep.subr.mxu0 0.0
      %3649 = vmatpush2.xpose.msra.mxu0 0.0
      %3650 = vmatprep.subr.mxu0 0.0
      %3651 = vmatpush2.xpose.msra.mxu0 0.0
      %3652 = vmatprep.subr.mxu0 0.0
      %3653 = vmatpush2.xpose.msra.mxu0 0.0
      %3654 = vmatprep.subr.mxu0 0.0
      %3655 = vmatpush2.xpose.msra.mxu0 0.0
      %3656 = vmatprep.subr.mxu0 0.0
      %3657 = vmatpush2.xpose.msra.mxu0 0.0
      %3658 = vmatprep.subr.mxu0 0.0
      %3659 = vmatpush2.xpose.msra.mxu0 0.0
      %3660 = vmatprep.subr.mxu0 0.0
      %3661 = vmatpush2.xpose.msra.mxu0 0.0
      %3662 = vmatprep.subr.mxu0 0.0
      %3663 = vmatpush2.xpose.msra.mxu0 0.0
      %3664 = vmatprep.subr.mxu0 0.0
      %3665 = vmatpush2.xpose.msra.mxu0 0.0
      %3666 = vmatprep.subr.mxu0 0.0
      %3667 = vmatpush2.xpose.msra.mxu0 0.0
      %3668 = vmatprep.subr.mxu0 0.0
      %3669 = vmatpush2.xpose.msra.mxu0 0.0
      %3670 = vmatprep.subr.mxu0 0.0
      %3671 = vmatpush2.xpose.msra.mxu0 0.0
      %3672 = vmatprep.subr.mxu0 0.0
      %3673 = vmatpush2.xpose.msra.mxu0 0.0
      %3674 = vmatprep.subr.mxu0 0.0
      %3675 = vmatpush2.xpose.msra.mxu0 0.0
      %3676 = vmatprep.subr.mxu0 0.0
      %3677 = vmatpush2.xpose.msra.mxu0 0.0
      %3678 = vmatprep.subr.mxu0 0.0
      %3679 = vmatpush2.xpose.msra.mxu0 0.0
      %3680 = vmatprep.mubr.f32.mxu0 0.0
      %3681 = vmatmul.mubr.f32.gmra.mxu0 %v3584
      %v3682 = vpop.f32.mrf.mxu0
      %v3683 = vadd.f32 0.0, %v3682
      %v3684 = vpop.f32.mrf.mxu0
      %3685 = vmatprep.mubr.f32.mxu0 0.0
      %3686 = vmatmul.mubr.f32.gmra.mxu0 %v3586
      %v3687 = vpop.f32.mrf.mxu0
      %v3688 = vadd.f32 0.0, %v3687
      %v3689 = vpop.f32.mrf.mxu0
      %3690 = vmatprep.mubr.f32.mxu0 0.0
      %3691 = vmatmul.mubr.f32.gmra.mxu0 %v3588
      %v3692 = vpop.f32.mrf.mxu0
      %v3693 = vadd.f32 0.0, %v3692
      %v3694 = vpop.f32.mrf.mxu0
      %3695 = vmatprep.mubr.f32.mxu0 0.0
      %3696 = vmatmul.mubr.f32.gmra.mxu0 %v3590
      %v3697 = vpop.f32.mrf.mxu0
      %v3698 = vadd.f32 0.0, %v3697
      %v3699 = vpop.f32.mrf.mxu0
      %3700 = vmatprep.mubr.f32.mxu0 0.0
      %3701 = vmatmul.mubr.f32.gmra.mxu0 %v3592
      %v3702 = vpop.f32.mrf.mxu0
      %v3703 = vadd.f32 0.0, %v3702
      %v3704 = vpop.f32.mrf.mxu0
      %3705 = vmatprep.mubr.f32.mxu0 0.0
      %3706 = vmatmul.mubr.f32.gmra.mxu0 %v3594
      %v3707 = vpop.f32.mrf.mxu0
      %v3708 = vadd.f32 0.0, %v3707
      %v3709 = vpop.f32.mrf.mxu0
      %3710 = vmatprep.mubr.f32.mxu0 0.0
      %3711 = vmatmul.mubr.f32.gmra.mxu0 %v3596
      %v3712 = vpop.f32.mrf.mxu0
      %v3713 = vadd.f32 0.0, %v3712
      %v3714 = vpop.f32.mrf.mxu0
      %3715 = vmatprep.mubr.f32.mxu0 0.0
      %3716 = vmatmul.mubr.f32.gmra.mxu0 %v3598
      %v3717 = vpop.f32.mrf.mxu0
      %v3718 = vadd.f32 0.0, %v3717
      %v3719 = vpop.f32.mrf.mxu0
      %3720 = vdwg.mxu0
      %vm3721 = vcmask 523264
      %v3722 = vsel %vm3721, %v1388, -inf
      %3723 = vmax.xlane.f32.xlu0 %v3722
      %v3724 = vpop.xlane.xlu0 %3723
      %v3725 = vsel %vm3721, %v1393, -inf
      %3726 = vmax.xlane.f32.xlu0 %v3725
      %v3727 = vpop.xlane.xlu0 %3726
      %v3728 = vsel %vm3721, %v1398, -inf
      %3729 = vmax.xlane.f32.xlu0 %v3728
      %v3730 = vpop.xlane.xlu0 %3729
      %v3731 = vsel %vm3721, %v1403, -inf
      %3732 = vmax.xlane.f32.xlu0 %v3731
      %v3733 = vpop.xlane.xlu0 %3732
      %v3734 = vsel %vm3721, %v1408, -inf
      %3735 = vmax.xlane.f32.xlu0 %v3734
      %v3736 = vpop.xlane.xlu0 %3735
      %v3737 = vsel %vm3721, %v1413, -inf
      %3738 = vmax.xlane.f32.xlu0 %v3737
      %v3739 = vpop.xlane.xlu0 %3738
      %v3740 = vsel %vm3721, %v1418, -inf
      %3741 = vmax.xlane.f32.xlu0 %v3740
      %v3742 = vpop.xlane.xlu0 %3741
      %v3743 = vsel %vm3721, %v1423, -inf
      %3744 = vmax.xlane.f32.xlu0 %v3743
      %v3745 = vpop.xlane.xlu0 %3744
      %v3746 = vsel %vm3721, %v1541, -inf
      %3747 = vmax.xlane.f32.xlu0 %v3746
      %v3748 = vpop.xlane.xlu0 %3747
      %v3749 = vsel %vm3721, %v1546, -inf
      %3750 = vmax.xlane.f32.xlu0 %v3749
      %v3751 = vpop.xlane.xlu0 %3750
      %v3752 = vsel %vm3721, %v1551, -inf
      %3753 = vmax.xlane.f32.xlu0 %v3752
      %v3754 = vpop.xlane.xlu0 %3753
      %v3755 = vsel %vm3721, %v1556, -inf
      %3756 = vmax.xlane.f32.xlu0 %v3755
      %v3757 = vpop.xlane.xlu0 %3756
      %v3758 = vsel %vm3721, %v1561, -inf
      %3759 = vmax.xlane.f32.xlu0 %v3758
      %v3760 = vpop.xlane.xlu0 %3759
      %v3761 = vsel %vm3721, %v1566, -inf
      %3762 = vmax.xlane.f32.xlu0 %v3761
      %v3763 = vpop.xlane.xlu0 %3762
      %v3764 = vsel %vm3721, %v1571, -inf
      %3765 = vmax.xlane.f32.xlu0 %v3764
      %v3766 = vpop.xlane.xlu0 %3765
      %v3767 = vsel %vm3721, %v1576, -inf
      %3768 = vmax.xlane.f32.xlu0 %v3767
      %v3769 = vpop.xlane.xlu0 %3768
      %v3770 = vsel %vm3721, %v1694, -inf
      %3771 = vmax.xlane.f32.xlu0 %v3770
      %v3772 = vpop.xlane.xlu0 %3771
      %v3773 = vsel %vm3721, %v1699, -inf
      %3774 = vmax.xlane.f32.xlu0 %v3773
      %v3775 = vpop.xlane.xlu0 %3774
      %v3776 = vsel %vm3721, %v1704, -inf
      %3777 = vmax.xlane.f32.xlu0 %v3776
      %v3778 = vpop.xlane.xlu0 %3777
      %v3779 = vsel %vm3721, %v1709, -inf
      %3780 = vmax.xlane.f32.xlu0 %v3779
      %v3781 = vpop.xlane.xlu0 %3780
      %v3782 = vsel %vm3721, %v1714, -inf
      %3783 = vmax.xlane.f32.xlu0 %v3782
      %v3784 = vpop.xlane.xlu0 %3783
      %v3785 = vsel %vm3721, %v1719, -inf
      %3786 = vmax.xlane.f32.xlu0 %v3785
      %v3787 = vpop.xlane.xlu0 %3786
      %v3788 = vsel %vm3721, %v1724, -inf
      %3789 = vmax.xlane.f32.xlu0 %v3788
      %v3790 = vpop.xlane.xlu0 %3789
      %v3791 = vsel %vm3721, %v1729, -inf
      %3792 = vmax.xlane.f32.xlu0 %v3791
      %v3793 = vpop.xlane.xlu0 %3792
      %v3794 = vsel %vm3721, %v1847, -inf
      %3795 = vmax.xlane.f32.xlu0 %v3794
      %v3796 = vpop.xlane.xlu0 %3795
      %v3797 = vsel %vm3721, %v1852, -inf
      %3798 = vmax.xlane.f32.xlu0 %v3797
      %v3799 = vpop.xlane.xlu0 %3798
      %v3800 = vsel %vm3721, %v1857, -inf
      %3801 = vmax.xlane.f32.xlu0 %v3800
      %v3802 = vpop.xlane.xlu0 %3801
      %v3803 = vsel %vm3721, %v1862, -inf
      %3804 = vmax.xlane.f32.xlu0 %v3803
      %v3805 = vpop.xlane.xlu0 %3804
      %v3806 = vsel %vm3721, %v1867, -inf
      %3807 = vmax.xlane.f32.xlu0 %v3806
      %v3808 = vpop.xlane.xlu0 %3807
      %v3809 = vsel %vm3721, %v1872, -inf
      %3810 = vmax.xlane.f32.xlu0 %v3809
      %v3811 = vpop.xlane.xlu0 %3810
      %v3812 = vsel %vm3721, %v1877, -inf
      %3813 = vmax.xlane.f32.xlu0 %v3812
      %v3814 = vpop.xlane.xlu0 %3813
      %v3815 = vsel %vm3721, %v1882, -inf
      %3816 = vmax.xlane.f32.xlu0 %v3815
      %v3817 = vpop.xlane.xlu0 %3816
      %v3818 = vsel %vm3721, %v2000, -inf
      %3819 = vmax.xlane.f32.xlu0 %v3818
      %v3820 = vpop.xlane.xlu0 %3819
      %v3821 = vsel %vm3721, %v2005, -inf
      %3822 = vmax.xlane.f32.xlu0 %v3821
      %v3823 = vpop.xlane.xlu0 %3822
      %v3824 = vsel %vm3721, %v2010, -inf
      %3825 = vmax.xlane.f32.xlu0 %v3824
      %v3826 = vpop.xlane.xlu0 %3825
      %v3827 = vsel %vm3721, %v2015, -inf
      %3828 = vmax.xlane.f32.xlu0 %v3827
      %v3829 = vpop.xlane.xlu0 %3828
      %v3830 = vsel %vm3721, %v2020, -inf
      %3831 = vmax.xlane.f32.xlu0 %v3830
      %v3832 = vpop.xlane.xlu0 %3831
      %v3833 = vsel %vm3721, %v2025, -inf
      %3834 = vmax.xlane.f32.xlu0 %v3833
      %v3835 = vpop.xlane.xlu0 %3834
      %v3836 = vsel %vm3721, %v2030, -inf
      %3837 = vmax.xlane.f32.xlu0 %v3836
      %v3838 = vpop.xlane.xlu0 %3837
      %v3839 = vsel %vm3721, %v2035, -inf
      %3840 = vmax.xlane.f32.xlu0 %v3839
      %v3841 = vpop.xlane.xlu0 %3840
      %v3842 = vsel %vm3721, %v2153, -inf
      %3843 = vmax.xlane.f32.xlu0 %v3842
      %v3844 = vpop.xlane.xlu0 %3843
      %v3845 = vsel %vm3721, %v2158, -inf
      %3846 = vmax.xlane.f32.xlu0 %v3845
      %v3847 = vpop.xlane.xlu0 %3846
      %v3848 = vsel %vm3721, %v2163, -inf
      %3849 = vmax.xlane.f32.xlu0 %v3848
      %v3850 = vpop.xlane.xlu0 %3849
      %v3851 = vsel %vm3721, %v2168, -inf
      %3852 = vmax.xlane.f32.xlu0 %v3851
      %v3853 = vpop.xlane.xlu0 %3852
      %v3854 = vsel %vm3721, %v2173, -inf
      %3855 = vmax.xlane.f32.xlu0 %v3854
      %v3856 = vpop.xlane.xlu0 %3855
      %v3857 = vsel %vm3721, %v2178, -inf
      %3858 = vmax.xlane.f32.xlu0 %v3857
      %v3859 = vpop.xlane.xlu0 %3858
      %v3860 = vsel %vm3721, %v2183, -inf
      %3861 = vmax.xlane.f32.xlu0 %v3860
      %v3862 = vpop.xlane.xlu0 %3861
      %v3863 = vsel %vm3721, %v2188, -inf
      %3864 = vmax.xlane.f32.xlu0 %v3863
      %v3865 = vpop.xlane.xlu0 %3864
      %v3866 = vsel %vm3721, %v2306, -inf
      %3867 = vmax.xlane.f32.xlu0 %v3866
      %v3868 = vpop.xlane.xlu0 %3867
      %v3869 = vsel %vm3721, %v2311, -inf
      %3870 = vmax.xlane.f32.xlu0 %v3869
      %v3871 = vpop.xlane.xlu0 %3870
      %v3872 = vsel %vm3721, %v2316, -inf
      %3873 = vmax.xlane.f32.xlu0 %v3872
      %v3874 = vpop.xlane.xlu0 %3873
      %v3875 = vsel %vm3721, %v2321, -inf
      %3876 = vmax.xlane.f32.xlu0 %v3875
      %v3877 = vpop.xlane.xlu0 %3876
      %v3878 = vsel %vm3721, %v2326, -inf
      %3879 = vmax.xlane.f32.xlu0 %v3878
      %v3880 = vpop.xlane.xlu0 %3879
      %v3881 = vsel %vm3721, %v2331, -inf
      %3882 = vmax.xlane.f32.xlu0 %v3881
      %v3883 = vpop.xlane.xlu0 %3882
      %v3884 = vsel %vm3721, %v2336, -inf
      %3885 = vmax.xlane.f32.xlu0 %v3884
      %v3886 = vpop.xlane.xlu0 %3885
      %v3887 = vsel %vm3721, %v2341, -inf
      %3888 = vmax.xlane.f32.xlu0 %v3887
      %v3889 = vpop.xlane.xlu0 %3888
      %v3890 = vsel %vm3721, %v2459, -inf
      %3891 = vmax.xlane.f32.xlu0 %v3890
      %v3892 = vpop.xlane.xlu0 %3891
      %v3893 = vsel %vm3721, %v2464, -inf
      %3894 = vmax.xlane.f32.xlu0 %v3893
      %v3895 = vpop.xlane.xlu0 %3894
      %v3896 = vsel %vm3721, %v2469, -inf
      %3897 = vmax.xlane.f32.xlu0 %v3896
      %v3898 = vpop.xlane.xlu0 %3897
      %v3899 = vsel %vm3721, %v2474, -inf
      %3900 = vmax.xlane.f32.xlu0 %v3899
      %v3901 = vpop.xlane.xlu0 %3900
      %v3902 = vsel %vm3721, %v2479, -inf
      %3903 = vmax.xlane.f32.xlu0 %v3902
      %v3904 = vpop.xlane.xlu0 %3903
      %v3905 = vsel %vm3721, %v2484, -inf
      %3906 = vmax.xlane.f32.xlu0 %v3905
      %v3907 = vpop.xlane.xlu0 %3906
      %v3908 = vsel %vm3721, %v2489, -inf
      %3909 = vmax.xlane.f32.xlu0 %v3908
      %v3910 = vpop.xlane.xlu0 %3909
      %v3911 = vsel %vm3721, %v2494, -inf
      %3912 = vmax.xlane.f32.xlu0 %v3911
      %v3913 = vpop.xlane.xlu0 %3912
      %v3914 = vsel %vm3721, %v2612, -inf
      %3915 = vmax.xlane.f32.xlu0 %v3914
      %v3916 = vpop.xlane.xlu0 %3915
      %v3917 = vsel %vm3721, %v2617, -inf
      %3918 = vmax.xlane.f32.xlu0 %v3917
      %v3919 = vpop.xlane.xlu0 %3918
      %v3920 = vsel %vm3721, %v2622, -inf
      %3921 = vmax.xlane.f32.xlu0 %v3920
      %v3922 = vpop.xlane.xlu0 %3921
      %v3923 = vsel %vm3721, %v2627, -inf
      %3924 = vmax.xlane.f32.xlu0 %v3923
      %v3925 = vpop.xlane.xlu0 %3924
      %v3926 = vsel %vm3721, %v2632, -inf
      %3927 = vmax.xlane.f32.xlu0 %v3926
      %v3928 = vpop.xlane.xlu0 %3927
      %v3929 = vsel %vm3721, %v2637, -inf
      %3930 = vmax.xlane.f32.xlu0 %v3929
      %v3931 = vpop.xlane.xlu0 %3930
      %v3932 = vsel %vm3721, %v2642, -inf
      %3933 = vmax.xlane.f32.xlu0 %v3932
      %v3934 = vpop.xlane.xlu0 %3933
      %v3935 = vsel %vm3721, %v2647, -inf
      %3936 = vmax.xlane.f32.xlu0 %v3935
      %v3937 = vpop.xlane.xlu0 %3936
      %v3938 = vsel %vm3721, %v2765, -inf
      %3939 = vmax.xlane.f32.xlu0 %v3938
      %v3940 = vpop.xlane.xlu0 %3939
      %v3941 = vsel %vm3721, %v2770, -inf
      %3942 = vmax.xlane.f32.xlu0 %v3941
      %v3943 = vpop.xlane.xlu0 %3942
      %v3944 = vsel %vm3721, %v2775, -inf
      %3945 = vmax.xlane.f32.xlu0 %v3944
      %v3946 = vpop.xlane.xlu0 %3945
      %v3947 = vsel %vm3721, %v2780, -inf
      %3948 = vmax.xlane.f32.xlu0 %v3947
      %v3949 = vpop.xlane.xlu0 %3948
      %v3950 = vsel %vm3721, %v2785, -inf
      %3951 = vmax.xlane.f32.xlu0 %v3950
      %v3952 = vpop.xlane.xlu0 %3951
      %v3953 = vsel %vm3721, %v2790, -inf
      %3954 = vmax.xlane.f32.xlu0 %v3953
      %v3955 = vpop.xlane.xlu0 %3954
      %v3956 = vsel %vm3721, %v2795, -inf
      %3957 = vmax.xlane.f32.xlu0 %v3956
      %v3958 = vpop.xlane.xlu0 %3957
      %v3959 = vsel %vm3721, %v2800, -inf
      %3960 = vmax.xlane.f32.xlu0 %v3959
      %v3961 = vpop.xlane.xlu0 %3960
      %v3962 = vsel %vm3721, %v2918, -inf
      %3963 = vmax.xlane.f32.xlu0 %v3962
      %v3964 = vpop.xlane.xlu0 %3963
      %v3965 = vsel %vm3721, %v2923, -inf
      %3966 = vmax.xlane.f32.xlu0 %v3965
      %v3967 = vpop.xlane.xlu0 %3966
      %v3968 = vsel %vm3721, %v2928, -inf
      %3969 = vmax.xlane.f32.xlu0 %v3968
      %v3970 = vpop.xlane.xlu0 %3969
      %v3971 = vsel %vm3721, %v2933, -inf
      %3972 = vmax.xlane.f32.xlu0 %v3971
      %v3973 = vpop.xlane.xlu0 %3972
      %v3974 = vsel %vm3721, %v2938, -inf
      %3975 = vmax.xlane.f32.xlu0 %v3974
      %v3976 = vpop.xlane.xlu0 %3975
      %v3977 = vsel %vm3721, %v2943, -inf
      %3978 = vmax.xlane.f32.xlu0 %v3977
      %v3979 = vpop.xlane.xlu0 %3978
      %v3980 = vsel %vm3721, %v2948, -inf
      %3981 = vmax.xlane.f32.xlu0 %v3980
      %v3982 = vpop.xlane.xlu0 %3981
      %v3983 = vsel %vm3721, %v2953, -inf
      %3984 = vmax.xlane.f32.xlu0 %v3983
      %v3985 = vpop.xlane.xlu0 %3984
      %v3986 = vsel %vm3721, %v3071, -inf
      %3987 = vmax.xlane.f32.xlu0 %v3986
      %v3988 = vpop.xlane.xlu0 %3987
      %v3989 = vsel %vm3721, %v3076, -inf
      %3990 = vmax.xlane.f32.xlu0 %v3989
      %v3991 = vpop.xlane.xlu0 %3990
      %v3992 = vsel %vm3721, %v3081, -inf
      %3993 = vmax.xlane.f32.xlu0 %v3992
      %v3994 = vpop.xlane.xlu0 %3993
      %v3995 = vsel %vm3721, %v3086, -inf
      %3996 = vmax.xlane.f32.xlu0 %v3995
      %v3997 = vpop.xlane.xlu0 %3996
      %v3998 = vsel %vm3721, %v3091, -inf
      %3999 = vmax.xlane.f32.xlu0 %v3998
      %v4000 = vpop.xlane.xlu0 %3999
      %v4001 = vsel %vm3721, %v3096, -inf
      %4002 = vmax.xlane.f32.xlu0 %v4001
      %v4003 = vpop.xlane.xlu0 %4002
      %v4004 = vsel %vm3721, %v3101, -inf
      %4005 = vmax.xlane.f32.xlu0 %v4004
      %v4006 = vpop.xlane.xlu0 %4005
      %v4007 = vsel %vm3721, %v3106, -inf
      %4008 = vmax.xlane.f32.xlu0 %v4007
      %v4009 = vpop.xlane.xlu0 %4008
      %v4010 = vsel %vm3721, %v3224, -inf
      %4011 = vmax.xlane.f32.xlu0 %v4010
      %v4012 = vpop.xlane.xlu0 %4011
      %v4013 = vsel %vm3721, %v3229, -inf
      %4014 = vmax.xlane.f32.xlu0 %v4013
      %v4015 = vpop.xlane.xlu0 %4014
      %v4016 = vsel %vm3721, %v3234, -inf
      %4017 = vmax.xlane.f32.xlu0 %v4016
      %v4018 = vpop.xlane.xlu0 %4017
      %v4019 = vsel %vm3721, %v3239, -inf
      %4020 = vmax.xlane.f32.xlu0 %v4019
      %v4021 = vpop.xlane.xlu0 %4020
      %v4022 = vsel %vm3721, %v3244, -inf
      %4023 = vmax.xlane.f32.xlu0 %v4022
      %v4024 = vpop.xlane.xlu0 %4023
      %v4025 = vsel %vm3721, %v3249, -inf
      %4026 = vmax.xlane.f32.xlu0 %v4025
      %v4027 = vpop.xlane.xlu0 %4026
      %v4028 = vsel %vm3721, %v3254, -inf
      %4029 = vmax.xlane.f32.xlu0 %v4028
      %v4030 = vpop.xlane.xlu0 %4029
      %v4031 = vsel %vm3721, %v3259, -inf
      %4032 = vmax.xlane.f32.xlu0 %v4031
      %v4033 = vpop.xlane.xlu0 %4032
      %v4034 = vsel %vm3721, %v3377, -inf
      %4035 = vmax.xlane.f32.xlu0 %v4034
      %v4036 = vpop.xlane.xlu0 %4035
      %v4037 = vsel %vm3721, %v3382, -inf
      %4038 = vmax.xlane.f32.xlu0 %v4037
      %v4039 = vpop.xlane.xlu0 %4038
      %v4040 = vsel %vm3721, %v3387, -inf
      %4041 = vmax.xlane.f32.xlu0 %v4040
      %v4042 = vpop.xlane.xlu0 %4041
      %v4043 = vsel %vm3721, %v3392, -inf
      %4044 = vmax.xlane.f32.xlu0 %v4043
      %v4045 = vpop.xlane.xlu0 %4044
      %v4046 = vsel %vm3721, %v3397, -inf
      %4047 = vmax.xlane.f32.xlu0 %v4046
      %v4048 = vpop.xlane.xlu0 %4047
      %v4049 = vsel %vm3721, %v3402, -inf
      %4050 = vmax.xlane.f32.xlu0 %v4049
      %v4051 = vpop.xlane.xlu0 %4050
      %v4052 = vsel %vm3721, %v3407, -inf
      %4053 = vmax.xlane.f32.xlu0 %v4052
      %v4054 = vpop.xlane.xlu0 %4053
      %v4055 = vsel %vm3721, %v3412, -inf
      %4056 = vmax.xlane.f32.xlu0 %v4055
      %v4057 = vpop.xlane.xlu0 %4056
      %v4058 = vsel %vm3721, %v3530, -inf
      %4059 = vmax.xlane.f32.xlu0 %v4058
      %v4060 = vpop.xlane.xlu0 %4059
      %v4061 = vsel %vm3721, %v3535, -inf
      %4062 = vmax.xlane.f32.xlu0 %v4061
      %v4063 = vpop.xlane.xlu0 %4062
      %v4064 = vsel %vm3721, %v3540, -inf
      %4065 = vmax.xlane.f32.xlu0 %v4064
      %v4066 = vpop.xlane.xlu0 %4065
      %v4067 = vsel %vm3721, %v3545, -inf
      %4068 = vmax.xlane.f32.xlu0 %v4067
      %v4069 = vpop.xlane.xlu0 %4068
      %v4070 = vsel %vm3721, %v3550, -inf
      %4071 = vmax.xlane.f32.xlu0 %v4070
      %v4072 = vpop.xlane.xlu0 %4071
      %v4073 = vsel %vm3721, %v3555, -inf
      %4074 = vmax.xlane.f32.xlu0 %v4073
      %v4075 = vpop.xlane.xlu0 %4074
      %v4076 = vsel %vm3721, %v3560, -inf
      %4077 = vmax.xlane.f32.xlu0 %v4076
      %v4078 = vpop.xlane.xlu0 %4077
      %v4079 = vsel %vm3721, %v3565, -inf
      %4080 = vmax.xlane.f32.xlu0 %v4079
      %v4081 = vpop.xlane.xlu0 %4080
      %v4082 = vsel %vm3721, %v3683, -inf
      %4083 = vmax.xlane.f32.xlu0 %v4082
      %v4084 = vpop.xlane.xlu0 %4083
      %v4085 = vsel %vm3721, %v3688, -inf
      %4086 = vmax.xlane.f32.xlu0 %v4085
      %v4087 = vpop.xlane.xlu0 %4086
      %v4088 = vsel %vm3721, %v3693, -inf
      %4089 = vmax.xlane.f32.xlu0 %v4088
      %v4090 = vpop.xlane.xlu0 %4089
      %v4091 = vsel %vm3721, %v3698, -inf
      %4092 = vmax.xlane.f32.xlu0 %v4091
      %v4093 = vpop.xlane.xlu0 %4092
      %v4094 = vsel %vm3721, %v3703, -inf
      %4095 = vmax.xlane.f32.xlu0 %v4094
      %v4096 = vpop.xlane.xlu0 %4095
      %v4097 = vsel %vm3721, %v3708, -inf
      %4098 = vmax.xlane.f32.xlu0 %v4097
      %v4099 = vpop.xlane.xlu0 %4098
      %v4100 = vsel %vm3721, %v3713, -inf
      %4101 = vmax.xlane.f32.xlu0 %v4100
      %v4102 = vpop.xlane.xlu0 %4101
      %v4103 = vsel %vm3721, %v3718, -inf
      %4104 = vmax.xlane.f32.xlu0 %v4103
      %v4105 = vpop.xlane.xlu0 %4104
      %v4106 = vsub.f32 %v1388, %v3724
      %v4107 = vsub.f32 %v1393, %v3727
      %v4108 = vsub.f32 %v1398, %v3730
      %v4109 = vsub.f32 %v1403, %v3733
      %v4110 = vsub.f32 %v1408, %v3736
      %v4111 = vsub.f32 %v1413, %v3739
      %v4112 = vsub.f32 %v1418, %v3742
      %v4113 = vsub.f32 %v1423, %v3745
      %v4114 = vsub.f32 %v1541, %v3748
      %v4115 = vsub.f32 %v1546, %v3751
      %v4116 = vsub.f32 %v1551, %v3754
      %v4117 = vsub.f32 %v1556, %v3757
      %v4118 = vsub.f32 %v1561, %v3760
      %v4119 = vsub.f32 %v1566, %v3763
      %v4120 = vsub.f32 %v1571, %v3766
      %v4121 = vsub.f32 %v1576, %v3769
      %v4122 = vsub.f32 %v1694, %v3772
      %v4123 = vsub.f32 %v1699, %v3775
      %v4124 = vsub.f32 %v1704, %v3778
      %v4125 = vsub.f32 %v1709, %v3781
      %v4126 = vsub.f32 %v1714, %v3784
      %v4127 = vsub.f32 %v1719, %v3787
      %v4128 = vsub.f32 %v1724, %v3790
      %v4129 = vsub.f32 %v1729, %v3793
      %v4130 = vsub.f32 %v1847, %v3796
      %v4131 = vsub.f32 %v1852, %v3799
      %v4132 = vsub.f32 %v1857, %v3802
      %v4133 = vsub.f32 %v1862, %v3805
      %v4134 = vsub.f32 %v1867, %v3808
      %v4135 = vsub.f32 %v1872, %v3811
      %v4136 = vsub.f32 %v1877, %v3814
      %v4137 = vsub.f32 %v1882, %v3817
      %v4138 = vsub.f32 %v2000, %v3820
      %v4139 = vsub.f32 %v2005, %v3823
      %v4140 = vsub.f32 %v2010, %v3826
      %v4141 = vsub.f32 %v2015, %v3829
      %v4142 = vsub.f32 %v2020, %v3832
      %v4143 = vsub.f32 %v2025, %v3835
      %v4144 = vsub.f32 %v2030, %v3838
      %v4145 = vsub.f32 %v2035, %v3841
      %v4146 = vsub.f32 %v2153, %v3844
      %v4147 = vsub.f32 %v2158, %v3847
      %v4148 = vsub.f32 %v2163, %v3850
      %v4149 = vsub.f32 %v2168, %v3853
      %v4150 = vsub.f32 %v2173, %v3856
      %v4151 = vsub.f32 %v2178, %v3859
      %v4152 = vsub.f32 %v2183, %v3862
      %v4153 = vsub.f32 %v2188, %v3865
      %v4154 = vsub.f32 %v2306, %v3868
      %v4155 = vsub.f32 %v2311, %v3871
      %v4156 = vsub.f32 %v2316, %v3874
      %v4157 = vsub.f32 %v2321, %v3877
      %v4158 = vsub.f32 %v2326, %v3880
      %v4159 = vsub.f32 %v2331, %v3883
      %v4160 = vsub.f32 %v2336, %v3886
      %v4161 = vsub.f32 %v2341, %v3889
      %v4162 = vsub.f32 %v2459, %v3892
      %v4163 = vsub.f32 %v2464, %v3895
      %v4164 = vsub.f32 %v2469, %v3898
      %v4165 = vsub.f32 %v2474, %v3901
      %v4166 = vsub.f32 %v2479, %v3904
      %v4167 = vsub.f32 %v2484, %v3907
      %v4168 = vsub.f32 %v2489, %v3910
      %v4169 = vsub.f32 %v2494, %v3913
      %v4170 = vsub.f32 %v2612, %v3916
      %v4171 = vsub.f32 %v2617, %v3919
      %v4172 = vsub.f32 %v2622, %v3922
      %v4173 = vsub.f32 %v2627, %v3925
      %v4174 = vsub.f32 %v2632, %v3928
      %v4175 = vsub.f32 %v2637, %v3931
      %v4176 = vsub.f32 %v2642, %v3934
      %v4177 = vsub.f32 %v2647, %v3937
      %v4178 = vsub.f32 %v2765, %v3940
      %v4179 = vsub.f32 %v2770, %v3943
      %v4180 = vsub.f32 %v2775, %v3946
      %v4181 = vsub.f32 %v2780, %v3949
      %v4182 = vsub.f32 %v2785, %v3952
      %v4183 = vsub.f32 %v2790, %v3955
      %v4184 = vsub.f32 %v2795, %v3958
      %v4185 = vsub.f32 %v2800, %v3961
      %v4186 = vsub.f32 %v2918, %v3964
      %v4187 = vsub.f32 %v2923, %v3967
      %v4188 = vsub.f32 %v2928, %v3970
      %v4189 = vsub.f32 %v2933, %v3973
      %v4190 = vsub.f32 %v2938, %v3976
      %v4191 = vsub.f32 %v2943, %v3979
      %v4192 = vsub.f32 %v2948, %v3982
      %v4193 = vsub.f32 %v2953, %v3985
      %v4194 = vsub.f32 %v3071, %v3988
      %v4195 = vsub.f32 %v3076, %v3991
      %v4196 = vsub.f32 %v3081, %v3994
      %v4197 = vsub.f32 %v3086, %v3997
      %v4198 = vsub.f32 %v3091, %v4000
      %v4199 = vsub.f32 %v3096, %v4003
      %v4200 = vsub.f32 %v3101, %v4006
      %v4201 = vsub.f32 %v3106, %v4009
      %v4202 = vsub.f32 %v3224, %v4012
      %v4203 = vsub.f32 %v3229, %v4015
      %v4204 = vsub.f32 %v3234, %v4018
      %v4205 = vsub.f32 %v3239, %v4021
      %v4206 = vsub.f32 %v3244, %v4024
      %v4207 = vsub.f32 %v3249, %v4027
      %v4208 = vsub.f32 %v3254, %v4030
      %v4209 = vsub.f32 %v3259, %v4033
      %v4210 = vsub.f32 %v3377, %v4036
      %v4211 = vsub.f32 %v3382, %v4039
      %v4212 = vsub.f32 %v3387, %v4042
      %v4213 = vsub.f32 %v3392, %v4045
      %v4214 = vsub.f32 %v3397, %v4048
      %v4215 = vsub.f32 %v3402, %v4051
      %v4216 = vsub.f32 %v3407, %v4054
      %v4217 = vsub.f32 %v3412, %v4057
      %v4218 = vsub.f32 %v3530, %v4060
      %v4219 = vsub.f32 %v3535, %v4063
      %v4220 = vsub.f32 %v3540, %v4066
      %v4221 = vsub.f32 %v3545, %v4069
      %v4222 = vsub.f32 %v3550, %v4072
      %v4223 = vsub.f32 %v3555, %v4075
      %v4224 = vsub.f32 %v3560, %v4078
      %v4225 = vsub.f32 %v3565, %v4081
      %v4226 = vsub.f32 %v3683, %v4084
      %v4227 = vsub.f32 %v3688, %v4087
      %v4228 = vsub.f32 %v3693, %v4090
      %v4229 = vsub.f32 %v3698, %v4093
      %v4230 = vsub.f32 %v3703, %v4096
      %v4231 = vsub.f32 %v3708, %v4099
      %v4232 = vsub.f32 %v3713, %v4102
      %v4233 = vsub.f32 %v3718, %v4105
      %v4234 = vmul.f32 %v4106, 1.442695
      %v4235 = vpow.pop %v4234
      %v4236 = vmul.f32 %v4107, 1.442695
      %v4237 = vpow.pop %v4236
      %v4238 = vmul.f32 %v4108, 1.442695
      %v4239 = vpow.pop %v4238
      %v4240 = vmul.f32 %v4109, 1.442695
      %v4241 = vpow.pop %v4240
      %v4242 = vmul.f32 %v4110, 1.442695
      %v4243 = vpow.pop %v4242
      %v4244 = vmul.f32 %v4111, 1.442695
      %v4245 = vpow.pop %v4244
      %v4246 = vmul.f32 %v4112, 1.442695
      %v4247 = vpow.pop %v4246
      %v4248 = vmul.f32 %v4113, 1.442695
      %v4249 = vpow.pop %v4248
      %v4250 = vmul.f32 %v4114, 1.442695
      %v4251 = vpow.pop %v4250
      %v4252 = vmul.f32 %v4115, 1.442695
      %v4253 = vpow.pop %v4252
      %v4254 = vmul.f32 %v4116, 1.442695
      %v4255 = vpow.pop %v4254
      %v4256 = vmul.f32 %v4117, 1.442695
      %v4257 = vpow.pop %v4256
      %v4258 = vmul.f32 %v4118, 1.442695
      %v4259 = vpow.pop %v4258
      %v4260 = vmul.f32 %v4119, 1.442695
      %v4261 = vpow.pop %v4260
      %v4262 = vmul.f32 %v4120, 1.442695
      %v4263 = vpow.pop %v4262
      %v4264 = vmul.f32 %v4121, 1.442695
      %v4265 = vpow.pop %v4264
      %v4266 = vmul.f32 %v4122, 1.442695
      %v4267 = vpow.pop %v4266
      %v4268 = vmul.f32 %v4123, 1.442695
      %v4269 = vpow.pop %v4268
      %v4270 = vmul.f32 %v4124, 1.442695
      %v4271 = vpow.pop %v4270
      %v4272 = vmul.f32 %v4125, 1.442695
      %v4273 = vpow.pop %v4272
      %v4274 = vmul.f32 %v4126, 1.442695
      %v4275 = vpow.pop %v4274
      %v4276 = vmul.f32 %v4127, 1.442695
      %v4277 = vpow.pop %v4276
      %v4278 = vmul.f32 %v4128, 1.442695
      %v4279 = vpow.pop %v4278
      %v4280 = vmul.f32 %v4129, 1.442695
      %v4281 = vpow.pop %v4280
      %v4282 = vmul.f32 %v4130, 1.442695
      %v4283 = vpow.pop %v4282
      %v4284 = vmul.f32 %v4131, 1.442695
      %v4285 = vpow.pop %v4284
      %v4286 = vmul.f32 %v4132, 1.442695
      %v4287 = vpow.pop %v4286
      %v4288 = vmul.f32 %v4133, 1.442695
      %v4289 = vpow.pop %v4288
      %v4290 = vmul.f32 %v4134, 1.442695
      %v4291 = vpow.pop %v4290
      %v4292 = vmul.f32 %v4135, 1.442695
      %v4293 = vpow.pop %v4292
      %v4294 = vmul.f32 %v4136, 1.442695
      %v4295 = vpow.pop %v4294
      %v4296 = vmul.f32 %v4137, 1.442695
      %v4297 = vpow.pop %v4296
      %v4298 = vmul.f32 %v4138, 1.442695
      %v4299 = vpow.pop %v4298
      %v4300 = vmul.f32 %v4139, 1.442695
      %v4301 = vpow.pop %v4300
      %v4302 = vmul.f32 %v4140, 1.442695
      %v4303 = vpow.pop %v4302
      %v4304 = vmul.f32 %v4141, 1.442695
      %v4305 = vpow.pop %v4304
      %v4306 = vmul.f32 %v4142, 1.442695
      %v4307 = vpow.pop %v4306
      %v4308 = vmul.f32 %v4143, 1.442695
      %v4309 = vpow.pop %v4308
      %v4310 = vmul.f32 %v4144, 1.442695
      %v4311 = vpow.pop %v4310
      %v4312 = vmul.f32 %v4145, 1.442695
      %v4313 = vpow.pop %v4312
      %v4314 = vmul.f32 %v4146, 1.442695
      %v4315 = vpow.pop %v4314
      %v4316 = vmul.f32 %v4147, 1.442695
      %v4317 = vpow.pop %v4316
      %v4318 = vmul.f32 %v4148, 1.442695
      %v4319 = vpow.pop %v4318
      %v4320 = vmul.f32 %v4149, 1.442695
      %v4321 = vpow.pop %v4320
      %v4322 = vmul.f32 %v4150, 1.442695
      %v4323 = vpow.pop %v4322
      %v4324 = vmul.f32 %v4151, 1.442695
      %v4325 = vpow.pop %v4324
      %v4326 = vmul.f32 %v4152, 1.442695
      %v4327 = vpow.pop %v4326
      %v4328 = vmul.f32 %v4153, 1.442695
      %v4329 = vpow.pop %v4328
      %v4330 = vmul.f32 %v4154, 1.442695
      %v4331 = vpow.pop %v4330
      %v4332 = vmul.f32 %v4155, 1.442695
      %v4333 = vpow.pop %v4332
      %v4334 = vmul.f32 %v4156, 1.442695
      %v4335 = vpow.pop %v4334
      %v4336 = vmul.f32 %v4157, 1.442695
      %v4337 = vpow.pop %v4336
      %v4338 = vmul.f32 %v4158, 1.442695
      %v4339 = vpow.pop %v4338
      %v4340 = vmul.f32 %v4159, 1.442695
      %v4341 = vpow.pop %v4340
      %v4342 = vmul.f32 %v4160, 1.442695
      %v4343 = vpow.pop %v4342
      %v4344 = vmul.f32 %v4161, 1.442695
      %v4345 = vpow.pop %v4344
      %v4346 = vmul.f32 %v4162, 1.442695
      %v4347 = vpow.pop %v4346
      %v4348 = vmul.f32 %v4163, 1.442695
      %v4349 = vpow.pop %v4348
      %v4350 = vmul.f32 %v4164, 1.442695
      %v4351 = vpow.pop %v4350
      %v4352 = vmul.f32 %v4165, 1.442695
      %v4353 = vpow.pop %v4352
      %v4354 = vmul.f32 %v4166, 1.442695
      %v4355 = vpow.pop %v4354
      %v4356 = vmul.f32 %v4167, 1.442695
      %v4357 = vpow.pop %v4356
      %v4358 = vmul.f32 %v4168, 1.442695
      %v4359 = vpow.pop %v4358
      %v4360 = vmul.f32 %v4169, 1.442695
      %v4361 = vpow.pop %v4360
      %v4362 = vmul.f32 %v4170, 1.442695
      %v4363 = vpow.pop %v4362
      %v4364 = vmul.f32 %v4171, 1.442695
      %v4365 = vpow.pop %v4364
      %v4366 = vmul.f32 %v4172, 1.442695
      %v4367 = vpow.pop %v4366
      %v4368 = vmul.f32 %v4173, 1.442695
      %v4369 = vpow.pop %v4368
      %v4370 = vmul.f32 %v4174, 1.442695
      %v4371 = vpow.pop %v4370
      %v4372 = vmul.f32 %v4175, 1.442695
      %v4373 = vpow.pop %v4372
      %v4374 = vmul.f32 %v4176, 1.442695
      %v4375 = vpow.pop %v4374
      %v4376 = vmul.f32 %v4177, 1.442695
      %v4377 = vpow.pop %v4376
      %v4378 = vmul.f32 %v4178, 1.442695
      %v4379 = vpow.pop %v4378
      %v4380 = vmul.f32 %v4179, 1.442695
      %v4381 = vpow.pop %v4380
      %v4382 = vmul.f32 %v4180, 1.442695
      %v4383 = vpow.pop %v4382
      %v4384 = vmul.f32 %v4181, 1.442695
      %v4385 = vpow.pop %v4384
      %v4386 = vmul.f32 %v4182, 1.442695
      %v4387 = vpow.pop %v4386
      %v4388 = vmul.f32 %v4183, 1.442695
      %v4389 = vpow.pop %v4388
      %v4390 = vmul.f32 %v4184, 1.442695
      %v4391 = vpow.pop %v4390
      %v4392 = vmul.f32 %v4185, 1.442695
      %v4393 = vpow.pop %v4392
      %v4394 = vmul.f32 %v4186, 1.442695
      %v4395 = vpow.pop %v4394
      %v4396 = vmul.f32 %v4187, 1.442695
      %v4397 = vpow.pop %v4396
      %v4398 = vmul.f32 %v4188, 1.442695
      %v4399 = vpow.pop %v4398
      %v4400 = vmul.f32 %v4189, 1.442695
      %v4401 = vpow.pop %v4400
      %v4402 = vmul.f32 %v4190, 1.442695
      %v4403 = vpow.pop %v4402
      %v4404 = vmul.f32 %v4191, 1.442695
      %v4405 = vpow.pop %v4404
      %v4406 = vmul.f32 %v4192, 1.442695
      %v4407 = vpow.pop %v4406
      %v4408 = vmul.f32 %v4193, 1.442695
      %v4409 = vpow.pop %v4408
      %v4410 = vmul.f32 %v4194, 1.442695
      %v4411 = vpow.pop %v4410
      %v4412 = vmul.f32 %v4195, 1.442695
      %v4413 = vpow.pop %v4412
      %v4414 = vmul.f32 %v4196, 1.442695
      %v4415 = vpow.pop %v4414
      %v4416 = vmul.f32 %v4197, 1.442695
      %v4417 = vpow.pop %v4416
      %v4418 = vmul.f32 %v4198, 1.442695
      %v4419 = vpow.pop %v4418
      %v4420 = vmul.f32 %v4199, 1.442695
      %v4421 = vpow.pop %v4420
      %v4422 = vmul.f32 %v4200, 1.442695
      %v4423 = vpow.pop %v4422
      %v4424 = vmul.f32 %v4201, 1.442695
      %v4425 = vpow.pop %v4424
      %v4426 = vmul.f32 %v4202, 1.442695
      %v4427 = vpow.pop %v4426
      %v4428 = vmul.f32 %v4203, 1.442695
      %v4429 = vpow.pop %v4428
      %v4430 = vmul.f32 %v4204, 1.442695
      %v4431 = vpow.pop %v4430
      %v4432 = vmul.f32 %v4205, 1.442695
      %v4433 = vpow.pop %v4432
      %v4434 = vmul.f32 %v4206, 1.442695
      %v4435 = vpow.pop %v4434
      %v4436 = vmul.f32 %v4207, 1.442695
      %v4437 = vpow.pop %v4436
      %v4438 = vmul.f32 %v4208, 1.442695
      %v4439 = vpow.pop %v4438
      %v4440 = vmul.f32 %v4209, 1.442695
      %v4441 = vpow.pop %v4440
      %v4442 = vmul.f32 %v4210, 1.442695
      %v4443 = vpow.pop %v4442
      %v4444 = vmul.f32 %v4211, 1.442695
      %v4445 = vpow.pop %v4444
      %v4446 = vmul.f32 %v4212, 1.442695
      %v4447 = vpow.pop %v4446
      %v4448 = vmul.f32 %v4213, 1.442695
      %v4449 = vpow.pop %v4448
      %v4450 = vmul.f32 %v4214, 1.442695
      %v4451 = vpow.pop %v4450
      %v4452 = vmul.f32 %v4215, 1.442695
      %v4453 = vpow.pop %v4452
      %v4454 = vmul.f32 %v4216, 1.442695
      %v4455 = vpow.pop %v4454
      %v4456 = vmul.f32 %v4217, 1.442695
      %v4457 = vpow.pop %v4456
      %v4458 = vmul.f32 %v4218, 1.442695
      %v4459 = vpow.pop %v4458
      %v4460 = vmul.f32 %v4219, 1.442695
      %v4461 = vpow.pop %v4460
      %v4462 = vmul.f32 %v4220, 1.442695
      %v4463 = vpow.pop %v4462
      %v4464 = vmul.f32 %v4221, 1.442695
      %v4465 = vpow.pop %v4464
      %v4466 = vmul.f32 %v4222, 1.442695
      %v4467 = vpow.pop %v4466
      %v4468 = vmul.f32 %v4223, 1.442695
      %v4469 = vpow.pop %v4468
      %v4470 = vmul.f32 %v4224, 1.442695
      %v4471 = vpow.pop %v4470
      %v4472 = vmul.f32 %v4225, 1.442695
      %v4473 = vpow.pop %v4472
      %v4474 = vmul.f32 %v4226, 1.442695
      %v4475 = vpow.pop %v4474
      %v4476 = vmul.f32 %v4227, 1.442695
      %v4477 = vpow.pop %v4476
      %v4478 = vmul.f32 %v4228, 1.442695
      %v4479 = vpow.pop %v4478
      %v4480 = vmul.f32 %v4229, 1.442695
      %v4481 = vpow.pop %v4480
      %v4482 = vmul.f32 %v4230, 1.442695
      %v4483 = vpow.pop %v4482
      %v4484 = vmul.f32 %v4231, 1.442695
      %v4485 = vpow.pop %v4484
      %v4486 = vmul.f32 %v4232, 1.442695
      %v4487 = vpow.pop %v4486
      %v4488 = vmul.f32 %v4233, 1.442695
      %v4489 = vpow.pop %v4488
      %v4490 = vsel %vm3721, %v4235, 0.0
      %4491 = vadd.xlane.f32.xlu0 %v4490
      %v4492 = vpop.xlane.xlu0 %4491
      %v4493 = vsel %vm3721, %v4237, 0.0
      %4494 = vadd.xlane.f32.xlu0 %v4493
      %v4495 = vpop.xlane.xlu0 %4494
      %v4496 = vsel %vm3721, %v4239, 0.0
      %4497 = vadd.xlane.f32.xlu0 %v4496
      %v4498 = vpop.xlane.xlu0 %4497
      %v4499 = vsel %vm3721, %v4241, 0.0
      %4500 = vadd.xlane.f32.xlu0 %v4499
      %v4501 = vpop.xlane.xlu0 %4500
      %v4502 = vsel %vm3721, %v4243, 0.0
      %4503 = vadd.xlane.f32.xlu0 %v4502
      %v4504 = vpop.xlane.xlu0 %4503
      %v4505 = vsel %vm3721, %v4245, 0.0
      %4506 = vadd.xlane.f32.xlu0 %v4505
      %v4507 = vpop.xlane.xlu0 %4506
      %v4508 = vsel %vm3721, %v4247, 0.0
      %4509 = vadd.xlane.f32.xlu0 %v4508
      %v4510 = vpop.xlane.xlu0 %4509
      %v4511 = vsel %vm3721, %v4249, 0.0
      %4512 = vadd.xlane.f32.xlu0 %v4511
      %v4513 = vpop.xlane.xlu0 %4512
      %v4514 = vsel %vm3721, %v4251, 0.0
      %4515 = vadd.xlane.f32.xlu0 %v4514
      %v4516 = vpop.xlane.xlu0 %4515
      %v4517 = vsel %vm3721, %v4253, 0.0
      %4518 = vadd.xlane.f32.xlu0 %v4517
      %v4519 = vpop.xlane.xlu0 %4518
      %v4520 = vsel %vm3721, %v4255, 0.0
      %4521 = vadd.xlane.f32.xlu0 %v4520
      %v4522 = vpop.xlane.xlu0 %4521
      %v4523 = vsel %vm3721, %v4257, 0.0
      %4524 = vadd.xlane.f32.xlu0 %v4523
      %v4525 = vpop.xlane.xlu0 %4524
      %v4526 = vsel %vm3721, %v4259, 0.0
      %4527 = vadd.xlane.f32.xlu0 %v4526
      %v4528 = vpop.xlane.xlu0 %4527
      %v4529 = vsel %vm3721, %v4261, 0.0
      %4530 = vadd.xlane.f32.xlu0 %v4529
      %v4531 = vpop.xlane.xlu0 %4530
      %v4532 = vsel %vm3721, %v4263, 0.0
      %4533 = vadd.xlane.f32.xlu0 %v4532
      %v4534 = vpop.xlane.xlu0 %4533
      %v4535 = vsel %vm3721, %v4265, 0.0
      %4536 = vadd.xlane.f32.xlu0 %v4535
      %v4537 = vpop.xlane.xlu0 %4536
      %v4538 = vsel %vm3721, %v4267, 0.0
      %4539 = vadd.xlane.f32.xlu0 %v4538
      %v4540 = vpop.xlane.xlu0 %4539
      %v4541 = vsel %vm3721, %v4269, 0.0
      %4542 = vadd.xlane.f32.xlu0 %v4541
      %v4543 = vpop.xlane.xlu0 %4542
      %v4544 = vsel %vm3721, %v4271, 0.0
      %4545 = vadd.xlane.f32.xlu0 %v4544
      %v4546 = vpop.xlane.xlu0 %4545
      %v4547 = vsel %vm3721, %v4273, 0.0
      %4548 = vadd.xlane.f32.xlu0 %v4547
      %v4549 = vpop.xlane.xlu0 %4548
      %v4550 = vsel %vm3721, %v4275, 0.0
      %4551 = vadd.xlane.f32.xlu0 %v4550
      %v4552 = vpop.xlane.xlu0 %4551
      %v4553 = vsel %vm3721, %v4277, 0.0
      %4554 = vadd.xlane.f32.xlu0 %v4553
      %v4555 = vpop.xlane.xlu0 %4554
      %v4556 = vsel %vm3721, %v4279, 0.0
      %4557 = vadd.xlane.f32.xlu0 %v4556
      %v4558 = vpop.xlane.xlu0 %4557
      %v4559 = vsel %vm3721, %v4281, 0.0
      %4560 = vadd.xlane.f32.xlu0 %v4559
      %v4561 = vpop.xlane.xlu0 %4560
      %v4562 = vsel %vm3721, %v4283, 0.0
      %4563 = vadd.xlane.f32.xlu0 %v4562
      %v4564 = vpop.xlane.xlu0 %4563
      %v4565 = vsel %vm3721, %v4285, 0.0
      %4566 = vadd.xlane.f32.xlu0 %v4565
      %v4567 = vpop.xlane.xlu0 %4566
      %v4568 = vsel %vm3721, %v4287, 0.0
      %4569 = vadd.xlane.f32.xlu0 %v4568
      %v4570 = vpop.xlane.xlu0 %4569
      %v4571 = vsel %vm3721, %v4289, 0.0
      %4572 = vadd.xlane.f32.xlu0 %v4571
      %v4573 = vpop.xlane.xlu0 %4572
      %v4574 = vsel %vm3721, %v4291, 0.0
      %4575 = vadd.xlane.f32.xlu0 %v4574
      %v4576 = vpop.xlane.xlu0 %4575
      %v4577 = vsel %vm3721, %v4293, 0.0
      %4578 = vadd.xlane.f32.xlu0 %v4577
      %v4579 = vpop.xlane.xlu0 %4578
      %v4580 = vsel %vm3721, %v4295, 0.0
      %4581 = vadd.xlane.f32.xlu0 %v4580
      %v4582 = vpop.xlane.xlu0 %4581
      %v4583 = vsel %vm3721, %v4297, 0.0
      %4584 = vadd.xlane.f32.xlu0 %v4583
      %v4585 = vpop.xlane.xlu0 %4584
      %v4586 = vsel %vm3721, %v4299, 0.0
      %4587 = vadd.xlane.f32.xlu0 %v4586
      %v4588 = vpop.xlane.xlu0 %4587
      %v4589 = vsel %vm3721, %v4301, 0.0
      %4590 = vadd.xlane.f32.xlu0 %v4589
      %v4591 = vpop.xlane.xlu0 %4590
      %v4592 = vsel %vm3721, %v4303, 0.0
      %4593 = vadd.xlane.f32.xlu0 %v4592
      %v4594 = vpop.xlane.xlu0 %4593
      %v4595 = vsel %vm3721, %v4305, 0.0
      %4596 = vadd.xlane.f32.xlu0 %v4595
      %v4597 = vpop.xlane.xlu0 %4596
      %v4598 = vsel %vm3721, %v4307, 0.0
      %4599 = vadd.xlane.f32.xlu0 %v4598
      %v4600 = vpop.xlane.xlu0 %4599
      %v4601 = vsel %vm3721, %v4309, 0.0
      %4602 = vadd.xlane.f32.xlu0 %v4601
      %v4603 = vpop.xlane.xlu0 %4602
      %v4604 = vsel %vm3721, %v4311, 0.0
      %4605 = vadd.xlane.f32.xlu0 %v4604
      %v4606 = vpop.xlane.xlu0 %4605
      %v4607 = vsel %vm3721, %v4313, 0.0
      %4608 = vadd.xlane.f32.xlu0 %v4607
      %v4609 = vpop.xlane.xlu0 %4608
      %v4610 = vsel %vm3721, %v4315, 0.0
      %4611 = vadd.xlane.f32.xlu0 %v4610
      %v4612 = vpop.xlane.xlu0 %4611
      %v4613 = vsel %vm3721, %v4317, 0.0
      %4614 = vadd.xlane.f32.xlu0 %v4613
      %v4615 = vpop.xlane.xlu0 %4614
      %v4616 = vsel %vm3721, %v4319, 0.0
      %4617 = vadd.xlane.f32.xlu0 %v4616
      %v4618 = vpop.xlane.xlu0 %4617
      %v4619 = vsel %vm3721, %v4321, 0.0
      %4620 = vadd.xlane.f32.xlu0 %v4619
      %v4621 = vpop.xlane.xlu0 %4620
      %v4622 = vsel %vm3721, %v4323, 0.0
      %4623 = vadd.xlane.f32.xlu0 %v4622
      %v4624 = vpop.xlane.xlu0 %4623
      %v4625 = vsel %vm3721, %v4325, 0.0
      %4626 = vadd.xlane.f32.xlu0 %v4625
      %v4627 = vpop.xlane.xlu0 %4626
      %v4628 = vsel %vm3721, %v4327, 0.0
      %4629 = vadd.xlane.f32.xlu0 %v4628
      %v4630 = vpop.xlane.xlu0 %4629
      %v4631 = vsel %vm3721, %v4329, 0.0
      %4632 = vadd.xlane.f32.xlu0 %v4631
      %v4633 = vpop.xlane.xlu0 %4632
      %v4634 = vsel %vm3721, %v4331, 0.0
      %4635 = vadd.xlane.f32.xlu0 %v4634
      %v4636 = vpop.xlane.xlu0 %4635
      %v4637 = vsel %vm3721, %v4333, 0.0
      %4638 = vadd.xlane.f32.xlu0 %v4637
      %v4639 = vpop.xlane.xlu0 %4638
      %v4640 = vsel %vm3721, %v4335, 0.0
      %4641 = vadd.xlane.f32.xlu0 %v4640
      %v4642 = vpop.xlane.xlu0 %4641
      %v4643 = vsel %vm3721, %v4337, 0.0
      %4644 = vadd.xlane.f32.xlu0 %v4643
      %v4645 = vpop.xlane.xlu0 %4644
      %v4646 = vsel %vm3721, %v4339, 0.0
      %4647 = vadd.xlane.f32.xlu0 %v4646
      %v4648 = vpop.xlane.xlu0 %4647
      %v4649 = vsel %vm3721, %v4341, 0.0
      %4650 = vadd.xlane.f32.xlu0 %v4649
      %v4651 = vpop.xlane.xlu0 %4650
      %v4652 = vsel %vm3721, %v4343, 0.0
      %4653 = vadd.xlane.f32.xlu0 %v4652
      %v4654 = vpop.xlane.xlu0 %4653
      %v4655 = vsel %vm3721, %v4345, 0.0
      %4656 = vadd.xlane.f32.xlu0 %v4655
      %v4657 = vpop.xlane.xlu0 %4656
      %v4658 = vsel %vm3721, %v4347, 0.0
      %4659 = vadd.xlane.f32.xlu0 %v4658
      %v4660 = vpop.xlane.xlu0 %4659
      %v4661 = vsel %vm3721, %v4349, 0.0
      %4662 = vadd.xlane.f32.xlu0 %v4661
      %v4663 = vpop.xlane.xlu0 %4662
      %v4664 = vsel %vm3721, %v4351, 0.0
      %4665 = vadd.xlane.f32.xlu0 %v4664
      %v4666 = vpop.xlane.xlu0 %4665
      %v4667 = vsel %vm3721, %v4353, 0.0
      %4668 = vadd.xlane.f32.xlu0 %v4667
      %v4669 = vpop.xlane.xlu0 %4668
      %v4670 = vsel %vm3721, %v4355, 0.0
      %4671 = vadd.xlane.f32.xlu0 %v4670
      %v4672 = vpop.xlane.xlu0 %4671
      %v4673 = vsel %vm3721, %v4357, 0.0
      %4674 = vadd.xlane.f32.xlu0 %v4673
      %v4675 = vpop.xlane.xlu0 %4674
      %v4676 = vsel %vm3721, %v4359, 0.0
      %4677 = vadd.xlane.f32.xlu0 %v4676
      %v4678 = vpop.xlane.xlu0 %4677
      %v4679 = vsel %vm3721, %v4361, 0.0
      %4680 = vadd.xlane.f32.xlu0 %v4679
      %v4681 = vpop.xlane.xlu0 %4680
      %v4682 = vsel %vm3721, %v4363, 0.0
      %4683 = vadd.xlane.f32.xlu0 %v4682
      %v4684 = vpop.xlane.xlu0 %4683
      %v4685 = vsel %vm3721, %v4365, 0.0
      %4686 = vadd.xlane.f32.xlu0 %v4685
      %v4687 = vpop.xlane.xlu0 %4686
      %v4688 = vsel %vm3721, %v4367, 0.0
      %4689 = vadd.xlane.f32.xlu0 %v4688
      %v4690 = vpop.xlane.xlu0 %4689
      %v4691 = vsel %vm3721, %v4369, 0.0
      %4692 = vadd.xlane.f32.xlu0 %v4691
      %v4693 = vpop.xlane.xlu0 %4692
      %v4694 = vsel %vm3721, %v4371, 0.0
      %4695 = vadd.xlane.f32.xlu0 %v4694
      %v4696 = vpop.xlane.xlu0 %4695
      %v4697 = vsel %vm3721, %v4373, 0.0
      %4698 = vadd.xlane.f32.xlu0 %v4697
      %v4699 = vpop.xlane.xlu0 %4698
      %v4700 = vsel %vm3721, %v4375, 0.0
      %4701 = vadd.xlane.f32.xlu0 %v4700
      %v4702 = vpop.xlane.xlu0 %4701
      %v4703 = vsel %vm3721, %v4377, 0.0
      %4704 = vadd.xlane.f32.xlu0 %v4703
      %v4705 = vpop.xlane.xlu0 %4704
      %v4706 = vsel %vm3721, %v4379, 0.0
      %4707 = vadd.xlane.f32.xlu0 %v4706
      %v4708 = vpop.xlane.xlu0 %4707
      %v4709 = vsel %vm3721, %v4381, 0.0
      %4710 = vadd.xlane.f32.xlu0 %v4709
      %v4711 = vpop.xlane.xlu0 %4710
      %v4712 = vsel %vm3721, %v4383, 0.0
      %4713 = vadd.xlane.f32.xlu0 %v4712
      %v4714 = vpop.xlane.xlu0 %4713
      %v4715 = vsel %vm3721, %v4385, 0.0
      %4716 = vadd.xlane.f32.xlu0 %v4715
      %v4717 = vpop.xlane.xlu0 %4716
      %v4718 = vsel %vm3721, %v4387, 0.0
      %4719 = vadd.xlane.f32.xlu0 %v4718
      %v4720 = vpop.xlane.xlu0 %4719
      %v4721 = vsel %vm3721, %v4389, 0.0
      %4722 = vadd.xlane.f32.xlu0 %v4721
      %v4723 = vpop.xlane.xlu0 %4722
      %v4724 = vsel %vm3721, %v4391, 0.0
      %4725 = vadd.xlane.f32.xlu0 %v4724
      %v4726 = vpop.xlane.xlu0 %4725
      %v4727 = vsel %vm3721, %v4393, 0.0
      %4728 = vadd.xlane.f32.xlu0 %v4727
      %v4729 = vpop.xlane.xlu0 %4728
      %v4730 = vsel %vm3721, %v4395, 0.0
      %4731 = vadd.xlane.f32.xlu0 %v4730
      %v4732 = vpop.xlane.xlu0 %4731
      %v4733 = vsel %vm3721, %v4397, 0.0
      %4734 = vadd.xlane.f32.xlu0 %v4733
      %v4735 = vpop.xlane.xlu0 %4734
      %v4736 = vsel %vm3721, %v4399, 0.0
      %4737 = vadd.xlane.f32.xlu0 %v4736
      %v4738 = vpop.xlane.xlu0 %4737
      %v4739 = vsel %vm3721, %v4401, 0.0
      %4740 = vadd.xlane.f32.xlu0 %v4739
      %v4741 = vpop.xlane.xlu0 %4740
      %v4742 = vsel %vm3721, %v4403, 0.0
      %4743 = vadd.xlane.f32.xlu0 %v4742
      %v4744 = vpop.xlane.xlu0 %4743
      %v4745 = vsel %vm3721, %v4405, 0.0
      %4746 = vadd.xlane.f32.xlu0 %v4745
      %v4747 = vpop.xlane.xlu0 %4746
      %v4748 = vsel %vm3721, %v4407, 0.0
      %4749 = vadd.xlane.f32.xlu0 %v4748
      %v4750 = vpop.xlane.xlu0 %4749
      %v4751 = vsel %vm3721, %v4409, 0.0
      %4752 = vadd.xlane.f32.xlu0 %v4751
      %v4753 = vpop.xlane.xlu0 %4752
      %v4754 = vsel %vm3721, %v4411, 0.0
      %4755 = vadd.xlane.f32.xlu0 %v4754
      %v4756 = vpop.xlane.xlu0 %4755
      %v4757 = vsel %vm3721, %v4413, 0.0
      %4758 = vadd.xlane.f32.xlu0 %v4757
      %v4759 = vpop.xlane.xlu0 %4758
      %v4760 = vsel %vm3721, %v4415, 0.0
      %4761 = vadd.xlane.f32.xlu0 %v4760
      %v4762 = vpop.xlane.xlu0 %4761
      %v4763 = vsel %vm3721, %v4417, 0.0
      %4764 = vadd.xlane.f32.xlu0 %v4763
      %v4765 = vpop.xlane.xlu0 %4764
      %v4766 = vsel %vm3721, %v4419, 0.0
      %4767 = vadd.xlane.f32.xlu0 %v4766
      %v4768 = vpop.xlane.xlu0 %4767
      %v4769 = vsel %vm3721, %v4421, 0.0
      %4770 = vadd.xlane.f32.xlu0 %v4769
      %v4771 = vpop.xlane.xlu0 %4770
      %v4772 = vsel %vm3721, %v4423, 0.0
      %4773 = vadd.xlane.f32.xlu0 %v4772
      %v4774 = vpop.xlane.xlu0 %4773
      %v4775 = vsel %vm3721, %v4425, 0.0
      %4776 = vadd.xlane.f32.xlu0 %v4775
      %v4777 = vpop.xlane.xlu0 %4776
      %v4778 = vsel %vm3721, %v4427, 0.0
      %4779 = vadd.xlane.f32.xlu0 %v4778
      %v4780 = vpop.xlane.xlu0 %4779
      %v4781 = vsel %vm3721, %v4429, 0.0
      %4782 = vadd.xlane.f32.xlu0 %v4781
      %v4783 = vpop.xlane.xlu0 %4782
      %v4784 = vsel %vm3721, %v4431, 0.0
      %4785 = vadd.xlane.f32.xlu0 %v4784
      %v4786 = vpop.xlane.xlu0 %4785
      %v4787 = vsel %vm3721, %v4433, 0.0
      %4788 = vadd.xlane.f32.xlu0 %v4787
      %v4789 = vpop.xlane.xlu0 %4788
      %v4790 = vsel %vm3721, %v4435, 0.0
      %4791 = vadd.xlane.f32.xlu0 %v4790
      %v4792 = vpop.xlane.xlu0 %4791
      %v4793 = vsel %vm3721, %v4437, 0.0
      %4794 = vadd.xlane.f32.xlu0 %v4793
      %v4795 = vpop.xlane.xlu0 %4794
      %v4796 = vsel %vm3721, %v4439, 0.0
      %4797 = vadd.xlane.f32.xlu0 %v4796
      %v4798 = vpop.xlane.xlu0 %4797
      %v4799 = vsel %vm3721, %v4441, 0.0
      %4800 = vadd.xlane.f32.xlu0 %v4799
      %v4801 = vpop.xlane.xlu0 %4800
      %v4802 = vsel %vm3721, %v4443, 0.0
      %4803 = vadd.xlane.f32.xlu0 %v4802
      %v4804 = vpop.xlane.xlu0 %4803
      %v4805 = vsel %vm3721, %v4445, 0.0
      %4806 = vadd.xlane.f32.xlu0 %v4805
      %v4807 = vpop.xlane.xlu0 %4806
      %v4808 = vsel %vm3721, %v4447, 0.0
      %4809 = vadd.xlane.f32.xlu0 %v4808
      %v4810 = vpop.xlane.xlu0 %4809
      %v4811 = vsel %vm3721, %v4449, 0.0
      %4812 = vadd.xlane.f32.xlu0 %v4811
      %v4813 = vpop.xlane.xlu0 %4812
      %v4814 = vsel %vm3721, %v4451, 0.0
      %4815 = vadd.xlane.f32.xlu0 %v4814
      %v4816 = vpop.xlane.xlu0 %4815
      %v4817 = vsel %vm3721, %v4453, 0.0
      %4818 = vadd.xlane.f32.xlu0 %v4817
      %v4819 = vpop.xlane.xlu0 %4818
      %v4820 = vsel %vm3721, %v4455, 0.0
      %4821 = vadd.xlane.f32.xlu0 %v4820
      %v4822 = vpop.xlane.xlu0 %4821
      %v4823 = vsel %vm3721, %v4457, 0.0
      %4824 = vadd.xlane.f32.xlu0 %v4823
      %v4825 = vpop.xlane.xlu0 %4824
      %v4826 = vsel %vm3721, %v4459, 0.0
      %4827 = vadd.xlane.f32.xlu0 %v4826
      %v4828 = vpop.xlane.xlu0 %4827
      %v4829 = vsel %vm3721, %v4461, 0.0
      %4830 = vadd.xlane.f32.xlu0 %v4829
      %v4831 = vpop.xlane.xlu0 %4830
      %v4832 = vsel %vm3721, %v4463, 0.0
      %4833 = vadd.xlane.f32.xlu0 %v4832
      %v4834 = vpop.xlane.xlu0 %4833
      %v4835 = vsel %vm3721, %v4465, 0.0
      %4836 = vadd.xlane.f32.xlu0 %v4835
      %v4837 = vpop.xlane.xlu0 %4836
      %v4838 = vsel %vm3721, %v4467, 0.0
      %4839 = vadd.xlane.f32.xlu0 %v4838
      %v4840 = vpop.xlane.xlu0 %4839
      %v4841 = vsel %vm3721, %v4469, 0.0
      %4842 = vadd.xlane.f32.xlu0 %v4841
      %v4843 = vpop.xlane.xlu0 %4842
      %v4844 = vsel %vm3721, %v4471, 0.0
      %4845 = vadd.xlane.f32.xlu0 %v4844
      %v4846 = vpop.xlane.xlu0 %4845
      %v4847 = vsel %vm3721, %v4473, 0.0
      %4848 = vadd.xlane.f32.xlu0 %v4847
      %v4849 = vpop.xlane.xlu0 %4848
      %v4850 = vsel %vm3721, %v4475, 0.0
      %4851 = vadd.xlane.f32.xlu0 %v4850
      %v4852 = vpop.xlane.xlu0 %4851
      %v4853 = vsel %vm3721, %v4477, 0.0
      %4854 = vadd.xlane.f32.xlu0 %v4853
      %v4855 = vpop.xlane.xlu0 %4854
      %v4856 = vsel %vm3721, %v4479, 0.0
      %4857 = vadd.xlane.f32.xlu0 %v4856
      %v4858 = vpop.xlane.xlu0 %4857
      %v4859 = vsel %vm3721, %v4481, 0.0
      %4860 = vadd.xlane.f32.xlu0 %v4859
      %v4861 = vpop.xlane.xlu0 %4860
      %v4862 = vsel %vm3721, %v4483, 0.0
      %4863 = vadd.xlane.f32.xlu0 %v4862
      %v4864 = vpop.xlane.xlu0 %4863
      %v4865 = vsel %vm3721, %v4485, 0.0
      %4866 = vadd.xlane.f32.xlu0 %v4865
      %v4867 = vpop.xlane.xlu0 %4866
      %v4868 = vsel %vm3721, %v4487, 0.0
      %4869 = vadd.xlane.f32.xlu0 %v4868
      %v4870 = vpop.xlane.xlu0 %4869
      %v4871 = vsel %vm3721, %v4489, 0.0
      %4872 = vadd.xlane.f32.xlu0 %v4871
      %v4873 = vpop.xlane.xlu0 %4872
      %v4874 = vrcp.pop %v4492
      %v4875 = vrcp.pop %v4495
      %v4876 = vrcp.pop %v4498
      %v4877 = vrcp.pop %v4501
      %v4878 = vrcp.pop %v4504
      %v4879 = vrcp.pop %v4507
      %v4880 = vrcp.pop %v4510
      %v4881 = vrcp.pop %v4513
      %v4882 = vrcp.pop %v4516
      %v4883 = vrcp.pop %v4519
      %v4884 = vrcp.pop %v4522
      %v4885 = vrcp.pop %v4525
      %v4886 = vrcp.pop %v4528
      %v4887 = vrcp.pop %v4531
      %v4888 = vrcp.pop %v4534
      %v4889 = vrcp.pop %v4537
      %v4890 = vrcp.pop %v4540
      %v4891 = vrcp.pop %v4543
      %v4892 = vrcp.pop %v4546
      %v4893 = vrcp.pop %v4549
      %v4894 = vrcp.pop %v4552
      %v4895 = vrcp.pop %v4555
      %v4896 = vrcp.pop %v4558
      %v4897 = vrcp.pop %v4561
      %v4898 = vrcp.pop %v4564
      %v4899 = vrcp.pop %v4567
      %v4900 = vrcp.pop %v4570
      %v4901 = vrcp.pop %v4573
      %v4902 = vrcp.pop %v4576
      %v4903 = vrcp.pop %v4579
      %v4904 = vrcp.pop %v4582
      %v4905 = vrcp.pop %v4585
      %v4906 = vrcp.pop %v4588
      %v4907 = vrcp.pop %v4591
      %v4908 = vrcp.pop %v4594
      %v4909 = vrcp.pop %v4597
      %v4910 = vrcp.pop %v4600
      %v4911 = vrcp.pop %v4603
      %v4912 = vrcp.pop %v4606
      %v4913 = vrcp.pop %v4609
      %v4914 = vrcp.pop %v4612
      %v4915 = vrcp.pop %v4615
      %v4916 = vrcp.pop %v4618
      %v4917 = vrcp.pop %v4621
      %v4918 = vrcp.pop %v4624
      %v4919 = vrcp.pop %v4627
      %v4920 = vrcp.pop %v4630
      %v4921 = vrcp.pop %v4633
      %v4922 = vrcp.pop %v4636
      %v4923 = vrcp.pop %v4639
      %v4924 = vrcp.pop %v4642
      %v4925 = vrcp.pop %v4645
      %v4926 = vrcp.pop %v4648
      %v4927 = vrcp.pop %v4651
      %v4928 = vrcp.pop %v4654
      %v4929 = vrcp.pop %v4657
      %v4930 = vrcp.pop %v4660
      %v4931 = vrcp.pop %v4663
      %v4932 = vrcp.pop %v4666
      %v4933 = vrcp.pop %v4669
      %v4934 = vrcp.pop %v4672
      %v4935 = vrcp.pop %v4675
      %v4936 = vrcp.pop %v4678
      %v4937 = vrcp.pop %v4681
      %v4938 = vrcp.pop %v4684
      %v4939 = vrcp.pop %v4687
      %v4940 = vrcp.pop %v4690
      %v4941 = vrcp.pop %v4693
      %v4942 = vrcp.pop %v4696
      %v4943 = vrcp.pop %v4699
      %v4944 = vrcp.pop %v4702
      %v4945 = vrcp.pop %v4705
      %v4946 = vrcp.pop %v4708
      %v4947 = vrcp.pop %v4711
      %v4948 = vrcp.pop %v4714
      %v4949 = vrcp.pop %v4717
      %v4950 = vrcp.pop %v4720
      %v4951 = vrcp.pop %v4723
      %v4952 = vrcp.pop %v4726
      %v4953 = vrcp.pop %v4729
      %v4954 = vrcp.pop %v4732
      %v4955 = vrcp.pop %v4735
      %v4956 = vrcp.pop %v4738
      %v4957 = vrcp.pop %v4741
      %v4958 = vrcp.pop %v4744
      %v4959 = vrcp.pop %v4747
      %v4960 = vrcp.pop %v4750
      %v4961 = vrcp.pop %v4753
      %v4962 = vrcp.pop %v4756
      %v4963 = vrcp.pop %v4759
      %v4964 = vrcp.pop %v4762
      %v4965 = vrcp.pop %v4765
      %v4966 = vrcp.pop %v4768
      %v4967 = vrcp.pop %v4771
      %v4968 = vrcp.pop %v4774
      %v4969 = vrcp.pop %v4777
      %v4970 = vrcp.pop %v4780
      %v4971 = vrcp.pop %v4783
      %v4972 = vrcp.pop %v4786
      %v4973 = vrcp.pop %v4789
      %v4974 = vrcp.pop %v4792
      %v4975 = vrcp.pop %v4795
      %v4976 = vrcp.pop %v4798
      %v4977 = vrcp.pop %v4801
      %v4978 = vrcp.pop %v4804
      %v4979 = vrcp.pop %v4807
      %v4980 = vrcp.pop %v4810
      %v4981 = vrcp.pop %v4813
      %v4982 = vrcp.pop %v4816
      %v4983 = vrcp.pop %v4819
      %v4984 = vrcp.pop %v4822
      %v4985 = vrcp.pop %v4825
      %v4986 = vrcp.pop %v4828
      %v4987 = vrcp.pop %v4831
      %v4988 = vrcp.pop %v4834
      %v4989 = vrcp.pop %v4837
      %v4990 = vrcp.pop %v4840
      %v4991 = vrcp.pop %v4843
      %v4992 = vrcp.pop %v4846
      %v4993 = vrcp.pop %v4849
      %v4994 = vrcp.pop %v4852
      %v4995 = vrcp.pop %v4855
      %v4996 = vrcp.pop %v4858
      %v4997 = vrcp.pop %v4861
      %v4998 = vrcp.pop %v4864
      %v4999 = vrcp.pop %v4867
      %v5000 = vrcp.pop %v4870
      %v5001 = vrcp.pop %v4873
      %v5002 = vmul.f32 %v4492, %v4874
      %v5003 = vmul.f32 %v4495, %v4875
      %v5004 = vmul.f32 %v4498, %v4876
      %v5005 = vmul.f32 %v4501, %v4877
      %v5006 = vmul.f32 %v4504, %v4878
      %v5007 = vmul.f32 %v4507, %v4879
      %v5008 = vmul.f32 %v4510, %v4880
      %v5009 = vmul.f32 %v4513, %v4881
      %v5010 = vmul.f32 %v4516, %v4882
      %v5011 = vmul.f32 %v4519, %v4883
      %v5012 = vmul.f32 %v4522, %v4884
      %v5013 = vmul.f32 %v4525, %v4885
      %v5014 = vmul.f32 %v4528, %v4886
      %v5015 = vmul.f32 %v4531, %v4887
      %v5016 = vmul.f32 %v4534, %v4888
      %v5017 = vmul.f32 %v4537, %v4889
      %v5018 = vmul.f32 %v4540, %v4890
      %v5019 = vmul.f32 %v4543, %v4891
      %v5020 = vmul.f32 %v4546, %v4892
      %v5021 = vmul.f32 %v4549, %v4893
      %v5022 = vmul.f32 %v4552, %v4894
      %v5023 = vmul.f32 %v4555, %v4895
      %v5024 = vmul.f32 %v4558, %v4896
      %v5025 = vmul.f32 %v4561, %v4897
      %v5026 = vmul.f32 %v4564, %v4898
      %v5027 = vmul.f32 %v4567, %v4899
      %v5028 = vmul.f32 %v4570, %v4900
      %v5029 = vmul.f32 %v4573, %v4901
      %v5030 = vmul.f32 %v4576, %v4902
      %v5031 = vmul.f32 %v4579, %v4903
      %v5032 = vmul.f32 %v4582, %v4904
      %v5033 = vmul.f32 %v4585, %v4905
      %v5034 = vmul.f32 %v4588, %v4906
      %v5035 = vmul.f32 %v4591, %v4907
      %v5036 = vmul.f32 %v4594, %v4908
      %v5037 = vmul.f32 %v4597, %v4909
      %v5038 = vmul.f32 %v4600, %v4910
      %v5039 = vmul.f32 %v4603, %v4911
      %v5040 = vmul.f32 %v4606, %v4912
      %v5041 = vmul.f32 %v4609, %v4913
      %v5042 = vmul.f32 %v4612, %v4914
      %v5043 = vmul.f32 %v4615, %v4915
      %v5044 = vmul.f32 %v4618, %v4916
      %v5045 = vmul.f32 %v4621, %v4917
      %v5046 = vmul.f32 %v4624, %v4918
      %v5047 = vmul.f32 %v4627, %v4919
      %v5048 = vmul.f32 %v4630, %v4920
      %v5049 = vmul.f32 %v4633, %v4921
      %v5050 = vmul.f32 %v4636, %v4922
      %v5051 = vmul.f32 %v4639, %v4923
      %v5052 = vmul.f32 %v4642, %v4924
      %v5053 = vmul.f32 %v4645, %v4925
      %v5054 = vmul.f32 %v4648, %v4926
      %v5055 = vmul.f32 %v4651, %v4927
      %v5056 = vmul.f32 %v4654, %v4928
      %v5057 = vmul.f32 %v4657, %v4929
      %v5058 = vmul.f32 %v4660, %v4930
      %v5059 = vmul.f32 %v4663, %v4931
      %v5060 = vmul.f32 %v4666, %v4932
      %v5061 = vmul.f32 %v4669, %v4933
      %v5062 = vmul.f32 %v4672, %v4934
      %v5063 = vmul.f32 %v4675, %v4935
      %v5064 = vmul.f32 %v4678, %v4936
      %v5065 = vmul.f32 %v4681, %v4937
      %v5066 = vmul.f32 %v4684, %v4938
      %v5067 = vmul.f32 %v4687, %v4939
      %v5068 = vmul.f32 %v4690, %v4940
      %v5069 = vmul.f32 %v4693, %v4941
      %v5070 = vmul.f32 %v4696, %v4942
      %v5071 = vmul.f32 %v4699, %v4943
      %v5072 = vmul.f32 %v4702, %v4944
      %v5073 = vmul.f32 %v4705, %v4945
      %v5074 = vmul.f32 %v4708, %v4946
      %v5075 = vmul.f32 %v4711, %v4947
      %v5076 = vmul.f32 %v4714, %v4948
      %v5077 = vmul.f32 %v4717, %v4949
      %v5078 = vmul.f32 %v4720, %v4950
      %v5079 = vmul.f32 %v4723, %v4951
      %v5080 = vmul.f32 %v4726, %v4952
      %v5081 = vmul.f32 %v4729, %v4953
      %v5082 = vmul.f32 %v4732, %v4954
      %v5083 = vmul.f32 %v4735, %v4955
      %v5084 = vmul.f32 %v4738, %v4956
      %v5085 = vmul.f32 %v4741, %v4957
      %v5086 = vmul.f32 %v4744, %v4958
      %v5087 = vmul.f32 %v4747, %v4959
      %v5088 = vmul.f32 %v4750, %v4960
      %v5089 = vmul.f32 %v4753, %v4961
      %v5090 = vmul.f32 %v4756, %v4962
      %v5091 = vmul.f32 %v4759, %v4963
      %v5092 = vmul.f32 %v4762, %v4964
      %v5093 = vmul.f32 %v4765, %v4965
      %v5094 = vmul.f32 %v4768, %v4966
      %v5095 = vmul.f32 %v4771, %v4967
      %v5096 = vmul.f32 %v4774, %v4968
      %v5097 = vmul.f32 %v4777, %v4969
      %v5098 = vmul.f32 %v4780, %v4970
      %v5099 = vmul.f32 %v4783, %v4971
      %v5100 = vmul.f32 %v4786, %v4972
      %v5101 = vmul.f32 %v4789, %v4973
      %v5102 = vmul.f32 %v4792, %v4974
      %v5103 = vmul.f32 %v4795, %v4975
      %v5104 = vmul.f32 %v4798, %v4976
      %v5105 = vmul.f32 %v4801, %v4977
      %v5106 = vmul.f32 %v4804, %v4978
      %v5107 = vmul.f32 %v4807, %v4979
      %v5108 = vmul.f32 %v4810, %v4980
      %v5109 = vmul.f32 %v4813, %v4981
      %v5110 = vmul.f32 %v4816, %v4982
      %v5111 = vmul.f32 %v4819, %v4983
      %v5112 = vmul.f32 %v4822, %v4984
      %v5113 = vmul.f32 %v4825, %v4985
      %v5114 = vmul.f32 %v4828, %v4986
      %v5115 = vmul.f32 %v4831, %v4987
      %v5116 = vmul.f32 %v4834, %v4988
      %v5117 = vmul.f32 %v4837, %v4989
      %v5118 = vmul.f32 %v4840, %v4990
      %v5119 = vmul.f32 %v4843, %v4991
      %v5120 = vmul.f32 %v4846, %v4992
      %v5121 = vmul.f32 %v4849, %v4993
      %v5122 = vmul.f32 %v4852, %v4994
      %v5123 = vmul.f32 %v4855, %v4995
      %v5124 = vmul.f32 %v4858, %v4996
      %v5125 = vmul.f32 %v4861, %v4997
      %v5126 = vmul.f32 %v4864, %v4998
      %v5127 = vmul.f32 %v4867, %v4999
      %v5128 = vmul.f32 %v4870, %v5000
      %v5129 = vmul.f32 %v4873, %v5001
      %v5130 = vsub.f32 2.0, %v5002
      %v5131 = vsub.f32 2.0, %v5003
      %v5132 = vsub.f32 2.0, %v5004
      %v5133 = vsub.f32 2.0, %v5005
      %v5134 = vsub.f32 2.0, %v5006
      %v5135 = vsub.f32 2.0, %v5007
      %v5136 = vsub.f32 2.0, %v5008
      %v5137 = vsub.f32 2.0, %v5009
      %v5138 = vsub.f32 2.0, %v5010
      %v5139 = vsub.f32 2.0, %v5011
      %v5140 = vsub.f32 2.0, %v5012
      %v5141 = vsub.f32 2.0, %v5013
      %v5142 = vsub.f32 2.0, %v5014
      %v5143 = vsub.f32 2.0, %v5015
      %v5144 = vsub.f32 2.0, %v5016
      %v5145 = vsub.f32 2.0, %v5017
      %v5146 = vsub.f32 2.0, %v5018
      %v5147 = vsub.f32 2.0, %v5019
      %v5148 = vsub.f32 2.0, %v5020
      %v5149 = vsub.f32 2.0, %v5021
      %v5150 = vsub.f32 2.0, %v5022
      %v5151 = vsub.f32 2.0, %v5023
      %v5152 = vsub.f32 2.0, %v5024
      %v5153 = vsub.f32 2.0, %v5025
      %v5154 = vsub.f32 2.0, %v5026
      %v5155 = vsub.f32 2.0, %v5027
      %v5156 = vsub.f32 2.0, %v5028
      %v5157 = vsub.f32 2.0, %v5029
      %v5158 = vsub.f32 2.0, %v5030
      %v5159 = vsub.f32 2.0, %v5031
      %v5160 = vsub.f32 2.0, %v5032
      %v5161 = vsub.f32 2.0, %v5033
      %v5162 = vsub.f32 2.0, %v5034
      %v5163 = vsub.f32 2.0, %v5035
      %v5164 = vsub.f32 2.0, %v5036
      %v5165 = vsub.f32 2.0, %v5037
      %v5166 = vsub.f32 2.0, %v5038
      %v5167 = vsub.f32 2.0, %v5039
      %v5168 = vsub.f32 2.0, %v5040
      %v5169 = vsub.f32 2.0, %v5041
      %v5170 = vsub.f32 2.0, %v5042
      %v5171 = vsub.f32 2.0, %v5043
      %v5172 = vsub.f32 2.0, %v5044
      %v5173 = vsub.f32 2.0, %v5045
      %v5174 = vsub.f32 2.0, %v5046
      %v5175 = vsub.f32 2.0, %v5047
      %v5176 = vsub.f32 2.0, %v5048
      %v5177 = vsub.f32 2.0, %v5049
      %v5178 = vsub.f32 2.0, %v5050
      %v5179 = vsub.f32 2.0, %v5051
      %v5180 = vsub.f32 2.0, %v5052
      %v5181 = vsub.f32 2.0, %v5053
      %v5182 = vsub.f32 2.0, %v5054
      %v5183 = vsub.f32 2.0, %v5055
      %v5184 = vsub.f32 2.0, %v5056
      %v5185 = vsub.f32 2.0, %v5057
      %v5186 = vsub.f32 2.0, %v5058
      %v5187 = vsub.f32 2.0, %v5059
      %v5188 = vsub.f32 2.0, %v5060
      %v5189 = vsub.f32 2.0, %v5061
      %v5190 = vsub.f32 2.0, %v5062
      %v5191 = vsub.f32 2.0, %v5063
      %v5192 = vsub.f32 2.0, %v5064
      %v5193 = vsub.f32 2.0, %v5065
      %v5194 = vsub.f32 2.0, %v5066
      %v5195 = vsub.f32 2.0, %v5067
      %v5196 = vsub.f32 2.0, %v5068
      %v5197 = vsub.f32 2.0, %v5069
      %v5198 = vsub.f32 2.0, %v5070
      %v5199 = vsub.f32 2.0, %v5071
      %v5200 = vsub.f32 2.0, %v5072
      %v5201 = vsub.f32 2.0, %v5073
      %v5202 = vsub.f32 2.0, %v5074
      %v5203 = vsub.f32 2.0, %v5075
      %v5204 = vsub.f32 2.0, %v5076
      %v5205 = vsub.f32 2.0, %v5077
      %v5206 = vsub.f32 2.0, %v5078
      %v5207 = vsub.f32 2.0, %v5079
      %v5208 = vsub.f32 2.0, %v5080
      %v5209 = vsub.f32 2.0, %v5081
      %v5210 = vsub.f32 2.0, %v5082
      %v5211 = vsub.f32 2.0, %v5083
      %v5212 = vsub.f32 2.0, %v5084
      %v5213 = vsub.f32 2.0, %v5085
      %v5214 = vsub.f32 2.0, %v5086
      %v5215 = vsub.f32 2.0, %v5087
      %v5216 = vsub.f32 2.0, %v5088
      %v5217 = vsub.f32 2.0, %v5089
      %v5218 = vsub.f32 2.0, %v5090
      %v5219 = vsub.f32 2.0, %v5091
      %v5220 = vsub.f32 2.0, %v5092
      %v5221 = vsub.f32 2.0, %v5093
      %v5222 = vsub.f32 2.0, %v5094
      %v5223 = vsub.f32 2.0, %v5095
      %v5224 = vsub.f32 2.0, %v5096
      %v5225 = vsub.f32 2.0, %v5097
      %v5226 = vsub.f32 2.0, %v5098
      %v5227 = vsub.f32 2.0, %v5099
      %v5228 = vsub.f32 2.0, %v5100
      %v5229 = vsub.f32 2.0, %v5101
      %v5230 = vsub.f32 2.0, %v5102
      %v5231 = vsub.f32 2.0, %v5103
      %v5232 = vsub.f32 2.0, %v5104
      %v5233 = vsub.f32 2.0, %v5105
      %v5234 = vsub.f32 2.0, %v5106
      %v5235 = vsub.f32 2.0, %v5107
      %v5236 = vsub.f32 2.0, %v5108
      %v5237 = vsub.f32 2.0, %v5109
      %v5238 = vsub.f32 2.0, %v5110
      %v5239 = vsub.f32 2.0, %v5111
      %v5240 = vsub.f32 2.0, %v5112
      %v5241 = vsub.f32 2.0, %v5113
      %v5242 = vsub.f32 2.0, %v5114
      %v5243 = vsub.f32 2.0, %v5115
      %v5244 = vsub.f32 2.0, %v5116
      %v5245 = vsub.f32 2.0, %v5117
      %v5246 = vsub.f32 2.0, %v5118
      %v5247 = vsub.f32 2.0, %v5119
      %v5248 = vsub.f32 2.0, %v5120
      %v5249 = vsub.f32 2.0, %v5121
      %v5250 = vsub.f32 2.0, %v5122
      %v5251 = vsub.f32 2.0, %v5123
      %v5252 = vsub.f32 2.0, %v5124
      %v5253 = vsub.f32 2.0, %v5125
      %v5254 = vsub.f32 2.0, %v5126
      %v5255 = vsub.f32 2.0, %v5127
      %v5256 = vsub.f32 2.0, %v5128
      %v5257 = vsub.f32 2.0, %v5129
      %v5258 = vmul.f32 %v4874, %v5130
      %v5259 = vmul.f32 %v4875, %v5131
      %v5260 = vmul.f32 %v4876, %v5132
      %v5261 = vmul.f32 %v4877, %v5133
      %v5262 = vmul.f32 %v4878, %v5134
      %v5263 = vmul.f32 %v4879, %v5135
      %v5264 = vmul.f32 %v4880, %v5136
      %v5265 = vmul.f32 %v4881, %v5137
      %v5266 = vmul.f32 %v4882, %v5138
      %v5267 = vmul.f32 %v4883, %v5139
      %v5268 = vmul.f32 %v4884, %v5140
      %v5269 = vmul.f32 %v4885, %v5141
      %v5270 = vmul.f32 %v4886, %v5142
      %v5271 = vmul.f32 %v4887, %v5143
      %v5272 = vmul.f32 %v4888, %v5144
      %v5273 = vmul.f32 %v4889, %v5145
      %v5274 = vmul.f32 %v4890, %v5146
      %v5275 = vmul.f32 %v4891, %v5147
      %v5276 = vmul.f32 %v4892, %v5148
      %v5277 = vmul.f32 %v4893, %v5149
      %v5278 = vmul.f32 %v4894, %v5150
      %v5279 = vmul.f32 %v4895, %v5151
      %v5280 = vmul.f32 %v4896, %v5152
      %v5281 = vmul.f32 %v4897, %v5153
      %v5282 = vmul.f32 %v4898, %v5154
      %v5283 = vmul.f32 %v4899, %v5155
      %v5284 = vmul.f32 %v4900, %v5156
      %v5285 = vmul.f32 %v4901, %v5157
      %v5286 = vmul.f32 %v4902, %v5158
      %v5287 = vmul.f32 %v4903, %v5159
      %v5288 = vmul.f32 %v4904, %v5160
      %v5289 = vmul.f32 %v4905, %v5161
      %v5290 = vmul.f32 %v4906, %v5162
      %v5291 = vmul.f32 %v4907, %v5163
      %v5292 = vmul.f32 %v4908, %v5164
      %v5293 = vmul.f32 %v4909, %v5165
      %v5294 = vmul.f32 %v4910, %v5166
      %v5295 = vmul.f32 %v4911, %v5167
      %v5296 = vmul.f32 %v4912, %v5168
      %v5297 = vmul.f32 %v4913, %v5169
      %v5298 = vmul.f32 %v4914, %v5170
      %v5299 = vmul.f32 %v4915, %v5171
      %v5300 = vmul.f32 %v4916, %v5172
      %v5301 = vmul.f32 %v4917, %v5173
      %v5302 = vmul.f32 %v4918, %v5174
      %v5303 = vmul.f32 %v4919, %v5175
      %v5304 = vmul.f32 %v4920, %v5176
      %v5305 = vmul.f32 %v4921, %v5177
      %v5306 = vmul.f32 %v4922, %v5178
      %v5307 = vmul.f32 %v4923, %v5179
      %v5308 = vmul.f32 %v4924, %v5180
      %v5309 = vmul.f32 %v4925, %v5181
      %v5310 = vmul.f32 %v4926, %v5182
      %v5311 = vmul.f32 %v4927, %v5183
      %v5312 = vmul.f32 %v4928, %v5184
      %v5313 = vmul.f32 %v4929, %v5185
      %v5314 = vmul.f32 %v4930, %v5186
      %v5315 = vmul.f32 %v4931, %v5187
      %v5316 = vmul.f32 %v4932, %v5188
      %v5317 = vmul.f32 %v4933, %v5189
      %v5318 = vmul.f32 %v4934, %v5190
      %v5319 = vmul.f32 %v4935, %v5191
      %v5320 = vmul.f32 %v4936, %v5192
      %v5321 = vmul.f32 %v4937, %v5193
      %v5322 = vmul.f32 %v4938, %v5194
      %v5323 = vmul.f32 %v4939, %v5195
      %v5324 = vmul.f32 %v4940, %v5196
      %v5325 = vmul.f32 %v4941, %v5197
      %v5326 = vmul.f32 %v4942, %v5198
      %v5327 = vmul.f32 %v4943, %v5199
      %v5328 = vmul.f32 %v4944, %v5200
      %v5329 = vmul.f32 %v4945, %v5201
      %v5330 = vmul.f32 %v4946, %v5202
      %v5331 = vmul.f32 %v4947, %v5203
      %v5332 = vmul.f32 %v4948, %v5204
      %v5333 = vmul.f32 %v4949, %v5205
      %v5334 = vmul.f32 %v4950, %v5206
      %v5335 = vmul.f32 %v4951, %v5207
      %v5336 = vmul.f32 %v4952, %v5208
      %v5337 = vmul.f32 %v4953, %v5209
      %v5338 = vmul.f32 %v4954, %v5210
      %v5339 = vmul.f32 %v4955, %v5211
      %v5340 = vmul.f32 %v4956, %v5212
      %v5341 = vmul.f32 %v4957, %v5213
      %v5342 = vmul.f32 %v4958, %v5214
      %v5343 = vmul.f32 %v4959, %v5215
      %v5344 = vmul.f32 %v4960, %v5216
      %v5345 = vmul.f32 %v4961, %v5217
      %v5346 = vmul.f32 %v4962, %v5218
      %v5347 = vmul.f32 %v4963, %v5219
      %v5348 = vmul.f32 %v4964, %v5220
      %v5349 = vmul.f32 %v4965, %v5221
      %v5350 = vmul.f32 %v4966, %v5222
      %v5351 = vmul.f32 %v4967, %v5223
      %v5352 = vmul.f32 %v4968, %v5224
      %v5353 = vmul.f32 %v4969, %v5225
      %v5354 = vmul.f32 %v4970, %v5226
      %v5355 = vmul.f32 %v4971, %v5227
      %v5356 = vmul.f32 %v4972, %v5228
      %v5357 = vmul.f32 %v4973, %v5229
      %v5358 = vmul.f32 %v4974, %v5230
      %v5359 = vmul.f32 %v4975, %v5231
      %v5360 = vmul.f32 %v4976, %v5232
      %v5361 = vmul.f32 %v4977, %v5233
      %v5362 = vmul.f32 %v4978, %v5234
      %v5363 = vmul.f32 %v4979, %v5235
      %v5364 = vmul.f32 %v4980, %v5236
      %v5365 = vmul.f32 %v4981, %v5237
      %v5366 = vmul.f32 %v4982, %v5238
      %v5367 = vmul.f32 %v4983, %v5239
      %v5368 = vmul.f32 %v4984, %v5240
      %v5369 = vmul.f32 %v4985, %v5241
      %v5370 = vmul.f32 %v4986, %v5242
      %v5371 = vmul.f32 %v4987, %v5243
      %v5372 = vmul.f32 %v4988, %v5244
      %v5373 = vmul.f32 %v4989, %v5245
      %v5374 = vmul.f32 %v4990, %v5246
      %v5375 = vmul.f32 %v4991, %v5247
      %v5376 = vmul.f32 %v4992, %v5248
      %v5377 = vmul.f32 %v4993, %v5249
      %v5378 = vmul.f32 %v4994, %v5250
      %v5379 = vmul.f32 %v4995, %v5251
      %v5380 = vmul.f32 %v4996, %v5252
      %v5381 = vmul.f32 %v4997, %v5253
      %v5382 = vmul.f32 %v4998, %v5254
      %v5383 = vmul.f32 %v4999, %v5255
      %v5384 = vmul.f32 %v5000, %v5256
      %v5385 = vmul.f32 %v5001, %v5257
      %v5386 = vmul.f32 %v4235, %v5258
      %v5387 = vmul.f32 %v4237, %v5259
      %v5388 = vmul.f32 %v4239, %v5260
      %v5389 = vmul.f32 %v4241, %v5261
      %v5390 = vmul.f32 %v4243, %v5262
      %v5391 = vmul.f32 %v4245, %v5263
      %v5392 = vmul.f32 %v4247, %v5264
      %v5393 = vmul.f32 %v4249, %v5265
      %v5394 = vmul.f32 %v4251, %v5266
      %v5395 = vmul.f32 %v4253, %v5267
      %v5396 = vmul.f32 %v4255, %v5268
      %v5397 = vmul.f32 %v4257, %v5269
      %v5398 = vmul.f32 %v4259, %v5270
      %v5399 = vmul.f32 %v4261, %v5271
      %v5400 = vmul.f32 %v4263, %v5272
      %v5401 = vmul.f32 %v4265, %v5273
      %v5402 = vmul.f32 %v4267, %v5274
      %v5403 = vmul.f32 %v4269, %v5275
      %v5404 = vmul.f32 %v4271, %v5276
      %v5405 = vmul.f32 %v4273, %v5277
      %v5406 = vmul.f32 %v4275, %v5278
      %v5407 = vmul.f32 %v4277, %v5279
      %v5408 = vmul.f32 %v4279, %v5280
      %v5409 = vmul.f32 %v4281, %v5281
      %v5410 = vmul.f32 %v4283, %v5282
      %v5411 = vmul.f32 %v4285, %v5283
      %v5412 = vmul.f32 %v4287, %v5284
      %v5413 = vmul.f32 %v4289, %v5285
      %v5414 = vmul.f32 %v4291, %v5286
      %v5415 = vmul.f32 %v4293, %v5287
      %v5416 = vmul.f32 %v4295, %v5288
      %v5417 = vmul.f32 %v4297, %v5289
      %v5418 = vmul.f32 %v4299, %v5290
      %v5419 = vmul.f32 %v4301, %v5291
      %v5420 = vmul.f32 %v4303, %v5292
      %v5421 = vmul.f32 %v4305, %v5293
      %v5422 = vmul.f32 %v4307, %v5294
      %v5423 = vmul.f32 %v4309, %v5295
      %v5424 = vmul.f32 %v4311, %v5296
      %v5425 = vmul.f32 %v4313, %v5297
      %v5426 = vmul.f32 %v4315, %v5298
      %v5427 = vmul.f32 %v4317, %v5299
      %v5428 = vmul.f32 %v4319, %v5300
      %v5429 = vmul.f32 %v4321, %v5301
      %v5430 = vmul.f32 %v4323, %v5302
      %v5431 = vmul.f32 %v4325, %v5303
      %v5432 = vmul.f32 %v4327, %v5304
      %v5433 = vmul.f32 %v4329, %v5305
      %v5434 = vmul.f32 %v4331, %v5306
      %v5435 = vmul.f32 %v4333, %v5307
      %v5436 = vmul.f32 %v4335, %v5308
      %v5437 = vmul.f32 %v4337, %v5309
      %v5438 = vmul.f32 %v4339, %v5310
      %v5439 = vmul.f32 %v4341, %v5311
      %v5440 = vmul.f32 %v4343, %v5312
      %v5441 = vmul.f32 %v4345, %v5313
      %v5442 = vmul.f32 %v4347, %v5314
      %v5443 = vmul.f32 %v4349, %v5315
      %v5444 = vmul.f32 %v4351, %v5316
      %v5445 = vmul.f32 %v4353, %v5317
      %v5446 = vmul.f32 %v4355, %v5318
      %v5447 = vmul.f32 %v4357, %v5319
      %v5448 = vmul.f32 %v4359, %v5320
      %v5449 = vmul.f32 %v4361, %v5321
      %v5450 = vmul.f32 %v4363, %v5322
      %v5451 = vmul.f32 %v4365, %v5323
      %v5452 = vmul.f32 %v4367, %v5324
      %v5453 = vmul.f32 %v4369, %v5325
      %v5454 = vmul.f32 %v4371, %v5326
      %v5455 = vmul.f32 %v4373, %v5327
      %v5456 = vmul.f32 %v4375, %v5328
      %v5457 = vmul.f32 %v4377, %v5329
      %v5458 = vmul.f32 %v4379, %v5330
      %v5459 = vmul.f32 %v4381, %v5331
      %v5460 = vmul.f32 %v4383, %v5332
      %v5461 = vmul.f32 %v4385, %v5333
      %v5462 = vmul.f32 %v4387, %v5334
      %v5463 = vmul.f32 %v4389, %v5335
      %v5464 = vmul.f32 %v4391, %v5336
      %v5465 = vmul.f32 %v4393, %v5337
      %v5466 = vmul.f32 %v4395, %v5338
      %v5467 = vmul.f32 %v4397, %v5339
      %v5468 = vmul.f32 %v4399, %v5340
      %v5469 = vmul.f32 %v4401, %v5341
      %v5470 = vmul.f32 %v4403, %v5342
      %v5471 = vmul.f32 %v4405, %v5343
      %v5472 = vmul.f32 %v4407, %v5344
      %v5473 = vmul.f32 %v4409, %v5345
      %v5474 = vmul.f32 %v4411, %v5346
      %v5475 = vmul.f32 %v4413, %v5347
      %v5476 = vmul.f32 %v4415, %v5348
      %v5477 = vmul.f32 %v4417, %v5349
      %v5478 = vmul.f32 %v4419, %v5350
      %v5479 = vmul.f32 %v4421, %v5351
      %v5480 = vmul.f32 %v4423, %v5352
      %v5481 = vmul.f32 %v4425, %v5353
      %v5482 = vmul.f32 %v4427, %v5354
      %v5483 = vmul.f32 %v4429, %v5355
      %v5484 = vmul.f32 %v4431, %v5356
      %v5485 = vmul.f32 %v4433, %v5357
      %v5486 = vmul.f32 %v4435, %v5358
      %v5487 = vmul.f32 %v4437, %v5359
      %v5488 = vmul.f32 %v4439, %v5360
      %v5489 = vmul.f32 %v4441, %v5361
      %v5490 = vmul.f32 %v4443, %v5362
      %v5491 = vmul.f32 %v4445, %v5363
      %v5492 = vmul.f32 %v4447, %v5364
      %v5493 = vmul.f32 %v4449, %v5365
      %v5494 = vmul.f32 %v4451, %v5366
      %v5495 = vmul.f32 %v4453, %v5367
      %v5496 = vmul.f32 %v4455, %v5368
      %v5497 = vmul.f32 %v4457, %v5369
      %v5498 = vmul.f32 %v4459, %v5370
      %v5499 = vmul.f32 %v4461, %v5371
      %v5500 = vmul.f32 %v4463, %v5372
      %v5501 = vmul.f32 %v4465, %v5373
      %v5502 = vmul.f32 %v4467, %v5374
      %v5503 = vmul.f32 %v4469, %v5375
      %v5504 = vmul.f32 %v4471, %v5376
      %v5505 = vmul.f32 %v4473, %v5377
      %v5506 = vmul.f32 %v4475, %v5378
      %v5507 = vmul.f32 %v4477, %v5379
      %v5508 = vmul.f32 %v4479, %v5380
      %v5509 = vmul.f32 %v4481, %v5381
      %v5510 = vmul.f32 %v4483, %v5382
      %v5511 = vmul.f32 %v4485, %v5383
      %v5512 = vmul.f32 %v4487, %v5384
      %v5513 = vmul.f32 %v4489, %v5385
      %5514 = vrot.lane.b32.xlu0 %v890, 96
      %v5515 = vpop.permute.xlu0 %5514
      %5516 = vrot.lane.b32.xlu0 %v895, 96
      %v5517 = vpop.permute.xlu0 %5516
      %5518 = vrot.lane.b32.xlu0 %v900, 96
      %v5519 = vpop.permute.xlu0 %5518
      %5520 = vrot.lane.b32.xlu0 %v905, 96
      %v5521 = vpop.permute.xlu0 %5520
      %5522 = vrot.lane.b32.xlu0 %v910, 96
      %v5523 = vpop.permute.xlu0 %5522
      %5524 = vrot.lane.b32.xlu0 %v915, 96
      %v5525 = vpop.permute.xlu0 %5524
      %5526 = vrot.lane.b32.xlu0 %v920, 96
      %v5527 = vpop.permute.xlu0 %5526
      %5528 = vrot.lane.b32.xlu0 %v925, 96
      %v5529 = vpop.permute.xlu0 %5528
      %v5539 = vsel %vm3721, %v5386, 0
      %v5542 = vsel %vm3721, %v5387, 0
      %v5545 = vsel %vm3721, %v5388, 0
      %v5548 = vsel %vm3721, %v5389, 0
      %v5551 = vsel %vm3721, %v5390, 0
      %v5554 = vsel %vm3721, %v5391, 0
      %v5557 = vsel %vm3721, %v5392, 0
      %v5560 = vsel %vm3721, %v5393, 0
      %5562 = vmatprep.subr.mxu0 0.0
      %5563 = vmatpush1.msra.mxu0 0.0
      %5564 = vmatprep.subr.mxu0 0.0
      %5565 = vmatpush1.msra.mxu0 0.0
      %5566 = vmatprep.subr.mxu0 0.0
      %5567 = vmatpush1.msra.mxu0 0.0
      %5568 = vmatprep.subr.mxu0 0.0
      %5569 = vmatpush1.msra.mxu0 0.0
      %5570 = vmatprep.subr.mxu0 0.0
      %5571 = vmatpush1.msra.mxu0 0.0
      %5572 = vmatprep.subr.mxu0 0.0
      %5573 = vmatpush1.msra.mxu0 0.0
      %5574 = vmatprep.subr.mxu0 0.0
      %5575 = vmatpush1.msra.mxu0 0.0
      %5576 = vmatprep.subr.mxu0 0.0
      %5577 = vmatpush1.msra.mxu0 0.0
      %5578 = vmatprep.subr.mxu0 0.0
      %5579 = vmatpush1.msra.mxu0 %v5529
      %5580 = vmatprep.subr.mxu0 0.0
      %5581 = vmatpush1.msra.mxu0 %v5527
      %5582 = vmatprep.subr.mxu0 0.0
      %5583 = vmatpush1.msra.mxu0 %v5525
      %5584 = vmatprep.subr.mxu0 0.0
      %5585 = vmatpush1.msra.mxu0 %v5523
      %5586 = vmatprep.subr.mxu0 0.0
      %5587 = vmatpush1.msra.mxu0 %v5521
      %5588 = vmatprep.subr.mxu0 0.0
      %5589 = vmatpush1.msra.mxu0 %v5519
      %5590 = vmatprep.subr.mxu0 0.0
      %5591 = vmatpush1.msra.mxu0 %v5517
      %5592 = vmatprep.subr.mxu0 0.0
      %5593 = vmatpush1.msra.mxu0 %v5515
      %5594 = vmatprep.subr.mxu0 0.0
      %5595 = vmatpush2.msra.mxu0 0.0
      %5596 = vmatprep.subr.mxu0 0.0
      %5597 = vmatpush2.msra.mxu0 0.0
      %5598 = vmatprep.subr.mxu0 0.0
      %5599 = vmatpush2.msra.mxu0 0.0
      %5600 = vmatprep.subr.mxu0 0.0
      %5601 = vmatpush2.msra.mxu0 0.0
      %5602 = vmatprep.subr.mxu0 0.0
      %5603 = vmatpush2.msra.mxu0 0.0
      %5604 = vmatprep.subr.mxu0 0.0
      %5605 = vmatpush2.msra.mxu0 0.0
      %5606 = vmatprep.subr.mxu0 0.0
      %5607 = vmatpush2.msra.mxu0 0.0
      %5608 = vmatprep.subr.mxu0 0.0
      %5609 = vmatpush2.msra.mxu0 0.0
      %5610 = vmatprep.subr.mxu0 0.0
      %5611 = vmatpush2.msra.mxu0 0.0
      %5612 = vmatprep.subr.mxu0 0.0
      %5613 = vmatpush2.msra.mxu0 0.0
      %5614 = vmatprep.subr.mxu0 0.0
      %5615 = vmatpush2.msra.mxu0 0.0
      %5616 = vmatprep.subr.mxu0 0.0
      %5617 = vmatpush2.msra.mxu0 0.0
      %5618 = vmatprep.subr.mxu0 0.0
      %5619 = vmatpush2.msra.mxu0 0.0
      %5620 = vmatprep.subr.mxu0 0.0
      %5621 = vmatpush2.msra.mxu0 0.0
      %5622 = vmatprep.subr.mxu0 0.0
      %5623 = vmatpush2.msra.mxu0 0.0
      %5624 = vmatprep.subr.mxu0 0.0
      %5625 = vmatpush2.msra.mxu0 0.0
      %5626 = vmatprep.mubr.f32.mxu0 0.0
      %5627 = vmatmul.mubr.f32.gmra.mxu0 %v5539
      %v5628 = vpop.f32.mrf.mxu0
      %v5629 = vadd.f32 0.0, %v5628
      %v5630 = vpop.f32.mrf.mxu0
      %5631 = vmatprep.mubr.f32.mxu0 0.0
      %5632 = vmatmul.mubr.f32.gmra.mxu0 %v5542
      %v5633 = vpop.f32.mrf.mxu0
      %v5634 = vadd.f32 0.0, %v5633
      %v5635 = vpop.f32.mrf.mxu0
      %5636 = vmatprep.mubr.f32.mxu0 0.0
      %5637 = vmatmul.mubr.f32.gmra.mxu0 %v5545
      %v5638 = vpop.f32.mrf.mxu0
      %v5639 = vadd.f32 0.0, %v5638
      %v5640 = vpop.f32.mrf.mxu0
      %5641 = vmatprep.mubr.f32.mxu0 0.0
      %5642 = vmatmul.mubr.f32.gmra.mxu0 %v5548
      %v5643 = vpop.f32.mrf.mxu0
      %v5644 = vadd.f32 0.0, %v5643
      %v5645 = vpop.f32.mrf.mxu0
      %5646 = vmatprep.mubr.f32.mxu0 0.0
      %5647 = vmatmul.mubr.f32.gmra.mxu0 %v5551
      %v5648 = vpop.f32.mrf.mxu0
      %v5649 = vadd.f32 0.0, %v5648
      %v5650 = vpop.f32.mrf.mxu0
      %5651 = vmatprep.mubr.f32.mxu0 0.0
      %5652 = vmatmul.mubr.f32.gmra.mxu0 %v5554
      %v5653 = vpop.f32.mrf.mxu0
      %v5654 = vadd.f32 0.0, %v5653
      %v5655 = vpop.f32.mrf.mxu0
      %5656 = vmatprep.mubr.f32.mxu0 0.0
      %5657 = vmatmul.mubr.f32.gmra.mxu0 %v5557
      %v5658 = vpop.f32.mrf.mxu0
      %v5659 = vadd.f32 0.0, %v5658
      %v5660 = vpop.f32.mrf.mxu0
      %5661 = vmatprep.mubr.f32.mxu0 0.0
      %5662 = vmatmul.mubr.f32.gmra.mxu0 %v5560
      %v5663 = vpop.f32.mrf.mxu0
      %v5664 = vadd.f32 0.0, %v5663
      %v5665 = vpop.f32.mrf.mxu0
      %5666 = vdwg.mxu0
      %5667 = vrot.lane.b32.xlu0 %v930, 96
      %v5668 = vpop.permute.xlu0 %5667
      %5669 = vrot.lane.b32.xlu0 %v935, 96
      %v5670 = vpop.permute.xlu0 %5669
      %5671 = vrot.lane.b32.xlu0 %v940, 96
      %v5672 = vpop.permute.xlu0 %5671
      %5673 = vrot.lane.b32.xlu0 %v945, 96
      %v5674 = vpop.permute.xlu0 %5673
      %5675 = vrot.lane.b32.xlu0 %v950, 96
      %v5676 = vpop.permute.xlu0 %5675
      %5677 = vrot.lane.b32.xlu0 %v955, 96
      %v5678 = vpop.permute.xlu0 %5677
      %5679 = vrot.lane.b32.xlu0 %v960, 96
      %v5680 = vpop.permute.xlu0 %5679
      %5681 = vrot.lane.b32.xlu0 %v965, 96
      %v5682 = vpop.permute.xlu0 %5681
      %v5692 = vsel %vm3721, %v5394, 0
      %v5695 = vsel %vm3721, %v5395, 0
      %v5698 = vsel %vm3721, %v5396, 0
      %v5701 = vsel %vm3721, %v5397, 0
      %v5704 = vsel %vm3721, %v5398, 0
      %v5707 = vsel %vm3721, %v5399, 0
      %v5710 = vsel %vm3721, %v5400, 0
      %v5713 = vsel %vm3721, %v5401, 0
      %5715 = vmatprep.subr.mxu0 0.0
      %5716 = vmatpush1.msra.mxu0 0.0
      %5717 = vmatprep.subr.mxu0 0.0
      %5718 = vmatpush1.msra.mxu0 0.0
      %5719 = vmatprep.subr.mxu0 0.0
      %5720 = vmatpush1.msra.mxu0 0.0
      %5721 = vmatprep.subr.mxu0 0.0
      %5722 = vmatpush1.msra.mxu0 0.0
      %5723 = vmatprep.subr.mxu0 0.0
      %5724 = vmatpush1.msra.mxu0 0.0
      %5725 = vmatprep.subr.mxu0 0.0
      %5726 = vmatpush1.msra.mxu0 0.0
      %5727 = vmatprep.subr.mxu0 0.0
      %5728 = vmatpush1.msra.mxu0 0.0
      %5729 = vmatprep.subr.mxu0 0.0
      %5730 = vmatpush1.msra.mxu0 0.0
      %5731 = vmatprep.subr.mxu0 0.0
      %5732 = vmatpush1.msra.mxu0 %v5682
      %5733 = vmatprep.subr.mxu0 0.0
      %5734 = vmatpush1.msra.mxu0 %v5680
      %5735 = vmatprep.subr.mxu0 0.0
      %5736 = vmatpush1.msra.mxu0 %v5678
      %5737 = vmatprep.subr.mxu0 0.0
      %5738 = vmatpush1.msra.mxu0 %v5676
      %5739 = vmatprep.subr.mxu0 0.0
      %5740 = vmatpush1.msra.mxu0 %v5674
      %5741 = vmatprep.subr.mxu0 0.0
      %5742 = vmatpush1.msra.mxu0 %v5672
      %5743 = vmatprep.subr.mxu0 0.0
      %5744 = vmatpush1.msra.mxu0 %v5670
      %5745 = vmatprep.subr.mxu0 0.0
      %5746 = vmatpush1.msra.mxu0 %v5668
      %5747 = vmatprep.subr.mxu0 0.0
      %5748 = vmatpush2.msra.mxu0 0.0
      %5749 = vmatprep.subr.mxu0 0.0
      %5750 = vmatpush2.msra.mxu0 0.0
      %5751 = vmatprep.subr.mxu0 0.0
      %5752 = vmatpush2.msra.mxu0 0.0
      %5753 = vmatprep.subr.mxu0 0.0
      %5754 = vmatpush2.msra.mxu0 0.0
      %5755 = vmatprep.subr.mxu0 0.0
      %5756 = vmatpush2.msra.mxu0 0.0
      %5757 = vmatprep.subr.mxu0 0.0
      %5758 = vmatpush2.msra.mxu0 0.0
      %5759 = vmatprep.subr.mxu0 0.0
      %5760 = vmatpush2.msra.mxu0 0.0
      %5761 = vmatprep.subr.mxu0 0.0
      %5762 = vmatpush2.msra.mxu0 0.0
      %5763 = vmatprep.subr.mxu0 0.0
      %5764 = vmatpush2.msra.mxu0 0.0
      %5765 = vmatprep.subr.mxu0 0.0
      %5766 = vmatpush2.msra.mxu0 0.0
      %5767 = vmatprep.subr.mxu0 0.0
      %5768 = vmatpush2.msra.mxu0 0.0
      %5769 = vmatprep.subr.mxu0 0.0
      %5770 = vmatpush2.msra.mxu0 0.0
      %5771 = vmatprep.subr.mxu0 0.0
      %5772 = vmatpush2.msra.mxu0 0.0
      %5773 = vmatprep.subr.mxu0 0.0
      %5774 = vmatpush2.msra.mxu0 0.0
      %5775 = vmatprep.subr.mxu0 0.0
      %5776 = vmatpush2.msra.mxu0 0.0
      %5777 = vmatprep.subr.mxu0 0.0
      %5778 = vmatpush2.msra.mxu0 0.0
      %5779 = vmatprep.mubr.f32.mxu0 0.0
      %5780 = vmatmul.mubr.f32.gmra.mxu0 %v5692
      %v5781 = vpop.f32.mrf.mxu0
      %v5782 = vadd.f32 0.0, %v5781
      %v5783 = vpop.f32.mrf.mxu0
      %5784 = vmatprep.mubr.f32.mxu0 0.0
      %5785 = vmatmul.mubr.f32.gmra.mxu0 %v5695
      %v5786 = vpop.f32.mrf.mxu0
      %v5787 = vadd.f32 0.0, %v5786
      %v5788 = vpop.f32.mrf.mxu0
      %5789 = vmatprep.mubr.f32.mxu0 0.0
      %5790 = vmatmul.mubr.f32.gmra.mxu0 %v5698
      %v5791 = vpop.f32.mrf.mxu0
      %v5792 = vadd.f32 0.0, %v5791
      %v5793 = vpop.f32.mrf.mxu0
      %5794 = vmatprep.mubr.f32.mxu0 0.0
      %5795 = vmatmul.mubr.f32.gmra.mxu0 %v5701
      %v5796 = vpop.f32.mrf.mxu0
      %v5797 = vadd.f32 0.0, %v5796
      %v5798 = vpop.f32.mrf.mxu0
      %5799 = vmatprep.mubr.f32.mxu0 0.0
      %5800 = vmatmul.mubr.f32.gmra.mxu0 %v5704
      %v5801 = vpop.f32.mrf.mxu0
      %v5802 = vadd.f32 0.0, %v5801
      %v5803 = vpop.f32.mrf.mxu0
      %5804 = vmatprep.mubr.f32.mxu0 0.0
      %5805 = vmatmul.mubr.f32.gmra.mxu0 %v5707
      %v5806 = vpop.f32.mrf.mxu0
      %v5807 = vadd.f32 0.0, %v5806
      %v5808 = vpop.f32.mrf.mxu0
      %5809 = vmatprep.mubr.f32.mxu0 0.0
      %5810 = vmatmul.mubr.f32.gmra.mxu0 %v5710
      %v5811 = vpop.f32.mrf.mxu0
      %v5812 = vadd.f32 0.0, %v5811
      %v5813 = vpop.f32.mrf.mxu0
      %5814 = vmatprep.mubr.f32.mxu0 0.0
      %5815 = vmatmul.mubr.f32.gmra.mxu0 %v5713
      %v5816 = vpop.f32.mrf.mxu0
      %v5817 = vadd.f32 0.0, %v5816
      %v5818 = vpop.f32.mrf.mxu0
      %5819 = vdwg.mxu0
      %5820 = vrot.lane.b32.xlu0 %v970, 96
      %v5821 = vpop.permute.xlu0 %5820
      %5822 = vrot.lane.b32.xlu0 %v975, 96
      %v5823 = vpop.permute.xlu0 %5822
      %5824 = vrot.lane.b32.xlu0 %v980, 96
      %v5825 = vpop.permute.xlu0 %5824
      %5826 = vrot.lane.b32.xlu0 %v985, 96
      %v5827 = vpop.permute.xlu0 %5826
      %5828 = vrot.lane.b32.xlu0 %v990, 96
      %v5829 = vpop.permute.xlu0 %5828
      %5830 = vrot.lane.b32.xlu0 %v995, 96
      %v5831 = vpop.permute.xlu0 %5830
      %5832 = vrot.lane.b32.xlu0 %v1000, 96
      %v5833 = vpop.permute.xlu0 %5832
      %5834 = vrot.lane.b32.xlu0 %v1005, 96
      %v5835 = vpop.permute.xlu0 %5834
      %v5845 = vsel %vm3721, %v5402, 0
      %v5848 = vsel %vm3721, %v5403, 0
      %v5851 = vsel %vm3721, %v5404, 0
      %v5854 = vsel %vm3721, %v5405, 0
      %v5857 = vsel %vm3721, %v5406, 0
      %v5860 = vsel %vm3721, %v5407, 0
      %v5863 = vsel %vm3721, %v5408, 0
      %v5866 = vsel %vm3721, %v5409, 0
      %5868 = vmatprep.subr.mxu0 0.0
      %5869 = vmatpush1.msra.mxu0 0.0
      %5870 = vmatprep.subr.mxu0 0.0
      %5871 = vmatpush1.msra.mxu0 0.0
      %5872 = vmatprep.subr.mxu0 0.0
      %5873 = vmatpush1.msra.mxu0 0.0
      %5874 = vmatprep.subr.mxu0 0.0
      %5875 = vmatpush1.msra.mxu0 0.0
      %5876 = vmatprep.subr.mxu0 0.0
      %5877 = vmatpush1.msra.mxu0 0.0
      %5878 = vmatprep.subr.mxu0 0.0
      %5879 = vmatpush1.msra.mxu0 0.0
      %5880 = vmatprep.subr.mxu0 0.0
      %5881 = vmatpush1.msra.mxu0 0.0
      %5882 = vmatprep.subr.mxu0 0.0
      %5883 = vmatpush1.msra.mxu0 0.0
      %5884 = vmatprep.subr.mxu0 0.0
      %5885 = vmatpush1.msra.mxu0 %v5835
      %5886 = vmatprep.subr.mxu0 0.0
      %5887 = vmatpush1.msra.mxu0 %v5833
      %5888 = vmatprep.subr.mxu0 0.0
      %5889 = vmatpush1.msra.mxu0 %v5831
      %5890 = vmatprep.subr.mxu0 0.0
      %5891 = vmatpush1.msra.mxu0 %v5829
      %5892 = vmatprep.subr.mxu0 0.0
      %5893 = vmatpush1.msra.mxu0 %v5827
      %5894 = vmatprep.subr.mxu0 0.0
      %5895 = vmatpush1.msra.mxu0 %v5825
      %5896 = vmatprep.subr.mxu0 0.0
      %5897 = vmatpush1.msra.mxu0 %v5823
      %5898 = vmatprep.subr.mxu0 0.0
      %5899 = vmatpush1.msra.mxu0 %v5821
      %5900 = vmatprep.subr.mxu0 0.0
      %5901 = vmatpush2.msra.mxu0 0.0
      %5902 = vmatprep.subr.mxu0 0.0
      %5903 = vmatpush2.msra.mxu0 0.0
      %5904 = vmatprep.subr.mxu0 0.0
      %5905 = vmatpush2.msra.mxu0 0.0
      %5906 = vmatprep.subr.mxu0 0.0
      %5907 = vmatpush2.msra.mxu0 0.0
      %5908 = vmatprep.subr.mxu0 0.0
      %5909 = vmatpush2.msra.mxu0 0.0
      %5910 = vmatprep.subr.mxu0 0.0
      %5911 = vmatpush2.msra.mxu0 0.0
      %5912 = vmatprep.subr.mxu0 0.0
      %5913 = vmatpush2.msra.mxu0 0.0
      %5914 = vmatprep.subr.mxu0 0.0
      %5915 = vmatpush2.msra.mxu0 0.0
      %5916 = vmatprep.subr.mxu0 0.0
      %5917 = vmatpush2.msra.mxu0 0.0
      %5918 = vmatprep.subr.mxu0 0.0
      %5919 = vmatpush2.msra.mxu0 0.0
      %5920 = vmatprep.subr.mxu0 0.0
      %5921 = vmatpush2.msra.mxu0 0.0
      %5922 = vmatprep.subr.mxu0 0.0
      %5923 = vmatpush2.msra.mxu0 0.0
      %5924 = vmatprep.subr.mxu0 0.0
      %5925 = vmatpush2.msra.mxu0 0.0
      %5926 = vmatprep.subr.mxu0 0.0
      %5927 = vmatpush2.msra.mxu0 0.0
      %5928 = vmatprep.subr.mxu0 0.0
      %5929 = vmatpush2.msra.mxu0 0.0
      %5930 = vmatprep.subr.mxu0 0.0
      %5931 = vmatpush2.msra.mxu0 0.0
      %5932 = vmatprep.mubr.f32.mxu0 0.0
      %5933 = vmatmul.mubr.f32.gmra.mxu0 %v5845
      %v5934 = vpop.f32.mrf.mxu0
      %v5935 = vadd.f32 0.0, %v5934
      %v5936 = vpop.f32.mrf.mxu0
      %5937 = vmatprep.mubr.f32.mxu0 0.0
      %5938 = vmatmul.mubr.f32.gmra.mxu0 %v5848
      %v5939 = vpop.f32.mrf.mxu0
      %v5940 = vadd.f32 0.0, %v5939
      %v5941 = vpop.f32.mrf.mxu0
      %5942 = vmatprep.mubr.f32.mxu0 0.0
      %5943 = vmatmul.mubr.f32.gmra.mxu0 %v5851
      %v5944 = vpop.f32.mrf.mxu0
      %v5945 = vadd.f32 0.0, %v5944
      %v5946 = vpop.f32.mrf.mxu0
      %5947 = vmatprep.mubr.f32.mxu0 0.0
      %5948 = vmatmul.mubr.f32.gmra.mxu0 %v5854
      %v5949 = vpop.f32.mrf.mxu0
      %v5950 = vadd.f32 0.0, %v5949
      %v5951 = vpop.f32.mrf.mxu0
      %5952 = vmatprep.mubr.f32.mxu0 0.0
      %5953 = vmatmul.mubr.f32.gmra.mxu0 %v5857
      %v5954 = vpop.f32.mrf.mxu0
      %v5955 = vadd.f32 0.0, %v5954
      %v5956 = vpop.f32.mrf.mxu0
      %5957 = vmatprep.mubr.f32.mxu0 0.0
      %5958 = vmatmul.mubr.f32.gmra.mxu0 %v5860
      %v5959 = vpop.f32.mrf.mxu0
      %v5960 = vadd.f32 0.0, %v5959
      %v5961 = vpop.f32.mrf.mxu0
      %5962 = vmatprep.mubr.f32.mxu0 0.0
      %5963 = vmatmul.mubr.f32.gmra.mxu0 %v5863
      %v5964 = vpop.f32.mrf.mxu0
      %v5965 = vadd.f32 0.0, %v5964
      %v5966 = vpop.f32.mrf.mxu0
      %5967 = vmatprep.mubr.f32.mxu0 0.0
      %5968 = vmatmul.mubr.f32.gmra.mxu0 %v5866
      %v5969 = vpop.f32.mrf.mxu0
      %v5970 = vadd.f32 0.0, %v5969
      %v5971 = vpop.f32.mrf.mxu0
      %5972 = vdwg.mxu0
      %5973 = vrot.lane.b32.xlu0 %v1010, 96
      %v5974 = vpop.permute.xlu0 %5973
      %5975 = vrot.lane.b32.xlu0 %v1015, 96
      %v5976 = vpop.permute.xlu0 %5975
      %5977 = vrot.lane.b32.xlu0 %v1020, 96
      %v5978 = vpop.permute.xlu0 %5977
      %5979 = vrot.lane.b32.xlu0 %v1025, 96
      %v5980 = vpop.permute.xlu0 %5979
      %5981 = vrot.lane.b32.xlu0 %v1030, 96
      %v5982 = vpop.permute.xlu0 %5981
      %5983 = vrot.lane.b32.xlu0 %v1035, 96
      %v5984 = vpop.permute.xlu0 %5983
      %5985 = vrot.lane.b32.xlu0 %v1040, 96
      %v5986 = vpop.permute.xlu0 %5985
      %5987 = vrot.lane.b32.xlu0 %v1045, 96
      %v5988 = vpop.permute.xlu0 %5987
      %v5998 = vsel %vm3721, %v5410, 0
      %v6001 = vsel %vm3721, %v5411, 0
      %v6004 = vsel %vm3721, %v5412, 0
      %v6007 = vsel %vm3721, %v5413, 0
      %v6010 = vsel %vm3721, %v5414, 0
      %v6013 = vsel %vm3721, %v5415, 0
      %v6016 = vsel %vm3721, %v5416, 0
      %v6019 = vsel %vm3721, %v5417, 0
      %6021 = vmatprep.subr.mxu0 0.0
      %6022 = vmatpush1.msra.mxu0 0.0
      %6023 = vmatprep.subr.mxu0 0.0
      %6024 = vmatpush1.msra.mxu0 0.0
      %6025 = vmatprep.subr.mxu0 0.0
      %6026 = vmatpush1.msra.mxu0 0.0
      %6027 = vmatprep.subr.mxu0 0.0
      %6028 = vmatpush1.msra.mxu0 0.0
      %6029 = vmatprep.subr.mxu0 0.0
      %6030 = vmatpush1.msra.mxu0 0.0
      %6031 = vmatprep.subr.mxu0 0.0
      %6032 = vmatpush1.msra.mxu0 0.0
      %6033 = vmatprep.subr.mxu0 0.0
      %6034 = vmatpush1.msra.mxu0 0.0
      %6035 = vmatprep.subr.mxu0 0.0
      %6036 = vmatpush1.msra.mxu0 0.0
      %6037 = vmatprep.subr.mxu0 0.0
      %6038 = vmatpush1.msra.mxu0 %v5988
      %6039 = vmatprep.subr.mxu0 0.0
      %6040 = vmatpush1.msra.mxu0 %v5986
      %6041 = vmatprep.subr.mxu0 0.0
      %6042 = vmatpush1.msra.mxu0 %v5984
      %6043 = vmatprep.subr.mxu0 0.0
      %6044 = vmatpush1.msra.mxu0 %v5982
      %6045 = vmatprep.subr.mxu0 0.0
      %6046 = vmatpush1.msra.mxu0 %v5980
      %6047 = vmatprep.subr.mxu0 0.0
      %6048 = vmatpush1.msra.mxu0 %v5978
      %6049 = vmatprep.subr.mxu0 0.0
      %6050 = vmatpush1.msra.mxu0 %v5976
      %6051 = vmatprep.subr.mxu0 0.0
      %6052 = vmatpush1.msra.mxu0 %v5974
      %6053 = vmatprep.subr.mxu0 0.0
      %6054 = vmatpush2.msra.mxu0 0.0
      %6055 = vmatprep.subr.mxu0 0.0
      %6056 = vmatpush2.msra.mxu0 0.0
      %6057 = vmatprep.subr.mxu0 0.0
      %6058 = vmatpush2.msra.mxu0 0.0
      %6059 = vmatprep.subr.mxu0 0.0
      %6060 = vmatpush2.msra.mxu0 0.0
      %6061 = vmatprep.subr.mxu0 0.0
      %6062 = vmatpush2.msra.mxu0 0.0
      %6063 = vmatprep.subr.mxu0 0.0
      %6064 = vmatpush2.msra.mxu0 0.0
      %6065 = vmatprep.subr.mxu0 0.0
      %6066 = vmatpush2.msra.mxu0 0.0
      %6067 = vmatprep.subr.mxu0 0.0
      %6068 = vmatpush2.msra.mxu0 0.0
      %6069 = vmatprep.subr.mxu0 0.0
      %6070 = vmatpush2.msra.mxu0 0.0
      %6071 = vmatprep.subr.mxu0 0.0
      %6072 = vmatpush2.msra.mxu0 0.0
      %6073 = vmatprep.subr.mxu0 0.0
      %6074 = vmatpush2.msra.mxu0 0.0
      %6075 = vmatprep.subr.mxu0 0.0
      %6076 = vmatpush2.msra.mxu0 0.0
      %6077 = vmatprep.subr.mxu0 0.0
      %6078 = vmatpush2.msra.mxu0 0.0
      %6079 = vmatprep.subr.mxu0 0.0
      %6080 = vmatpush2.msra.mxu0 0.0
      %6081 = vmatprep.subr.mxu0 0.0
      %6082 = vmatpush2.msra.mxu0 0.0
      %6083 = vmatprep.subr.mxu0 0.0
      %6084 = vmatpush2.msra.mxu0 0.0
      %6085 = vmatprep.mubr.f32.mxu0 0.0
      %6086 = vmatmul.mubr.f32.gmra.mxu0 %v5998
      %v6087 = vpop.f32.mrf.mxu0
      %v6088 = vadd.f32 0.0, %v6087
      %v6089 = vpop.f32.mrf.mxu0
      %6090 = vmatprep.mubr.f32.mxu0 0.0
      %6091 = vmatmul.mubr.f32.gmra.mxu0 %v6001
      %v6092 = vpop.f32.mrf.mxu0
      %v6093 = vadd.f32 0.0, %v6092
      %v6094 = vpop.f32.mrf.mxu0
      %6095 = vmatprep.mubr.f32.mxu0 0.0
      %6096 = vmatmul.mubr.f32.gmra.mxu0 %v6004
      %v6097 = vpop.f32.mrf.mxu0
      %v6098 = vadd.f32 0.0, %v6097
      %v6099 = vpop.f32.mrf.mxu0
      %6100 = vmatprep.mubr.f32.mxu0 0.0
      %6101 = vmatmul.mubr.f32.gmra.mxu0 %v6007
      %v6102 = vpop.f32.mrf.mxu0
      %v6103 = vadd.f32 0.0, %v6102
      %v6104 = vpop.f32.mrf.mxu0
      %6105 = vmatprep.mubr.f32.mxu0 0.0
      %6106 = vmatmul.mubr.f32.gmra.mxu0 %v6010
      %v6107 = vpop.f32.mrf.mxu0
      %v6108 = vadd.f32 0.0, %v6107
      %v6109 = vpop.f32.mrf.mxu0
      %6110 = vmatprep.mubr.f32.mxu0 0.0
      %6111 = vmatmul.mubr.f32.gmra.mxu0 %v6013
      %v6112 = vpop.f32.mrf.mxu0
      %v6113 = vadd.f32 0.0, %v6112
      %v6114 = vpop.f32.mrf.mxu0
      %6115 = vmatprep.mubr.f32.mxu0 0.0
      %6116 = vmatmul.mubr.f32.gmra.mxu0 %v6016
      %v6117 = vpop.f32.mrf.mxu0
      %v6118 = vadd.f32 0.0, %v6117
      %v6119 = vpop.f32.mrf.mxu0
      %6120 = vmatprep.mubr.f32.mxu0 0.0
      %6121 = vmatmul.mubr.f32.gmra.mxu0 %v6019
      %v6122 = vpop.f32.mrf.mxu0
      %v6123 = vadd.f32 0.0, %v6122
      %v6124 = vpop.f32.mrf.mxu0
      %6125 = vdwg.mxu0
      %6126 = vrot.lane.b32.xlu0 %v1081, 96
      %v6127 = vpop.permute.xlu0 %6126
      %6128 = vrot.lane.b32.xlu0 %v1083, 96
      %v6129 = vpop.permute.xlu0 %6128
      %6130 = vrot.lane.b32.xlu0 %v1085, 96
      %v6131 = vpop.permute.xlu0 %6130
      %6132 = vrot.lane.b32.xlu0 %v1087, 96
      %v6133 = vpop.permute.xlu0 %6132
      %6134 = vrot.lane.b32.xlu0 %v1089, 96
      %v6135 = vpop.permute.xlu0 %6134
      %6136 = vrot.lane.b32.xlu0 %v1091, 96
      %v6137 = vpop.permute.xlu0 %6136
      %6138 = vrot.lane.b32.xlu0 %v1093, 96
      %v6139 = vpop.permute.xlu0 %6138
      %6140 = vrot.lane.b32.xlu0 %v1095, 96
      %v6141 = vpop.permute.xlu0 %6140
      %v6151 = vsel %vm3721, %v5418, 0
      %v6154 = vsel %vm3721, %v5419, 0
      %v6157 = vsel %vm3721, %v5420, 0
      %v6160 = vsel %vm3721, %v5421, 0
      %v6163 = vsel %vm3721, %v5422, 0
      %v6166 = vsel %vm3721, %v5423, 0
      %v6169 = vsel %vm3721, %v5424, 0
      %v6172 = vsel %vm3721, %v5425, 0
      %6174 = vmatprep.subr.mxu0 0.0
      %6175 = vmatpush1.msra.mxu0 0.0
      %6176 = vmatprep.subr.mxu0 0.0
      %6177 = vmatpush1.msra.mxu0 0.0
      %6178 = vmatprep.subr.mxu0 0.0
      %6179 = vmatpush1.msra.mxu0 0.0
      %6180 = vmatprep.subr.mxu0 0.0
      %6181 = vmatpush1.msra.mxu0 0.0
      %6182 = vmatprep.subr.mxu0 0.0
      %6183 = vmatpush1.msra.mxu0 0.0
      %6184 = vmatprep.subr.mxu0 0.0
      %6185 = vmatpush1.msra.mxu0 0.0
      %6186 = vmatprep.subr.mxu0 0.0
      %6187 = vmatpush1.msra.mxu0 0.0
      %6188 = vmatprep.subr.mxu0 0.0
      %6189 = vmatpush1.msra.mxu0 0.0
      %6190 = vmatprep.subr.mxu0 0.0
      %6191 = vmatpush1.msra.mxu0 %v6141
      %6192 = vmatprep.subr.mxu0 0.0
      %6193 = vmatpush1.msra.mxu0 %v6139
      %6194 = vmatprep.subr.mxu0 0.0
      %6195 = vmatpush1.msra.mxu0 %v6137
      %6196 = vmatprep.subr.mxu0 0.0
      %6197 = vmatpush1.msra.mxu0 %v6135
      %6198 = vmatprep.subr.mxu0 0.0
      %6199 = vmatpush1.msra.mxu0 %v6133
      %6200 = vmatprep.subr.mxu0 0.0
      %6201 = vmatpush1.msra.mxu0 %v6131
      %6202 = vmatprep.subr.mxu0 0.0
      %6203 = vmatpush1.msra.mxu0 %v6129
      %6204 = vmatprep.subr.mxu0 0.0
      %6205 = vmatpush1.msra.mxu0 %v6127
      %6206 = vmatprep.subr.mxu0 0.0
      %6207 = vmatpush2.msra.mxu0 0.0
      %6208 = vmatprep.subr.mxu0 0.0
      %6209 = vmatpush2.msra.mxu0 0.0
      %6210 = vmatprep.subr.mxu0 0.0
      %6211 = vmatpush2.msra.mxu0 0.0
      %6212 = vmatprep.subr.mxu0 0.0
      %6213 = vmatpush2.msra.mxu0 0.0
      %6214 = vmatprep.subr.mxu0 0.0
      %6215 = vmatpush2.msra.mxu0 0.0
      %6216 = vmatprep.subr.mxu0 0.0
      %6217 = vmatpush2.msra.mxu0 0.0
      %6218 = vmatprep.subr.mxu0 0.0
      %6219 = vmatpush2.msra.mxu0 0.0
      %6220 = vmatprep.subr.mxu0 0.0
      %6221 = vmatpush2.msra.mxu0 0.0
      %6222 = vmatprep.subr.mxu0 0.0
      %6223 = vmatpush2.msra.mxu0 0.0
      %6224 = vmatprep.subr.mxu0 0.0
      %6225 = vmatpush2.msra.mxu0 0.0
      %6226 = vmatprep.subr.mxu0 0.0
      %6227 = vmatpush2.msra.mxu0 0.0
      %6228 = vmatprep.subr.mxu0 0.0
      %6229 = vmatpush2.msra.mxu0 0.0
      %6230 = vmatprep.subr.mxu0 0.0
      %6231 = vmatpush2.msra.mxu0 0.0
      %6232 = vmatprep.subr.mxu0 0.0
      %6233 = vmatpush2.msra.mxu0 0.0
      %6234 = vmatprep.subr.mxu0 0.0
      %6235 = vmatpush2.msra.mxu0 0.0
      %6236 = vmatprep.subr.mxu0 0.0
      %6237 = vmatpush2.msra.mxu0 0.0
      %6238 = vmatprep.mubr.f32.mxu0 0.0
      %6239 = vmatmul.mubr.f32.gmra.mxu0 %v6151
      %v6240 = vpop.f32.mrf.mxu0
      %v6241 = vadd.f32 0.0, %v6240
      %v6242 = vpop.f32.mrf.mxu0
      %6243 = vmatprep.mubr.f32.mxu0 0.0
      %6244 = vmatmul.mubr.f32.gmra.mxu0 %v6154
      %v6245 = vpop.f32.mrf.mxu0
      %v6246 = vadd.f32 0.0, %v6245
      %v6247 = vpop.f32.mrf.mxu0
      %6248 = vmatprep.mubr.f32.mxu0 0.0
      %6249 = vmatmul.mubr.f32.gmra.mxu0 %v6157
      %v6250 = vpop.f32.mrf.mxu0
      %v6251 = vadd.f32 0.0, %v6250
      %v6252 = vpop.f32.mrf.mxu0
      %6253 = vmatprep.mubr.f32.mxu0 0.0
      %6254 = vmatmul.mubr.f32.gmra.mxu0 %v6160
      %v6255 = vpop.f32.mrf.mxu0
      %v6256 = vadd.f32 0.0, %v6255
      %v6257 = vpop.f32.mrf.mxu0
      %6258 = vmatprep.mubr.f32.mxu0 0.0
      %6259 = vmatmul.mubr.f32.gmra.mxu0 %v6163
      %v6260 = vpop.f32.mrf.mxu0
      %v6261 = vadd.f32 0.0, %v6260
      %v6262 = vpop.f32.mrf.mxu0
      %6263 = vmatprep.mubr.f32.mxu0 0.0
      %6264 = vmatmul.mubr.f32.gmra.mxu0 %v6166
      %v6265 = vpop.f32.mrf.mxu0
      %v6266 = vadd.f32 0.0, %v6265
      %v6267 = vpop.f32.mrf.mxu0
      %6268 = vmatprep.mubr.f32.mxu0 0.0
      %6269 = vmatmul.mubr.f32.gmra.mxu0 %v6169
      %v6270 = vpop.f32.mrf.mxu0
      %v6271 = vadd.f32 0.0, %v6270
      %v6272 = vpop.f32.mrf.mxu0
      %6273 = vmatprep.mubr.f32.mxu0 0.0
      %6274 = vmatmul.mubr.f32.gmra.mxu0 %v6172
      %v6275 = vpop.f32.mrf.mxu0
      %v6276 = vadd.f32 0.0, %v6275
      %v6277 = vpop.f32.mrf.mxu0
      %6278 = vdwg.mxu0
      %6279 = vrot.lane.b32.xlu0 %v1097, 96
      %v6280 = vpop.permute.xlu0 %6279
      %6281 = vrot.lane.b32.xlu0 %v1099, 96
      %v6282 = vpop.permute.xlu0 %6281
      %6283 = vrot.lane.b32.xlu0 %v1101, 96
      %v6284 = vpop.permute.xlu0 %6283
      %6285 = vrot.lane.b32.xlu0 %v1103, 96
      %v6286 = vpop.permute.xlu0 %6285
      %6287 = vrot.lane.b32.xlu0 %v1105, 96
      %v6288 = vpop.permute.xlu0 %6287
      %6289 = vrot.lane.b32.xlu0 %v1107, 96
      %v6290 = vpop.permute.xlu0 %6289
      %6291 = vrot.lane.b32.xlu0 %v1109, 96
      %v6292 = vpop.permute.xlu0 %6291
      %6293 = vrot.lane.b32.xlu0 %v1111, 96
      %v6294 = vpop.permute.xlu0 %6293
      %v6304 = vsel %vm3721, %v5426, 0
      %v6307 = vsel %vm3721, %v5427, 0
      %v6310 = vsel %vm3721, %v5428, 0
      %v6313 = vsel %vm3721, %v5429, 0
      %v6316 = vsel %vm3721, %v5430, 0
      %v6319 = vsel %vm3721, %v5431, 0
      %v6322 = vsel %vm3721, %v5432, 0
      %v6325 = vsel %vm3721, %v5433, 0
      %6327 = vmatprep.subr.mxu0 0.0
      %6328 = vmatpush1.msra.mxu0 0.0
      %6329 = vmatprep.subr.mxu0 0.0
      %6330 = vmatpush1.msra.mxu0 0.0
      %6331 = vmatprep.subr.mxu0 0.0
      %6332 = vmatpush1.msra.mxu0 0.0
      %6333 = vmatprep.subr.mxu0 0.0
      %6334 = vmatpush1.msra.mxu0 0.0
      %6335 = vmatprep.subr.mxu0 0.0
      %6336 = vmatpush1.msra.mxu0 0.0
      %6337 = vmatprep.subr.mxu0 0.0
      %6338 = vmatpush1.msra.mxu0 0.0
      %6339 = vmatprep.subr.mxu0 0.0
      %6340 = vmatpush1.msra.mxu0 0.0
      %6341 = vmatprep.subr.mxu0 0.0
      %6342 = vmatpush1.msra.mxu0 0.0
      %6343 = vmatprep.subr.mxu0 0.0
      %6344 = vmatpush1.msra.mxu0 %v6294
      %6345 = vmatprep.subr.mxu0 0.0
      %6346 = vmatpush1.msra.mxu0 %v6292
      %6347 = vmatprep.subr.mxu0 0.0
      %6348 = vmatpush1.msra.mxu0 %v6290
      %6349 = vmatprep.subr.mxu0 0.0
      %6350 = vmatpush1.msra.mxu0 %v6288
      %6351 = vmatprep.subr.mxu0 0.0
      %6352 = vmatpush1.msra.mxu0 %v6286
      %6353 = vmatprep.subr.mxu0 0.0
      %6354 = vmatpush1.msra.mxu0 %v6284
      %6355 = vmatprep.subr.mxu0 0.0
      %6356 = vmatpush1.msra.mxu0 %v6282
      %6357 = vmatprep.subr.mxu0 0.0
      %6358 = vmatpush1.msra.mxu0 %v6280
      %6359 = vmatprep.subr.mxu0 0.0
      %6360 = vmatpush2.msra.mxu0 0.0
      %6361 = vmatprep.subr.mxu0 0.0
      %6362 = vmatpush2.msra.mxu0 0.0
      %6363 = vmatprep.subr.mxu0 0.0
      %6364 = vmatpush2.msra.mxu0 0.0
      %6365 = vmatprep.subr.mxu0 0.0
      %6366 = vmatpush2.msra.mxu0 0.0
      %6367 = vmatprep.subr.mxu0 0.0
      %6368 = vmatpush2.msra.mxu0 0.0
      %6369 = vmatprep.subr.mxu0 0.0
      %6370 = vmatpush2.msra.mxu0 0.0
      %6371 = vmatprep.subr.mxu0 0.0
      %6372 = vmatpush2.msra.mxu0 0.0
      %6373 = vmatprep.subr.mxu0 0.0
      %6374 = vmatpush2.msra.mxu0 0.0
      %6375 = vmatprep.subr.mxu0 0.0
      %6376 = vmatpush2.msra.mxu0 0.0
      %6377 = vmatprep.subr.mxu0 0.0
      %6378 = vmatpush2.msra.mxu0 0.0
      %6379 = vmatprep.subr.mxu0 0.0
      %6380 = vmatpush2.msra.mxu0 0.0
      %6381 = vmatprep.subr.mxu0 0.0
      %6382 = vmatpush2.msra.mxu0 0.0
      %6383 = vmatprep.subr.mxu0 0.0
      %6384 = vmatpush2.msra.mxu0 0.0
      %6385 = vmatprep.subr.mxu0 0.0
      %6386 = vmatpush2.msra.mxu0 0.0
      %6387 = vmatprep.subr.mxu0 0.0
      %6388 = vmatpush2.msra.mxu0 0.0
      %6389 = vmatprep.subr.mxu0 0.0
      %6390 = vmatpush2.msra.mxu0 0.0
      %6391 = vmatprep.mubr.f32.mxu0 0.0
      %6392 = vmatmul.mubr.f32.gmra.mxu0 %v6304
      %v6393 = vpop.f32.mrf.mxu0
      %v6394 = vadd.f32 0.0, %v6393
      %v6395 = vpop.f32.mrf.mxu0
      %6396 = vmatprep.mubr.f32.mxu0 0.0
      %6397 = vmatmul.mubr.f32.gmra.mxu0 %v6307
      %v6398 = vpop.f32.mrf.mxu0
      %v6399 = vadd.f32 0.0, %v6398
      %v6400 = vpop.f32.mrf.mxu0
      %6401 = vmatprep.mubr.f32.mxu0 0.0
      %6402 = vmatmul.mubr.f32.gmra.mxu0 %v6310
      %v6403 = vpop.f32.mrf.mxu0
      %v6404 = vadd.f32 0.0, %v6403
      %v6405 = vpop.f32.mrf.mxu0
      %6406 = vmatprep.mubr.f32.mxu0 0.0
      %6407 = vmatmul.mubr.f32.gmra.mxu0 %v6313
      %v6408 = vpop.f32.mrf.mxu0
      %v6409 = vadd.f32 0.0, %v6408
      %v6410 = vpop.f32.mrf.mxu0
      %6411 = vmatprep.mubr.f32.mxu0 0.0
      %6412 = vmatmul.mubr.f32.gmra.mxu0 %v6316
      %v6413 = vpop.f32.mrf.mxu0
      %v6414 = vadd.f32 0.0, %v6413
      %v6415 = vpop.f32.mrf.mxu0
      %6416 = vmatprep.mubr.f32.mxu0 0.0
      %6417 = vmatmul.mubr.f32.gmra.mxu0 %v6319
      %v6418 = vpop.f32.mrf.mxu0
      %v6419 = vadd.f32 0.0, %v6418
      %v6420 = vpop.f32.mrf.mxu0
      %6421 = vmatprep.mubr.f32.mxu0 0.0
      %6422 = vmatmul.mubr.f32.gmra.mxu0 %v6322
      %v6423 = vpop.f32.mrf.mxu0
      %v6424 = vadd.f32 0.0, %v6423
      %v6425 = vpop.f32.mrf.mxu0
      %6426 = vmatprep.mubr.f32.mxu0 0.0
      %6427 = vmatmul.mubr.f32.gmra.mxu0 %v6325
      %v6428 = vpop.f32.mrf.mxu0
      %v6429 = vadd.f32 0.0, %v6428
      %v6430 = vpop.f32.mrf.mxu0
      %6431 = vdwg.mxu0
      %6432 = vrot.lane.b32.xlu0 %v1113, 96
      %v6433 = vpop.permute.xlu0 %6432
      %6434 = vrot.lane.b32.xlu0 %v1115, 96
      %v6435 = vpop.permute.xlu0 %6434
      %6436 = vrot.lane.b32.xlu0 %v1117, 96
      %v6437 = vpop.permute.xlu0 %6436
      %6438 = vrot.lane.b32.xlu0 %v1119, 96
      %v6439 = vpop.permute.xlu0 %6438
      %6440 = vrot.lane.b32.xlu0 %v1121, 96
      %v6441 = vpop.permute.xlu0 %6440
      %6442 = vrot.lane.b32.xlu0 %v1123, 96
      %v6443 = vpop.permute.xlu0 %6442
      %6444 = vrot.lane.b32.xlu0 %v1125, 96
      %v6445 = vpop.permute.xlu0 %6444
      %6446 = vrot.lane.b32.xlu0 %v1127, 96
      %v6447 = vpop.permute.xlu0 %6446
      %v6457 = vsel %vm3721, %v5434, 0
      %v6460 = vsel %vm3721, %v5435, 0
      %v6463 = vsel %vm3721, %v5436, 0
      %v6466 = vsel %vm3721, %v5437, 0
      %v6469 = vsel %vm3721, %v5438, 0
      %v6472 = vsel %vm3721, %v5439, 0
      %v6475 = vsel %vm3721, %v5440, 0
      %v6478 = vsel %vm3721, %v5441, 0
      %6480 = vmatprep.subr.mxu0 0.0
      %6481 = vmatpush1.msra.mxu0 0.0
      %6482 = vmatprep.subr.mxu0 0.0
      %6483 = vmatpush1.msra.mxu0 0.0
      %6484 = vmatprep.subr.mxu0 0.0
      %6485 = vmatpush1.msra.mxu0 0.0
      %6486 = vmatprep.subr.mxu0 0.0
      %6487 = vmatpush1.msra.mxu0 0.0
      %6488 = vmatprep.subr.mxu0 0.0
      %6489 = vmatpush1.msra.mxu0 0.0
      %6490 = vmatprep.subr.mxu0 0.0
      %6491 = vmatpush1.msra.mxu0 0.0
      %6492 = vmatprep.subr.mxu0 0.0
      %6493 = vmatpush1.msra.mxu0 0.0
      %6494 = vmatprep.subr.mxu0 0.0
      %6495 = vmatpush1.msra.mxu0 0.0
      %6496 = vmatprep.subr.mxu0 0.0
      %6497 = vmatpush1.msra.mxu0 %v6447
      %6498 = vmatprep.subr.mxu0 0.0
      %6499 = vmatpush1.msra.mxu0 %v6445
      %6500 = vmatprep.subr.mxu0 0.0
      %6501 = vmatpush1.msra.mxu0 %v6443
      %6502 = vmatprep.subr.mxu0 0.0
      %6503 = vmatpush1.msra.mxu0 %v6441
      %6504 = vmatprep.subr.mxu0 0.0
      %6505 = vmatpush1.msra.mxu0 %v6439
      %6506 = vmatprep.subr.mxu0 0.0
      %6507 = vmatpush1.msra.mxu0 %v6437
      %6508 = vmatprep.subr.mxu0 0.0
      %6509 = vmatpush1.msra.mxu0 %v6435
      %6510 = vmatprep.subr.mxu0 0.0
      %6511 = vmatpush1.msra.mxu0 %v6433
      %6512 = vmatprep.subr.mxu0 0.0
      %6513 = vmatpush2.msra.mxu0 0.0
      %6514 = vmatprep.subr.mxu0 0.0
      %6515 = vmatpush2.msra.mxu0 0.0
      %6516 = vmatprep.subr.mxu0 0.0
      %6517 = vmatpush2.msra.mxu0 0.0
      %6518 = vmatprep.subr.mxu0 0.0
      %6519 = vmatpush2.msra.mxu0 0.0
      %6520 = vmatprep.subr.mxu0 0.0
      %6521 = vmatpush2.msra.mxu0 0.0
      %6522 = vmatprep.subr.mxu0 0.0
      %6523 = vmatpush2.msra.mxu0 0.0
      %6524 = vmatprep.subr.mxu0 0.0
      %6525 = vmatpush2.msra.mxu0 0.0
      %6526 = vmatprep.subr.mxu0 0.0
      %6527 = vmatpush2.msra.mxu0 0.0
      %6528 = vmatprep.subr.mxu0 0.0
      %6529 = vmatpush2.msra.mxu0 0.0
      %6530 = vmatprep.subr.mxu0 0.0
      %6531 = vmatpush2.msra.mxu0 0.0
      %6532 = vmatprep.subr.mxu0 0.0
      %6533 = vmatpush2.msra.mxu0 0.0
      %6534 = vmatprep.subr.mxu0 0.0
      %6535 = vmatpush2.msra.mxu0 0.0
      %6536 = vmatprep.subr.mxu0 0.0
      %6537 = vmatpush2.msra.mxu0 0.0
      %6538 = vmatprep.subr.mxu0 0.0
      %6539 = vmatpush2.msra.mxu0 0.0
      %6540 = vmatprep.subr.mxu0 0.0
      %6541 = vmatpush2.msra.mxu0 0.0
      %6542 = vmatprep.subr.mxu0 0.0
      %6543 = vmatpush2.msra.mxu0 0.0
      %6544 = vmatprep.mubr.f32.mxu0 0.0
      %6545 = vmatmul.mubr.f32.gmra.mxu0 %v6457
      %v6546 = vpop.f32.mrf.mxu0
      %v6547 = vadd.f32 0.0, %v6546
      %v6548 = vpop.f32.mrf.mxu0
      %6549 = vmatprep.mubr.f32.mxu0 0.0
      %6550 = vmatmul.mubr.f32.gmra.mxu0 %v6460
      %v6551 = vpop.f32.mrf.mxu0
      %v6552 = vadd.f32 0.0, %v6551
      %v6553 = vpop.f32.mrf.mxu0
      %6554 = vmatprep.mubr.f32.mxu0 0.0
      %6555 = vmatmul.mubr.f32.gmra.mxu0 %v6463
      %v6556 = vpop.f32.mrf.mxu0
      %v6557 = vadd.f32 0.0, %v6556
      %v6558 = vpop.f32.mrf.mxu0
      %6559 = vmatprep.mubr.f32.mxu0 0.0
      %6560 = vmatmul.mubr.f32.gmra.mxu0 %v6466
      %v6561 = vpop.f32.mrf.mxu0
      %v6562 = vadd.f32 0.0, %v6561
      %v6563 = vpop.f32.mrf.mxu0
      %6564 = vmatprep.mubr.f32.mxu0 0.0
      %6565 = vmatmul.mubr.f32.gmra.mxu0 %v6469
      %v6566 = vpop.f32.mrf.mxu0
      %v6567 = vadd.f32 0.0, %v6566
      %v6568 = vpop.f32.mrf.mxu0
      %6569 = vmatprep.mubr.f32.mxu0 0.0
      %6570 = vmatmul.mubr.f32.gmra.mxu0 %v6472
      %v6571 = vpop.f32.mrf.mxu0
      %v6572 = vadd.f32 0.0, %v6571
      %v6573 = vpop.f32.mrf.mxu0
      %6574 = vmatprep.mubr.f32.mxu0 0.0
      %6575 = vmatmul.mubr.f32.gmra.mxu0 %v6475
      %v6576 = vpop.f32.mrf.mxu0
      %v6577 = vadd.f32 0.0, %v6576
      %v6578 = vpop.f32.mrf.mxu0
      %6579 = vmatprep.mubr.f32.mxu0 0.0
      %6580 = vmatmul.mubr.f32.gmra.mxu0 %v6478
      %v6581 = vpop.f32.mrf.mxu0
      %v6582 = vadd.f32 0.0, %v6581
      %v6583 = vpop.f32.mrf.mxu0
      %6584 = vdwg.mxu0
      %6585 = vrot.lane.b32.xlu0 %v1129, 96
      %v6586 = vpop.permute.xlu0 %6585
      %6587 = vrot.lane.b32.xlu0 %v1131, 96
      %v6588 = vpop.permute.xlu0 %6587
      %6589 = vrot.lane.b32.xlu0 %v1133, 96
      %v6590 = vpop.permute.xlu0 %6589
      %6591 = vrot.lane.b32.xlu0 %v1135, 96
      %v6592 = vpop.permute.xlu0 %6591
      %6593 = vrot.lane.b32.xlu0 %v1137, 96
      %v6594 = vpop.permute.xlu0 %6593
      %6595 = vrot.lane.b32.xlu0 %v1139, 96
      %v6596 = vpop.permute.xlu0 %6595
      %6597 = vrot.lane.b32.xlu0 %v1141, 96
      %v6598 = vpop.permute.xlu0 %6597
      %6599 = vrot.lane.b32.xlu0 %v1143, 96
      %v6600 = vpop.permute.xlu0 %6599
      %v6610 = vsel %vm3721, %v5442, 0
      %v6613 = vsel %vm3721, %v5443, 0
      %v6616 = vsel %vm3721, %v5444, 0
      %v6619 = vsel %vm3721, %v5445, 0
      %v6622 = vsel %vm3721, %v5446, 0
      %v6625 = vsel %vm3721, %v5447, 0
      %v6628 = vsel %vm3721, %v5448, 0
      %v6631 = vsel %vm3721, %v5449, 0
      %6633 = vmatprep.subr.mxu0 0.0
      %6634 = vmatpush1.msra.mxu0 0.0
      %6635 = vmatprep.subr.mxu0 0.0
      %6636 = vmatpush1.msra.mxu0 0.0
      %6637 = vmatprep.subr.mxu0 0.0
      %6638 = vmatpush1.msra.mxu0 0.0
      %6639 = vmatprep.subr.mxu0 0.0
      %6640 = vmatpush1.msra.mxu0 0.0
      %6641 = vmatprep.subr.mxu0 0.0
      %6642 = vmatpush1.msra.mxu0 0.0
      %6643 = vmatprep.subr.mxu0 0.0
      %6644 = vmatpush1.msra.mxu0 0.0
      %6645 = vmatprep.subr.mxu0 0.0
      %6646 = vmatpush1.msra.mxu0 0.0
      %6647 = vmatprep.subr.mxu0 0.0
      %6648 = vmatpush1.msra.mxu0 0.0
      %6649 = vmatprep.subr.mxu0 0.0
      %6650 = vmatpush1.msra.mxu0 %v6600
      %6651 = vmatprep.subr.mxu0 0.0
      %6652 = vmatpush1.msra.mxu0 %v6598
      %6653 = vmatprep.subr.mxu0 0.0
      %6654 = vmatpush1.msra.mxu0 %v6596
      %6655 = vmatprep.subr.mxu0 0.0
      %6656 = vmatpush1.msra.mxu0 %v6594
      %6657 = vmatprep.subr.mxu0 0.0
      %6658 = vmatpush1.msra.mxu0 %v6592
      %6659 = vmatprep.subr.mxu0 0.0
      %6660 = vmatpush1.msra.mxu0 %v6590
      %6661 = vmatprep.subr.mxu0 0.0
      %6662 = vmatpush1.msra.mxu0 %v6588
      %6663 = vmatprep.subr.mxu0 0.0
      %6664 = vmatpush1.msra.mxu0 %v6586
      %6665 = vmatprep.subr.mxu0 0.0
      %6666 = vmatpush2.msra.mxu0 0.0
      %6667 = vmatprep.subr.mxu0 0.0
      %6668 = vmatpush2.msra.mxu0 0.0
      %6669 = vmatprep.subr.mxu0 0.0
      %6670 = vmatpush2.msra.mxu0 0.0
      %6671 = vmatprep.subr.mxu0 0.0
      %6672 = vmatpush2.msra.mxu0 0.0
      %6673 = vmatprep.subr.mxu0 0.0
      %6674 = vmatpush2.msra.mxu0 0.0
      %6675 = vmatprep.subr.mxu0 0.0
      %6676 = vmatpush2.msra.mxu0 0.0
      %6677 = vmatprep.subr.mxu0 0.0
      %6678 = vmatpush2.msra.mxu0 0.0
      %6679 = vmatprep.subr.mxu0 0.0
      %6680 = vmatpush2.msra.mxu0 0.0
      %6681 = vmatprep.subr.mxu0 0.0
      %6682 = vmatpush2.msra.mxu0 0.0
      %6683 = vmatprep.subr.mxu0 0.0
      %6684 = vmatpush2.msra.mxu0 0.0
      %6685 = vmatprep.subr.mxu0 0.0
      %6686 = vmatpush2.msra.mxu0 0.0
      %6687 = vmatprep.subr.mxu0 0.0
      %6688 = vmatpush2.msra.mxu0 0.0
      %6689 = vmatprep.subr.mxu0 0.0
      %6690 = vmatpush2.msra.mxu0 0.0
      %6691 = vmatprep.subr.mxu0 0.0
      %6692 = vmatpush2.msra.mxu0 0.0
      %6693 = vmatprep.subr.mxu0 0.0
      %6694 = vmatpush2.msra.mxu0 0.0
      %6695 = vmatprep.subr.mxu0 0.0
      %6696 = vmatpush2.msra.mxu0 0.0
      %6697 = vmatprep.mubr.f32.mxu0 0.0
      %6698 = vmatmul.mubr.f32.gmra.mxu0 %v6610
      %v6699 = vpop.f32.mrf.mxu0
      %v6700 = vadd.f32 0.0, %v6699
      %v6701 = vpop.f32.mrf.mxu0
      %6702 = vmatprep.mubr.f32.mxu0 0.0
      %6703 = vmatmul.mubr.f32.gmra.mxu0 %v6613
      %v6704 = vpop.f32.mrf.mxu0
      %v6705 = vadd.f32 0.0, %v6704
      %v6706 = vpop.f32.mrf.mxu0
      %6707 = vmatprep.mubr.f32.mxu0 0.0
      %6708 = vmatmul.mubr.f32.gmra.mxu0 %v6616
      %v6709 = vpop.f32.mrf.mxu0
      %v6710 = vadd.f32 0.0, %v6709
      %v6711 = vpop.f32.mrf.mxu0
      %6712 = vmatprep.mubr.f32.mxu0 0.0
      %6713 = vmatmul.mubr.f32.gmra.mxu0 %v6619
      %v6714 = vpop.f32.mrf.mxu0
      %v6715 = vadd.f32 0.0, %v6714
      %v6716 = vpop.f32.mrf.mxu0
      %6717 = vmatprep.mubr.f32.mxu0 0.0
      %6718 = vmatmul.mubr.f32.gmra.mxu0 %v6622
      %v6719 = vpop.f32.mrf.mxu0
      %v6720 = vadd.f32 0.0, %v6719
      %v6721 = vpop.f32.mrf.mxu0
      %6722 = vmatprep.mubr.f32.mxu0 0.0
      %6723 = vmatmul.mubr.f32.gmra.mxu0 %v6625
      %v6724 = vpop.f32.mrf.mxu0
      %v6725 = vadd.f32 0.0, %v6724
      %v6726 = vpop.f32.mrf.mxu0
      %6727 = vmatprep.mubr.f32.mxu0 0.0
      %6728 = vmatmul.mubr.f32.gmra.mxu0 %v6628
      %v6729 = vpop.f32.mrf.mxu0
      %v6730 = vadd.f32 0.0, %v6729
      %v6731 = vpop.f32.mrf.mxu0
      %6732 = vmatprep.mubr.f32.mxu0 0.0
      %6733 = vmatmul.mubr.f32.gmra.mxu0 %v6631
      %v6734 = vpop.f32.mrf.mxu0
      %v6735 = vadd.f32 0.0, %v6734
      %v6736 = vpop.f32.mrf.mxu0
      %6737 = vdwg.mxu0
      %6738 = vrot.lane.b32.xlu0 %v1145, 96
      %v6739 = vpop.permute.xlu0 %6738
      %6740 = vrot.lane.b32.xlu0 %v1147, 96
      %v6741 = vpop.permute.xlu0 %6740
      %6742 = vrot.lane.b32.xlu0 %v1149, 96
      %v6743 = vpop.permute.xlu0 %6742
      %6744 = vrot.lane.b32.xlu0 %v1151, 96
      %v6745 = vpop.permute.xlu0 %6744
      %6746 = vrot.lane.b32.xlu0 %v1153, 96
      %v6747 = vpop.permute.xlu0 %6746
      %6748 = vrot.lane.b32.xlu0 %v1155, 96
      %v6749 = vpop.permute.xlu0 %6748
      %6750 = vrot.lane.b32.xlu0 %v1157, 96
      %v6751 = vpop.permute.xlu0 %6750
      %6752 = vrot.lane.b32.xlu0 %v1159, 96
      %v6753 = vpop.permute.xlu0 %6752
      %v6763 = vsel %vm3721, %v5450, 0
      %v6766 = vsel %vm3721, %v5451, 0
      %v6769 = vsel %vm3721, %v5452, 0
      %v6772 = vsel %vm3721, %v5453, 0
      %v6775 = vsel %vm3721, %v5454, 0
      %v6778 = vsel %vm3721, %v5455, 0
      %v6781 = vsel %vm3721, %v5456, 0
      %v6784 = vsel %vm3721, %v5457, 0
      %6786 = vmatprep.subr.mxu0 0.0
      %6787 = vmatpush1.msra.mxu0 0.0
      %6788 = vmatprep.subr.mxu0 0.0
      %6789 = vmatpush1.msra.mxu0 0.0
      %6790 = vmatprep.subr.mxu0 0.0
      %6791 = vmatpush1.msra.mxu0 0.0
      %6792 = vmatprep.subr.mxu0 0.0
      %6793 = vmatpush1.msra.mxu0 0.0
      %6794 = vmatprep.subr.mxu0 0.0
      %6795 = vmatpush1.msra.mxu0 0.0
      %6796 = vmatprep.subr.mxu0 0.0
      %6797 = vmatpush1.msra.mxu0 0.0
      %6798 = vmatprep.subr.mxu0 0.0
      %6799 = vmatpush1.msra.mxu0 0.0
      %6800 = vmatprep.subr.mxu0 0.0
      %6801 = vmatpush1.msra.mxu0 0.0
      %6802 = vmatprep.subr.mxu0 0.0
      %6803 = vmatpush1.msra.mxu0 %v6753
      %6804 = vmatprep.subr.mxu0 0.0
      %6805 = vmatpush1.msra.mxu0 %v6751
      %6806 = vmatprep.subr.mxu0 0.0
      %6807 = vmatpush1.msra.mxu0 %v6749
      %6808 = vmatprep.subr.mxu0 0.0
      %6809 = vmatpush1.msra.mxu0 %v6747
      %6810 = vmatprep.subr.mxu0 0.0
      %6811 = vmatpush1.msra.mxu0 %v6745
      %6812 = vmatprep.subr.mxu0 0.0
      %6813 = vmatpush1.msra.mxu0 %v6743
      %6814 = vmatprep.subr.mxu0 0.0
      %6815 = vmatpush1.msra.mxu0 %v6741
      %6816 = vmatprep.subr.mxu0 0.0
      %6817 = vmatpush1.msra.mxu0 %v6739
      %6818 = vmatprep.subr.mxu0 0.0
      %6819 = vmatpush2.msra.mxu0 0.0
      %6820 = vmatprep.subr.mxu0 0.0
      %6821 = vmatpush2.msra.mxu0 0.0
      %6822 = vmatprep.subr.mxu0 0.0
      %6823 = vmatpush2.msra.mxu0 0.0
      %6824 = vmatprep.subr.mxu0 0.0
      %6825 = vmatpush2.msra.mxu0 0.0
      %6826 = vmatprep.subr.mxu0 0.0
      %6827 = vmatpush2.msra.mxu0 0.0
      %6828 = vmatprep.subr.mxu0 0.0
      %6829 = vmatpush2.msra.mxu0 0.0
      %6830 = vmatprep.subr.mxu0 0.0
      %6831 = vmatpush2.msra.mxu0 0.0
      %6832 = vmatprep.subr.mxu0 0.0
      %6833 = vmatpush2.msra.mxu0 0.0
      %6834 = vmatprep.subr.mxu0 0.0
      %6835 = vmatpush2.msra.mxu0 0.0
      %6836 = vmatprep.subr.mxu0 0.0
      %6837 = vmatpush2.msra.mxu0 0.0
      %6838 = vmatprep.subr.mxu0 0.0
      %6839 = vmatpush2.msra.mxu0 0.0
      %6840 = vmatprep.subr.mxu0 0.0
      %6841 = vmatpush2.msra.mxu0 0.0
      %6842 = vmatprep.subr.mxu0 0.0
      %6843 = vmatpush2.msra.mxu0 0.0
      %6844 = vmatprep.subr.mxu0 0.0
      %6845 = vmatpush2.msra.mxu0 0.0
      %6846 = vmatprep.subr.mxu0 0.0
      %6847 = vmatpush2.msra.mxu0 0.0
      %6848 = vmatprep.subr.mxu0 0.0
      %6849 = vmatpush2.msra.mxu0 0.0
      %6850 = vmatprep.mubr.f32.mxu0 0.0
      %6851 = vmatmul.mubr.f32.gmra.mxu0 %v6763
      %v6852 = vpop.f32.mrf.mxu0
      %v6853 = vadd.f32 0.0, %v6852
      %v6854 = vpop.f32.mrf.mxu0
      %6855 = vmatprep.mubr.f32.mxu0 0.0
      %6856 = vmatmul.mubr.f32.gmra.mxu0 %v6766
      %v6857 = vpop.f32.mrf.mxu0
      %v6858 = vadd.f32 0.0, %v6857
      %v6859 = vpop.f32.mrf.mxu0
      %6860 = vmatprep.mubr.f32.mxu0 0.0
      %6861 = vmatmul.mubr.f32.gmra.mxu0 %v6769
      %v6862 = vpop.f32.mrf.mxu0
      %v6863 = vadd.f32 0.0, %v6862
      %v6864 = vpop.f32.mrf.mxu0
      %6865 = vmatprep.mubr.f32.mxu0 0.0
      %6866 = vmatmul.mubr.f32.gmra.mxu0 %v6772
      %v6867 = vpop.f32.mrf.mxu0
      %v6868 = vadd.f32 0.0, %v6867
      %v6869 = vpop.f32.mrf.mxu0
      %6870 = vmatprep.mubr.f32.mxu0 0.0
      %6871 = vmatmul.mubr.f32.gmra.mxu0 %v6775
      %v6872 = vpop.f32.mrf.mxu0
      %v6873 = vadd.f32 0.0, %v6872
      %v6874 = vpop.f32.mrf.mxu0
      %6875 = vmatprep.mubr.f32.mxu0 0.0
      %6876 = vmatmul.mubr.f32.gmra.mxu0 %v6778
      %v6877 = vpop.f32.mrf.mxu0
      %v6878 = vadd.f32 0.0, %v6877
      %v6879 = vpop.f32.mrf.mxu0
      %6880 = vmatprep.mubr.f32.mxu0 0.0
      %6881 = vmatmul.mubr.f32.gmra.mxu0 %v6781
      %v6882 = vpop.f32.mrf.mxu0
      %v6883 = vadd.f32 0.0, %v6882
      %v6884 = vpop.f32.mrf.mxu0
      %6885 = vmatprep.mubr.f32.mxu0 0.0
      %6886 = vmatmul.mubr.f32.gmra.mxu0 %v6784
      %v6887 = vpop.f32.mrf.mxu0
      %v6888 = vadd.f32 0.0, %v6887
      %v6889 = vpop.f32.mrf.mxu0
      %6890 = vdwg.mxu0
      %6891 = vrot.lane.b32.xlu0 %v1161, 96
      %v6892 = vpop.permute.xlu0 %6891
      %6893 = vrot.lane.b32.xlu0 %v1163, 96
      %v6894 = vpop.permute.xlu0 %6893
      %6895 = vrot.lane.b32.xlu0 %v1165, 96
      %v6896 = vpop.permute.xlu0 %6895
      %6897 = vrot.lane.b32.xlu0 %v1167, 96
      %v6898 = vpop.permute.xlu0 %6897
      %6899 = vrot.lane.b32.xlu0 %v1169, 96
      %v6900 = vpop.permute.xlu0 %6899
      %6901 = vrot.lane.b32.xlu0 %v1171, 96
      %v6902 = vpop.permute.xlu0 %6901
      %6903 = vrot.lane.b32.xlu0 %v1173, 96
      %v6904 = vpop.permute.xlu0 %6903
      %6905 = vrot.lane.b32.xlu0 %v1175, 96
      %v6906 = vpop.permute.xlu0 %6905
      %v6916 = vsel %vm3721, %v5458, 0
      %v6919 = vsel %vm3721, %v5459, 0
      %v6922 = vsel %vm3721, %v5460, 0
      %v6925 = vsel %vm3721, %v5461, 0
      %v6928 = vsel %vm3721, %v5462, 0
      %v6931 = vsel %vm3721, %v5463, 0
      %v6934 = vsel %vm3721, %v5464, 0
      %v6937 = vsel %vm3721, %v5465, 0
      %6939 = vmatprep.subr.mxu0 0.0
      %6940 = vmatpush1.msra.mxu0 0.0
      %6941 = vmatprep.subr.mxu0 0.0
      %6942 = vmatpush1.msra.mxu0 0.0
      %6943 = vmatprep.subr.mxu0 0.0
      %6944 = vmatpush1.msra.mxu0 0.0
      %6945 = vmatprep.subr.mxu0 0.0
      %6946 = vmatpush1.msra.mxu0 0.0
      %6947 = vmatprep.subr.mxu0 0.0
      %6948 = vmatpush1.msra.mxu0 0.0
      %6949 = vmatprep.subr.mxu0 0.0
      %6950 = vmatpush1.msra.mxu0 0.0
      %6951 = vmatprep.subr.mxu0 0.0
      %6952 = vmatpush1.msra.mxu0 0.0
      %6953 = vmatprep.subr.mxu0 0.0
      %6954 = vmatpush1.msra.mxu0 0.0
      %6955 = vmatprep.subr.mxu0 0.0
      %6956 = vmatpush1.msra.mxu0 %v6906
      %6957 = vmatprep.subr.mxu0 0.0
      %6958 = vmatpush1.msra.mxu0 %v6904
      %6959 = vmatprep.subr.mxu0 0.0
      %6960 = vmatpush1.msra.mxu0 %v6902
      %6961 = vmatprep.subr.mxu0 0.0
      %6962 = vmatpush1.msra.mxu0 %v6900
      %6963 = vmatprep.subr.mxu0 0.0
      %6964 = vmatpush1.msra.mxu0 %v6898
      %6965 = vmatprep.subr.mxu0 0.0
      %6966 = vmatpush1.msra.mxu0 %v6896
      %6967 = vmatprep.subr.mxu0 0.0
      %6968 = vmatpush1.msra.mxu0 %v6894
      %6969 = vmatprep.subr.mxu0 0.0
      %6970 = vmatpush1.msra.mxu0 %v6892
      %6971 = vmatprep.subr.mxu0 0.0
      %6972 = vmatpush2.msra.mxu0 0.0
      %6973 = vmatprep.subr.mxu0 0.0
      %6974 = vmatpush2.msra.mxu0 0.0
      %6975 = vmatprep.subr.mxu0 0.0
      %6976 = vmatpush2.msra.mxu0 0.0
      %6977 = vmatprep.subr.mxu0 0.0
      %6978 = vmatpush2.msra.mxu0 0.0
      %6979 = vmatprep.subr.mxu0 0.0
      %6980 = vmatpush2.msra.mxu0 0.0
      %6981 = vmatprep.subr.mxu0 0.0
      %6982 = vmatpush2.msra.mxu0 0.0
      %6983 = vmatprep.subr.mxu0 0.0
      %6984 = vmatpush2.msra.mxu0 0.0
      %6985 = vmatprep.subr.mxu0 0.0
      %6986 = vmatpush2.msra.mxu0 0.0
      %6987 = vmatprep.subr.mxu0 0.0
      %6988 = vmatpush2.msra.mxu0 0.0
      %6989 = vmatprep.subr.mxu0 0.0
      %6990 = vmatpush2.msra.mxu0 0.0
      %6991 = vmatprep.subr.mxu0 0.0
      %6992 = vmatpush2.msra.mxu0 0.0
      %6993 = vmatprep.subr.mxu0 0.0
      %6994 = vmatpush2.msra.mxu0 0.0
      %6995 = vmatprep.subr.mxu0 0.0
      %6996 = vmatpush2.msra.mxu0 0.0
      %6997 = vmatprep.subr.mxu0 0.0
      %6998 = vmatpush2.msra.mxu0 0.0
      %6999 = vmatprep.subr.mxu0 0.0
      %7000 = vmatpush2.msra.mxu0 0.0
      %7001 = vmatprep.subr.mxu0 0.0
      %7002 = vmatpush2.msra.mxu0 0.0
      %7003 = vmatprep.mubr.f32.mxu0 0.0
      %7004 = vmatmul.mubr.f32.gmra.mxu0 %v6916
      %v7005 = vpop.f32.mrf.mxu0
      %v7006 = vadd.f32 0.0, %v7005
      %v7007 = vpop.f32.mrf.mxu0
      %7008 = vmatprep.mubr.f32.mxu0 0.0
      %7009 = vmatmul.mubr.f32.gmra.mxu0 %v6919
      %v7010 = vpop.f32.mrf.mxu0
      %v7011 = vadd.f32 0.0, %v7010
      %v7012 = vpop.f32.mrf.mxu0
      %7013 = vmatprep.mubr.f32.mxu0 0.0
      %7014 = vmatmul.mubr.f32.gmra.mxu0 %v6922
      %v7015 = vpop.f32.mrf.mxu0
      %v7016 = vadd.f32 0.0, %v7015
      %v7017 = vpop.f32.mrf.mxu0
      %7018 = vmatprep.mubr.f32.mxu0 0.0
      %7019 = vmatmul.mubr.f32.gmra.mxu0 %v6925
      %v7020 = vpop.f32.mrf.mxu0
      %v7021 = vadd.f32 0.0, %v7020
      %v7022 = vpop.f32.mrf.mxu0
      %7023 = vmatprep.mubr.f32.mxu0 0.0
      %7024 = vmatmul.mubr.f32.gmra.mxu0 %v6928
      %v7025 = vpop.f32.mrf.mxu0
      %v7026 = vadd.f32 0.0, %v7025
      %v7027 = vpop.f32.mrf.mxu0
      %7028 = vmatprep.mubr.f32.mxu0 0.0
      %7029 = vmatmul.mubr.f32.gmra.mxu0 %v6931
      %v7030 = vpop.f32.mrf.mxu0
      %v7031 = vadd.f32 0.0, %v7030
      %v7032 = vpop.f32.mrf.mxu0
      %7033 = vmatprep.mubr.f32.mxu0 0.0
      %7034 = vmatmul.mubr.f32.gmra.mxu0 %v6934
      %v7035 = vpop.f32.mrf.mxu0
      %v7036 = vadd.f32 0.0, %v7035
      %v7037 = vpop.f32.mrf.mxu0
      %7038 = vmatprep.mubr.f32.mxu0 0.0
      %7039 = vmatmul.mubr.f32.gmra.mxu0 %v6937
      %v7040 = vpop.f32.mrf.mxu0
      %v7041 = vadd.f32 0.0, %v7040
      %v7042 = vpop.f32.mrf.mxu0
      %7043 = vdwg.mxu0
      %7044 = vrot.lane.b32.xlu0 %v1177, 96
      %v7045 = vpop.permute.xlu0 %7044
      %7046 = vrot.lane.b32.xlu0 %v1179, 96
      %v7047 = vpop.permute.xlu0 %7046
      %7048 = vrot.lane.b32.xlu0 %v1181, 96
      %v7049 = vpop.permute.xlu0 %7048
      %7050 = vrot.lane.b32.xlu0 %v1183, 96
      %v7051 = vpop.permute.xlu0 %7050
      %7052 = vrot.lane.b32.xlu0 %v1185, 96
      %v7053 = vpop.permute.xlu0 %7052
      %7054 = vrot.lane.b32.xlu0 %v1187, 96
      %v7055 = vpop.permute.xlu0 %7054
      %7056 = vrot.lane.b32.xlu0 %v1189, 96
      %v7057 = vpop.permute.xlu0 %7056
      %7058 = vrot.lane.b32.xlu0 %v1191, 96
      %v7059 = vpop.permute.xlu0 %7058
      %v7069 = vsel %vm3721, %v5466, 0
      %v7072 = vsel %vm3721, %v5467, 0
      %v7075 = vsel %vm3721, %v5468, 0
      %v7078 = vsel %vm3721, %v5469, 0
      %v7081 = vsel %vm3721, %v5470, 0
      %v7084 = vsel %vm3721, %v5471, 0
      %v7087 = vsel %vm3721, %v5472, 0
      %v7090 = vsel %vm3721, %v5473, 0
      %7092 = vmatprep.subr.mxu0 0.0
      %7093 = vmatpush1.msra.mxu0 0.0
      %7094 = vmatprep.subr.mxu0 0.0
      %7095 = vmatpush1.msra.mxu0 0.0
      %7096 = vmatprep.subr.mxu0 0.0
      %7097 = vmatpush1.msra.mxu0 0.0
      %7098 = vmatprep.subr.mxu0 0.0
      %7099 = vmatpush1.msra.mxu0 0.0
      %7100 = vmatprep.subr.mxu0 0.0
      %7101 = vmatpush1.msra.mxu0 0.0
      %7102 = vmatprep.subr.mxu0 0.0
      %7103 = vmatpush1.msra.mxu0 0.0
      %7104 = vmatprep.subr.mxu0 0.0
      %7105 = vmatpush1.msra.mxu0 0.0
      %7106 = vmatprep.subr.mxu0 0.0
      %7107 = vmatpush1.msra.mxu0 0.0
      %7108 = vmatprep.subr.mxu0 0.0
      %7109 = vmatpush1.msra.mxu0 %v7059
      %7110 = vmatprep.subr.mxu0 0.0
      %7111 = vmatpush1.msra.mxu0 %v7057
      %7112 = vmatprep.subr.mxu0 0.0
      %7113 = vmatpush1.msra.mxu0 %v7055
      %7114 = vmatprep.subr.mxu0 0.0
      %7115 = vmatpush1.msra.mxu0 %v7053
      %7116 = vmatprep.subr.mxu0 0.0
      %7117 = vmatpush1.msra.mxu0 %v7051
      %7118 = vmatprep.subr.mxu0 0.0
      %7119 = vmatpush1.msra.mxu0 %v7049
      %7120 = vmatprep.subr.mxu0 0.0
      %7121 = vmatpush1.msra.mxu0 %v7047
      %7122 = vmatprep.subr.mxu0 0.0
      %7123 = vmatpush1.msra.mxu0 %v7045
      %7124 = vmatprep.subr.mxu0 0.0
      %7125 = vmatpush2.msra.mxu0 0.0
      %7126 = vmatprep.subr.mxu0 0.0
      %7127 = vmatpush2.msra.mxu0 0.0
      %7128 = vmatprep.subr.mxu0 0.0
      %7129 = vmatpush2.msra.mxu0 0.0
      %7130 = vmatprep.subr.mxu0 0.0
      %7131 = vmatpush2.msra.mxu0 0.0
      %7132 = vmatprep.subr.mxu0 0.0
      %7133 = vmatpush2.msra.mxu0 0.0
      %7134 = vmatprep.subr.mxu0 0.0
      %7135 = vmatpush2.msra.mxu0 0.0
      %7136 = vmatprep.subr.mxu0 0.0
      %7137 = vmatpush2.msra.mxu0 0.0
      %7138 = vmatprep.subr.mxu0 0.0
      %7139 = vmatpush2.msra.mxu0 0.0
      %7140 = vmatprep.subr.mxu0 0.0
      %7141 = vmatpush2.msra.mxu0 0.0
      %7142 = vmatprep.subr.mxu0 0.0
      %7143 = vmatpush2.msra.mxu0 0.0
      %7144 = vmatprep.subr.mxu0 0.0
      %7145 = vmatpush2.msra.mxu0 0.0
      %7146 = vmatprep.subr.mxu0 0.0
      %7147 = vmatpush2.msra.mxu0 0.0
      %7148 = vmatprep.subr.mxu0 0.0
      %7149 = vmatpush2.msra.mxu0 0.0
      %7150 = vmatprep.subr.mxu0 0.0
      %7151 = vmatpush2.msra.mxu0 0.0
      %7152 = vmatprep.subr.mxu0 0.0
      %7153 = vmatpush2.msra.mxu0 0.0
      %7154 = vmatprep.subr.mxu0 0.0
      %7155 = vmatpush2.msra.mxu0 0.0
      %7156 = vmatprep.mubr.f32.mxu0 0.0
      %7157 = vmatmul.mubr.f32.gmra.mxu0 %v7069
      %v7158 = vpop.f32.mrf.mxu0
      %v7159 = vadd.f32 0.0, %v7158
      %v7160 = vpop.f32.mrf.mxu0
      %7161 = vmatprep.mubr.f32.mxu0 0.0
      %7162 = vmatmul.mubr.f32.gmra.mxu0 %v7072
      %v7163 = vpop.f32.mrf.mxu0
      %v7164 = vadd.f32 0.0, %v7163
      %v7165 = vpop.f32.mrf.mxu0
      %7166 = vmatprep.mubr.f32.mxu0 0.0
      %7167 = vmatmul.mubr.f32.gmra.mxu0 %v7075
      %v7168 = vpop.f32.mrf.mxu0
      %v7169 = vadd.f32 0.0, %v7168
      %v7170 = vpop.f32.mrf.mxu0
      %7171 = vmatprep.mubr.f32.mxu0 0.0
      %7172 = vmatmul.mubr.f32.gmra.mxu0 %v7078
      %v7173 = vpop.f32.mrf.mxu0
      %v7174 = vadd.f32 0.0, %v7173
      %v7175 = vpop.f32.mrf.mxu0
      %7176 = vmatprep.mubr.f32.mxu0 0.0
      %7177 = vmatmul.mubr.f32.gmra.mxu0 %v7081
      %v7178 = vpop.f32.mrf.mxu0
      %v7179 = vadd.f32 0.0, %v7178
      %v7180 = vpop.f32.mrf.mxu0
      %7181 = vmatprep.mubr.f32.mxu0 0.0
      %7182 = vmatmul.mubr.f32.gmra.mxu0 %v7084
      %v7183 = vpop.f32.mrf.mxu0
      %v7184 = vadd.f32 0.0, %v7183
      %v7185 = vpop.f32.mrf.mxu0
      %7186 = vmatprep.mubr.f32.mxu0 0.0
      %7187 = vmatmul.mubr.f32.gmra.mxu0 %v7087
      %v7188 = vpop.f32.mrf.mxu0
      %v7189 = vadd.f32 0.0, %v7188
      %v7190 = vpop.f32.mrf.mxu0
      %7191 = vmatprep.mubr.f32.mxu0 0.0
      %7192 = vmatmul.mubr.f32.gmra.mxu0 %v7090
      %v7193 = vpop.f32.mrf.mxu0
      %v7194 = vadd.f32 0.0, %v7193
      %v7195 = vpop.f32.mrf.mxu0
      %7196 = vdwg.mxu0
      %7197 = vrot.lane.b32.xlu0 %v1193, 96
      %v7198 = vpop.permute.xlu0 %7197
      %7199 = vrot.lane.b32.xlu0 %v1195, 96
      %v7200 = vpop.permute.xlu0 %7199
      %7201 = vrot.lane.b32.xlu0 %v1197, 96
      %v7202 = vpop.permute.xlu0 %7201
      %7203 = vrot.lane.b32.xlu0 %v1199, 96
      %v7204 = vpop.permute.xlu0 %7203
      %7205 = vrot.lane.b32.xlu0 %v1201, 96
      %v7206 = vpop.permute.xlu0 %7205
      %7207 = vrot.lane.b32.xlu0 %v1203, 96
      %v7208 = vpop.permute.xlu0 %7207
      %7209 = vrot.lane.b32.xlu0 %v1205, 96
      %v7210 = vpop.permute.xlu0 %7209
      %7211 = vrot.lane.b32.xlu0 %v1207, 96
      %v7212 = vpop.permute.xlu0 %7211
      %v7222 = vsel %vm3721, %v5474, 0
      %v7225 = vsel %vm3721, %v5475, 0
      %v7228 = vsel %vm3721, %v5476, 0
      %v7231 = vsel %vm3721, %v5477, 0
      %v7234 = vsel %vm3721, %v5478, 0
      %v7237 = vsel %vm3721, %v5479, 0
      %v7240 = vsel %vm3721, %v5480, 0
      %v7243 = vsel %vm3721, %v5481, 0
      %7245 = vmatprep.subr.mxu0 0.0
      %7246 = vmatpush1.msra.mxu0 0.0
      %7247 = vmatprep.subr.mxu0 0.0
      %7248 = vmatpush1.msra.mxu0 0.0
      %7249 = vmatprep.subr.mxu0 0.0
      %7250 = vmatpush1.msra.mxu0 0.0
      %7251 = vmatprep.subr.mxu0 0.0
      %7252 = vmatpush1.msra.mxu0 0.0
      %7253 = vmatprep.subr.mxu0 0.0
      %7254 = vmatpush1.msra.mxu0 0.0
      %7255 = vmatprep.subr.mxu0 0.0
      %7256 = vmatpush1.msra.mxu0 0.0
      %7257 = vmatprep.subr.mxu0 0.0
      %7258 = vmatpush1.msra.mxu0 0.0
      %7259 = vmatprep.subr.mxu0 0.0
      %7260 = vmatpush1.msra.mxu0 0.0
      %7261 = vmatprep.subr.mxu0 0.0
      %7262 = vmatpush1.msra.mxu0 %v7212
      %7263 = vmatprep.subr.mxu0 0.0
      %7264 = vmatpush1.msra.mxu0 %v7210
      %7265 = vmatprep.subr.mxu0 0.0
      %7266 = vmatpush1.msra.mxu0 %v7208
      %7267 = vmatprep.subr.mxu0 0.0
      %7268 = vmatpush1.msra.mxu0 %v7206
      %7269 = vmatprep.subr.mxu0 0.0
      %7270 = vmatpush1.msra.mxu0 %v7204
      %7271 = vmatprep.subr.mxu0 0.0
      %7272 = vmatpush1.msra.mxu0 %v7202
      %7273 = vmatprep.subr.mxu0 0.0
      %7274 = vmatpush1.msra.mxu0 %v7200
      %7275 = vmatprep.subr.mxu0 0.0
      %7276 = vmatpush1.msra.mxu0 %v7198
      %7277 = vmatprep.subr.mxu0 0.0
      %7278 = vmatpush2.msra.mxu0 0.0
      %7279 = vmatprep.subr.mxu0 0.0
      %7280 = vmatpush2.msra.mxu0 0.0
      %7281 = vmatprep.subr.mxu0 0.0
      %7282 = vmatpush2.msra.mxu0 0.0
      %7283 = vmatprep.subr.mxu0 0.0
      %7284 = vmatpush2.msra.mxu0 0.0
      %7285 = vmatprep.subr.mxu0 0.0
      %7286 = vmatpush2.msra.mxu0 0.0
      %7287 = vmatprep.subr.mxu0 0.0
      %7288 = vmatpush2.msra.mxu0 0.0
      %7289 = vmatprep.subr.mxu0 0.0
      %7290 = vmatpush2.msra.mxu0 0.0
      %7291 = vmatprep.subr.mxu0 0.0
      %7292 = vmatpush2.msra.mxu0 0.0
      %7293 = vmatprep.subr.mxu0 0.0
      %7294 = vmatpush2.msra.mxu0 0.0
      %7295 = vmatprep.subr.mxu0 0.0
      %7296 = vmatpush2.msra.mxu0 0.0
      %7297 = vmatprep.subr.mxu0 0.0
      %7298 = vmatpush2.msra.mxu0 0.0
      %7299 = vmatprep.subr.mxu0 0.0
      %7300 = vmatpush2.msra.mxu0 0.0
      %7301 = vmatprep.subr.mxu0 0.0
      %7302 = vmatpush2.msra.mxu0 0.0
      %7303 = vmatprep.subr.mxu0 0.0
      %7304 = vmatpush2.msra.mxu0 0.0
      %7305 = vmatprep.subr.mxu0 0.0
      %7306 = vmatpush2.msra.mxu0 0.0
      %7307 = vmatprep.subr.mxu0 0.0
      %7308 = vmatpush2.msra.mxu0 0.0
      %7309 = vmatprep.mubr.f32.mxu0 0.0
      %7310 = vmatmul.mubr.f32.gmra.mxu0 %v7222
      %v7311 = vpop.f32.mrf.mxu0
      %v7312 = vadd.f32 0.0, %v7311
      %v7313 = vpop.f32.mrf.mxu0
      %7314 = vmatprep.mubr.f32.mxu0 0.0
      %7315 = vmatmul.mubr.f32.gmra.mxu0 %v7225
      %v7316 = vpop.f32.mrf.mxu0
      %v7317 = vadd.f32 0.0, %v7316
      %v7318 = vpop.f32.mrf.mxu0
      %7319 = vmatprep.mubr.f32.mxu0 0.0
      %7320 = vmatmul.mubr.f32.gmra.mxu0 %v7228
      %v7321 = vpop.f32.mrf.mxu0
      %v7322 = vadd.f32 0.0, %v7321
      %v7323 = vpop.f32.mrf.mxu0
      %7324 = vmatprep.mubr.f32.mxu0 0.0
      %7325 = vmatmul.mubr.f32.gmra.mxu0 %v7231
      %v7326 = vpop.f32.mrf.mxu0
      %v7327 = vadd.f32 0.0, %v7326
      %v7328 = vpop.f32.mrf.mxu0
      %7329 = vmatprep.mubr.f32.mxu0 0.0
      %7330 = vmatmul.mubr.f32.gmra.mxu0 %v7234
      %v7331 = vpop.f32.mrf.mxu0
      %v7332 = vadd.f32 0.0, %v7331
      %v7333 = vpop.f32.mrf.mxu0
      %7334 = vmatprep.mubr.f32.mxu0 0.0
      %7335 = vmatmul.mubr.f32.gmra.mxu0 %v7237
      %v7336 = vpop.f32.mrf.mxu0
      %v7337 = vadd.f32 0.0, %v7336
      %v7338 = vpop.f32.mrf.mxu0
      %7339 = vmatprep.mubr.f32.mxu0 0.0
      %7340 = vmatmul.mubr.f32.gmra.mxu0 %v7240
      %v7341 = vpop.f32.mrf.mxu0
      %v7342 = vadd.f32 0.0, %v7341
      %v7343 = vpop.f32.mrf.mxu0
      %7344 = vmatprep.mubr.f32.mxu0 0.0
      %7345 = vmatmul.mubr.f32.gmra.mxu0 %v7243
      %v7346 = vpop.f32.mrf.mxu0
      %v7347 = vadd.f32 0.0, %v7346
      %v7348 = vpop.f32.mrf.mxu0
      %7349 = vdwg.mxu0
      %7350 = vrot.lane.b32.xlu0 %v1209, 96
      %v7351 = vpop.permute.xlu0 %7350
      %7352 = vrot.lane.b32.xlu0 %v1211, 96
      %v7353 = vpop.permute.xlu0 %7352
      %7354 = vrot.lane.b32.xlu0 %v1213, 96
      %v7355 = vpop.permute.xlu0 %7354
      %7356 = vrot.lane.b32.xlu0 %v1215, 96
      %v7357 = vpop.permute.xlu0 %7356
      %7358 = vrot.lane.b32.xlu0 %v1217, 96
      %v7359 = vpop.permute.xlu0 %7358
      %7360 = vrot.lane.b32.xlu0 %v1219, 96
      %v7361 = vpop.permute.xlu0 %7360
      %7362 = vrot.lane.b32.xlu0 %v1221, 96
      %v7363 = vpop.permute.xlu0 %7362
      %7364 = vrot.lane.b32.xlu0 %v1223, 96
      %v7365 = vpop.permute.xlu0 %7364
      %v7375 = vsel %vm3721, %v5482, 0
      %v7378 = vsel %vm3721, %v5483, 0
      %v7381 = vsel %vm3721, %v5484, 0
      %v7384 = vsel %vm3721, %v5485, 0
      %v7387 = vsel %vm3721, %v5486, 0
      %v7390 = vsel %vm3721, %v5487, 0
      %v7393 = vsel %vm3721, %v5488, 0
      %v7396 = vsel %vm3721, %v5489, 0
      %7398 = vmatprep.subr.mxu0 0.0
      %7399 = vmatpush1.msra.mxu0 0.0
      %7400 = vmatprep.subr.mxu0 0.0
      %7401 = vmatpush1.msra.mxu0 0.0
      %7402 = vmatprep.subr.mxu0 0.0
      %7403 = vmatpush1.msra.mxu0 0.0
      %7404 = vmatprep.subr.mxu0 0.0
      %7405 = vmatpush1.msra.mxu0 0.0
      %7406 = vmatprep.subr.mxu0 0.0
      %7407 = vmatpush1.msra.mxu0 0.0
      %7408 = vmatprep.subr.mxu0 0.0
      %7409 = vmatpush1.msra.mxu0 0.0
      %7410 = vmatprep.subr.mxu0 0.0
      %7411 = vmatpush1.msra.mxu0 0.0
      %7412 = vmatprep.subr.mxu0 0.0
      %7413 = vmatpush1.msra.mxu0 0.0
      %7414 = vmatprep.subr.mxu0 0.0
      %7415 = vmatpush1.msra.mxu0 %v7365
      %7416 = vmatprep.subr.mxu0 0.0
      %7417 = vmatpush1.msra.mxu0 %v7363
      %7418 = vmatprep.subr.mxu0 0.0
      %7419 = vmatpush1.msra.mxu0 %v7361
      %7420 = vmatprep.subr.mxu0 0.0
      %7421 = vmatpush1.msra.mxu0 %v7359
      %7422 = vmatprep.subr.mxu0 0.0
      %7423 = vmatpush1.msra.mxu0 %v7357
      %7424 = vmatprep.subr.mxu0 0.0
      %7425 = vmatpush1.msra.mxu0 %v7355
      %7426 = vmatprep.subr.mxu0 0.0
      %7427 = vmatpush1.msra.mxu0 %v7353
      %7428 = vmatprep.subr.mxu0 0.0
      %7429 = vmatpush1.msra.mxu0 %v7351
      %7430 = vmatprep.subr.mxu0 0.0
      %7431 = vmatpush2.msra.mxu0 0.0
      %7432 = vmatprep.subr.mxu0 0.0
      %7433 = vmatpush2.msra.mxu0 0.0
      %7434 = vmatprep.subr.mxu0 0.0
      %7435 = vmatpush2.msra.mxu0 0.0
      %7436 = vmatprep.subr.mxu0 0.0
      %7437 = vmatpush2.msra.mxu0 0.0
      %7438 = vmatprep.subr.mxu0 0.0
      %7439 = vmatpush2.msra.mxu0 0.0
      %7440 = vmatprep.subr.mxu0 0.0
      %7441 = vmatpush2.msra.mxu0 0.0
      %7442 = vmatprep.subr.mxu0 0.0
      %7443 = vmatpush2.msra.mxu0 0.0
      %7444 = vmatprep.subr.mxu0 0.0
      %7445 = vmatpush2.msra.mxu0 0.0
      %7446 = vmatprep.subr.mxu0 0.0
      %7447 = vmatpush2.msra.mxu0 0.0
      %7448 = vmatprep.subr.mxu0 0.0
      %7449 = vmatpush2.msra.mxu0 0.0
      %7450 = vmatprep.subr.mxu0 0.0
      %7451 = vmatpush2.msra.mxu0 0.0
      %7452 = vmatprep.subr.mxu0 0.0
      %7453 = vmatpush2.msra.mxu0 0.0
      %7454 = vmatprep.subr.mxu0 0.0
      %7455 = vmatpush2.msra.mxu0 0.0
      %7456 = vmatprep.subr.mxu0 0.0
      %7457 = vmatpush2.msra.mxu0 0.0
      %7458 = vmatprep.subr.mxu0 0.0
      %7459 = vmatpush2.msra.mxu0 0.0
      %7460 = vmatprep.subr.mxu0 0.0
      %7461 = vmatpush2.msra.mxu0 0.0
      %7462 = vmatprep.mubr.f32.mxu0 0.0
      %7463 = vmatmul.mubr.f32.gmra.mxu0 %v7375
      %v7464 = vpop.f32.mrf.mxu0
      %v7465 = vadd.f32 0.0, %v7464
      %v7466 = vpop.f32.mrf.mxu0
      %7467 = vmatprep.mubr.f32.mxu0 0.0
      %7468 = vmatmul.mubr.f32.gmra.mxu0 %v7378
      %v7469 = vpop.f32.mrf.mxu0
      %v7470 = vadd.f32 0.0, %v7469
      %v7471 = vpop.f32.mrf.mxu0
      %7472 = vmatprep.mubr.f32.mxu0 0.0
      %7473 = vmatmul.mubr.f32.gmra.mxu0 %v7381
      %v7474 = vpop.f32.mrf.mxu0
      %v7475 = vadd.f32 0.0, %v7474
      %v7476 = vpop.f32.mrf.mxu0
      %7477 = vmatprep.mubr.f32.mxu0 0.0
      %7478 = vmatmul.mubr.f32.gmra.mxu0 %v7384
      %v7479 = vpop.f32.mrf.mxu0
      %v7480 = vadd.f32 0.0, %v7479
      %v7481 = vpop.f32.mrf.mxu0
      %7482 = vmatprep.mubr.f32.mxu0 0.0
      %7483 = vmatmul.mubr.f32.gmra.mxu0 %v7387
      %v7484 = vpop.f32.mrf.mxu0
      %v7485 = vadd.f32 0.0, %v7484
      %v7486 = vpop.f32.mrf.mxu0
      %7487 = vmatprep.mubr.f32.mxu0 0.0
      %7488 = vmatmul.mubr.f32.gmra.mxu0 %v7390
      %v7489 = vpop.f32.mrf.mxu0
      %v7490 = vadd.f32 0.0, %v7489
      %v7491 = vpop.f32.mrf.mxu0
      %7492 = vmatprep.mubr.f32.mxu0 0.0
      %7493 = vmatmul.mubr.f32.gmra.mxu0 %v7393
      %v7494 = vpop.f32.mrf.mxu0
      %v7495 = vadd.f32 0.0, %v7494
      %v7496 = vpop.f32.mrf.mxu0
      %7497 = vmatprep.mubr.f32.mxu0 0.0
      %7498 = vmatmul.mubr.f32.gmra.mxu0 %v7396
      %v7499 = vpop.f32.mrf.mxu0
      %v7500 = vadd.f32 0.0, %v7499
      %v7501 = vpop.f32.mrf.mxu0
      %7502 = vdwg.mxu0
      %7503 = vrot.lane.b32.xlu0 %v1225, 96
      %v7504 = vpop.permute.xlu0 %7503
      %7505 = vrot.lane.b32.xlu0 %v1227, 96
      %v7506 = vpop.permute.xlu0 %7505
      %7507 = vrot.lane.b32.xlu0 %v1229, 96
      %v7508 = vpop.permute.xlu0 %7507
      %7509 = vrot.lane.b32.xlu0 %v1231, 96
      %v7510 = vpop.permute.xlu0 %7509
      %7511 = vrot.lane.b32.xlu0 %v1233, 96
      %v7512 = vpop.permute.xlu0 %7511
      %7513 = vrot.lane.b32.xlu0 %v1235, 96
      %v7514 = vpop.permute.xlu0 %7513
      %7515 = vrot.lane.b32.xlu0 %v1237, 96
      %v7516 = vpop.permute.xlu0 %7515
      %7517 = vrot.lane.b32.xlu0 %v1239, 96
      %v7518 = vpop.permute.xlu0 %7517
      %v7528 = vsel %vm3721, %v5490, 0
      %v7531 = vsel %vm3721, %v5491, 0
      %v7534 = vsel %vm3721, %v5492, 0
      %v7537 = vsel %vm3721, %v5493, 0
      %v7540 = vsel %vm3721, %v5494, 0
      %v7543 = vsel %vm3721, %v5495, 0
      %v7546 = vsel %vm3721, %v5496, 0
      %v7549 = vsel %vm3721, %v5497, 0
      %7551 = vmatprep.subr.mxu0 0.0
      %7552 = vmatpush1.msra.mxu0 0.0
      %7553 = vmatprep.subr.mxu0 0.0
      %7554 = vmatpush1.msra.mxu0 0.0
      %7555 = vmatprep.subr.mxu0 0.0
      %7556 = vmatpush1.msra.mxu0 0.0
      %7557 = vmatprep.subr.mxu0 0.0
      %7558 = vmatpush1.msra.mxu0 0.0
      %7559 = vmatprep.subr.mxu0 0.0
      %7560 = vmatpush1.msra.mxu0 0.0
      %7561 = vmatprep.subr.mxu0 0.0
      %7562 = vmatpush1.msra.mxu0 0.0
      %7563 = vmatprep.subr.mxu0 0.0
      %7564 = vmatpush1.msra.mxu0 0.0
      %7565 = vmatprep.subr.mxu0 0.0
      %7566 = vmatpush1.msra.mxu0 0.0
      %7567 = vmatprep.subr.mxu0 0.0
      %7568 = vmatpush1.msra.mxu0 %v7518
      %7569 = vmatprep.subr.mxu0 0.0
      %7570 = vmatpush1.msra.mxu0 %v7516
      %7571 = vmatprep.subr.mxu0 0.0
      %7572 = vmatpush1.msra.mxu0 %v7514
      %7573 = vmatprep.subr.mxu0 0.0
      %7574 = vmatpush1.msra.mxu0 %v7512
      %7575 = vmatprep.subr.mxu0 0.0
      %7576 = vmatpush1.msra.mxu0 %v7510
      %7577 = vmatprep.subr.mxu0 0.0
      %7578 = vmatpush1.msra.mxu0 %v7508
      %7579 = vmatprep.subr.mxu0 0.0
      %7580 = vmatpush1.msra.mxu0 %v7506
      %7581 = vmatprep.subr.mxu0 0.0
      %7582 = vmatpush1.msra.mxu0 %v7504
      %7583 = vmatprep.subr.mxu0 0.0
      %7584 = vmatpush2.msra.mxu0 0.0
      %7585 = vmatprep.subr.mxu0 0.0
      %7586 = vmatpush2.msra.mxu0 0.0
      %7587 = vmatprep.subr.mxu0 0.0
      %7588 = vmatpush2.msra.mxu0 0.0
      %7589 = vmatprep.subr.mxu0 0.0
      %7590 = vmatpush2.msra.mxu0 0.0
      %7591 = vmatprep.subr.mxu0 0.0
      %7592 = vmatpush2.msra.mxu0 0.0
      %7593 = vmatprep.subr.mxu0 0.0
      %7594 = vmatpush2.msra.mxu0 0.0
      %7595 = vmatprep.subr.mxu0 0.0
      %7596 = vmatpush2.msra.mxu0 0.0
      %7597 = vmatprep.subr.mxu0 0.0
      %7598 = vmatpush2.msra.mxu0 0.0
      %7599 = vmatprep.subr.mxu0 0.0
      %7600 = vmatpush2.msra.mxu0 0.0
      %7601 = vmatprep.subr.mxu0 0.0
      %7602 = vmatpush2.msra.mxu0 0.0
      %7603 = vmatprep.subr.mxu0 0.0
      %7604 = vmatpush2.msra.mxu0 0.0
      %7605 = vmatprep.subr.mxu0 0.0
      %7606 = vmatpush2.msra.mxu0 0.0
      %7607 = vmatprep.subr.mxu0 0.0
      %7608 = vmatpush2.msra.mxu0 0.0
      %7609 = vmatprep.subr.mxu0 0.0
      %7610 = vmatpush2.msra.mxu0 0.0
      %7611 = vmatprep.subr.mxu0 0.0
      %7612 = vmatpush2.msra.mxu0 0.0
      %7613 = vmatprep.subr.mxu0 0.0
      %7614 = vmatpush2.msra.mxu0 0.0
      %7615 = vmatprep.mubr.f32.mxu0 0.0
      %7616 = vmatmul.mubr.f32.gmra.mxu0 %v7528
      %v7617 = vpop.f32.mrf.mxu0
      %v7618 = vadd.f32 0.0, %v7617
      %v7619 = vpop.f32.mrf.mxu0
      %7620 = vmatprep.mubr.f32.mxu0 0.0
      %7621 = vmatmul.mubr.f32.gmra.mxu0 %v7531
      %v7622 = vpop.f32.mrf.mxu0
      %v7623 = vadd.f32 0.0, %v7622
      %v7624 = vpop.f32.mrf.mxu0
      %7625 = vmatprep.mubr.f32.mxu0 0.0
      %7626 = vmatmul.mubr.f32.gmra.mxu0 %v7534
      %v7627 = vpop.f32.mrf.mxu0
      %v7628 = vadd.f32 0.0, %v7627
      %v7629 = vpop.f32.mrf.mxu0
      %7630 = vmatprep.mubr.f32.mxu0 0.0
      %7631 = vmatmul.mubr.f32.gmra.mxu0 %v7537
      %v7632 = vpop.f32.mrf.mxu0
      %v7633 = vadd.f32 0.0, %v7632
      %v7634 = vpop.f32.mrf.mxu0
      %7635 = vmatprep.mubr.f32.mxu0 0.0
      %7636 = vmatmul.mubr.f32.gmra.mxu0 %v7540
      %v7637 = vpop.f32.mrf.mxu0
      %v7638 = vadd.f32 0.0, %v7637
      %v7639 = vpop.f32.mrf.mxu0
      %7640 = vmatprep.mubr.f32.mxu0 0.0
      %7641 = vmatmul.mubr.f32.gmra.mxu0 %v7543
      %v7642 = vpop.f32.mrf.mxu0
      %v7643 = vadd.f32 0.0, %v7642
      %v7644 = vpop.f32.mrf.mxu0
      %7645 = vmatprep.mubr.f32.mxu0 0.0
      %7646 = vmatmul.mubr.f32.gmra.mxu0 %v7546
      %v7647 = vpop.f32.mrf.mxu0
      %v7648 = vadd.f32 0.0, %v7647
      %v7649 = vpop.f32.mrf.mxu0
      %7650 = vmatprep.mubr.f32.mxu0 0.0
      %7651 = vmatmul.mubr.f32.gmra.mxu0 %v7549
      %v7652 = vpop.f32.mrf.mxu0
      %v7653 = vadd.f32 0.0, %v7652
      %v7654 = vpop.f32.mrf.mxu0
      %7655 = vdwg.mxu0
      %7656 = vrot.lane.b32.xlu0 %v1241, 96
      %v7657 = vpop.permute.xlu0 %7656
      %7658 = vrot.lane.b32.xlu0 %v1243, 96
      %v7659 = vpop.permute.xlu0 %7658
      %7660 = vrot.lane.b32.xlu0 %v1245, 96
      %v7661 = vpop.permute.xlu0 %7660
      %7662 = vrot.lane.b32.xlu0 %v1247, 96
      %v7663 = vpop.permute.xlu0 %7662
      %7664 = vrot.lane.b32.xlu0 %v1249, 96
      %v7665 = vpop.permute.xlu0 %7664
      %7666 = vrot.lane.b32.xlu0 %v1251, 96
      %v7667 = vpop.permute.xlu0 %7666
      %7668 = vrot.lane.b32.xlu0 %v1253, 96
      %v7669 = vpop.permute.xlu0 %7668
      %7670 = vrot.lane.b32.xlu0 %v1255, 96
      %v7671 = vpop.permute.xlu0 %7670
      %v7681 = vsel %vm3721, %v5498, 0
      %v7684 = vsel %vm3721, %v5499, 0
      %v7687 = vsel %vm3721, %v5500, 0
      %v7690 = vsel %vm3721, %v5501, 0
      %v7693 = vsel %vm3721, %v5502, 0
      %v7696 = vsel %vm3721, %v5503, 0
      %v7699 = vsel %vm3721, %v5504, 0
      %v7702 = vsel %vm3721, %v5505, 0
      %7704 = vmatprep.subr.mxu0 0.0
      %7705 = vmatpush1.msra.mxu0 0.0
      %7706 = vmatprep.subr.mxu0 0.0
      %7707 = vmatpush1.msra.mxu0 0.0
      %7708 = vmatprep.subr.mxu0 0.0
      %7709 = vmatpush1.msra.mxu0 0.0
      %7710 = vmatprep.subr.mxu0 0.0
      %7711 = vmatpush1.msra.mxu0 0.0
      %7712 = vmatprep.subr.mxu0 0.0
      %7713 = vmatpush1.msra.mxu0 0.0
      %7714 = vmatprep.subr.mxu0 0.0
      %7715 = vmatpush1.msra.mxu0 0.0
      %7716 = vmatprep.subr.mxu0 0.0
      %7717 = vmatpush1.msra.mxu0 0.0
      %7718 = vmatprep.subr.mxu0 0.0
      %7719 = vmatpush1.msra.mxu0 0.0
      %7720 = vmatprep.subr.mxu0 0.0
      %7721 = vmatpush1.msra.mxu0 %v7671
      %7722 = vmatprep.subr.mxu0 0.0
      %7723 = vmatpush1.msra.mxu0 %v7669
      %7724 = vmatprep.subr.mxu0 0.0
      %7725 = vmatpush1.msra.mxu0 %v7667
      %7726 = vmatprep.subr.mxu0 0.0
      %7727 = vmatpush1.msra.mxu0 %v7665
      %7728 = vmatprep.subr.mxu0 0.0
      %7729 = vmatpush1.msra.mxu0 %v7663
      %7730 = vmatprep.subr.mxu0 0.0
      %7731 = vmatpush1.msra.mxu0 %v7661
      %7732 = vmatprep.subr.mxu0 0.0
      %7733 = vmatpush1.msra.mxu0 %v7659
      %7734 = vmatprep.subr.mxu0 0.0
      %7735 = vmatpush1.msra.mxu0 %v7657
      %7736 = vmatprep.subr.mxu0 0.0
      %7737 = vmatpush2.msra.mxu0 0.0
      %7738 = vmatprep.subr.mxu0 0.0
      %7739 = vmatpush2.msra.mxu0 0.0
      %7740 = vmatprep.subr.mxu0 0.0
      %7741 = vmatpush2.msra.mxu0 0.0
      %7742 = vmatprep.subr.mxu0 0.0
      %7743 = vmatpush2.msra.mxu0 0.0
      %7744 = vmatprep.subr.mxu0 0.0
      %7745 = vmatpush2.msra.mxu0 0.0
      %7746 = vmatprep.subr.mxu0 0.0
      %7747 = vmatpush2.msra.mxu0 0.0
      %7748 = vmatprep.subr.mxu0 0.0
      %7749 = vmatpush2.msra.mxu0 0.0
      %7750 = vmatprep.subr.mxu0 0.0
      %7751 = vmatpush2.msra.mxu0 0.0
      %7752 = vmatprep.subr.mxu0 0.0
      %7753 = vmatpush2.msra.mxu0 0.0
      %7754 = vmatprep.subr.mxu0 0.0
      %7755 = vmatpush2.msra.mxu0 0.0
      %7756 = vmatprep.subr.mxu0 0.0
      %7757 = vmatpush2.msra.mxu0 0.0
      %7758 = vmatprep.subr.mxu0 0.0
      %7759 = vmatpush2.msra.mxu0 0.0
      %7760 = vmatprep.subr.mxu0 0.0
      %7761 = vmatpush2.msra.mxu0 0.0
      %7762 = vmatprep.subr.mxu0 0.0
      %7763 = vmatpush2.msra.mxu0 0.0
      %7764 = vmatprep.subr.mxu0 0.0
      %7765 = vmatpush2.msra.mxu0 0.0
      %7766 = vmatprep.subr.mxu0 0.0
      %7767 = vmatpush2.msra.mxu0 0.0
      %7768 = vmatprep.mubr.f32.mxu0 0.0
      %7769 = vmatmul.mubr.f32.gmra.mxu0 %v7681
      %v7770 = vpop.f32.mrf.mxu0
      %v7771 = vadd.f32 0.0, %v7770
      %v7772 = vpop.f32.mrf.mxu0
      %7773 = vmatprep.mubr.f32.mxu0 0.0
      %7774 = vmatmul.mubr.f32.gmra.mxu0 %v7684
      %v7775 = vpop.f32.mrf.mxu0
      %v7776 = vadd.f32 0.0, %v7775
      %v7777 = vpop.f32.mrf.mxu0
      %7778 = vmatprep.mubr.f32.mxu0 0.0
      %7779 = vmatmul.mubr.f32.gmra.mxu0 %v7687
      %v7780 = vpop.f32.mrf.mxu0
      %v7781 = vadd.f32 0.0, %v7780
      %v7782 = vpop.f32.mrf.mxu0
      %7783 = vmatprep.mubr.f32.mxu0 0.0
      %7784 = vmatmul.mubr.f32.gmra.mxu0 %v7690
      %v7785 = vpop.f32.mrf.mxu0
      %v7786 = vadd.f32 0.0, %v7785
      %v7787 = vpop.f32.mrf.mxu0
      %7788 = vmatprep.mubr.f32.mxu0 0.0
      %7789 = vmatmul.mubr.f32.gmra.mxu0 %v7693
      %v7790 = vpop.f32.mrf.mxu0
      %v7791 = vadd.f32 0.0, %v7790
      %v7792 = vpop.f32.mrf.mxu0
      %7793 = vmatprep.mubr.f32.mxu0 0.0
      %7794 = vmatmul.mubr.f32.gmra.mxu0 %v7696
      %v7795 = vpop.f32.mrf.mxu0
      %v7796 = vadd.f32 0.0, %v7795
      %v7797 = vpop.f32.mrf.mxu0
      %7798 = vmatprep.mubr.f32.mxu0 0.0
      %7799 = vmatmul.mubr.f32.gmra.mxu0 %v7699
      %v7800 = vpop.f32.mrf.mxu0
      %v7801 = vadd.f32 0.0, %v7800
      %v7802 = vpop.f32.mrf.mxu0
      %7803 = vmatprep.mubr.f32.mxu0 0.0
      %7804 = vmatmul.mubr.f32.gmra.mxu0 %v7702
      %v7805 = vpop.f32.mrf.mxu0
      %v7806 = vadd.f32 0.0, %v7805
      %v7807 = vpop.f32.mrf.mxu0
      %7808 = vdwg.mxu0
      %7809 = vrot.lane.b32.xlu0 %v1257, 96
      %v7810 = vpop.permute.xlu0 %7809
      %7811 = vrot.lane.b32.xlu0 %v1259, 96
      %v7812 = vpop.permute.xlu0 %7811
      %7813 = vrot.lane.b32.xlu0 %v1261, 96
      %v7814 = vpop.permute.xlu0 %7813
      %7815 = vrot.lane.b32.xlu0 %v1263, 96
      %v7816 = vpop.permute.xlu0 %7815
      %7817 = vrot.lane.b32.xlu0 %v1265, 96
      %v7818 = vpop.permute.xlu0 %7817
      %7819 = vrot.lane.b32.xlu0 %v1267, 96
      %v7820 = vpop.permute.xlu0 %7819
      %7821 = vrot.lane.b32.xlu0 %v1269, 96
      %v7822 = vpop.permute.xlu0 %7821
      %7823 = vrot.lane.b32.xlu0 %v1271, 96
      %v7824 = vpop.permute.xlu0 %7823
      %v7834 = vsel %vm3721, %v5506, 0
      %v7837 = vsel %vm3721, %v5507, 0
      %v7840 = vsel %vm3721, %v5508, 0
      %v7843 = vsel %vm3721, %v5509, 0
      %v7846 = vsel %vm3721, %v5510, 0
      %v7849 = vsel %vm3721, %v5511, 0
      %v7852 = vsel %vm3721, %v5512, 0
      %v7855 = vsel %vm3721, %v5513, 0
      %7857 = vmatprep.subr.mxu0 0.0
      %7858 = vmatpush1.msra.mxu0 0.0
      %7859 = vmatprep.subr.mxu0 0.0
      %7860 = vmatpush1.msra.mxu0 0.0
      %7861 = vmatprep.subr.mxu0 0.0
      %7862 = vmatpush1.msra.mxu0 0.0
      %7863 = vmatprep.subr.mxu0 0.0
      %7864 = vmatpush1.msra.mxu0 0.0
      %7865 = vmatprep.subr.mxu0 0.0
      %7866 = vmatpush1.msra.mxu0 0.0
      %7867 = vmatprep.subr.mxu0 0.0
      %7868 = vmatpush1.msra.mxu0 0.0
      %7869 = vmatprep.subr.mxu0 0.0
      %7870 = vmatpush1.msra.mxu0 0.0
      %7871 = vmatprep.subr.mxu0 0.0
      %7872 = vmatpush1.msra.mxu0 0.0
      %7873 = vmatprep.subr.mxu0 0.0
      %7874 = vmatpush1.msra.mxu0 %v7824
      %7875 = vmatprep.subr.mxu0 0.0
      %7876 = vmatpush1.msra.mxu0 %v7822
      %7877 = vmatprep.subr.mxu0 0.0
      %7878 = vmatpush1.msra.mxu0 %v7820
      %7879 = vmatprep.subr.mxu0 0.0
      %7880 = vmatpush1.msra.mxu0 %v7818
      %7881 = vmatprep.subr.mxu0 0.0
      %7882 = vmatpush1.msra.mxu0 %v7816
      %7883 = vmatprep.subr.mxu0 0.0
      %7884 = vmatpush1.msra.mxu0 %v7814
      %7885 = vmatprep.subr.mxu0 0.0
      %7886 = vmatpush1.msra.mxu0 %v7812
      %7887 = vmatprep.subr.mxu0 0.0
      %7888 = vmatpush1.msra.mxu0 %v7810
      %7889 = vmatprep.subr.mxu0 0.0
      %7890 = vmatpush2.msra.mxu0 0.0
      %7891 = vmatprep.subr.mxu0 0.0
      %7892 = vmatpush2.msra.mxu0 0.0
      %7893 = vmatprep.subr.mxu0 0.0
      %7894 = vmatpush2.msra.mxu0 0.0
      %7895 = vmatprep.subr.mxu0 0.0
      %7896 = vmatpush2.msra.mxu0 0.0
      %7897 = vmatprep.subr.mxu0 0.0
      %7898 = vmatpush2.msra.mxu0 0.0
      %7899 = vmatprep.subr.mxu0 0.0
      %7900 = vmatpush2.msra.mxu0 0.0
      %7901 = vmatprep.subr.mxu0 0.0
      %7902 = vmatpush2.msra.mxu0 0.0
      %7903 = vmatprep.subr.mxu0 0.0
      %7904 = vmatpush2.msra.mxu0 0.0
      %7905 = vmatprep.subr.mxu0 0.0
      %7906 = vmatpush2.msra.mxu0 0.0
      %7907 = vmatprep.subr.mxu0 0.0
      %7908 = vmatpush2.msra.mxu0 0.0
      %7909 = vmatprep.subr.mxu0 0.0
      %7910 = vmatpush2.msra.mxu0 0.0
      %7911 = vmatprep.subr.mxu0 0.0
      %7912 = vmatpush2.msra.mxu0 0.0
      %7913 = vmatprep.subr.mxu0 0.0
      %7914 = vmatpush2.msra.mxu0 0.0
      %7915 = vmatprep.subr.mxu0 0.0
      %7916 = vmatpush2.msra.mxu0 0.0
      %7917 = vmatprep.subr.mxu0 0.0
      %7918 = vmatpush2.msra.mxu0 0.0
      %7919 = vmatprep.subr.mxu0 0.0
      %7920 = vmatpush2.msra.mxu0 0.0
      %7921 = vmatprep.mubr.f32.mxu0 0.0
      %7922 = vmatmul.mubr.f32.gmra.mxu0 %v7834
      %v7923 = vpop.f32.mrf.mxu0
      %v7924 = vadd.f32 0.0, %v7923
      %v7925 = vpop.f32.mrf.mxu0
      %7926 = vmatprep.mubr.f32.mxu0 0.0
      %7927 = vmatmul.mubr.f32.gmra.mxu0 %v7837
      %v7928 = vpop.f32.mrf.mxu0
      %v7929 = vadd.f32 0.0, %v7928
      %v7930 = vpop.f32.mrf.mxu0
      %7931 = vmatprep.mubr.f32.mxu0 0.0
      %7932 = vmatmul.mubr.f32.gmra.mxu0 %v7840
      %v7933 = vpop.f32.mrf.mxu0
      %v7934 = vadd.f32 0.0, %v7933
      %v7935 = vpop.f32.mrf.mxu0
      %7936 = vmatprep.mubr.f32.mxu0 0.0
      %7937 = vmatmul.mubr.f32.gmra.mxu0 %v7843
      %v7938 = vpop.f32.mrf.mxu0
      %v7939 = vadd.f32 0.0, %v7938
      %v7940 = vpop.f32.mrf.mxu0
      %7941 = vmatprep.mubr.f32.mxu0 0.0
      %7942 = vmatmul.mubr.f32.gmra.mxu0 %v7846
      %v7943 = vpop.f32.mrf.mxu0
      %v7944 = vadd.f32 0.0, %v7943
      %v7945 = vpop.f32.mrf.mxu0
      %7946 = vmatprep.mubr.f32.mxu0 0.0
      %7947 = vmatmul.mubr.f32.gmra.mxu0 %v7849
      %v7948 = vpop.f32.mrf.mxu0
      %v7949 = vadd.f32 0.0, %v7948
      %v7950 = vpop.f32.mrf.mxu0
      %7951 = vmatprep.mubr.f32.mxu0 0.0
      %7952 = vmatmul.mubr.f32.gmra.mxu0 %v7852
      %v7953 = vpop.f32.mrf.mxu0
      %v7954 = vadd.f32 0.0, %v7953
      %v7955 = vpop.f32.mrf.mxu0
      %7956 = vmatprep.mubr.f32.mxu0 0.0
      %7957 = vmatmul.mubr.f32.gmra.mxu0 %v7855
      %v7958 = vpop.f32.mrf.mxu0
      %v7959 = vadd.f32 0.0, %v7958
      %v7960 = vpop.f32.mrf.mxu0
      %7961 = vdwg.mxu0
      %v7962 = vld [vmem:[%s5] sm:$0x1]
      %v7963 = vld [vmem:[%s4] sm:$0xf]
      %v7965 = vsel %vm1288, %v5629, 0
      %v7968 = vsel %vm1288, %v5634, 0
      %v7971 = vsel %vm1288, %v5639, 0
      %v7974 = vsel %vm1288, %v5644, 0
      %v7977 = vsel %vm1288, %v5649, 0
      %v7980 = vsel %vm1288, %v5654, 0
      %v7983 = vsel %vm1288, %v5659, 0
      %v7986 = vsel %vm1288, %v5664, 0
      %v7989 = vsel %vm1288, %v5782, 0
      %v7992 = vsel %vm1288, %v5787, 0
      %v7995 = vsel %vm1288, %v5792, 0
      %v7998 = vsel %vm1288, %v5797, 0
      %v8001 = vsel %vm1288, %v5802, 0
      %v8004 = vsel %vm1288, %v5807, 0
      %v8007 = vsel %vm1288, %v5812, 0
      %v8010 = vsel %vm1288, %v5817, 0
      %v8013 = vsel %vm1288, %v5935, 0
      %v8016 = vsel %vm1288, %v5940, 0
      %v8019 = vsel %vm1288, %v5945, 0
      %v8022 = vsel %vm1288, %v5950, 0
      %v8025 = vsel %vm1288, %v5955, 0
      %v8028 = vsel %vm1288, %v5960, 0
      %v8031 = vsel %vm1288, %v5965, 0
      %v8034 = vsel %vm1288, %v5970, 0
      %v8037 = vsel %vm1288, %v6088, 0
      %v8040 = vsel %vm1288, %v6093, 0
      %v8043 = vsel %vm1288, %v6098, 0
      %v8046 = vsel %vm1288, %v6103, 0
      %v8049 = vsel %vm1288, %v6108, 0
      %v8052 = vsel %vm1288, %v6113, 0
      %v8055 = vsel %vm1288, %v6118, 0
      %v8058 = vsel %vm1288, %v6123, 0
      %vm8060 = vcmask 1043456
      %v8062 = vsel %vm8060, %v7963, 0
      %8064 = vmatprep.subr.mxu0 0.0
      %8065 = vmatpush1.msra.mxu0 0.0
      %8066 = vmatprep.subr.mxu0 0.0
      %8067 = vmatpush1.msra.mxu0 0.0
      %8068 = vmatprep.subr.mxu0 0.0
      %8069 = vmatpush1.msra.mxu0 0.0
      %8070 = vmatprep.subr.mxu0 0.0
      %8071 = vmatpush1.msra.mxu0 0.0
      %8072 = vmatprep.subr.mxu0 0.0
      %8073 = vmatpush1.msra.mxu0 0.0
      %8074 = vmatprep.subr.mxu0 0.0
      %8075 = vmatpush1.msra.mxu0 0.0
      %8076 = vmatprep.subr.mxu0 0.0
      %8077 = vmatpush1.msra.mxu0 0.0
      %8078 = vmatprep.subr.mxu0 0.0
      %8079 = vmatpush1.msra.mxu0 0.0
      %8080 = vmatprep.subr.mxu0 0.0
      %8081 = vmatpush1.msra.mxu0 0.0
      %8082 = vmatprep.subr.mxu0 0.0
      %8083 = vmatpush1.msra.mxu0 0.0
      %8084 = vmatprep.subr.mxu0 0.0
      %8085 = vmatpush1.msra.mxu0 0.0
      %8086 = vmatprep.subr.mxu0 0.0
      %8087 = vmatpush1.msra.mxu0 0.0
      %8088 = vmatprep.subr.mxu0 0.0
      %8089 = vmatpush1.msra.mxu0 0.0
      %8090 = vmatprep.subr.mxu0 0.0
      %8091 = vmatpush1.msra.mxu0 0.0
      %8092 = vmatprep.subr.mxu0 0.0
      %8093 = vmatpush1.msra.mxu0 0.0
      %8094 = vmatprep.subr.mxu0 0.0
      %8095 = vmatpush1.msra.mxu0 %v8062
      %8096 = vmatprep.subr.mxu0 0.0
      %8097 = vmatpush2.msra.mxu0 0.0
      %8098 = vmatprep.subr.mxu0 0.0
      %8099 = vmatpush2.msra.mxu0 0.0
      %8100 = vmatprep.subr.mxu0 0.0
      %8101 = vmatpush2.msra.mxu0 0.0
      %8102 = vmatprep.subr.mxu0 0.0
      %8103 = vmatpush2.msra.mxu0 0.0
      %8104 = vmatprep.subr.mxu0 0.0
      %8105 = vmatpush2.msra.mxu0 0.0
      %8106 = vmatprep.subr.mxu0 0.0
      %8107 = vmatpush2.msra.mxu0 0.0
      %8108 = vmatprep.subr.mxu0 0.0
      %8109 = vmatpush2.msra.mxu0 0.0
      %8110 = vmatprep.subr.mxu0 0.0
      %8111 = vmatpush2.msra.mxu0 0.0
      %8112 = vmatprep.subr.mxu0 0.0
      %8113 = vmatpush2.msra.mxu0 0.0
      %8114 = vmatprep.subr.mxu0 0.0
      %8115 = vmatpush2.msra.mxu0 0.0
      %8116 = vmatprep.subr.mxu0 0.0
      %8117 = vmatpush2.msra.mxu0 0.0
      %8118 = vmatprep.subr.mxu0 0.0
      %8119 = vmatpush2.msra.mxu0 0.0
      %8120 = vmatprep.subr.mxu0 0.0
      %8121 = vmatpush2.msra.mxu0 0.0
      %8122 = vmatprep.subr.mxu0 0.0
      %8123 = vmatpush2.msra.mxu0 0.0
      %8124 = vmatprep.subr.mxu0 0.0
      %8125 = vmatpush2.msra.mxu0 0.0
      %8126 = vmatprep.subr.mxu0 0.0
      %8127 = vmatpush2.msra.mxu0 0.0
      %8128 = vmatprep.mubr.f32.mxu0 0.0
      %8129 = vmatmul.mubr.f32.gmra.mxu0 %v7965
      %v8130 = vpop.f32.mrf.mxu0
      %v8131 = vadd.f32 0.0, %v8130
      %v8132 = vpop.f32.mrf.mxu0
      %8133 = vmatprep.mubr.f32.mxu0 0.0
      %8134 = vmatmul.mubr.f32.gmra.mxu0 %v7968
      %v8135 = vpop.f32.mrf.mxu0
      %v8136 = vadd.f32 0.0, %v8135
      %v8137 = vpop.f32.mrf.mxu0
      %8138 = vmatprep.mubr.f32.mxu0 0.0
      %8139 = vmatmul.mubr.f32.gmra.mxu0 %v7971
      %v8140 = vpop.f32.mrf.mxu0
      %v8141 = vadd.f32 0.0, %v8140
      %v8142 = vpop.f32.mrf.mxu0
      %8143 = vmatprep.mubr.f32.mxu0 0.0
      %8144 = vmatmul.mubr.f32.gmra.mxu0 %v7974
      %v8145 = vpop.f32.mrf.mxu0
      %v8146 = vadd.f32 0.0, %v8145
      %v8147 = vpop.f32.mrf.mxu0
      %8148 = vmatprep.mubr.f32.mxu0 0.0
      %8149 = vmatmul.mubr.f32.gmra.mxu0 %v7977
      %v8150 = vpop.f32.mrf.mxu0
      %v8151 = vadd.f32 0.0, %v8150
      %v8152 = vpop.f32.mrf.mxu0
      %8153 = vmatprep.mubr.f32.mxu0 0.0
      %8154 = vmatmul.mubr.f32.gmra.mxu0 %v7980
      %v8155 = vpop.f32.mrf.mxu0
      %v8156 = vadd.f32 0.0, %v8155
      %v8157 = vpop.f32.mrf.mxu0
      %8158 = vmatprep.mubr.f32.mxu0 0.0
      %8159 = vmatmul.mubr.f32.gmra.mxu0 %v7983
      %v8160 = vpop.f32.mrf.mxu0
      %v8161 = vadd.f32 0.0, %v8160
      %v8162 = vpop.f32.mrf.mxu0
      %8163 = vmatprep.mubr.f32.mxu0 0.0
      %8164 = vmatmul.mubr.f32.gmra.mxu0 %v7986
      %v8165 = vpop.f32.mrf.mxu0
      %v8166 = vadd.f32 0.0, %v8165
      %v8167 = vpop.f32.mrf.mxu0
      %8168 = vmatprep.mubr.f32.mxu0 0.0
      %8169 = vmatmul.mubr.f32.gmra.mxu0 %v7989
      %v8170 = vpop.f32.mrf.mxu0
      %v8171 = vadd.f32 0.0, %v8170
      %v8172 = vpop.f32.mrf.mxu0
      %8173 = vmatprep.mubr.f32.mxu0 0.0
      %8174 = vmatmul.mubr.f32.gmra.mxu0 %v7992
      %v8175 = vpop.f32.mrf.mxu0
      %v8176 = vadd.f32 0.0, %v8175
      %v8177 = vpop.f32.mrf.mxu0
      %8178 = vmatprep.mubr.f32.mxu0 0.0
      %8179 = vmatmul.mubr.f32.gmra.mxu0 %v7995
      %v8180 = vpop.f32.mrf.mxu0
      %v8181 = vadd.f32 0.0, %v8180
      %v8182 = vpop.f32.mrf.mxu0
      %8183 = vmatprep.mubr.f32.mxu0 0.0
      %8184 = vmatmul.mubr.f32.gmra.mxu0 %v7998
      %v8185 = vpop.f32.mrf.mxu0
      %v8186 = vadd.f32 0.0, %v8185
      %v8187 = vpop.f32.mrf.mxu0
      %8188 = vmatprep.mubr.f32.mxu0 0.0
      %8189 = vmatmul.mubr.f32.gmra.mxu0 %v8001
      %v8190 = vpop.f32.mrf.mxu0
      %v8191 = vadd.f32 0.0, %v8190
      %v8192 = vpop.f32.mrf.mxu0
      %8193 = vmatprep.mubr.f32.mxu0 0.0
      %8194 = vmatmul.mubr.f32.gmra.mxu0 %v8004
      %v8195 = vpop.f32.mrf.mxu0
      %v8196 = vadd.f32 0.0, %v8195
      %v8197 = vpop.f32.mrf.mxu0
      %8198 = vmatprep.mubr.f32.mxu0 0.0
      %8199 = vmatmul.mubr.f32.gmra.mxu0 %v8007
      %v8200 = vpop.f32.mrf.mxu0
      %v8201 = vadd.f32 0.0, %v8200
      %v8202 = vpop.f32.mrf.mxu0
      %8203 = vmatprep.mubr.f32.mxu0 0.0
      %8204 = vmatmul.mubr.f32.gmra.mxu0 %v8010
      %v8205 = vpop.f32.mrf.mxu0
      %v8206 = vadd.f32 0.0, %v8205
      %v8207 = vpop.f32.mrf.mxu0
      %8208 = vmatprep.mubr.f32.mxu0 0.0
      %8209 = vmatmul.mubr.f32.gmra.mxu0 %v8013
      %v8210 = vpop.f32.mrf.mxu0
      %v8211 = vadd.f32 0.0, %v8210
      %v8212 = vpop.f32.mrf.mxu0
      %8213 = vmatprep.mubr.f32.mxu0 0.0
      %8214 = vmatmul.mubr.f32.gmra.mxu0 %v8016
      %v8215 = vpop.f32.mrf.mxu0
      %v8216 = vadd.f32 0.0, %v8215
      %v8217 = vpop.f32.mrf.mxu0
      %8218 = vmatprep.mubr.f32.mxu0 0.0
      %8219 = vmatmul.mubr.f32.gmra.mxu0 %v8019
      %v8220 = vpop.f32.mrf.mxu0
      %v8221 = vadd.f32 0.0, %v8220
      %v8222 = vpop.f32.mrf.mxu0
      %8223 = vmatprep.mubr.f32.mxu0 0.0
      %8224 = vmatmul.mubr.f32.gmra.mxu0 %v8022
      %v8225 = vpop.f32.mrf.mxu0
      %v8226 = vadd.f32 0.0, %v8225
      %v8227 = vpop.f32.mrf.mxu0
      %8228 = vmatprep.mubr.f32.mxu0 0.0
      %8229 = vmatmul.mubr.f32.gmra.mxu0 %v8025
      %v8230 = vpop.f32.mrf.mxu0
      %v8231 = vadd.f32 0.0, %v8230
      %v8232 = vpop.f32.mrf.mxu0
      %8233 = vmatprep.mubr.f32.mxu0 0.0
      %8234 = vmatmul.mubr.f32.gmra.mxu0 %v8028
      %v8235 = vpop.f32.mrf.mxu0
      %v8236 = vadd.f32 0.0, %v8235
      %v8237 = vpop.f32.mrf.mxu0
      %8238 = vmatprep.mubr.f32.mxu0 0.0
      %8239 = vmatmul.mubr.f32.gmra.mxu0 %v8031
      %v8240 = vpop.f32.mrf.mxu0
      %v8241 = vadd.f32 0.0, %v8240
      %v8242 = vpop.f32.mrf.mxu0
      %8243 = vmatprep.mubr.f32.mxu0 0.0
      %8244 = vmatmul.mubr.f32.gmra.mxu0 %v8034
      %v8245 = vpop.f32.mrf.mxu0
      %v8246 = vadd.f32 0.0, %v8245
      %v8247 = vpop.f32.mrf.mxu0
      %8248 = vmatprep.mubr.f32.mxu0 0.0
      %8249 = vmatmul.mubr.f32.gmra.mxu0 %v8037
      %v8250 = vpop.f32.mrf.mxu0
      %v8251 = vadd.f32 0.0, %v8250
      %v8252 = vpop.f32.mrf.mxu0
      %8253 = vmatprep.mubr.f32.mxu0 0.0
      %8254 = vmatmul.mubr.f32.gmra.mxu0 %v8040
      %v8255 = vpop.f32.mrf.mxu0
      %v8256 = vadd.f32 0.0, %v8255
      %v8257 = vpop.f32.mrf.mxu0
      %8258 = vmatprep.mubr.f32.mxu0 0.0
      %8259 = vmatmul.mubr.f32.gmra.mxu0 %v8043
      %v8260 = vpop.f32.mrf.mxu0
      %v8261 = vadd.f32 0.0, %v8260
      %v8262 = vpop.f32.mrf.mxu0
      %8263 = vmatprep.mubr.f32.mxu0 0.0
      %8264 = vmatmul.mubr.f32.gmra.mxu0 %v8046
      %v8265 = vpop.f32.mrf.mxu0
      %v8266 = vadd.f32 0.0, %v8265
      %v8267 = vpop.f32.mrf.mxu0
      %8268 = vmatprep.mubr.f32.mxu0 0.0
      %8269 = vmatmul.mubr.f32.gmra.mxu0 %v8049
      %v8270 = vpop.f32.mrf.mxu0
      %v8271 = vadd.f32 0.0, %v8270
      %v8272 = vpop.f32.mrf.mxu0
      %8273 = vmatprep.mubr.f32.mxu0 0.0
      %8274 = vmatmul.mubr.f32.gmra.mxu0 %v8052
      %v8275 = vpop.f32.mrf.mxu0
      %v8276 = vadd.f32 0.0, %v8275
      %v8277 = vpop.f32.mrf.mxu0
      %8278 = vmatprep.mubr.f32.mxu0 0.0
      %8279 = vmatmul.mubr.f32.gmra.mxu0 %v8055
      %v8280 = vpop.f32.mrf.mxu0
      %v8281 = vadd.f32 0.0, %v8280
      %v8282 = vpop.f32.mrf.mxu0
      %8283 = vmatprep.mubr.f32.mxu0 0.0
      %8284 = vmatmul.mubr.f32.gmra.mxu0 %v8058
      %v8285 = vpop.f32.mrf.mxu0
      %v8286 = vadd.f32 0.0, %v8285
      %v8287 = vpop.f32.mrf.mxu0
      %8288 = vdwg.mxu0
      %v8290 = vlaneseq
      %v8291 = vshrl.u32 %v8290, 7
      %v8292 = vsub.s32 0, %v8291
      %v8293 = vrot.slane %v7962, %v8292
      %v8295 = vadd.f32 %v8293, %v8131
      %v8296 = vadd.f32 %v8293, %v8136
      %v8297 = vadd.f32 %v8293, %v8141
      %v8298 = vadd.f32 %v8293, %v8146
      %v8299 = vadd.f32 %v8293, %v8151
      %v8300 = vadd.f32 %v8293, %v8156
      %v8301 = vadd.f32 %v8293, %v8161
      %v8302 = vadd.f32 %v8293, %v8166
      %v8303 = vadd.f32 %v8293, %v8171
      %v8304 = vadd.f32 %v8293, %v8176
      %v8305 = vadd.f32 %v8293, %v8181
      %v8306 = vadd.f32 %v8293, %v8186
      %v8307 = vadd.f32 %v8293, %v8191
      %v8308 = vadd.f32 %v8293, %v8196
      %v8309 = vadd.f32 %v8293, %v8201
      %v8310 = vadd.f32 %v8293, %v8206
      %v8311 = vadd.f32 %v8293, %v8211
      %v8312 = vadd.f32 %v8293, %v8216
      %v8313 = vadd.f32 %v8293, %v8221
      %v8314 = vadd.f32 %v8293, %v8226
      %v8315 = vadd.f32 %v8293, %v8231
      %v8316 = vadd.f32 %v8293, %v8236
      %v8317 = vadd.f32 %v8293, %v8241
      %v8318 = vadd.f32 %v8293, %v8246
      %v8319 = vadd.f32 %v8293, %v8251
      %v8320 = vadd.f32 %v8293, %v8256
      %v8321 = vadd.f32 %v8293, %v8261
      %v8322 = vadd.f32 %v8293, %v8266
      %v8323 = vadd.f32 %v8293, %v8271
      %v8324 = vadd.f32 %v8293, %v8276
      %v8325 = vadd.f32 %v8293, %v8281
      %v8326 = vadd.f32 %v8293, %v8286
      %s8327 = scalar_lea.vmem %s4, 4
      %v8328 = vld [vmem:[%s8327] sm:$0xf]
      %v8330 = vsel %vm1288, %v6241, 0
      %v8333 = vsel %vm1288, %v6246, 0
      %v8336 = vsel %vm1288, %v6251, 0
      %v8339 = vsel %vm1288, %v6256, 0
      %v8342 = vsel %vm1288, %v6261, 0
      %v8345 = vsel %vm1288, %v6266, 0
      %v8348 = vsel %vm1288, %v6271, 0
      %v8351 = vsel %vm1288, %v6276, 0
      %v8354 = vsel %vm1288, %v6394, 0
      %v8357 = vsel %vm1288, %v6399, 0
      %v8360 = vsel %vm1288, %v6404, 0
      %v8363 = vsel %vm1288, %v6409, 0
      %v8366 = vsel %vm1288, %v6414, 0
      %v8369 = vsel %vm1288, %v6419, 0
      %v8372 = vsel %vm1288, %v6424, 0
      %v8375 = vsel %vm1288, %v6429, 0
      %v8378 = vsel %vm1288, %v6547, 0
      %v8381 = vsel %vm1288, %v6552, 0
      %v8384 = vsel %vm1288, %v6557, 0
      %v8387 = vsel %vm1288, %v6562, 0
      %v8390 = vsel %vm1288, %v6567, 0
      %v8393 = vsel %vm1288, %v6572, 0
      %v8396 = vsel %vm1288, %v6577, 0
      %v8399 = vsel %vm1288, %v6582, 0
      %v8402 = vsel %vm1288, %v6700, 0
      %v8405 = vsel %vm1288, %v6705, 0
      %v8408 = vsel %vm1288, %v6710, 0
      %v8411 = vsel %vm1288, %v6715, 0
      %v8414 = vsel %vm1288, %v6720, 0
      %v8417 = vsel %vm1288, %v6725, 0
      %v8420 = vsel %vm1288, %v6730, 0
      %v8423 = vsel %vm1288, %v6735, 0
      %v8426 = vsel %vm8060, %v8328, 0
      %8428 = vmatprep.subr.mxu0 0.0
      %8429 = vmatpush1.msra.mxu0 0.0
      %8430 = vmatprep.subr.mxu0 0.0
      %8431 = vmatpush1.msra.mxu0 0.0
      %8432 = vmatprep.subr.mxu0 0.0
      %8433 = vmatpush1.msra.mxu0 0.0
      %8434 = vmatprep.subr.mxu0 0.0
      %8435 = vmatpush1.msra.mxu0 0.0
      %8436 = vmatprep.subr.mxu0 0.0
      %8437 = vmatpush1.msra.mxu0 0.0
      %8438 = vmatprep.subr.mxu0 0.0
      %8439 = vmatpush1.msra.mxu0 0.0
      %8440 = vmatprep.subr.mxu0 0.0
      %8441 = vmatpush1.msra.mxu0 0.0
      %8442 = vmatprep.subr.mxu0 0.0
      %8443 = vmatpush1.msra.mxu0 0.0
      %8444 = vmatprep.subr.mxu0 0.0
      %8445 = vmatpush1.msra.mxu0 0.0
      %8446 = vmatprep.subr.mxu0 0.0
      %8447 = vmatpush1.msra.mxu0 0.0
      %8448 = vmatprep.subr.mxu0 0.0
      %8449 = vmatpush1.msra.mxu0 0.0
      %8450 = vmatprep.subr.mxu0 0.0
      %8451 = vmatpush1.msra.mxu0 0.0
      %8452 = vmatprep.subr.mxu0 0.0
      %8453 = vmatpush1.msra.mxu0 0.0
      %8454 = vmatprep.subr.mxu0 0.0
      %8455 = vmatpush1.msra.mxu0 0.0
      %8456 = vmatprep.subr.mxu0 0.0
      %8457 = vmatpush1.msra.mxu0 0.0
      %8458 = vmatprep.subr.mxu0 0.0
      %8459 = vmatpush1.msra.mxu0 %v8426
      %8460 = vmatprep.subr.mxu0 0.0
      %8461 = vmatpush2.msra.mxu0 0.0
      %8462 = vmatprep.subr.mxu0 0.0
      %8463 = vmatpush2.msra.mxu0 0.0
      %8464 = vmatprep.subr.mxu0 0.0
      %8465 = vmatpush2.msra.mxu0 0.0
      %8466 = vmatprep.subr.mxu0 0.0
      %8467 = vmatpush2.msra.mxu0 0.0
      %8468 = vmatprep.subr.mxu0 0.0
      %8469 = vmatpush2.msra.mxu0 0.0
      %8470 = vmatprep.subr.mxu0 0.0
      %8471 = vmatpush2.msra.mxu0 0.0
      %8472 = vmatprep.subr.mxu0 0.0
      %8473 = vmatpush2.msra.mxu0 0.0
      %8474 = vmatprep.subr.mxu0 0.0
      %8475 = vmatpush2.msra.mxu0 0.0
      %8476 = vmatprep.subr.mxu0 0.0
      %8477 = vmatpush2.msra.mxu0 0.0
      %8478 = vmatprep.subr.mxu0 0.0
      %8479 = vmatpush2.msra.mxu0 0.0
      %8480 = vmatprep.subr.mxu0 0.0
      %8481 = vmatpush2.msra.mxu0 0.0
      %8482 = vmatprep.subr.mxu0 0.0
      %8483 = vmatpush2.msra.mxu0 0.0
      %8484 = vmatprep.subr.mxu0 0.0
      %8485 = vmatpush2.msra.mxu0 0.0
      %8486 = vmatprep.subr.mxu0 0.0
      %8487 = vmatpush2.msra.mxu0 0.0
      %8488 = vmatprep.subr.mxu0 0.0
      %8489 = vmatpush2.msra.mxu0 0.0
      %8490 = vmatprep.subr.mxu0 0.0
      %8491 = vmatpush2.msra.mxu0 0.0
      %8492 = vmatprep.mubr.f32.mxu0 0.0
      %8493 = vmatmul.mubr.f32.gmra.mxu0 %v8330
      %v8494 = vpop.f32.mrf.mxu0
      %v8495 = vadd.f32 0.0, %v8494
      %v8496 = vpop.f32.mrf.mxu0
      %8497 = vmatprep.mubr.f32.mxu0 0.0
      %8498 = vmatmul.mubr.f32.gmra.mxu0 %v8333
      %v8499 = vpop.f32.mrf.mxu0
      %v8500 = vadd.f32 0.0, %v8499
      %v8501 = vpop.f32.mrf.mxu0
      %8502 = vmatprep.mubr.f32.mxu0 0.0
      %8503 = vmatmul.mubr.f32.gmra.mxu0 %v8336
      %v8504 = vpop.f32.mrf.mxu0
      %v8505 = vadd.f32 0.0, %v8504
      %v8506 = vpop.f32.mrf.mxu0
      %8507 = vmatprep.mubr.f32.mxu0 0.0
      %8508 = vmatmul.mubr.f32.gmra.mxu0 %v8339
      %v8509 = vpop.f32.mrf.mxu0
      %v8510 = vadd.f32 0.0, %v8509
      %v8511 = vpop.f32.mrf.mxu0
      %8512 = vmatprep.mubr.f32.mxu0 0.0
      %8513 = vmatmul.mubr.f32.gmra.mxu0 %v8342
      %v8514 = vpop.f32.mrf.mxu0
      %v8515 = vadd.f32 0.0, %v8514
      %v8516 = vpop.f32.mrf.mxu0
      %8517 = vmatprep.mubr.f32.mxu0 0.0
      %8518 = vmatmul.mubr.f32.gmra.mxu0 %v8345
      %v8519 = vpop.f32.mrf.mxu0
      %v8520 = vadd.f32 0.0, %v8519
      %v8521 = vpop.f32.mrf.mxu0
      %8522 = vmatprep.mubr.f32.mxu0 0.0
      %8523 = vmatmul.mubr.f32.gmra.mxu0 %v8348
      %v8524 = vpop.f32.mrf.mxu0
      %v8525 = vadd.f32 0.0, %v8524
      %v8526 = vpop.f32.mrf.mxu0
      %8527 = vmatprep.mubr.f32.mxu0 0.0
      %8528 = vmatmul.mubr.f32.gmra.mxu0 %v8351
      %v8529 = vpop.f32.mrf.mxu0
      %v8530 = vadd.f32 0.0, %v8529
      %v8531 = vpop.f32.mrf.mxu0
      %8532 = vmatprep.mubr.f32.mxu0 0.0
      %8533 = vmatmul.mubr.f32.gmra.mxu0 %v8354
      %v8534 = vpop.f32.mrf.mxu0
      %v8535 = vadd.f32 0.0, %v8534
      %v8536 = vpop.f32.mrf.mxu0
      %8537 = vmatprep.mubr.f32.mxu0 0.0
      %8538 = vmatmul.mubr.f32.gmra.mxu0 %v8357
      %v8539 = vpop.f32.mrf.mxu0
      %v8540 = vadd.f32 0.0, %v8539
      %v8541 = vpop.f32.mrf.mxu0
      %8542 = vmatprep.mubr.f32.mxu0 0.0
      %8543 = vmatmul.mubr.f32.gmra.mxu0 %v8360
      %v8544 = vpop.f32.mrf.mxu0
      %v8545 = vadd.f32 0.0, %v8544
      %v8546 = vpop.f32.mrf.mxu0
      %8547 = vmatprep.mubr.f32.mxu0 0.0
      %8548 = vmatmul.mubr.f32.gmra.mxu0 %v8363
      %v8549 = vpop.f32.mrf.mxu0
      %v8550 = vadd.f32 0.0, %v8549
      %v8551 = vpop.f32.mrf.mxu0
      %8552 = vmatprep.mubr.f32.mxu0 0.0
      %8553 = vmatmul.mubr.f32.gmra.mxu0 %v8366
      %v8554 = vpop.f32.mrf.mxu0
      %v8555 = vadd.f32 0.0, %v8554
      %v8556 = vpop.f32.mrf.mxu0
      %8557 = vmatprep.mubr.f32.mxu0 0.0
      %8558 = vmatmul.mubr.f32.gmra.mxu0 %v8369
      %v8559 = vpop.f32.mrf.mxu0
      %v8560 = vadd.f32 0.0, %v8559
      %v8561 = vpop.f32.mrf.mxu0
      %8562 = vmatprep.mubr.f32.mxu0 0.0
      %8563 = vmatmul.mubr.f32.gmra.mxu0 %v8372
      %v8564 = vpop.f32.mrf.mxu0
      %v8565 = vadd.f32 0.0, %v8564
      %v8566 = vpop.f32.mrf.mxu0
      %8567 = vmatprep.mubr.f32.mxu0 0.0
      %8568 = vmatmul.mubr.f32.gmra.mxu0 %v8375
      %v8569 = vpop.f32.mrf.mxu0
      %v8570 = vadd.f32 0.0, %v8569
      %v8571 = vpop.f32.mrf.mxu0
      %8572 = vmatprep.mubr.f32.mxu0 0.0
      %8573 = vmatmul.mubr.f32.gmra.mxu0 %v8378
      %v8574 = vpop.f32.mrf.mxu0
      %v8575 = vadd.f32 0.0, %v8574
      %v8576 = vpop.f32.mrf.mxu0
      %8577 = vmatprep.mubr.f32.mxu0 0.0
      %8578 = vmatmul.mubr.f32.gmra.mxu0 %v8381
      %v8579 = vpop.f32.mrf.mxu0
      %v8580 = vadd.f32 0.0, %v8579
      %v8581 = vpop.f32.mrf.mxu0
      %8582 = vmatprep.mubr.f32.mxu0 0.0
      %8583 = vmatmul.mubr.f32.gmra.mxu0 %v8384
      %v8584 = vpop.f32.mrf.mxu0
      %v8585 = vadd.f32 0.0, %v8584
      %v8586 = vpop.f32.mrf.mxu0
      %8587 = vmatprep.mubr.f32.mxu0 0.0
      %8588 = vmatmul.mubr.f32.gmra.mxu0 %v8387
      %v8589 = vpop.f32.mrf.mxu0
      %v8590 = vadd.f32 0.0, %v8589
      %v8591 = vpop.f32.mrf.mxu0
      %8592 = vmatprep.mubr.f32.mxu0 0.0
      %8593 = vmatmul.mubr.f32.gmra.mxu0 %v8390
      %v8594 = vpop.f32.mrf.mxu0
      %v8595 = vadd.f32 0.0, %v8594
      %v8596 = vpop.f32.mrf.mxu0
      %8597 = vmatprep.mubr.f32.mxu0 0.0
      %8598 = vmatmul.mubr.f32.gmra.mxu0 %v8393
      %v8599 = vpop.f32.mrf.mxu0
      %v8600 = vadd.f32 0.0, %v8599
      %v8601 = vpop.f32.mrf.mxu0
      %8602 = vmatprep.mubr.f32.mxu0 0.0
      %8603 = vmatmul.mubr.f32.gmra.mxu0 %v8396
      %v8604 = vpop.f32.mrf.mxu0
      %v8605 = vadd.f32 0.0, %v8604
      %v8606 = vpop.f32.mrf.mxu0
      %8607 = vmatprep.mubr.f32.mxu0 0.0
      %8608 = vmatmul.mubr.f32.gmra.mxu0 %v8399
      %v8609 = vpop.f32.mrf.mxu0
      %v8610 = vadd.f32 0.0, %v8609
      %v8611 = vpop.f32.mrf.mxu0
      %8612 = vmatprep.mubr.f32.mxu0 0.0
      %8613 = vmatmul.mubr.f32.gmra.mxu0 %v8402
      %v8614 = vpop.f32.mrf.mxu0
      %v8615 = vadd.f32 0.0, %v8614
      %v8616 = vpop.f32.mrf.mxu0
      %8617 = vmatprep.mubr.f32.mxu0 0.0
      %8618 = vmatmul.mubr.f32.gmra.mxu0 %v8405
      %v8619 = vpop.f32.mrf.mxu0
      %v8620 = vadd.f32 0.0, %v8619
      %v8621 = vpop.f32.mrf.mxu0
      %8622 = vmatprep.mubr.f32.mxu0 0.0
      %8623 = vmatmul.mubr.f32.gmra.mxu0 %v8408
      %v8624 = vpop.f32.mrf.mxu0
      %v8625 = vadd.f32 0.0, %v8624
      %v8626 = vpop.f32.mrf.mxu0
      %8627 = vmatprep.mubr.f32.mxu0 0.0
      %8628 = vmatmul.mubr.f32.gmra.mxu0 %v8411
      %v8629 = vpop.f32.mrf.mxu0
      %v8630 = vadd.f32 0.0, %v8629
      %v8631 = vpop.f32.mrf.mxu0
      %8632 = vmatprep.mubr.f32.mxu0 0.0
      %8633 = vmatmul.mubr.f32.gmra.mxu0 %v8414
      %v8634 = vpop.f32.mrf.mxu0
      %v8635 = vadd.f32 0.0, %v8634
      %v8636 = vpop.f32.mrf.mxu0
      %8637 = vmatprep.mubr.f32.mxu0 0.0
      %8638 = vmatmul.mubr.f32.gmra.mxu0 %v8417
      %v8639 = vpop.f32.mrf.mxu0
      %v8640 = vadd.f32 0.0, %v8639
      %v8641 = vpop.f32.mrf.mxu0
      %8642 = vmatprep.mubr.f32.mxu0 0.0
      %8643 = vmatmul.mubr.f32.gmra.mxu0 %v8420
      %v8644 = vpop.f32.mrf.mxu0
      %v8645 = vadd.f32 0.0, %v8644
      %v8646 = vpop.f32.mrf.mxu0
      %8647 = vmatprep.mubr.f32.mxu0 0.0
      %8648 = vmatmul.mubr.f32.gmra.mxu0 %v8423
      %v8649 = vpop.f32.mrf.mxu0
      %v8650 = vadd.f32 0.0, %v8649
      %v8651 = vpop.f32.mrf.mxu0
      %8652 = vdwg.mxu0
      %v8653 = vadd.f32 %v8295, %v8495
      %v8654 = vadd.f32 %v8296, %v8500
      %v8655 = vadd.f32 %v8297, %v8505
      %v8656 = vadd.f32 %v8298, %v8510
      %v8657 = vadd.f32 %v8299, %v8515
      %v8658 = vadd.f32 %v8300, %v8520
      %v8659 = vadd.f32 %v8301, %v8525
      %v8660 = vadd.f32 %v8302, %v8530
      %v8661 = vadd.f32 %v8303, %v8535
      %v8662 = vadd.f32 %v8304, %v8540
      %v8663 = vadd.f32 %v8305, %v8545
      %v8664 = vadd.f32 %v8306, %v8550
      %v8665 = vadd.f32 %v8307, %v8555
      %v8666 = vadd.f32 %v8308, %v8560
      %v8667 = vadd.f32 %v8309, %v8565
      %v8668 = vadd.f32 %v8310, %v8570
      %v8669 = vadd.f32 %v8311, %v8575
      %v8670 = vadd.f32 %v8312, %v8580
      %v8671 = vadd.f32 %v8313, %v8585
      %v8672 = vadd.f32 %v8314, %v8590
      %v8673 = vadd.f32 %v8315, %v8595
      %v8674 = vadd.f32 %v8316, %v8600
      %v8675 = vadd.f32 %v8317, %v8605
      %v8676 = vadd.f32 %v8318, %v8610
      %v8677 = vadd.f32 %v8319, %v8615
      %v8678 = vadd.f32 %v8320, %v8620
      %v8679 = vadd.f32 %v8321, %v8625
      %v8680 = vadd.f32 %v8322, %v8630
      %v8681 = vadd.f32 %v8323, %v8635
      %v8682 = vadd.f32 %v8324, %v8640
      %v8683 = vadd.f32 %v8325, %v8645
      %v8684 = vadd.f32 %v8326, %v8650
      %s8685 = scalar_lea.vmem %s4, 8
      %v8686 = vld [vmem:[%s8685] sm:$0xf]
      %v8688 = vsel %vm1288, %v6853, 0
      %v8691 = vsel %vm1288, %v6858, 0
      %v8694 = vsel %vm1288, %v6863, 0
      %v8697 = vsel %vm1288, %v6868, 0
      %v8700 = vsel %vm1288, %v6873, 0
      %v8703 = vsel %vm1288, %v6878, 0
      %v8706 = vsel %vm1288, %v6883, 0
      %v8709 = vsel %vm1288, %v6888, 0
      %v8712 = vsel %vm1288, %v7006, 0
      %v8715 = vsel %vm1288, %v7011, 0
      %v8718 = vsel %vm1288, %v7016, 0
      %v8721 = vsel %vm1288, %v7021, 0
      %v8724 = vsel %vm1288, %v7026, 0
      %v8727 = vsel %vm1288, %v7031, 0
      %v8730 = vsel %vm1288, %v7036, 0
      %v8733 = vsel %vm1288, %v7041, 0
      %v8736 = vsel %vm1288, %v7159, 0
      %v8739 = vsel %vm1288, %v7164, 0
      %v8742 = vsel %vm1288, %v7169, 0
      %v8745 = vsel %vm1288, %v7174, 0
      %v8748 = vsel %vm1288, %v7179, 0
      %v8751 = vsel %vm1288, %v7184, 0
      %v8754 = vsel %vm1288, %v7189, 0
      %v8757 = vsel %vm1288, %v7194, 0
      %v8760 = vsel %vm1288, %v7312, 0
      %v8763 = vsel %vm1288, %v7317, 0
      %v8766 = vsel %vm1288, %v7322, 0
      %v8769 = vsel %vm1288, %v7327, 0
      %v8772 = vsel %vm1288, %v7332, 0
      %v8775 = vsel %vm1288, %v7337, 0
      %v8778 = vsel %vm1288, %v7342, 0
      %v8781 = vsel %vm1288, %v7347, 0
      %v8784 = vsel %vm8060, %v8686, 0
      %8786 = vmatprep.subr.mxu0 0.0
      %8787 = vmatpush1.msra.mxu0 0.0
      %8788 = vmatprep.subr.mxu0 0.0
      %8789 = vmatpush1.msra.mxu0 0.0
      %8790 = vmatprep.subr.mxu0 0.0
      %8791 = vmatpush1.msra.mxu0 0.0
      %8792 = vmatprep.subr.mxu0 0.0
      %8793 = vmatpush1.msra.mxu0 0.0
      %8794 = vmatprep.subr.mxu0 0.0
      %8795 = vmatpush1.msra.mxu0 0.0
      %8796 = vmatprep.subr.mxu0 0.0
      %8797 = vmatpush1.msra.mxu0 0.0
      %8798 = vmatprep.subr.mxu0 0.0
      %8799 = vmatpush1.msra.mxu0 0.0
      %8800 = vmatprep.subr.mxu0 0.0
      %8801 = vmatpush1.msra.mxu0 0.0
      %8802 = vmatprep.subr.mxu0 0.0
      %8803 = vmatpush1.msra.mxu0 0.0
      %8804 = vmatprep.subr.mxu0 0.0
      %8805 = vmatpush1.msra.mxu0 0.0
      %8806 = vmatprep.subr.mxu0 0.0
      %8807 = vmatpush1.msra.mxu0 0.0
      %8808 = vmatprep.subr.mxu0 0.0
      %8809 = vmatpush1.msra.mxu0 0.0
      %8810 = vmatprep.subr.mxu0 0.0
      %8811 = vmatpush1.msra.mxu0 0.0
      %8812 = vmatprep.subr.mxu0 0.0
      %8813 = vmatpush1.msra.mxu0 0.0
      %8814 = vmatprep.subr.mxu0 0.0
      %8815 = vmatpush1.msra.mxu0 0.0
      %8816 = vmatprep.subr.mxu0 0.0
      %8817 = vmatpush1.msra.mxu0 %v8784
      %8818 = vmatprep.subr.mxu0 0.0
      %8819 = vmatpush2.msra.mxu0 0.0
      %8820 = vmatprep.subr.mxu0 0.0
      %8821 = vmatpush2.msra.mxu0 0.0
      %8822 = vmatprep.subr.mxu0 0.0
      %8823 = vmatpush2.msra.mxu0 0.0
      %8824 = vmatprep.subr.mxu0 0.0
      %8825 = vmatpush2.msra.mxu0 0.0
      %8826 = vmatprep.subr.mxu0 0.0
      %8827 = vmatpush2.msra.mxu0 0.0
      %8828 = vmatprep.subr.mxu0 0.0
      %8829 = vmatpush2.msra.mxu0 0.0
      %8830 = vmatprep.subr.mxu0 0.0
      %8831 = vmatpush2.msra.mxu0 0.0
      %8832 = vmatprep.subr.mxu0 0.0
      %8833 = vmatpush2.msra.mxu0 0.0
      %8834 = vmatprep.subr.mxu0 0.0
      %8835 = vmatpush2.msra.mxu0 0.0
      %8836 = vmatprep.subr.mxu0 0.0
      %8837 = vmatpush2.msra.mxu0 0.0
      %8838 = vmatprep.subr.mxu0 0.0
      %8839 = vmatpush2.msra.mxu0 0.0
      %8840 = vmatprep.subr.mxu0 0.0
      %8841 = vmatpush2.msra.mxu0 0.0
      %8842 = vmatprep.subr.mxu0 0.0
      %8843 = vmatpush2.msra.mxu0 0.0
      %8844 = vmatprep.subr.mxu0 0.0
      %8845 = vmatpush2.msra.mxu0 0.0
      %8846 = vmatprep.subr.mxu0 0.0
      %8847 = vmatpush2.msra.mxu0 0.0
      %8848 = vmatprep.subr.mxu0 0.0
      %8849 = vmatpush2.msra.mxu0 0.0
      %8850 = vmatprep.mubr.f32.mxu0 0.0
      %8851 = vmatmul.mubr.f32.gmra.mxu0 %v8688
      %v8852 = vpop.f32.mrf.mxu0
      %v8853 = vadd.f32 0.0, %v8852
      %v8854 = vpop.f32.mrf.mxu0
      %8855 = vmatprep.mubr.f32.mxu0 0.0
      %8856 = vmatmul.mubr.f32.gmra.mxu0 %v8691
      %v8857 = vpop.f32.mrf.mxu0
      %v8858 = vadd.f32 0.0, %v8857
      %v8859 = vpop.f32.mrf.mxu0
      %8860 = vmatprep.mubr.f32.mxu0 0.0
      %8861 = vmatmul.mubr.f32.gmra.mxu0 %v8694
      %v8862 = vpop.f32.mrf.mxu0
      %v8863 = vadd.f32 0.0, %v8862
      %v8864 = vpop.f32.mrf.mxu0
      %8865 = vmatprep.mubr.f32.mxu0 0.0
      %8866 = vmatmul.mubr.f32.gmra.mxu0 %v8697
      %v8867 = vpop.f32.mrf.mxu0
      %v8868 = vadd.f32 0.0, %v8867
      %v8869 = vpop.f32.mrf.mxu0
      %8870 = vmatprep.mubr.f32.mxu0 0.0
      %8871 = vmatmul.mubr.f32.gmra.mxu0 %v8700
      %v8872 = vpop.f32.mrf.mxu0
      %v8873 = vadd.f32 0.0, %v8872
      %v8874 = vpop.f32.mrf.mxu0
      %8875 = vmatprep.mubr.f32.mxu0 0.0
      %8876 = vmatmul.mubr.f32.gmra.mxu0 %v8703
      %v8877 = vpop.f32.mrf.mxu0
      %v8878 = vadd.f32 0.0, %v8877
      %v8879 = vpop.f32.mrf.mxu0
      %8880 = vmatprep.mubr.f32.mxu0 0.0
      %8881 = vmatmul.mubr.f32.gmra.mxu0 %v8706
      %v8882 = vpop.f32.mrf.mxu0
      %v8883 = vadd.f32 0.0, %v8882
      %v8884 = vpop.f32.mrf.mxu0
      %8885 = vmatprep.mubr.f32.mxu0 0.0
      %8886 = vmatmul.mubr.f32.gmra.mxu0 %v8709
      %v8887 = vpop.f32.mrf.mxu0
      %v8888 = vadd.f32 0.0, %v8887
      %v8889 = vpop.f32.mrf.mxu0
      %8890 = vmatprep.mubr.f32.mxu0 0.0
      %8891 = vmatmul.mubr.f32.gmra.mxu0 %v8712
      %v8892 = vpop.f32.mrf.mxu0
      %v8893 = vadd.f32 0.0, %v8892
      %v8894 = vpop.f32.mrf.mxu0
      %8895 = vmatprep.mubr.f32.mxu0 0.0
      %8896 = vmatmul.mubr.f32.gmra.mxu0 %v8715
      %v8897 = vpop.f32.mrf.mxu0
      %v8898 = vadd.f32 0.0, %v8897
      %v8899 = vpop.f32.mrf.mxu0
      %8900 = vmatprep.mubr.f32.mxu0 0.0
      %8901 = vmatmul.mubr.f32.gmra.mxu0 %v8718
      %v8902 = vpop.f32.mrf.mxu0
      %v8903 = vadd.f32 0.0, %v8902
      %v8904 = vpop.f32.mrf.mxu0
      %8905 = vmatprep.mubr.f32.mxu0 0.0
      %8906 = vmatmul.mubr.f32.gmra.mxu0 %v8721
      %v8907 = vpop.f32.mrf.mxu0
      %v8908 = vadd.f32 0.0, %v8907
      %v8909 = vpop.f32.mrf.mxu0
      %8910 = vmatprep.mubr.f32.mxu0 0.0
      %8911 = vmatmul.mubr.f32.gmra.mxu0 %v8724
      %v8912 = vpop.f32.mrf.mxu0
      %v8913 = vadd.f32 0.0, %v8912
      %v8914 = vpop.f32.mrf.mxu0
      %8915 = vmatprep.mubr.f32.mxu0 0.0
      %8916 = vmatmul.mubr.f32.gmra.mxu0 %v8727
      %v8917 = vpop.f32.mrf.mxu0
      %v8918 = vadd.f32 0.0, %v8917
      %v8919 = vpop.f32.mrf.mxu0
      %8920 = vmatprep.mubr.f32.mxu0 0.0
      %8921 = vmatmul.mubr.f32.gmra.mxu0 %v8730
      %v8922 = vpop.f32.mrf.mxu0
      %v8923 = vadd.f32 0.0, %v8922
      %v8924 = vpop.f32.mrf.mxu0
      %8925 = vmatprep.mubr.f32.mxu0 0.0
      %8926 = vmatmul.mubr.f32.gmra.mxu0 %v8733
      %v8927 = vpop.f32.mrf.mxu0
      %v8928 = vadd.f32 0.0, %v8927
      %v8929 = vpop.f32.mrf.mxu0
      %8930 = vmatprep.mubr.f32.mxu0 0.0
      %8931 = vmatmul.mubr.f32.gmra.mxu0 %v8736
      %v8932 = vpop.f32.mrf.mxu0
      %v8933 = vadd.f32 0.0, %v8932
      %v8934 = vpop.f32.mrf.mxu0
      %8935 = vmatprep.mubr.f32.mxu0 0.0
      %8936 = vmatmul.mubr.f32.gmra.mxu0 %v8739
      %v8937 = vpop.f32.mrf.mxu0
      %v8938 = vadd.f32 0.0, %v8937
      %v8939 = vpop.f32.mrf.mxu0
      %8940 = vmatprep.mubr.f32.mxu0 0.0
      %8941 = vmatmul.mubr.f32.gmra.mxu0 %v8742
      %v8942 = vpop.f32.mrf.mxu0
      %v8943 = vadd.f32 0.0, %v8942
      %v8944 = vpop.f32.mrf.mxu0
      %8945 = vmatprep.mubr.f32.mxu0 0.0
      %8946 = vmatmul.mubr.f32.gmra.mxu0 %v8745
      %v8947 = vpop.f32.mrf.mxu0
      %v8948 = vadd.f32 0.0, %v8947
      %v8949 = vpop.f32.mrf.mxu0
      %8950 = vmatprep.mubr.f32.mxu0 0.0
      %8951 = vmatmul.mubr.f32.gmra.mxu0 %v8748
      %v8952 = vpop.f32.mrf.mxu0
      %v8953 = vadd.f32 0.0, %v8952
      %v8954 = vpop.f32.mrf.mxu0
      %8955 = vmatprep.mubr.f32.mxu0 0.0
      %8956 = vmatmul.mubr.f32.gmra.mxu0 %v8751
      %v8957 = vpop.f32.mrf.mxu0
      %v8958 = vadd.f32 0.0, %v8957
      %v8959 = vpop.f32.mrf.mxu0
      %8960 = vmatprep.mubr.f32.mxu0 0.0
      %8961 = vmatmul.mubr.f32.gmra.mxu0 %v8754
      %v8962 = vpop.f32.mrf.mxu0
      %v8963 = vadd.f32 0.0, %v8962
      %v8964 = vpop.f32.mrf.mxu0
      %8965 = vmatprep.mubr.f32.mxu0 0.0
      %8966 = vmatmul.mubr.f32.gmra.mxu0 %v8757
      %v8967 = vpop.f32.mrf.mxu0
      %v8968 = vadd.f32 0.0, %v8967
      %v8969 = vpop.f32.mrf.mxu0
      %8970 = vmatprep.mubr.f32.mxu0 0.0
      %8971 = vmatmul.mubr.f32.gmra.mxu0 %v8760
      %v8972 = vpop.f32.mrf.mxu0
      %v8973 = vadd.f32 0.0, %v8972
      %v8974 = vpop.f32.mrf.mxu0
      %8975 = vmatprep.mubr.f32.mxu0 0.0
      %8976 = vmatmul.mubr.f32.gmra.mxu0 %v8763
      %v8977 = vpop.f32.mrf.mxu0
      %v8978 = vadd.f32 0.0, %v8977
      %v8979 = vpop.f32.mrf.mxu0
      %8980 = vmatprep.mubr.f32.mxu0 0.0
      %8981 = vmatmul.mubr.f32.gmra.mxu0 %v8766
      %v8982 = vpop.f32.mrf.mxu0
      %v8983 = vadd.f32 0.0, %v8982
      %v8984 = vpop.f32.mrf.mxu0
      %8985 = vmatprep.mubr.f32.mxu0 0.0
      %8986 = vmatmul.mubr.f32.gmra.mxu0 %v8769
      %v8987 = vpop.f32.mrf.mxu0
      %v8988 = vadd.f32 0.0, %v8987
      %v8989 = vpop.f32.mrf.mxu0
      %8990 = vmatprep.mubr.f32.mxu0 0.0
      %8991 = vmatmul.mubr.f32.gmra.mxu0 %v8772
      %v8992 = vpop.f32.mrf.mxu0
      %v8993 = vadd.f32 0.0, %v8992
      %v8994 = vpop.f32.mrf.mxu0
      %8995 = vmatprep.mubr.f32.mxu0 0.0
      %8996 = vmatmul.mubr.f32.gmra.mxu0 %v8775
      %v8997 = vpop.f32.mrf.mxu0
      %v8998 = vadd.f32 0.0, %v8997
      %v8999 = vpop.f32.mrf.mxu0
      %9000 = vmatprep.mubr.f32.mxu0 0.0
      %9001 = vmatmul.mubr.f32.gmra.mxu0 %v8778
      %v9002 = vpop.f32.mrf.mxu0
      %v9003 = vadd.f32 0.0, %v9002
      %v9004 = vpop.f32.mrf.mxu0
      %9005 = vmatprep.mubr.f32.mxu0 0.0
      %9006 = vmatmul.mubr.f32.gmra.mxu0 %v8781
      %v9007 = vpop.f32.mrf.mxu0
      %v9008 = vadd.f32 0.0, %v9007
      %v9009 = vpop.f32.mrf.mxu0
      %9010 = vdwg.mxu0
      %v9011 = vadd.f32 %v8653, %v8853
      %v9012 = vadd.f32 %v8654, %v8858
      %v9013 = vadd.f32 %v8655, %v8863
      %v9014 = vadd.f32 %v8656, %v8868
      %v9015 = vadd.f32 %v8657, %v8873
      %v9016 = vadd.f32 %v8658, %v8878
      %v9017 = vadd.f32 %v8659, %v8883
      %v9018 = vadd.f32 %v8660, %v8888
      %v9019 = vadd.f32 %v8661, %v8893
      %v9020 = vadd.f32 %v8662, %v8898
      %v9021 = vadd.f32 %v8663, %v8903
      %v9022 = vadd.f32 %v8664, %v8908
      %v9023 = vadd.f32 %v8665, %v8913
      %v9024 = vadd.f32 %v8666, %v8918
      %v9025 = vadd.f32 %v8667, %v8923
      %v9026 = vadd.f32 %v8668, %v8928
      %v9027 = vadd.f32 %v8669, %v8933
      %v9028 = vadd.f32 %v8670, %v8938
      %v9029 = vadd.f32 %v8671, %v8943
      %v9030 = vadd.f32 %v8672, %v8948
      %v9031 = vadd.f32 %v8673, %v8953
      %v9032 = vadd.f32 %v8674, %v8958
      %v9033 = vadd.f32 %v8675, %v8963
      %v9034 = vadd.f32 %v8676, %v8968
      %v9035 = vadd.f32 %v8677, %v8973
      %v9036 = vadd.f32 %v8678, %v8978
      %v9037 = vadd.f32 %v8679, %v8983
      %v9038 = vadd.f32 %v8680, %v8988
      %v9039 = vadd.f32 %v8681, %v8993
      %v9040 = vadd.f32 %v8682, %v8998
      %v9041 = vadd.f32 %v8683, %v9003
      %v9042 = vadd.f32 %v8684, %v9008
      %s9043 = scalar_lea.vmem %s4, 12
      %v9044 = vld [vmem:[%s9043] sm:$0xf]
      %v9046 = vsel %vm1288, %v7465, 0
      %v9049 = vsel %vm1288, %v7470, 0
      %v9052 = vsel %vm1288, %v7475, 0
      %v9055 = vsel %vm1288, %v7480, 0
      %v9058 = vsel %vm1288, %v7485, 0
      %v9061 = vsel %vm1288, %v7490, 0
      %v9064 = vsel %vm1288, %v7495, 0
      %v9067 = vsel %vm1288, %v7500, 0
      %v9070 = vsel %vm1288, %v7618, 0
      %v9073 = vsel %vm1288, %v7623, 0
      %v9076 = vsel %vm1288, %v7628, 0
      %v9079 = vsel %vm1288, %v7633, 0
      %v9082 = vsel %vm1288, %v7638, 0
      %v9085 = vsel %vm1288, %v7643, 0
      %v9088 = vsel %vm1288, %v7648, 0
      %v9091 = vsel %vm1288, %v7653, 0
      %v9094 = vsel %vm1288, %v7771, 0
      %v9097 = vsel %vm1288, %v7776, 0
      %v9100 = vsel %vm1288, %v7781, 0
      %v9103 = vsel %vm1288, %v7786, 0
      %v9106 = vsel %vm1288, %v7791, 0
      %v9109 = vsel %vm1288, %v7796, 0
      %v9112 = vsel %vm1288, %v7801, 0
      %v9115 = vsel %vm1288, %v7806, 0
      %v9118 = vsel %vm1288, %v7924, 0
      %v9121 = vsel %vm1288, %v7929, 0
      %v9124 = vsel %vm1288, %v7934, 0
      %v9127 = vsel %vm1288, %v7939, 0
      %v9130 = vsel %vm1288, %v7944, 0
      %v9133 = vsel %vm1288, %v7949, 0
      %v9136 = vsel %vm1288, %v7954, 0
      %v9139 = vsel %vm1288, %v7959, 0
      %v9142 = vsel %vm8060, %v9044, 0
      %9144 = vmatprep.subr.mxu0 0.0
      %9145 = vmatpush1.msra.mxu0 0.0
      %9146 = vmatprep.subr.mxu0 0.0
      %9147 = vmatpush1.msra.mxu0 0.0
      %9148 = vmatprep.subr.mxu0 0.0
      %9149 = vmatpush1.msra.mxu0 0.0
      %9150 = vmatprep.subr.mxu0 0.0
      %9151 = vmatpush1.msra.mxu0 0.0
      %9152 = vmatprep.subr.mxu0 0.0
      %9153 = vmatpush1.msra.mxu0 0.0
      %9154 = vmatprep.subr.mxu0 0.0
      %9155 = vmatpush1.msra.mxu0 0.0
      %9156 = vmatprep.subr.mxu0 0.0
      %9157 = vmatpush1.msra.mxu0 0.0
      %9158 = vmatprep.subr.mxu0 0.0
      %9159 = vmatpush1.msra.mxu0 0.0
      %9160 = vmatprep.subr.mxu0 0.0
      %9161 = vmatpush1.msra.mxu0 0.0
      %9162 = vmatprep.subr.mxu0 0.0
      %9163 = vmatpush1.msra.mxu0 0.0
      %9164 = vmatprep.subr.mxu0 0.0
      %9165 = vmatpush1.msra.mxu0 0.0
      %9166 = vmatprep.subr.mxu0 0.0
      %9167 = vmatpush1.msra.mxu0 0.0
      %9168 = vmatprep.subr.mxu0 0.0
      %9169 = vmatpush1.msra.mxu0 0.0
      %9170 = vmatprep.subr.mxu0 0.0
      %9171 = vmatpush1.msra.mxu0 0.0
      %9172 = vmatprep.subr.mxu0 0.0
      %9173 = vmatpush1.msra.mxu0 0.0
      %9174 = vmatprep.subr.mxu0 0.0
      %9175 = vmatpush1.msra.mxu0 %v9142
      %9176 = vmatprep.subr.mxu0 0.0
      %9177 = vmatpush2.msra.mxu0 0.0
      %9178 = vmatprep.subr.mxu0 0.0
      %9179 = vmatpush2.msra.mxu0 0.0
      %9180 = vmatprep.subr.mxu0 0.0
      %9181 = vmatpush2.msra.mxu0 0.0
      %9182 = vmatprep.subr.mxu0 0.0
      %9183 = vmatpush2.msra.mxu0 0.0
      %9184 = vmatprep.subr.mxu0 0.0
      %9185 = vmatpush2.msra.mxu0 0.0
      %9186 = vmatprep.subr.mxu0 0.0
      %9187 = vmatpush2.msra.mxu0 0.0
      %9188 = vmatprep.subr.mxu0 0.0
      %9189 = vmatpush2.msra.mxu0 0.0
      %9190 = vmatprep.subr.mxu0 0.0
      %9191 = vmatpush2.msra.mxu0 0.0
      %9192 = vmatprep.subr.mxu0 0.0
      %9193 = vmatpush2.msra.mxu0 0.0
      %9194 = vmatprep.subr.mxu0 0.0
      %9195 = vmatpush2.msra.mxu0 0.0
      %9196 = vmatprep.subr.mxu0 0.0
      %9197 = vmatpush2.msra.mxu0 0.0
      %9198 = vmatprep.subr.mxu0 0.0
      %9199 = vmatpush2.msra.mxu0 0.0
      %9200 = vmatprep.subr.mxu0 0.0
      %9201 = vmatpush2.msra.mxu0 0.0
      %9202 = vmatprep.subr.mxu0 0.0
      %9203 = vmatpush2.msra.mxu0 0.0
      %9204 = vmatprep.subr.mxu0 0.0
      %9205 = vmatpush2.msra.mxu0 0.0
      %9206 = vmatprep.subr.mxu0 0.0
      %9207 = vmatpush2.msra.mxu0 0.0
      %9208 = vmatprep.mubr.f32.mxu0 0.0
      %9209 = vmatmul.mubr.f32.gmra.mxu0 %v9046
      %v9210 = vpop.f32.mrf.mxu0
      %v9211 = vadd.f32 0.0, %v9210
      %v9212 = vpop.f32.mrf.mxu0
      %9213 = vmatprep.mubr.f32.mxu0 0.0
      %9214 = vmatmul.mubr.f32.gmra.mxu0 %v9049
      %v9215 = vpop.f32.mrf.mxu0
      %v9216 = vadd.f32 0.0, %v9215
      %v9217 = vpop.f32.mrf.mxu0
      %9218 = vmatprep.mubr.f32.mxu0 0.0
      %9219 = vmatmul.mubr.f32.gmra.mxu0 %v9052
      %v9220 = vpop.f32.mrf.mxu0
      %v9221 = vadd.f32 0.0, %v9220
      %v9222 = vpop.f32.mrf.mxu0
      %9223 = vmatprep.mubr.f32.mxu0 0.0
      %9224 = vmatmul.mubr.f32.gmra.mxu0 %v9055
      %v9225 = vpop.f32.mrf.mxu0
      %v9226 = vadd.f32 0.0, %v9225
      %v9227 = vpop.f32.mrf.mxu0
      %9228 = vmatprep.mubr.f32.mxu0 0.0
      %9229 = vmatmul.mubr.f32.gmra.mxu0 %v9058
      %v9230 = vpop.f32.mrf.mxu0
      %v9231 = vadd.f32 0.0, %v9230
      %v9232 = vpop.f32.mrf.mxu0
      %9233 = vmatprep.mubr.f32.mxu0 0.0
      %9234 = vmatmul.mubr.f32.gmra.mxu0 %v9061
      %v9235 = vpop.f32.mrf.mxu0
      %v9236 = vadd.f32 0.0, %v9235
      %v9237 = vpop.f32.mrf.mxu0
      %9238 = vmatprep.mubr.f32.mxu0 0.0
      %9239 = vmatmul.mubr.f32.gmra.mxu0 %v9064
      %v9240 = vpop.f32.mrf.mxu0
      %v9241 = vadd.f32 0.0, %v9240
      %v9242 = vpop.f32.mrf.mxu0
      %9243 = vmatprep.mubr.f32.mxu0 0.0
      %9244 = vmatmul.mubr.f32.gmra.mxu0 %v9067
      %v9245 = vpop.f32.mrf.mxu0
      %v9246 = vadd.f32 0.0, %v9245
      %v9247 = vpop.f32.mrf.mxu0
      %9248 = vmatprep.mubr.f32.mxu0 0.0
      %9249 = vmatmul.mubr.f32.gmra.mxu0 %v9070
      %v9250 = vpop.f32.mrf.mxu0
      %v9251 = vadd.f32 0.0, %v9250
      %v9252 = vpop.f32.mrf.mxu0
      %9253 = vmatprep.mubr.f32.mxu0 0.0
      %9254 = vmatmul.mubr.f32.gmra.mxu0 %v9073
      %v9255 = vpop.f32.mrf.mxu0
      %v9256 = vadd.f32 0.0, %v9255
      %v9257 = vpop.f32.mrf.mxu0
      %9258 = vmatprep.mubr.f32.mxu0 0.0
      %9259 = vmatmul.mubr.f32.gmra.mxu0 %v9076
      %v9260 = vpop.f32.mrf.mxu0
      %v9261 = vadd.f32 0.0, %v9260
      %v9262 = vpop.f32.mrf.mxu0
      %9263 = vmatprep.mubr.f32.mxu0 0.0
      %9264 = vmatmul.mubr.f32.gmra.mxu0 %v9079
      %v9265 = vpop.f32.mrf.mxu0
      %v9266 = vadd.f32 0.0, %v9265
      %v9267 = vpop.f32.mrf.mxu0
      %9268 = vmatprep.mubr.f32.mxu0 0.0
      %9269 = vmatmul.mubr.f32.gmra.mxu0 %v9082
      %v9270 = vpop.f32.mrf.mxu0
      %v9271 = vadd.f32 0.0, %v9270
      %v9272 = vpop.f32.mrf.mxu0
      %9273 = vmatprep.mubr.f32.mxu0 0.0
      %9274 = vmatmul.mubr.f32.gmra.mxu0 %v9085
      %v9275 = vpop.f32.mrf.mxu0
      %v9276 = vadd.f32 0.0, %v9275
      %v9277 = vpop.f32.mrf.mxu0
      %9278 = vmatprep.mubr.f32.mxu0 0.0
      %9279 = vmatmul.mubr.f32.gmra.mxu0 %v9088
      %v9280 = vpop.f32.mrf.mxu0
      %v9281 = vadd.f32 0.0, %v9280
      %v9282 = vpop.f32.mrf.mxu0
      %9283 = vmatprep.mubr.f32.mxu0 0.0
      %9284 = vmatmul.mubr.f32.gmra.mxu0 %v9091
      %v9285 = vpop.f32.mrf.mxu0
      %v9286 = vadd.f32 0.0, %v9285
      %v9287 = vpop.f32.mrf.mxu0
      %9288 = vmatprep.mubr.f32.mxu0 0.0
      %9289 = vmatmul.mubr.f32.gmra.mxu0 %v9094
      %v9290 = vpop.f32.mrf.mxu0
      %v9291 = vadd.f32 0.0, %v9290
      %v9292 = vpop.f32.mrf.mxu0
      %9293 = vmatprep.mubr.f32.mxu0 0.0
      %9294 = vmatmul.mubr.f32.gmra.mxu0 %v9097
      %v9295 = vpop.f32.mrf.mxu0
      %v9296 = vadd.f32 0.0, %v9295
      %v9297 = vpop.f32.mrf.mxu0
      %9298 = vmatprep.mubr.f32.mxu0 0.0
      %9299 = vmatmul.mubr.f32.gmra.mxu0 %v9100
      %v9300 = vpop.f32.mrf.mxu0
      %v9301 = vadd.f32 0.0, %v9300
      %v9302 = vpop.f32.mrf.mxu0
      %9303 = vmatprep.mubr.f32.mxu0 0.0
      %9304 = vmatmul.mubr.f32.gmra.mxu0 %v9103
      %v9305 = vpop.f32.mrf.mxu0
      %v9306 = vadd.f32 0.0, %v9305
      %v9307 = vpop.f32.mrf.mxu0
      %9308 = vmatprep.mubr.f32.mxu0 0.0
      %9309 = vmatmul.mubr.f32.gmra.mxu0 %v9106
      %v9310 = vpop.f32.mrf.mxu0
      %v9311 = vadd.f32 0.0, %v9310
      %v9312 = vpop.f32.mrf.mxu0
      %9313 = vmatprep.mubr.f32.mxu0 0.0
      %9314 = vmatmul.mubr.f32.gmra.mxu0 %v9109
      %v9315 = vpop.f32.mrf.mxu0
      %v9316 = vadd.f32 0.0, %v9315
      %v9317 = vpop.f32.mrf.mxu0
      %9318 = vmatprep.mubr.f32.mxu0 0.0
      %9319 = vmatmul.mubr.f32.gmra.mxu0 %v9112
      %v9320 = vpop.f32.mrf.mxu0
      %v9321 = vadd.f32 0.0, %v9320
      %v9322 = vpop.f32.mrf.mxu0
      %9323 = vmatprep.mubr.f32.mxu0 0.0
      %9324 = vmatmul.mubr.f32.gmra.mxu0 %v9115
      %v9325 = vpop.f32.mrf.mxu0
      %v9326 = vadd.f32 0.0, %v9325
      %v9327 = vpop.f32.mrf.mxu0
      %9328 = vmatprep.mubr.f32.mxu0 0.0
      %9329 = vmatmul.mubr.f32.gmra.mxu0 %v9118
      %v9330 = vpop.f32.mrf.mxu0
      %v9331 = vadd.f32 0.0, %v9330
      %v9332 = vpop.f32.mrf.mxu0
      %9333 = vmatprep.mubr.f32.mxu0 0.0
      %9334 = vmatmul.mubr.f32.gmra.mxu0 %v9121
      %v9335 = vpop.f32.mrf.mxu0
      %v9336 = vadd.f32 0.0, %v9335
      %v9337 = vpop.f32.mrf.mxu0
      %9338 = vmatprep.mubr.f32.mxu0 0.0
      %9339 = vmatmul.mubr.f32.gmra.mxu0 %v9124
      %v9340 = vpop.f32.mrf.mxu0
      %v9341 = vadd.f32 0.0, %v9340
      %v9342 = vpop.f32.mrf.mxu0
      %9343 = vmatprep.mubr.f32.mxu0 0.0
      %9344 = vmatmul.mubr.f32.gmra.mxu0 %v9127
      %v9345 = vpop.f32.mrf.mxu0
      %v9346 = vadd.f32 0.0, %v9345
      %v9347 = vpop.f32.mrf.mxu0
      %9348 = vmatprep.mubr.f32.mxu0 0.0
      %9349 = vmatmul.mubr.f32.gmra.mxu0 %v9130
      %v9350 = vpop.f32.mrf.mxu0
      %v9351 = vadd.f32 0.0, %v9350
      %v9352 = vpop.f32.mrf.mxu0
      %9353 = vmatprep.mubr.f32.mxu0 0.0
      %9354 = vmatmul.mubr.f32.gmra.mxu0 %v9133
      %v9355 = vpop.f32.mrf.mxu0
      %v9356 = vadd.f32 0.0, %v9355
      %v9357 = vpop.f32.mrf.mxu0
      %9358 = vmatprep.mubr.f32.mxu0 0.0
      %9359 = vmatmul.mubr.f32.gmra.mxu0 %v9136
      %v9360 = vpop.f32.mrf.mxu0
      %v9361 = vadd.f32 0.0, %v9360
      %v9362 = vpop.f32.mrf.mxu0
      %9363 = vmatprep.mubr.f32.mxu0 0.0
      %9364 = vmatmul.mubr.f32.gmra.mxu0 %v9139
      %v9365 = vpop.f32.mrf.mxu0
      %v9366 = vadd.f32 0.0, %v9365
      %v9367 = vpop.f32.mrf.mxu0
      %9368 = vdwg.mxu0
      %v9369 = vadd.f32 %v9011, %v9211
      %v9370 = vadd.f32 %v9012, %v9216
      %v9371 = vadd.f32 %v9013, %v9221
      %v9372 = vadd.f32 %v9014, %v9226
      %v9373 = vadd.f32 %v9015, %v9231
      %v9374 = vadd.f32 %v9016, %v9236
      %v9375 = vadd.f32 %v9017, %v9241
      %v9376 = vadd.f32 %v9018, %v9246
      %v9377 = vadd.f32 %v9019, %v9251
      %v9378 = vadd.f32 %v9020, %v9256
      %v9379 = vadd.f32 %v9021, %v9261
      %v9380 = vadd.f32 %v9022, %v9266
      %v9381 = vadd.f32 %v9023, %v9271
      %v9382 = vadd.f32 %v9024, %v9276
      %v9383 = vadd.f32 %v9025, %v9281
      %v9384 = vadd.f32 %v9026, %v9286
      %v9385 = vadd.f32 %v9027, %v9291
      %v9386 = vadd.f32 %v9028, %v9296
      %v9387 = vadd.f32 %v9029, %v9301
      %v9388 = vadd.f32 %v9030, %v9306
      %v9389 = vadd.f32 %v9031, %v9311
      %v9390 = vadd.f32 %v9032, %v9316
      %v9391 = vadd.f32 %v9033, %v9321
      %v9392 = vadd.f32 %v9034, %v9326
      %v9393 = vadd.f32 %v9035, %v9331
      %v9394 = vadd.f32 %v9036, %v9336
      %v9395 = vadd.f32 %v9037, %v9341
      %v9396 = vadd.f32 %v9038, %v9346
      %v9397 = vadd.f32 %v9039, %v9351
      %v9398 = vadd.f32 %v9040, %v9356
      %v9399 = vadd.f32 %v9041, %v9361
      %v9400 = vadd.f32 %v9042, %v9366
      %v9401 = vadd.f32 %v362, %v9369
      %v9402 = vadd.f32 %v363, %v9370
      %v9403 = vadd.f32 %v364, %v9371
      %v9404 = vadd.f32 %v365, %v9372
      %v9405 = vadd.f32 %v366, %v9373
      %v9406 = vadd.f32 %v367, %v9374
      %v9407 = vadd.f32 %v368, %v9375
      %v9408 = vadd.f32 %v369, %v9376
      %v9409 = vadd.f32 %v370, %v9377
      %v9410 = vadd.f32 %v371, %v9378
      %v9411 = vadd.f32 %v372, %v9379
      %v9412 = vadd.f32 %v373, %v9380
      %v9413 = vadd.f32 %v374, %v9381
      %v9414 = vadd.f32 %v375, %v9382
      %v9415 = vadd.f32 %v376, %v9383
      %v9416 = vadd.f32 %v377, %v9384
      %v9417 = vadd.f32 %v378, %v9385
      %v9418 = vadd.f32 %v379, %v9386
      %v9419 = vadd.f32 %v380, %v9387
      %v9420 = vadd.f32 %v381, %v9388
      %v9421 = vadd.f32 %v382, %v9389
      %v9422 = vadd.f32 %v383, %v9390
      %v9423 = vadd.f32 %v384, %v9391
      %v9424 = vadd.f32 %v385, %v9392
      %v9425 = vadd.f32 %v386, %v9393
      %v9426 = vadd.f32 %v387, %v9394
      %v9427 = vadd.f32 %v388, %v9395
      %v9428 = vadd.f32 %v389, %v9396
      %v9429 = vadd.f32 %v390, %v9397
      %v9430 = vadd.f32 %v391, %v9398
      %v9431 = vadd.f32 %v392, %v9399
      %v9432 = vadd.f32 %v393, %v9400
      %v9433 = vsel %vm394, %v9401, 0.0
      %v9434 = vsel %vm394, %v9402, 0.0
      %v9435 = vadd.f32 %v9433, %v9434
      %v9436 = vsel %vm394, %v9403, 0.0
      %v9437 = vadd.f32 %v9435, %v9436
      %v9438 = vsel %vm394, %v9404, 0.0
      %v9439 = vadd.f32 %v9437, %v9438
      %v9440 = vsel %vm394, %v9405, 0.0
      %v9441 = vadd.f32 %v9439, %v9440
      %v9442 = vsel %vm394, %v9406, 0.0
      %v9443 = vadd.f32 %v9441, %v9442
      %v9444 = vsel %vm394, %v9407, 0.0
      %v9445 = vadd.f32 %v9443, %v9444
      %v9446 = vsel %vm394, %v9408, 0.0
      %v9447 = vadd.f32 %v9445, %v9446
      %v9448 = vsel %vm394, %v9409, 0.0
      %v9449 = vadd.f32 %v9447, %v9448
      %v9450 = vsel %vm394, %v9410, 0.0
      %v9451 = vadd.f32 %v9449, %v9450
      %v9452 = vsel %vm394, %v9411, 0.0
      %v9453 = vadd.f32 %v9451, %v9452
      %v9454 = vsel %vm394, %v9412, 0.0
      %v9455 = vadd.f32 %v9453, %v9454
      %v9456 = vsel %vm394, %v9413, 0.0
      %v9457 = vadd.f32 %v9455, %v9456
      %v9458 = vsel %vm394, %v9414, 0.0
      %v9459 = vadd.f32 %v9457, %v9458
      %v9460 = vsel %vm394, %v9415, 0.0
      %v9461 = vadd.f32 %v9459, %v9460
      %v9462 = vsel %vm394, %v9416, 0.0
      %v9463 = vadd.f32 %v9461, %v9462
      %v9464 = vsel %vm394, %v9417, 0.0
      %v9465 = vadd.f32 %v9463, %v9464
      %v9466 = vsel %vm394, %v9418, 0.0
      %v9467 = vadd.f32 %v9465, %v9466
      %v9468 = vsel %vm394, %v9419, 0.0
      %v9469 = vadd.f32 %v9467, %v9468
      %v9470 = vsel %vm394, %v9420, 0.0
      %v9471 = vadd.f32 %v9469, %v9470
      %v9472 = vsel %vm394, %v9421, 0.0
      %v9473 = vadd.f32 %v9471, %v9472
      %v9474 = vsel %vm394, %v9422, 0.0
      %v9475 = vadd.f32 %v9473, %v9474
      %v9476 = vsel %vm394, %v9423, 0.0
      %v9477 = vadd.f32 %v9475, %v9476
      %v9478 = vsel %vm394, %v9424, 0.0
      %v9479 = vadd.f32 %v9477, %v9478
      %v9480 = vsel %vm394, %v9425, 0.0
      %v9481 = vadd.f32 %v9479, %v9480
      %v9482 = vsel %vm394, %v9426, 0.0
      %v9483 = vadd.f32 %v9481, %v9482
      %v9484 = vsel %vm394, %v9427, 0.0
      %v9485 = vadd.f32 %v9483, %v9484
      %v9486 = vsel %vm394, %v9428, 0.0
      %v9487 = vadd.f32 %v9485, %v9486
      %v9488 = vsel %vm394, %v9429, 0.0
      %v9489 = vadd.f32 %v9487, %v9488
      %v9490 = vsel %vm394, %v9430, 0.0
      %v9491 = vadd.f32 %v9489, %v9490
      %v9492 = vsel %vm394, %v9431, 0.0
      %v9493 = vadd.f32 %v9491, %v9492
      %v9494 = vsel %vm394, %v9432, 0.0
      %v9495 = vadd.f32 %v9493, %v9494
      %9496 = vadd.xlane.f32.xlu0 %v9495
      %v9497 = vpop.xlane.xlu0 %9496
      %v9498 = vrot.slane %v9497, 4
      %v9499 = vadd.f32 %v9497, %v9498
      %v9500 = vrot.slane %v9499, 2
      %v9501 = vadd.f32 %v9499, %v9500
      %v9502 = vrot.slane %v9501, 1
      %v9503 = vadd.f32 %v9501, %v9502
      %s9504 = vtos %v9503
      %v9505 = vrcp.pop 4096.0
      %s9506 = vtos %v9505
      %s9507 = smul.f32 %s9504, %s9506
      %v9508 = vmul.f32 %v9401, %v9401
      %v9509 = vmul.f32 %v9402, %v9402
      %v9510 = vmul.f32 %v9403, %v9403
      %v9511 = vmul.f32 %v9404, %v9404
      %v9512 = vmul.f32 %v9405, %v9405
      %v9513 = vmul.f32 %v9406, %v9406
      %v9514 = vmul.f32 %v9407, %v9407
      %v9515 = vmul.f32 %v9408, %v9408
      %v9516 = vmul.f32 %v9409, %v9409
      %v9517 = vmul.f32 %v9410, %v9410
      %v9518 = vmul.f32 %v9411, %v9411
      %v9519 = vmul.f32 %v9412, %v9412
      %v9520 = vmul.f32 %v9413, %v9413
      %v9521 = vmul.f32 %v9414, %v9414
      %v9522 = vmul.f32 %v9415, %v9415
      %v9523 = vmul.f32 %v9416, %v9416
      %v9524 = vmul.f32 %v9417, %v9417
      %v9525 = vmul.f32 %v9418, %v9418
      %v9526 = vmul.f32 %v9419, %v9419
      %v9527 = vmul.f32 %v9420, %v9420
      %v9528 = vmul.f32 %v9421, %v9421
      %v9529 = vmul.f32 %v9422, %v9422
      %v9530 = vmul.f32 %v9423, %v9423
      %v9531 = vmul.f32 %v9424, %v9424
      %v9532 = vmul.f32 %v9425, %v9425
      %v9533 = vmul.f32 %v9426, %v9426
      %v9534 = vmul.f32 %v9427, %v9427
      %v9535 = vmul.f32 %v9428, %v9428
      %v9536 = vmul.f32 %v9429, %v9429
      %v9537 = vmul.f32 %v9430, %v9430
      %v9538 = vmul.f32 %v9431, %v9431
      %v9539 = vmul.f32 %v9432, %v9432
      %v9540 = vsel %vm394, %v9508, 0.0
      %v9541 = vsel %vm394, %v9509, 0.0
      %v9542 = vadd.f32 %v9540, %v9541
      %v9543 = vsel %vm394, %v9510, 0.0
      %v9544 = vadd.f32 %v9542, %v9543
      %v9545 = vsel %vm394, %v9511, 0.0
      %v9546 = vadd.f32 %v9544, %v9545
      %v9547 = vsel %vm394, %v9512, 0.0
      %v9548 = vadd.f32 %v9546, %v9547
      %v9549 = vsel %vm394, %v9513, 0.0
      %v9550 = vadd.f32 %v9548, %v9549
      %v9551 = vsel %vm394, %v9514, 0.0
      %v9552 = vadd.f32 %v9550, %v9551
      %v9553 = vsel %vm394, %v9515, 0.0
      %v9554 = vadd.f32 %v9552, %v9553
      %v9555 = vsel %vm394, %v9516, 0.0
      %v9556 = vadd.f32 %v9554, %v9555
      %v9557 = vsel %vm394, %v9517, 0.0
      %v9558 = vadd.f32 %v9556, %v9557
      %v9559 = vsel %vm394, %v9518, 0.0
      %v9560 = vadd.f32 %v9558, %v9559
      %v9561 = vsel %vm394, %v9519, 0.0
      %v9562 = vadd.f32 %v9560, %v9561
      %v9563 = vsel %vm394, %v9520, 0.0
      %v9564 = vadd.f32 %v9562, %v9563
      %v9565 = vsel %vm394, %v9521, 0.0
      %v9566 = vadd.f32 %v9564, %v9565
      %v9567 = vsel %vm394, %v9522, 0.0
      %v9568 = vadd.f32 %v9566, %v9567
      %v9569 = vsel %vm394, %v9523, 0.0
      %v9570 = vadd.f32 %v9568, %v9569
      %v9571 = vsel %vm394, %v9524, 0.0
      %v9572 = vadd.f32 %v9570, %v9571
      %v9573 = vsel %vm394, %v9525, 0.0
      %v9574 = vadd.f32 %v9572, %v9573
      %v9575 = vsel %vm394, %v9526, 0.0
      %v9576 = vadd.f32 %v9574, %v9575
      %v9577 = vsel %vm394, %v9527, 0.0
      %v9578 = vadd.f32 %v9576, %v9577
      %v9579 = vsel %vm394, %v9528, 0.0
      %v9580 = vadd.f32 %v9578, %v9579
      %v9581 = vsel %vm394, %v9529, 0.0
      %v9582 = vadd.f32 %v9580, %v9581
      %v9583 = vsel %vm394, %v9530, 0.0
      %v9584 = vadd.f32 %v9582, %v9583
      %v9585 = vsel %vm394, %v9531, 0.0
      %v9586 = vadd.f32 %v9584, %v9585
      %v9587 = vsel %vm394, %v9532, 0.0
      %v9588 = vadd.f32 %v9586, %v9587
      %v9589 = vsel %vm394, %v9533, 0.0
      %v9590 = vadd.f32 %v9588, %v9589
      %v9591 = vsel %vm394, %v9534, 0.0
      %v9592 = vadd.f32 %v9590, %v9591
      %v9593 = vsel %vm394, %v9535, 0.0
      %v9594 = vadd.f32 %v9592, %v9593
      %v9595 = vsel %vm394, %v9536, 0.0
      %v9596 = vadd.f32 %v9594, %v9595
      %v9597 = vsel %vm394, %v9537, 0.0
      %v9598 = vadd.f32 %v9596, %v9597
      %v9599 = vsel %vm394, %v9538, 0.0
      %v9600 = vadd.f32 %v9598, %v9599
      %v9601 = vsel %vm394, %v9539, 0.0
      %v9602 = vadd.f32 %v9600, %v9601
      %9603 = vadd.xlane.f32.xlu0 %v9602
      %v9604 = vpop.xlane.xlu0 %9603
      %v9605 = vrot.slane %v9604, 4
      %v9606 = vadd.f32 %v9604, %v9605
      %v9607 = vrot.slane %v9606, 2
      %v9608 = vadd.f32 %v9606, %v9607
      %v9609 = vrot.slane %v9608, 1
      %v9610 = vadd.f32 %v9608, %v9609
      %s9611 = vtos %v9610
      %v9612 = vrcp.pop 4096.0
      %s9613 = vtos %v9612
      %s9614 = smul.f32 %s9611, %s9613
      %s9615 = smul.f32 %s9507, %s9507
      %s9616 = ssub.f32 %s9614, %s9615
      %v9617 = vstv %s9507
      %v9618 = vsub.f32 %v9401, %v9617
      %v9619 = vsub.f32 %v9402, %v9617
      %v9620 = vsub.f32 %v9403, %v9617
      %v9621 = vsub.f32 %v9404, %v9617
      %v9622 = vsub.f32 %v9405, %v9617
      %v9623 = vsub.f32 %v9406, %v9617
      %v9624 = vsub.f32 %v9407, %v9617
      %v9625 = vsub.f32 %v9408, %v9617
      %v9626 = vsub.f32 %v9409, %v9617
      %v9627 = vsub.f32 %v9410, %v9617
      %v9628 = vsub.f32 %v9411, %v9617
      %v9629 = vsub.f32 %v9412, %v9617
      %v9630 = vsub.f32 %v9413, %v9617
      %v9631 = vsub.f32 %v9414, %v9617
      %v9632 = vsub.f32 %v9415, %v9617
      %v9633 = vsub.f32 %v9416, %v9617
      %v9634 = vsub.f32 %v9417, %v9617
      %v9635 = vsub.f32 %v9418, %v9617
      %v9636 = vsub.f32 %v9419, %v9617
      %v9637 = vsub.f32 %v9420, %v9617
      %v9638 = vsub.f32 %v9421, %v9617
      %v9639 = vsub.f32 %v9422, %v9617
      %v9640 = vsub.f32 %v9423, %v9617
      %v9641 = vsub.f32 %v9424, %v9617
      %v9642 = vsub.f32 %v9425, %v9617
      %v9643 = vsub.f32 %v9426, %v9617
      %v9644 = vsub.f32 %v9427, %v9617
      %v9645 = vsub.f32 %v9428, %v9617
      %v9646 = vsub.f32 %v9429, %v9617
      %v9647 = vsub.f32 %v9430, %v9617
      %v9648 = vsub.f32 %v9431, %v9617
      %v9649 = vsub.f32 %v9432, %v9617
      %s9650 = sadd.f32 %s9616, 1e-05
      %v9651 = vstv %s9650
      %v9652 = vrsqrt.pop %v9651
      %s9653 = vtos %v9652
      %v9654 = vstv %s9653
      %v9655 = vmul.f32 %v9618, %v9654
      %v9656 = vmul.f32 %v9619, %v9654
      %v9657 = vmul.f32 %v9620, %v9654
      %v9658 = vmul.f32 %v9621, %v9654
      %v9659 = vmul.f32 %v9622, %v9654
      %v9660 = vmul.f32 %v9623, %v9654
      %v9661 = vmul.f32 %v9624, %v9654
      %v9662 = vmul.f32 %v9625, %v9654
      %v9663 = vmul.f32 %v9626, %v9654
      %v9664 = vmul.f32 %v9627, %v9654
      %v9665 = vmul.f32 %v9628, %v9654
      %v9666 = vmul.f32 %v9629, %v9654
      %v9667 = vmul.f32 %v9630, %v9654
      %v9668 = vmul.f32 %v9631, %v9654
      %v9669 = vmul.f32 %v9632, %v9654
      %v9670 = vmul.f32 %v9633, %v9654
      %v9671 = vmul.f32 %v9634, %v9654
      %v9672 = vmul.f32 %v9635, %v9654
      %v9673 = vmul.f32 %v9636, %v9654
      %v9674 = vmul.f32 %v9637, %v9654
      %v9675 = vmul.f32 %v9638, %v9654
      %v9676 = vmul.f32 %v9639, %v9654
      %v9677 = vmul.f32 %v9640, %v9654
      %v9678 = vmul.f32 %v9641, %v9654
      %v9679 = vmul.f32 %v9642, %v9654
      %v9680 = vmul.f32 %v9643, %v9654
      %v9681 = vmul.f32 %v9644, %v9654
      %v9682 = vmul.f32 %v9645, %v9654
      %v9683 = vmul.f32 %v9646, %v9654
      %v9684 = vmul.f32 %v9647, %v9654
      %v9685 = vmul.f32 %v9648, %v9654
      %v9686 = vmul.f32 %v9649, %v9654
      %v9687 = vmul.f32 %v9655, %v653
      %v9688 = vmul.f32 %v9656, %v653
      %v9689 = vmul.f32 %v9657, %v653
      %v9690 = vmul.f32 %v9658, %v653
      %v9691 = vmul.f32 %v9659, %v653
      %v9692 = vmul.f32 %v9660, %v653
      %v9693 = vmul.f32 %v9661, %v653
      %v9694 = vmul.f32 %v9662, %v653
      %v9695 = vmul.f32 %v9663, %v653
      %v9696 = vmul.f32 %v9664, %v653
      %v9697 = vmul.f32 %v9665, %v653
      %v9698 = vmul.f32 %v9666, %v653
      %v9699 = vmul.f32 %v9667, %v653
      %v9700 = vmul.f32 %v9668, %v653
      %v9701 = vmul.f32 %v9669, %v653
      %v9702 = vmul.f32 %v9670, %v653
      %v9703 = vmul.f32 %v9671, %v653
      %v9704 = vmul.f32 %v9672, %v653
      %v9705 = vmul.f32 %v9673, %v653
      %v9706 = vmul.f32 %v9674, %v653
      %v9707 = vmul.f32 %v9675, %v653
      %v9708 = vmul.f32 %v9676, %v653
      %v9709 = vmul.f32 %v9677, %v653
      %v9710 = vmul.f32 %v9678, %v653
      %v9711 = vmul.f32 %v9679, %v653
      %v9712 = vmul.f32 %v9680, %v653
      %v9713 = vmul.f32 %v9681, %v653
      %v9714 = vmul.f32 %v9682, %v653
      %v9715 = vmul.f32 %v9683, %v653
      %v9716 = vmul.f32 %v9684, %v653
      %v9717 = vmul.f32 %v9685, %v653
      %v9718 = vmul.f32 %v9686, %v653
      %v9719 = vadd.f32 %v9687, %v691
      %v9720 = vadd.f32 %v9688, %v691
      %v9721 = vadd.f32 %v9689, %v691
      %v9722 = vadd.f32 %v9690, %v691
      %v9723 = vadd.f32 %v9691, %v691
      %v9724 = vadd.f32 %v9692, %v691
      %v9725 = vadd.f32 %v9693, %v691
      %v9726 = vadd.f32 %v9694, %v691
      %v9727 = vadd.f32 %v9695, %v691
      %v9728 = vadd.f32 %v9696, %v691
      %v9729 = vadd.f32 %v9697, %v691
      %v9730 = vadd.f32 %v9698, %v691
      %v9731 = vadd.f32 %v9699, %v691
      %v9732 = vadd.f32 %v9700, %v691
      %v9733 = vadd.f32 %v9701, %v691
      %v9734 = vadd.f32 %v9702, %v691
      %v9735 = vadd.f32 %v9703, %v691
      %v9736 = vadd.f32 %v9704, %v691
      %v9737 = vadd.f32 %v9705, %v691
      %v9738 = vadd.f32 %v9706, %v691
      %v9739 = vadd.f32 %v9707, %v691
      %v9740 = vadd.f32 %v9708, %v691
      %v9741 = vadd.f32 %v9709, %v691
      %v9742 = vadd.f32 %v9710, %v691
      %v9743 = vadd.f32 %v9711, %v691
      %v9744 = vadd.f32 %v9712, %v691
      %v9745 = vadd.f32 %v9713, %v691
      %v9746 = vadd.f32 %v9714, %v691
      %v9747 = vadd.f32 %v9715, %v691
      %v9748 = vadd.f32 %v9716, %v691
      %v9749 = vadd.f32 %v9717, %v691
      %v9750 = vadd.f32 %v9718, %v691
      %v9751 = vld [vmem:[%s6] sm:$0xff]
      %v9752 = vld [vmem:[%s6 + $0x8] sm:$0xff]
      %v9753 = vld [vmem:[%s7] sm:$0x1]
      %v9755 = vlaneseq
      %v9756 = vshrl.u32 %v9755, 7
      %v9757 = vsub.s32 0, %v9756
      %v9758 = vrot.slane %v9753, %v9757
      %v9761 = vsel %vm394, %v9719, 0
      %v9764 = vsel %vm394, %v9720, 0
      %v9767 = vsel %vm394, %v9721, 0
      %v9770 = vsel %vm394, %v9722, 0
      %v9773 = vsel %vm394, %v9723, 0
      %v9776 = vsel %vm394, %v9724, 0
      %v9779 = vsel %vm394, %v9725, 0
      %v9782 = vsel %vm394, %v9726, 0
      %v9785 = vsel %vm394, %v9727, 0
      %v9788 = vsel %vm394, %v9728, 0
      %v9791 = vsel %vm394, %v9729, 0
      %v9794 = vsel %vm394, %v9730, 0
      %v9797 = vsel %vm394, %v9731, 0
      %v9800 = vsel %vm394, %v9732, 0
      %v9803 = vsel %vm394, %v9733, 0
      %v9806 = vsel %vm394, %v9734, 0
      %v9809 = vsel %vm394, %v9735, 0
      %v9812 = vsel %vm394, %v9736, 0
      %v9815 = vsel %vm394, %v9737, 0
      %v9818 = vsel %vm394, %v9738, 0
      %v9821 = vsel %vm394, %v9739, 0
      %v9824 = vsel %vm394, %v9740, 0
      %v9827 = vsel %vm394, %v9741, 0
      %v9830 = vsel %vm394, %v9742, 0
      %v9833 = vsel %vm394, %v9743, 0
      %v9836 = vsel %vm394, %v9744, 0
      %v9839 = vsel %vm394, %v9745, 0
      %v9842 = vsel %vm394, %v9746, 0
      %v9845 = vsel %vm394, %v9747, 0
      %v9848 = vsel %vm394, %v9748, 0
      %v9851 = vsel %vm394, %v9749, 0
      %v9854 = vsel %vm394, %v9750, 0
      %9856 = vmatprep.subr.mxu0 0.0
      %9857 = vmatpush1.msra.mxu0 0.0
      %9858 = vmatprep.subr.mxu0 0.0
      %9859 = vmatpush1.msra.mxu0 0.0
      %9860 = vmatprep.subr.mxu0 0.0
      %9861 = vmatpush1.msra.mxu0 0.0
      %9862 = vmatprep.subr.mxu0 0.0
      %9863 = vmatpush1.msra.mxu0 0.0
      %9864 = vmatprep.subr.mxu0 0.0
      %9865 = vmatpush1.msra.mxu0 0.0
      %9866 = vmatprep.subr.mxu0 0.0
      %9867 = vmatpush1.msra.mxu0 0.0
      %9868 = vmatprep.subr.mxu0 0.0
      %9869 = vmatpush1.msra.mxu0 0.0
      %9870 = vmatprep.subr.mxu0 0.0
      %9871 = vmatpush1.msra.mxu0 0.0
      %9872 = vmatprep.subr.mxu0 0.0
      %9873 = vmatpush1.msra.mxu0 0.0
      %9874 = vmatprep.subr.mxu0 0.0
      %9875 = vmatpush1.msra.mxu0 0.0
      %9876 = vmatprep.subr.mxu0 0.0
      %9877 = vmatpush1.msra.mxu0 0.0
      %9878 = vmatprep.subr.mxu0 0.0
      %9879 = vmatpush1.msra.mxu0 0.0
      %9880 = vmatprep.subr.mxu0 0.0
      %9881 = vmatpush1.msra.mxu0 0.0
      %9882 = vmatprep.subr.mxu0 0.0
      %9883 = vmatpush1.msra.mxu0 0.0
      %9884 = vmatprep.subr.mxu0 0.0
      %9885 = vmatpush1.msra.mxu0 %v9752
      %9886 = vmatprep.subr.mxu0 0.0
      %9887 = vmatpush1.msra.mxu0 %v9751
      %9888 = vmatprep.subr.mxu0 0.0
      %9889 = vmatpush2.msra.mxu0 0.0
      %9890 = vmatprep.subr.mxu0 0.0
      %9891 = vmatpush2.msra.mxu0 0.0
      %9892 = vmatprep.subr.mxu0 0.0
      %9893 = vmatpush2.msra.mxu0 0.0
      %9894 = vmatprep.subr.mxu0 0.0
      %9895 = vmatpush2.msra.mxu0 0.0
      %9896 = vmatprep.subr.mxu0 0.0
      %9897 = vmatpush2.msra.mxu0 0.0
      %9898 = vmatprep.subr.mxu0 0.0
      %9899 = vmatpush2.msra.mxu0 0.0
      %9900 = vmatprep.subr.mxu0 0.0
      %9901 = vmatpush2.msra.mxu0 0.0
      %9902 = vmatprep.subr.mxu0 0.0
      %9903 = vmatpush2.msra.mxu0 0.0
      %9904 = vmatprep.subr.mxu0 0.0
      %9905 = vmatpush2.msra.mxu0 0.0
      %9906 = vmatprep.subr.mxu0 0.0
      %9907 = vmatpush2.msra.mxu0 0.0
      %9908 = vmatprep.subr.mxu0 0.0
      %9909 = vmatpush2.msra.mxu0 0.0
      %9910 = vmatprep.subr.mxu0 0.0
      %9911 = vmatpush2.msra.mxu0 0.0
      %9912 = vmatprep.subr.mxu0 0.0
      %9913 = vmatpush2.msra.mxu0 0.0
      %9914 = vmatprep.subr.mxu0 0.0
      %9915 = vmatpush2.msra.mxu0 0.0
      %9916 = vmatprep.subr.mxu0 0.0
      %9917 = vmatpush2.msra.mxu0 0.0
      %9918 = vmatprep.subr.mxu0 0.0
      %9919 = vmatpush2.msra.mxu0 0.0
      %9920 = vmatprep.mubr.f32.mxu0 0.0
      %9921 = vmatmul.mubr.f32.gmra.mxu0 %v9761
      %v9922 = vpop.f32.mrf.mxu0
      %v9923 = vadd.f32 %v9758, %v9922
      %v9924 = vpop.f32.mrf.mxu0
      %9925 = vmatprep.mubr.f32.mxu0 0.0
      %9926 = vmatmul.mubr.f32.gmra.mxu0 %v9764
      %v9927 = vpop.f32.mrf.mxu0
      %v9928 = vadd.f32 %v9758, %v9927
      %v9929 = vpop.f32.mrf.mxu0
      %9930 = vmatprep.mubr.f32.mxu0 0.0
      %9931 = vmatmul.mubr.f32.gmra.mxu0 %v9767
      %v9932 = vpop.f32.mrf.mxu0
      %v9933 = vadd.f32 %v9758, %v9932
      %v9934 = vpop.f32.mrf.mxu0
      %9935 = vmatprep.mubr.f32.mxu0 0.0
      %9936 = vmatmul.mubr.f32.gmra.mxu0 %v9770
      %v9937 = vpop.f32.mrf.mxu0
      %v9938 = vadd.f32 %v9758, %v9937
      %v9939 = vpop.f32.mrf.mxu0
      %9940 = vmatprep.mubr.f32.mxu0 0.0
      %9941 = vmatmul.mubr.f32.gmra.mxu0 %v9773
      %v9942 = vpop.f32.mrf.mxu0
      %v9943 = vadd.f32 %v9758, %v9942
      %v9944 = vpop.f32.mrf.mxu0
      %9945 = vmatprep.mubr.f32.mxu0 0.0
      %9946 = vmatmul.mubr.f32.gmra.mxu0 %v9776
      %v9947 = vpop.f32.mrf.mxu0
      %v9948 = vadd.f32 %v9758, %v9947
      %v9949 = vpop.f32.mrf.mxu0
      %9950 = vmatprep.mubr.f32.mxu0 0.0
      %9951 = vmatmul.mubr.f32.gmra.mxu0 %v9779
      %v9952 = vpop.f32.mrf.mxu0
      %v9953 = vadd.f32 %v9758, %v9952
      %v9954 = vpop.f32.mrf.mxu0
      %9955 = vmatprep.mubr.f32.mxu0 0.0
      %9956 = vmatmul.mubr.f32.gmra.mxu0 %v9782
      %v9957 = vpop.f32.mrf.mxu0
      %v9958 = vadd.f32 %v9758, %v9957
      %v9959 = vpop.f32.mrf.mxu0
      %9960 = vmatprep.mubr.f32.mxu0 0.0
      %9961 = vmatmul.mubr.f32.gmra.mxu0 %v9785
      %v9962 = vpop.f32.mrf.mxu0
      %v9963 = vadd.f32 %v9758, %v9962
      %v9964 = vpop.f32.mrf.mxu0
      %9965 = vmatprep.mubr.f32.mxu0 0.0
      %9966 = vmatmul.mubr.f32.gmra.mxu0 %v9788
      %v9967 = vpop.f32.mrf.mxu0
      %v9968 = vadd.f32 %v9758, %v9967
      %v9969 = vpop.f32.mrf.mxu0
      %9970 = vmatprep.mubr.f32.mxu0 0.0
      %9971 = vmatmul.mubr.f32.gmra.mxu0 %v9791
      %v9972 = vpop.f32.mrf.mxu0
      %v9973 = vadd.f32 %v9758, %v9972
      %v9974 = vpop.f32.mrf.mxu0
      %9975 = vmatprep.mubr.f32.mxu0 0.0
      %9976 = vmatmul.mubr.f32.gmra.mxu0 %v9794
      %v9977 = vpop.f32.mrf.mxu0
      %v9978 = vadd.f32 %v9758, %v9977
      %v9979 = vpop.f32.mrf.mxu0
      %9980 = vmatprep.mubr.f32.mxu0 0.0
      %9981 = vmatmul.mubr.f32.gmra.mxu0 %v9797
      %v9982 = vpop.f32.mrf.mxu0
      %v9983 = vadd.f32 %v9758, %v9982
      %v9984 = vpop.f32.mrf.mxu0
      %9985 = vmatprep.mubr.f32.mxu0 0.0
      %9986 = vmatmul.mubr.f32.gmra.mxu0 %v9800
      %v9987 = vpop.f32.mrf.mxu0
      %v9988 = vadd.f32 %v9758, %v9987
      %v9989 = vpop.f32.mrf.mxu0
      %9990 = vmatprep.mubr.f32.mxu0 0.0
      %9991 = vmatmul.mubr.f32.gmra.mxu0 %v9803
      %v9992 = vpop.f32.mrf.mxu0
      %v9993 = vadd.f32 %v9758, %v9992
      %v9994 = vpop.f32.mrf.mxu0
      %9995 = vmatprep.mubr.f32.mxu0 0.0
      %9996 = vmatmul.mubr.f32.gmra.mxu0 %v9806
      %v9997 = vpop.f32.mrf.mxu0
      %v9998 = vadd.f32 %v9758, %v9997
      %v9999 = vpop.f32.mrf.mxu0
      %10000 = vmatprep.mubr.f32.mxu0 0.0
      %10001 = vmatmul.mubr.f32.gmra.mxu0 %v9809
      %v10002 = vpop.f32.mrf.mxu0
      %v10003 = vadd.f32 %v9758, %v10002
      %v10004 = vpop.f32.mrf.mxu0
      %10005 = vmatprep.mubr.f32.mxu0 0.0
      %10006 = vmatmul.mubr.f32.gmra.mxu0 %v9812
      %v10007 = vpop.f32.mrf.mxu0
      %v10008 = vadd.f32 %v9758, %v10007
      %v10009 = vpop.f32.mrf.mxu0
      %10010 = vmatprep.mubr.f32.mxu0 0.0
      %10011 = vmatmul.mubr.f32.gmra.mxu0 %v9815
      %v10012 = vpop.f32.mrf.mxu0
      %v10013 = vadd.f32 %v9758, %v10012
      %v10014 = vpop.f32.mrf.mxu0
      %10015 = vmatprep.mubr.f32.mxu0 0.0
      %10016 = vmatmul.mubr.f32.gmra.mxu0 %v9818
      %v10017 = vpop.f32.mrf.mxu0
      %v10018 = vadd.f32 %v9758, %v10017
      %v10019 = vpop.f32.mrf.mxu0
      %10020 = vmatprep.mubr.f32.mxu0 0.0
      %10021 = vmatmul.mubr.f32.gmra.mxu0 %v9821
      %v10022 = vpop.f32.mrf.mxu0
      %v10023 = vadd.f32 %v9758, %v10022
      %v10024 = vpop.f32.mrf.mxu0
      %10025 = vmatprep.mubr.f32.mxu0 0.0
      %10026 = vmatmul.mubr.f32.gmra.mxu0 %v9824
      %v10027 = vpop.f32.mrf.mxu0
      %v10028 = vadd.f32 %v9758, %v10027
      %v10029 = vpop.f32.mrf.mxu0
      %10030 = vmatprep.mubr.f32.mxu0 0.0
      %10031 = vmatmul.mubr.f32.gmra.mxu0 %v9827
      %v10032 = vpop.f32.mrf.mxu0
      %v10033 = vadd.f32 %v9758, %v10032
      %v10034 = vpop.f32.mrf.mxu0
      %10035 = vmatprep.mubr.f32.mxu0 0.0
      %10036 = vmatmul.mubr.f32.gmra.mxu0 %v9830
      %v10037 = vpop.f32.mrf.mxu0
      %v10038 = vadd.f32 %v9758, %v10037
      %v10039 = vpop.f32.mrf.mxu0
      %10040 = vmatprep.mubr.f32.mxu0 0.0
      %10041 = vmatmul.mubr.f32.gmra.mxu0 %v9833
      %v10042 = vpop.f32.mrf.mxu0
      %v10043 = vadd.f32 %v9758, %v10042
      %v10044 = vpop.f32.mrf.mxu0
      %10045 = vmatprep.mubr.f32.mxu0 0.0
      %10046 = vmatmul.mubr.f32.gmra.mxu0 %v9836
      %v10047 = vpop.f32.mrf.mxu0
      %v10048 = vadd.f32 %v9758, %v10047
      %v10049 = vpop.f32.mrf.mxu0
      %10050 = vmatprep.mubr.f32.mxu0 0.0
      %10051 = vmatmul.mubr.f32.gmra.mxu0 %v9839
      %v10052 = vpop.f32.mrf.mxu0
      %v10053 = vadd.f32 %v9758, %v10052
      %v10054 = vpop.f32.mrf.mxu0
      %10055 = vmatprep.mubr.f32.mxu0 0.0
      %10056 = vmatmul.mubr.f32.gmra.mxu0 %v9842
      %v10057 = vpop.f32.mrf.mxu0
      %v10058 = vadd.f32 %v9758, %v10057
      %v10059 = vpop.f32.mrf.mxu0
      %10060 = vmatprep.mubr.f32.mxu0 0.0
      %10061 = vmatmul.mubr.f32.gmra.mxu0 %v9845
      %v10062 = vpop.f32.mrf.mxu0
      %v10063 = vadd.f32 %v9758, %v10062
      %v10064 = vpop.f32.mrf.mxu0
      %10065 = vmatprep.mubr.f32.mxu0 0.0
      %10066 = vmatmul.mubr.f32.gmra.mxu0 %v9848
      %v10067 = vpop.f32.mrf.mxu0
      %v10068 = vadd.f32 %v9758, %v10067
      %v10069 = vpop.f32.mrf.mxu0
      %10070 = vmatprep.mubr.f32.mxu0 0.0
      %10071 = vmatmul.mubr.f32.gmra.mxu0 %v9851
      %v10072 = vpop.f32.mrf.mxu0
      %v10073 = vadd.f32 %v9758, %v10072
      %v10074 = vpop.f32.mrf.mxu0
      %10075 = vmatprep.mubr.f32.mxu0 0.0
      %10076 = vmatmul.mubr.f32.gmra.mxu0 %v9854
      %v10077 = vpop.f32.mrf.mxu0
      %v10078 = vadd.f32 %v9758, %v10077
      %v10079 = vpop.f32.mrf.mxu0
      %10080 = vdwg.mxu0
      %v10081 = vmul.f32 %v9923, 0.5
      %v10082 = vmul.f32 %v9928, 0.5
      %v10083 = vmul.f32 %v9933, 0.5
      %v10084 = vmul.f32 %v9938, 0.5
      %v10085 = vmul.f32 %v9943, 0.5
      %v10086 = vmul.f32 %v9948, 0.5
      %v10087 = vmul.f32 %v9953, 0.5
      %v10088 = vmul.f32 %v9958, 0.5
      %v10089 = vmul.f32 %v9963, 0.5
      %v10090 = vmul.f32 %v9968, 0.5
      %v10091 = vmul.f32 %v9973, 0.5
      %v10092 = vmul.f32 %v9978, 0.5
      %v10093 = vmul.f32 %v9983, 0.5
      %v10094 = vmul.f32 %v9988, 0.5
      %v10095 = vmul.f32 %v9993, 0.5
      %v10096 = vmul.f32 %v9998, 0.5
      %v10097 = vmul.f32 %v10003, 0.5
      %v10098 = vmul.f32 %v10008, 0.5
      %v10099 = vmul.f32 %v10013, 0.5
      %v10100 = vmul.f32 %v10018, 0.5
      %v10101 = vmul.f32 %v10023, 0.5
      %v10102 = vmul.f32 %v10028, 0.5
      %v10103 = vmul.f32 %v10033, 0.5
      %v10104 = vmul.f32 %v10038, 0.5
      %v10105 = vmul.f32 %v10043, 0.5
      %v10106 = vmul.f32 %v10048, 0.5
      %v10107 = vmul.f32 %v10053, 0.5
      %v10108 = vmul.f32 %v10058, 0.5
      %v10109 = vmul.f32 %v10063, 0.5
      %v10110 = vmul.f32 %v10068, 0.5
      %v10111 = vmul.f32 %v10073, 0.5
      %v10112 = vmul.f32 %v10078, 0.5
      %v10113 = vmul.f32 %v9923, 0.70710677
      %v10114 = vmul.f32 %v9928, 0.70710677
      %v10115 = vmul.f32 %v9933, 0.70710677
      %v10116 = vmul.f32 %v9938, 0.70710677
      %v10117 = vmul.f32 %v9943, 0.70710677
      %v10118 = vmul.f32 %v9948, 0.70710677
      %v10119 = vmul.f32 %v9953, 0.70710677
      %v10120 = vmul.f32 %v9958, 0.70710677
      %v10121 = vmul.f32 %v9963, 0.70710677
      %v10122 = vmul.f32 %v9968, 0.70710677
      %v10123 = vmul.f32 %v9973, 0.70710677
      %v10124 = vmul.f32 %v9978, 0.70710677
      %v10125 = vmul.f32 %v9983, 0.70710677
      %v10126 = vmul.f32 %v9988, 0.70710677
      %v10127 = vmul.f32 %v9993, 0.70710677
      %v10128 = vmul.f32 %v9998, 0.70710677
      %v10129 = vmul.f32 %v10003, 0.70710677
      %v10130 = vmul.f32 %v10008, 0.70710677
      %v10131 = vmul.f32 %v10013, 0.70710677
      %v10132 = vmul.f32 %v10018, 0.70710677
      %v10133 = vmul.f32 %v10023, 0.70710677
      %v10134 = vmul.f32 %v10028, 0.70710677
      %v10135 = vmul.f32 %v10033, 0.70710677
      %v10136 = vmul.f32 %v10038, 0.70710677
      %v10137 = vmul.f32 %v10043, 0.70710677
      %v10138 = vmul.f32 %v10048, 0.70710677
      %v10139 = vmul.f32 %v10053, 0.70710677
      %v10140 = vmul.f32 %v10058, 0.70710677
      %v10141 = vmul.f32 %v10063, 0.70710677
      %v10142 = vmul.f32 %v10068, 0.70710677
      %v10143 = vmul.f32 %v10073, 0.70710677
      %v10144 = vmul.f32 %v10078, 0.70710677
      %v10145 = verf.f32.pop %v10113
      %v10146 = verf.f32.pop %v10114
      %v10147 = verf.f32.pop %v10115
      %v10148 = verf.f32.pop %v10116
      %v10149 = verf.f32.pop %v10117
      %v10150 = verf.f32.pop %v10118
      %v10151 = verf.f32.pop %v10119
      %v10152 = verf.f32.pop %v10120
      %v10153 = verf.f32.pop %v10121
      %v10154 = verf.f32.pop %v10122
      %v10155 = verf.f32.pop %v10123
      %v10156 = verf.f32.pop %v10124
      %v10157 = verf.f32.pop %v10125
      %v10158 = verf.f32.pop %v10126
      %v10159 = verf.f32.pop %v10127
      %v10160 = verf.f32.pop %v10128
      %v10161 = verf.f32.pop %v10129
      %v10162 = verf.f32.pop %v10130
      %v10163 = verf.f32.pop %v10131
      %v10164 = verf.f32.pop %v10132
      %v10165 = verf.f32.pop %v10133
      %v10166 = verf.f32.pop %v10134
      %v10167 = verf.f32.pop %v10135
      %v10168 = verf.f32.pop %v10136
      %v10169 = verf.f32.pop %v10137
      %v10170 = verf.f32.pop %v10138
      %v10171 = verf.f32.pop %v10139
      %v10172 = verf.f32.pop %v10140
      %v10173 = verf.f32.pop %v10141
      %v10174 = verf.f32.pop %v10142
      %v10175 = verf.f32.pop %v10143
      %v10176 = verf.f32.pop %v10144
      %v10177 = vadd.f32 %v10145, 1.0
      %v10178 = vadd.f32 %v10146, 1.0
      %v10179 = vadd.f32 %v10147, 1.0
      %v10180 = vadd.f32 %v10148, 1.0
      %v10181 = vadd.f32 %v10149, 1.0
      %v10182 = vadd.f32 %v10150, 1.0
      %v10183 = vadd.f32 %v10151, 1.0
      %v10184 = vadd.f32 %v10152, 1.0
      %v10185 = vadd.f32 %v10153, 1.0
      %v10186 = vadd.f32 %v10154, 1.0
      %v10187 = vadd.f32 %v10155, 1.0
      %v10188 = vadd.f32 %v10156, 1.0
      %v10189 = vadd.f32 %v10157, 1.0
      %v10190 = vadd.f32 %v10158, 1.0
      %v10191 = vadd.f32 %v10159, 1.0
      %v10192 = vadd.f32 %v10160, 1.0
      %v10193 = vadd.f32 %v10161, 1.0
      %v10194 = vadd.f32 %v10162, 1.0
      %v10195 = vadd.f32 %v10163, 1.0
      %v10196 = vadd.f32 %v10164, 1.0
      %v10197 = vadd.f32 %v10165, 1.0
      %v10198 = vadd.f32 %v10166, 1.0
      %v10199 = vadd.f32 %v10167, 1.0
      %v10200 = vadd.f32 %v10168, 1.0
      %v10201 = vadd.f32 %v10169, 1.0
      %v10202 = vadd.f32 %v10170, 1.0
      %v10203 = vadd.f32 %v10171, 1.0
      %v10204 = vadd.f32 %v10172, 1.0
      %v10205 = vadd.f32 %v10173, 1.0
      %v10206 = vadd.f32 %v10174, 1.0
      %v10207 = vadd.f32 %v10175, 1.0
      %v10208 = vadd.f32 %v10176, 1.0
      %v10209 = vmul.f32 %v10081, %v10177
      %v10210 = vmul.f32 %v10082, %v10178
      %v10211 = vmul.f32 %v10083, %v10179
      %v10212 = vmul.f32 %v10084, %v10180
      %v10213 = vmul.f32 %v10085, %v10181
      %v10214 = vmul.f32 %v10086, %v10182
      %v10215 = vmul.f32 %v10087, %v10183
      %v10216 = vmul.f32 %v10088, %v10184
      %v10217 = vmul.f32 %v10089, %v10185
      %v10218 = vmul.f32 %v10090, %v10186
      %v10219 = vmul.f32 %v10091, %v10187
      %v10220 = vmul.f32 %v10092, %v10188
      %v10221 = vmul.f32 %v10093, %v10189
      %v10222 = vmul.f32 %v10094, %v10190
      %v10223 = vmul.f32 %v10095, %v10191
      %v10224 = vmul.f32 %v10096, %v10192
      %v10225 = vmul.f32 %v10097, %v10193
      %v10226 = vmul.f32 %v10098, %v10194
      %v10227 = vmul.f32 %v10099, %v10195
      %v10228 = vmul.f32 %v10100, %v10196
      %v10229 = vmul.f32 %v10101, %v10197
      %v10230 = vmul.f32 %v10102, %v10198
      %v10231 = vmul.f32 %v10103, %v10199
      %v10232 = vmul.f32 %v10104, %v10200
      %v10233 = vmul.f32 %v10105, %v10201
      %v10234 = vmul.f32 %v10106, %v10202
      %v10235 = vmul.f32 %v10107, %v10203
      %v10236 = vmul.f32 %v10108, %v10204
      %v10237 = vmul.f32 %v10109, %v10205
      %v10238 = vmul.f32 %v10110, %v10206
      %v10239 = vmul.f32 %v10111, %v10207
      %v10240 = vmul.f32 %v10112, %v10208
      %v10241 = vld [vmem:[%s8] sm:$0xff]
      %v10242 = vld [vmem:[%s8 + $0x8] sm:$0xff]
      %v10243 = vld [vmem:[%s8 + $0x10] sm:$0xff]
      %v10244 = vld [vmem:[%s8 + $0x18] sm:$0xff]
      %vm10245 = vcmask 261120
      %v10247 = vsel %vm10245, %v10209, 0
      %v10250 = vsel %vm10245, %v10210, 0
      %v10253 = vsel %vm10245, %v10211, 0
      %v10256 = vsel %vm10245, %v10212, 0
      %v10259 = vsel %vm10245, %v10213, 0
      %v10262 = vsel %vm10245, %v10214, 0
      %v10265 = vsel %vm10245, %v10215, 0
      %v10268 = vsel %vm10245, %v10216, 0
      %v10271 = vsel %vm10245, %v10217, 0
      %v10274 = vsel %vm10245, %v10218, 0
      %v10277 = vsel %vm10245, %v10219, 0
      %v10280 = vsel %vm10245, %v10220, 0
      %v10283 = vsel %vm10245, %v10221, 0
      %v10286 = vsel %vm10245, %v10222, 0
      %v10289 = vsel %vm10245, %v10223, 0
      %v10292 = vsel %vm10245, %v10224, 0
      %v10295 = vsel %vm10245, %v10225, 0
      %v10298 = vsel %vm10245, %v10226, 0
      %v10301 = vsel %vm10245, %v10227, 0
      %v10304 = vsel %vm10245, %v10228, 0
      %v10307 = vsel %vm10245, %v10229, 0
      %v10310 = vsel %vm10245, %v10230, 0
      %v10313 = vsel %vm10245, %v10231, 0
      %v10316 = vsel %vm10245, %v10232, 0
      %v10319 = vsel %vm10245, %v10233, 0
      %v10322 = vsel %vm10245, %v10234, 0
      %v10325 = vsel %vm10245, %v10235, 0
      %v10328 = vsel %vm10245, %v10236, 0
      %v10331 = vsel %vm10245, %v10237, 0
      %v10334 = vsel %vm10245, %v10238, 0
      %v10337 = vsel %vm10245, %v10239, 0
      %v10340 = vsel %vm10245, %v10240, 0
      %10342 = vmatprep.subr.mxu0 0.0
      %10343 = vmatpush1.msra.mxu0 0.0
      %10344 = vmatprep.subr.mxu0 0.0
      %10345 = vmatpush1.msra.mxu0 0.0
      %10346 = vmatprep.subr.mxu0 0.0
      %10347 = vmatpush1.msra.mxu0 0.0
      %10348 = vmatprep.subr.mxu0 0.0
      %10349 = vmatpush1.msra.mxu0 0.0
      %10350 = vmatprep.subr.mxu0 0.0
      %10351 = vmatpush1.msra.mxu0 0.0
      %10352 = vmatprep.subr.mxu0 0.0
      %10353 = vmatpush1.msra.mxu0 0.0
      %10354 = vmatprep.subr.mxu0 0.0
      %10355 = vmatpush1.msra.mxu0 0.0
      %10356 = vmatprep.subr.mxu0 0.0
      %10357 = vmatpush1.msra.mxu0 0.0
      %10358 = vmatprep.subr.mxu0 0.0
      %10359 = vmatpush1.msra.mxu0 0.0
      %10360 = vmatprep.subr.mxu0 0.0
      %10361 = vmatpush1.msra.mxu0 0.0
      %10362 = vmatprep.subr.mxu0 0.0
      %10363 = vmatpush1.msra.mxu0 0.0
      %10364 = vmatprep.subr.mxu0 0.0
      %10365 = vmatpush1.msra.mxu0 0.0
      %10366 = vmatprep.subr.mxu0 0.0
      %10367 = vmatpush1.msra.mxu0 %v10244
      %10368 = vmatprep.subr.mxu0 0.0
      %10369 = vmatpush1.msra.mxu0 %v10243
      %10370 = vmatprep.subr.mxu0 0.0
      %10371 = vmatpush1.msra.mxu0 %v10242
      %10372 = vmatprep.subr.mxu0 0.0
      %10373 = vmatpush1.msra.mxu0 %v10241
      %10374 = vmatprep.subr.mxu0 0.0
      %10375 = vmatpush2.msra.mxu0 0.0
      %10376 = vmatprep.subr.mxu0 0.0
      %10377 = vmatpush2.msra.mxu0 0.0
      %10378 = vmatprep.subr.mxu0 0.0
      %10379 = vmatpush2.msra.mxu0 0.0
      %10380 = vmatprep.subr.mxu0 0.0
      %10381 = vmatpush2.msra.mxu0 0.0
      %10382 = vmatprep.subr.mxu0 0.0
      %10383 = vmatpush2.msra.mxu0 0.0
      %10384 = vmatprep.subr.mxu0 0.0
      %10385 = vmatpush2.msra.mxu0 0.0
      %10386 = vmatprep.subr.mxu0 0.0
      %10387 = vmatpush2.msra.mxu0 0.0
      %10388 = vmatprep.subr.mxu0 0.0
      %10389 = vmatpush2.msra.mxu0 0.0
      %10390 = vmatprep.subr.mxu0 0.0
      %10391 = vmatpush2.msra.mxu0 0.0
      %10392 = vmatprep.subr.mxu0 0.0
      %10393 = vmatpush2.msra.mxu0 0.0
      %10394 = vmatprep.subr.mxu0 0.0
      %10395 = vmatpush2.msra.mxu0 0.0
      %10396 = vmatprep.subr.mxu0 0.0
      %10397 = vmatpush2.msra.mxu0 0.0
      %10398 = vmatprep.subr.mxu0 0.0
      %10399 = vmatpush2.msra.mxu0 0.0
      %10400 = vmatprep.subr.mxu0 0.0
      %10401 = vmatpush2.msra.mxu0 0.0
      %10402 = vmatprep.subr.mxu0 0.0
      %10403 = vmatpush2.msra.mxu0 0.0
      %10404 = vmatprep.subr.mxu0 0.0
      %10405 = vmatpush2.msra.mxu0 0.0
      %10406 = vmatprep.mubr.f32.mxu0 0.0
      %10407 = vmatmul.mubr.f32.gmra.mxu0 %v10247
      %v10408 = vpop.f32.mrf.mxu0
      %v10409 = vadd.f32 0.0, %v10408
      %v10410 = vpop.f32.mrf.mxu0
      %10411 = vmatprep.mubr.f32.mxu0 0.0
      %10412 = vmatmul.mubr.f32.gmra.mxu0 %v10250
      %v10413 = vpop.f32.mrf.mxu0
      %v10414 = vadd.f32 0.0, %v10413
      %v10415 = vpop.f32.mrf.mxu0
      %10416 = vmatprep.mubr.f32.mxu0 0.0
      %10417 = vmatmul.mubr.f32.gmra.mxu0 %v10253
      %v10418 = vpop.f32.mrf.mxu0
      %v10419 = vadd.f32 0.0, %v10418
      %v10420 = vpop.f32.mrf.mxu0
      %10421 = vmatprep.mubr.f32.mxu0 0.0
      %10422 = vmatmul.mubr.f32.gmra.mxu0 %v10256
      %v10423 = vpop.f32.mrf.mxu0
      %v10424 = vadd.f32 0.0, %v10423
      %v10425 = vpop.f32.mrf.mxu0
      %10426 = vmatprep.mubr.f32.mxu0 0.0
      %10427 = vmatmul.mubr.f32.gmra.mxu0 %v10259
      %v10428 = vpop.f32.mrf.mxu0
      %v10429 = vadd.f32 0.0, %v10428
      %v10430 = vpop.f32.mrf.mxu0
      %10431 = vmatprep.mubr.f32.mxu0 0.0
      %10432 = vmatmul.mubr.f32.gmra.mxu0 %v10262
      %v10433 = vpop.f32.mrf.mxu0
      %v10434 = vadd.f32 0.0, %v10433
      %v10435 = vpop.f32.mrf.mxu0
      %10436 = vmatprep.mubr.f32.mxu0 0.0
      %10437 = vmatmul.mubr.f32.gmra.mxu0 %v10265
      %v10438 = vpop.f32.mrf.mxu0
      %v10439 = vadd.f32 0.0, %v10438
      %v10440 = vpop.f32.mrf.mxu0
      %10441 = vmatprep.mubr.f32.mxu0 0.0
      %10442 = vmatmul.mubr.f32.gmra.mxu0 %v10268
      %v10443 = vpop.f32.mrf.mxu0
      %v10444 = vadd.f32 0.0, %v10443
      %v10445 = vpop.f32.mrf.mxu0
      %10446 = vmatprep.mubr.f32.mxu0 0.0
      %10447 = vmatmul.mubr.f32.gmra.mxu0 %v10271
      %v10448 = vpop.f32.mrf.mxu0
      %v10449 = vadd.f32 0.0, %v10448
      %v10450 = vpop.f32.mrf.mxu0
      %10451 = vmatprep.mubr.f32.mxu0 0.0
      %10452 = vmatmul.mubr.f32.gmra.mxu0 %v10274
      %v10453 = vpop.f32.mrf.mxu0
      %v10454 = vadd.f32 0.0, %v10453
      %v10455 = vpop.f32.mrf.mxu0
      %10456 = vmatprep.mubr.f32.mxu0 0.0
      %10457 = vmatmul.mubr.f32.gmra.mxu0 %v10277
      %v10458 = vpop.f32.mrf.mxu0
      %v10459 = vadd.f32 0.0, %v10458
      %v10460 = vpop.f32.mrf.mxu0
      %10461 = vmatprep.mubr.f32.mxu0 0.0
      %10462 = vmatmul.mubr.f32.gmra.mxu0 %v10280
      %v10463 = vpop.f32.mrf.mxu0
      %v10464 = vadd.f32 0.0, %v10463
      %v10465 = vpop.f32.mrf.mxu0
      %10466 = vmatprep.mubr.f32.mxu0 0.0
      %10467 = vmatmul.mubr.f32.gmra.mxu0 %v10283
      %v10468 = vpop.f32.mrf.mxu0
      %v10469 = vadd.f32 0.0, %v10468
      %v10470 = vpop.f32.mrf.mxu0
      %10471 = vmatprep.mubr.f32.mxu0 0.0
      %10472 = vmatmul.mubr.f32.gmra.mxu0 %v10286
      %v10473 = vpop.f32.mrf.mxu0
      %v10474 = vadd.f32 0.0, %v10473
      %v10475 = vpop.f32.mrf.mxu0
      %10476 = vmatprep.mubr.f32.mxu0 0.0
      %10477 = vmatmul.mubr.f32.gmra.mxu0 %v10289
      %v10478 = vpop.f32.mrf.mxu0
      %v10479 = vadd.f32 0.0, %v10478
      %v10480 = vpop.f32.mrf.mxu0
      %10481 = vmatprep.mubr.f32.mxu0 0.0
      %10482 = vmatmul.mubr.f32.gmra.mxu0 %v10292
      %v10483 = vpop.f32.mrf.mxu0
      %v10484 = vadd.f32 0.0, %v10483
      %v10485 = vpop.f32.mrf.mxu0
      %10486 = vmatprep.mubr.f32.mxu0 0.0
      %10487 = vmatmul.mubr.f32.gmra.mxu0 %v10295
      %v10488 = vpop.f32.mrf.mxu0
      %v10489 = vadd.f32 0.0, %v10488
      %v10490 = vpop.f32.mrf.mxu0
      %10491 = vmatprep.mubr.f32.mxu0 0.0
      %10492 = vmatmul.mubr.f32.gmra.mxu0 %v10298
      %v10493 = vpop.f32.mrf.mxu0
      %v10494 = vadd.f32 0.0, %v10493
      %v10495 = vpop.f32.mrf.mxu0
      %10496 = vmatprep.mubr.f32.mxu0 0.0
      %10497 = vmatmul.mubr.f32.gmra.mxu0 %v10301
      %v10498 = vpop.f32.mrf.mxu0
      %v10499 = vadd.f32 0.0, %v10498
      %v10500 = vpop.f32.mrf.mxu0
      %10501 = vmatprep.mubr.f32.mxu0 0.0
      %10502 = vmatmul.mubr.f32.gmra.mxu0 %v10304
      %v10503 = vpop.f32.mrf.mxu0
      %v10504 = vadd.f32 0.0, %v10503
      %v10505 = vpop.f32.mrf.mxu0
      %10506 = vmatprep.mubr.f32.mxu0 0.0
      %10507 = vmatmul.mubr.f32.gmra.mxu0 %v10307
      %v10508 = vpop.f32.mrf.mxu0
      %v10509 = vadd.f32 0.0, %v10508
      %v10510 = vpop.f32.mrf.mxu0
      %10511 = vmatprep.mubr.f32.mxu0 0.0
      %10512 = vmatmul.mubr.f32.gmra.mxu0 %v10310
      %v10513 = vpop.f32.mrf.mxu0
      %v10514 = vadd.f32 0.0, %v10513
      %v10515 = vpop.f32.mrf.mxu0
      %10516 = vmatprep.mubr.f32.mxu0 0.0
      %10517 = vmatmul.mubr.f32.gmra.mxu0 %v10313
      %v10518 = vpop.f32.mrf.mxu0
      %v10519 = vadd.f32 0.0, %v10518
      %v10520 = vpop.f32.mrf.mxu0
      %10521 = vmatprep.mubr.f32.mxu0 0.0
      %10522 = vmatmul.mubr.f32.gmra.mxu0 %v10316
      %v10523 = vpop.f32.mrf.mxu0
      %v10524 = vadd.f32 0.0, %v10523
      %v10525 = vpop.f32.mrf.mxu0
      %10526 = vmatprep.mubr.f32.mxu0 0.0
      %10527 = vmatmul.mubr.f32.gmra.mxu0 %v10319
      %v10528 = vpop.f32.mrf.mxu0
      %v10529 = vadd.f32 0.0, %v10528
      %v10530 = vpop.f32.mrf.mxu0
      %10531 = vmatprep.mubr.f32.mxu0 0.0
      %10532 = vmatmul.mubr.f32.gmra.mxu0 %v10322
      %v10533 = vpop.f32.mrf.mxu0
      %v10534 = vadd.f32 0.0, %v10533
      %v10535 = vpop.f32.mrf.mxu0
      %10536 = vmatprep.mubr.f32.mxu0 0.0
      %10537 = vmatmul.mubr.f32.gmra.mxu0 %v10325
      %v10538 = vpop.f32.mrf.mxu0
      %v10539 = vadd.f32 0.0, %v10538
      %v10540 = vpop.f32.mrf.mxu0
      %10541 = vmatprep.mubr.f32.mxu0 0.0
      %10542 = vmatmul.mubr.f32.gmra.mxu0 %v10328
      %v10543 = vpop.f32.mrf.mxu0
      %v10544 = vadd.f32 0.0, %v10543
      %v10545 = vpop.f32.mrf.mxu0
      %10546 = vmatprep.mubr.f32.mxu0 0.0
      %10547 = vmatmul.mubr.f32.gmra.mxu0 %v10331
      %v10548 = vpop.f32.mrf.mxu0
      %v10549 = vadd.f32 0.0, %v10548
      %v10550 = vpop.f32.mrf.mxu0
      %10551 = vmatprep.mubr.f32.mxu0 0.0
      %10552 = vmatmul.mubr.f32.gmra.mxu0 %v10334
      %v10553 = vpop.f32.mrf.mxu0
      %v10554 = vadd.f32 0.0, %v10553
      %v10555 = vpop.f32.mrf.mxu0
      %10556 = vmatprep.mubr.f32.mxu0 0.0
      %10557 = vmatmul.mubr.f32.gmra.mxu0 %v10337
      %v10558 = vpop.f32.mrf.mxu0
      %v10559 = vadd.f32 0.0, %v10558
      %v10560 = vpop.f32.mrf.mxu0
      %10561 = vmatprep.mubr.f32.mxu0 0.0
      %10562 = vmatmul.mubr.f32.gmra.mxu0 %v10340
      %v10563 = vpop.f32.mrf.mxu0
      %v10564 = vadd.f32 0.0, %v10563
      %v10565 = vpop.f32.mrf.mxu0
      %10566 = vdwg.mxu0
      %v10567 = vadd.f32 %v9401, %v10409
      %v10568 = vadd.f32 %v9402, %v10414
      %v10569 = vadd.f32 %v9403, %v10419
      %v10570 = vadd.f32 %v9404, %v10424
      %v10571 = vadd.f32 %v9405, %v10429
      %v10572 = vadd.f32 %v9406, %v10434
      %v10573 = vadd.f32 %v9407, %v10439
      %v10574 = vadd.f32 %v9408, %v10444
      %v10575 = vadd.f32 %v9409, %v10449
      %v10576 = vadd.f32 %v9410, %v10454
      %v10577 = vadd.f32 %v9411, %v10459
      %v10578 = vadd.f32 %v9412, %v10464
      %v10579 = vadd.f32 %v9413, %v10469
      %v10580 = vadd.f32 %v9414, %v10474
      %v10581 = vadd.f32 %v9415, %v10479
      %v10582 = vadd.f32 %v9416, %v10484
      %v10583 = vadd.f32 %v9417, %v10489
      %v10584 = vadd.f32 %v9418, %v10494
      %v10585 = vadd.f32 %v9419, %v10499
      %v10586 = vadd.f32 %v9420, %v10504
      %v10587 = vadd.f32 %v9421, %v10509
      %v10588 = vadd.f32 %v9422, %v10514
      %v10589 = vadd.f32 %v9423, %v10519
      %v10590 = vadd.f32 %v9424, %v10524
      %v10591 = vadd.f32 %v9425, %v10529
      %v10592 = vadd.f32 %v9426, %v10534
      %v10593 = vadd.f32 %v9427, %v10539
      %v10594 = vadd.f32 %v9428, %v10544
      %v10595 = vadd.f32 %v9429, %v10549
      %v10596 = vadd.f32 %v9430, %v10554
      %v10597 = vadd.f32 %v9431, %v10559
      %v10598 = vadd.f32 %v9432, %v10564
      %v10599 = vld [vmem:[%s9] sm:$0x1]
      %v10601 = vlaneseq
      %v10602 = vshrl.u32 %v10601, 7
      %v10603 = vsub.s32 0, %v10602
      %v10604 = vrot.slane %v10599, %v10603
      %v10606 = vadd.f32 %v10567, %v10604
      %v10607 = vadd.f32 %v10568, %v10604
      %v10608 = vadd.f32 %v10569, %v10604
      %v10609 = vadd.f32 %v10570, %v10604
      %v10610 = vadd.f32 %v10571, %v10604
      %v10611 = vadd.f32 %v10572, %v10604
      %v10612 = vadd.f32 %v10573, %v10604
      %v10613 = vadd.f32 %v10574, %v10604
      %v10614 = vadd.f32 %v10575, %v10604
      %v10615 = vadd.f32 %v10576, %v10604
      %v10616 = vadd.f32 %v10577, %v10604
      %v10617 = vadd.f32 %v10578, %v10604
      %v10618 = vadd.f32 %v10579, %v10604
      %v10619 = vadd.f32 %v10580, %v10604
      %v10620 = vadd.f32 %v10581, %v10604
      %v10621 = vadd.f32 %v10582, %v10604
      %v10622 = vadd.f32 %v10583, %v10604
      %v10623 = vadd.f32 %v10584, %v10604
      %v10624 = vadd.f32 %v10585, %v10604
      %v10625 = vadd.f32 %v10586, %v10604
      %v10626 = vadd.f32 %v10587, %v10604
      %v10627 = vadd.f32 %v10588, %v10604
      %v10628 = vadd.f32 %v10589, %v10604
      %v10629 = vadd.f32 %v10590, %v10604
      %v10630 = vadd.f32 %v10591, %v10604
      %v10631 = vadd.f32 %v10592, %v10604
      %v10632 = vadd.f32 %v10593, %v10604
      %v10633 = vadd.f32 %v10594, %v10604
      %v10634 = vadd.f32 %v10595, %v10604
      %v10635 = vadd.f32 %v10596, %v10604
      %v10636 = vadd.f32 %v10597, %v10604
      %v10637 = vadd.f32 %v10598, %v10604
      %10638 = vst.msk [vmem:[%s359] sm:$0xff] %vm394, %v10606
      %10639 = vst.msk [vmem:[%s359 + $0x8] sm:$0xff] %vm394, %v10607
      %10640 = vst.msk [vmem:[%s359 + $0x10] sm:$0xff] %vm394, %v10608
      %10641 = vst.msk [vmem:[%s359 + $0x18] sm:$0xff] %vm394, %v10609
      %10642 = vst.msk [vmem:[%s359 + $0x20] sm:$0xff] %vm394, %v10610
      %10643 = vst.msk [vmem:[%s359 + $0x28] sm:$0xff] %vm394, %v10611
      %10644 = vst.msk [vmem:[%s359 + $0x30] sm:$0xff] %vm394, %v10612
      %10645 = vst.msk [vmem:[%s359 + $0x38] sm:$0xff] %vm394, %v10613
      %10646 = vst.msk [vmem:[%s359 + $0x40] sm:$0xff] %vm394, %v10614
      %10647 = vst.msk [vmem:[%s359 + $0x48] sm:$0xff] %vm394, %v10615
      %10648 = vst.msk [vmem:[%s359 + $0x50] sm:$0xff] %vm394, %v10616
      %10649 = vst.msk [vmem:[%s359 + $0x58] sm:$0xff] %vm394, %v10617
      %10650 = vst.msk [vmem:[%s359 + $0x60] sm:$0xff] %vm394, %v10618
      %10651 = vst.msk [vmem:[%s359 + $0x68] sm:$0xff] %vm394, %v10619
      %10652 = vst.msk [vmem:[%s359 + $0x70] sm:$0xff] %vm394, %v10620
      %10653 = vst.msk [vmem:[%s359 + $0x78] sm:$0xff] %vm394, %v10621
      %10654 = vst.msk [vmem:[%s359 + $0x80] sm:$0xff] %vm394, %v10622
      %10655 = vst.msk [vmem:[%s359 + $0x88] sm:$0xff] %vm394, %v10623
      %10656 = vst.msk [vmem:[%s359 + $0x90] sm:$0xff] %vm394, %v10624
      %10657 = vst.msk [vmem:[%s359 + $0x98] sm:$0xff] %vm394, %v10625
      %10658 = vst.msk [vmem:[%s359 + $0xa0] sm:$0xff] %vm394, %v10626
      %10659 = vst.msk [vmem:[%s359 + $0xa8] sm:$0xff] %vm394, %v10627
      %10660 = vst.msk [vmem:[%s359 + $0xb0] sm:$0xff] %vm394, %v10628
      %10661 = vst.msk [vmem:[%s359 + $0xb8] sm:$0xff] %vm394, %v10629
      %10662 = vst.msk [vmem:[%s359 + $0xc0] sm:$0xff] %vm394, %v10630
      %10663 = vst.msk [vmem:[%s359 + $0xc8] sm:$0xff] %vm394, %v10631
      %10664 = vst.msk [vmem:[%s359 + $0xd0] sm:$0xff] %vm394, %v10632
      %10665 = vst.msk [vmem:[%s359 + $0xd8] sm:$0xff] %vm394, %v10633
      %10666 = vst.msk [vmem:[%s359 + $0xe0] sm:$0xff] %vm394, %v10634
      %10667 = vst.msk [vmem:[%s359 + $0xe8] sm:$0xff] %vm394, %v10635
      %10668 = vst.msk [vmem:[%s359 + $0xf0] sm:$0xff] %vm394, %v10636
      %10669 = vst.msk [vmem:[%s359 + $0xf8] sm:$0xff] %vm394, %v10637
      %p10670 = scmp.lt.s32.totalorder %s21, 1
      %s10671 = scalar_select %p10670, %s21, 1
      %s10672 = smul.addr %s10671, 32
      %s10673 = smul.addr %s10672, 8
      %s10674 = scalar_lea.vmem %s10, %s10673
      // Predicated region
      $region61: #{transformer_block.1} parent=59 // pred_check
        %p10675 = pneg %p254
      $region62: #{transformer_block.1} parent=59 // pred_check_branch
        %10677 = sbr.rel (%p10675) target = $region64
      $region63: #{transformer_block.1} parent=59 // pred_region
        _
      $region64: #{transformer_block.1} parent=59 // pred_fallthru
        _
    $region60: #{transformer_block.1} parent=5 // pred_fallthru
      _
    %p10678 = scmp.le.s32.totalorder 2, %s16
    // Predicated region
    $region65: #{transformer_block.1} parent=5 // pred_check
      %p10679 = pneg %p10678
    $region66: #{transformer_block.1} parent=5 // pred_check_branch
      %10681 = sbr.rel (%p10679) target = $region68
    $region67: #{transformer_block.1} parent=5 // pred_region
      %s10682 = ssub.s32 %s16, 2
      // Predicated region
      $region69: #{transformer_block.1} parent=67 // pred_check
        %p10683 = pneg %p260
      $region70: #{transformer_block.1} parent=67 // pred_check_branch
        %10685 = sbr.rel (%p10683) target = $region72
      $region71: #{transformer_block.1} parent=67 // pred_region
        %p10686 = scmp.lt.s32.totalorder %s22, 1
        %s10687 = scalar_select %p10686, %s22, 1
        %s10688 = smul.addr %s10687, 32
        %s10689 = smul.addr %s10688, 8
        %s10690 = scalar_lea.vmem %s10, %s10689
      $region72: #{transformer_block.1} parent=67 // pred_fallthru
        _
    $region68: #{transformer_block.1} parent=5 // pred_fallthru
      _
  $region6: #{transformer_block.1} parent=0 // loop_footer
    %s20 = sadd.s32 1, %s16
  $region7: #{transformer_block.1} parent=0 // loop_footer_branch
    %15 = sbr.rel target = $region3
  $region8: #{transformer_block.1} parent=0 // loop_exit
    _

</llo_original>
